<compile_context>
chip_gen: v7x
topology: tpu7x:2x2x1
jax: 0.10.0
libtpu: 0.0.40
codegen_flags: <defaults>
</compile_context>

<pallas_src>
import numpy as np
import jax
import jax.numpy as jnp
from jax import lax
from jax.experimental import pallas as pl
from jax.experimental.pallas import tpu as pltpu


_PLANE_ROWS = 81            # one parity plane of the padded 18x18 map: 9*9
_N_ROWS = 4 * _PLANE_ROWS   # 324 rows: (plane q, 9x9 flattened position)
_SCRATCH_ROWS = 336         # + spare zero rows for the conv2 slice overhang


def _build_valid_mask():
    """1.0 on valid plane positions (the 14x14 data), 0.0 on the zero-pad ring."""
    v = np.zeros((9, 9), np.float32)
    v[1:8, 1:8] = 1.0
    return np.tile(v.reshape(-1), 4).reshape(_N_ROWS, 1)


_VALID_MASK = _build_valid_mask()


# --------------------------------------------------------------------------- #
# Fused conv1 + ReLU + pool1 -> conv2 + ReLU + pool2 (one image per grid step) #
# --------------------------------------------------------------------------- #
def _fused_cnn_kernel(p1_ref, w1_ref, b1_ref, mask_ref, w2c_ref, b2c_ref,
                      o_ref, a1pp_ref):
    """p1_ref : (1, 4, 324, 25) conv1 im2col patches; dim1 = pool-1 parity
                (rh,rw), dim2 = (parity plane q, 9x9 padded position), dim3 =
                5x5 patch taps (kh,kw).
       w1_ref : (25, 16)  conv1 weights, rows ordered (kh,kw)
       b1_ref : (1, 16)   conv1 bias
       mask_ref:(324, 1)  zero-pad-ring mask for the conv2 input
       w2c_ref: (36,16,128) conv2 weights for tap-sum (a,b)=a*6+b with the four
                pool-2 parities packed along N=128
       b2c_ref: (1, 128)  conv2 bias tiled 4x
       o_ref  : (1, 63, 128) pooled conv2 output; row = i2*9+j2 (j2<7 valid),
                lanes [0:32] hold the pooled result after the lane-roll max
       a1pp_ref: (336, 16) VMEM scratch: padded, parity-split conv1 output."""
    # ---- conv1 (merged im2col matmuls) + bias + ReLU + 2x2 max-pool ---------
    w1 = w1_ref[...]
    z = jnp.dot(p1_ref[0, 0], w1, preferred_element_type=jnp.float32)
    for r in range(1, 4):
        z = jnp.maximum(
            z, jnp.dot(p1_ref[0, r], w1, preferred_element_type=jnp.float32))
    # relu(max_r(conv) + b) == max_r(relu(conv + b)); mask zeroes the pad ring.
    a1 = jnp.maximum(z + b1_ref[...], 0.0) * mask_ref[...]          # (324, 16)

    a1pp_ref[...] = jnp.zeros_like(a1pp_ref)
    a1pp_ref[0:_N_ROWS, :] = a1

    # ---- conv2: 36 shared-LHS taps, all 4 pool-2 parities packed on N=128 ---
    acc = jnp.zeros((63, 128), jnp.float32)
    for a in range(6):
        for b in range(6):
            q = (a % 2) * 2 + (b % 2)
            off = q * _PLANE_ROWS + (a // 2) * 9 + (b // 2)
            lhs = a1pp_ref[off:off + 63, :]                         # (63, 16)
            acc = acc + jnp.dot(lhs, w2c_ref[a * 6 + b],
                                preferred_element_type=jnp.float32)

    # 2x2 max-pool == max over the four 32-lane parity blocks (XLU lane rolls).
    m = jnp.maximum(acc, pltpu.roll(acc, shift=32, axis=1))
    m = jnp.maximum(m, pltpu.roll(m, shift=64, axis=1))
    o_ref[0] = jnp.maximum(m + b2c_ref[...], 0.0).astype(o_ref.dtype)


def fused_conv_stack(p1, w1mat, b1row, mask, w2c, b2row):
    B = p1.shape[0]
    flops = B * (2 * 4 * _N_ROWS * 25 * 16 + 2 * 36 * 63 * 16 * 128)
    bytes_accessed = 4 * (p1.size + w1mat.size + b1row.size + mask.size
                          + w2c.size + b2row.size + B * 63 * 128)
    return pl.pallas_call(
        _fused_cnn_kernel,
        out_shape=jax.ShapeDtypeStruct((B, 63, 128), jnp.float32),
        grid=(B,),
        in_specs=[
            pl.BlockSpec((1, 4, _N_ROWS, 25), lambda bb: (bb, 0, 0, 0)),
            pl.BlockSpec((25, 16), lambda bb: (0, 0)),
            pl.BlockSpec((1, 16), lambda bb: (0, 0)),
            pl.BlockSpec((_N_ROWS, 1), lambda bb: (0, 0)),
            pl.BlockSpec((36, 16, 128), lambda bb: (0, 0, 0)),
            pl.BlockSpec((1, 128), lambda bb: (0, 0)),
        ],
        out_specs=pl.BlockSpec((1, 63, 128), lambda bb: (bb, 0, 0)),
        scratch_shapes=[pltpu.VMEM((_SCRATCH_ROWS, 16), jnp.float32)],
        compiler_params=pltpu.CompilerParams(
            dimension_semantics=("parallel",)),
        cost_estimate=pl.CostEstimate(flops=flops, transcendentals=0,
                                      bytes_accessed=bytes_accessed),
    )(p1, w1mat, b1row, mask, w2c, b2row)


# --------------------------------------------------------------------------- #
# Linear layer (N zero-padded from 10 to 128 lanes)                            #
# --------------------------------------------------------------------------- #
def _linear_kernel(x_ref, w_ref, b_ref, o_ref):
    o_ref[...] = (jnp.dot(x_ref[...], w_ref[...],
                          preferred_element_type=jnp.float32)
                  + b_ref[...]).astype(o_ref.dtype)


def linear_padded(x, w_pad, b_pad):
    B, F = x.shape
    Np = w_pad.shape[1]
    return pl.pallas_call(
        _linear_kernel,
        out_shape=jax.ShapeDtypeStruct((B, Np), jnp.float32),
        cost_estimate=pl.CostEstimate(
            flops=2 * B * F * Np, transcendentals=0,
            bytes_accessed=4 * (x.size + w_pad.size + b_pad.size + B * Np)),
    )(x, w_pad, b_pad)


# --------------------------------------------------------------------------- #
# XLA-side layout plumbing (tiny raw-input im2col, weight packing, reorders)   #
# --------------------------------------------------------------------------- #
def _conv1_patches(x_nchw):
    """Conv1 im2col on the raw padded input, rows pre-ordered as
    (pool-1 parity, parity plane q, 9x9 padded position of the conv2 input)."""
    B = x_nchw.shape[0]
    xp = jnp.pad(x_nchw[:, 0], ((0, 0), (2, 2), (2, 2)))             # (B,32,32)
    cols = jnp.stack([xp[:, kh:kh + 28, kw:kw + 28]
                      for kh in range(5) for kw in range(5)], axis=-1)  # (B,28,28,25)
    # output row index 0..27 decomposes as 4*r' + 2*qh + rh (same for columns)
    t = cols.reshape(B, 7, 2, 2, 7, 2, 2, 25)      # b, r', qh, rh, c', qw, rw, k
    t = jnp.transpose(t, (0, 3, 6, 2, 5, 1, 4, 7))  # b, rh, rw, qh, qw, r', c', k
    t = t.reshape(B, 4, 4, 7, 7, 25)
    t = jnp.pad(t, ((0, 0), (0, 0), (0, 0), (1, 1), (1, 1), (0, 0)))  # 7x7 -> 9x9
    return t.reshape(B, 4, _N_ROWS, 25)


def _build_w2c(w2_hwio):
    """(5,5,16,32) HWIO -> (36,16,128): index a*6+b over tap sums
    (a,b) = (rh2+kh, rw2+kw); the 4 pool-2 parities packed side by side on N."""
    zero = jnp.zeros((16, 32), jnp.float32)
    blocks = []
    for a in range(6):
        for b in range(6):
            par = []
            for p in range(4):
                rh2, rw2 = p // 2, p % 2
                kh, kw = a - rh2, b - rw2
                par.append(w2_hwio[kh, kw]
                           if 0 <= kh <= 4 and 0 <= kw <= 4 else zero)
            blocks.append(jnp.concatenate(par, axis=-1))             # (16,128)
    return jnp.stack(blocks, axis=0)                                 # (36,16,128)


def init_params(key):
    """Deterministic synthetic parameters (PyTorch layouts, then converted)."""
    ks = jax.random.split(key, 6)
    w1_pt = jax.random.normal(ks[0], (16, 1, 5, 5), jnp.float32) * 0.1   # OIHW
    b1 = jax.random.normal(ks[1], (16,), jnp.float32) * 0.1
    w2_pt = jax.random.normal(ks[2], (32, 16, 5, 5), jnp.float32) * 0.05
    b2 = jax.random.normal(ks[3], (32,), jnp.float32) * 0.05
    w_out = jax.random.normal(ks[4], (10, 32 * 7 * 7), jnp.float32) * 0.02
    b_out = jax.random.normal(ks[5], (10,), jnp.float32) * 0.02

    w1_hwio = jnp.transpose(w1_pt, (2, 3, 1, 0))        # (5,5,1,16)
    w2_hwio = jnp.transpose(w2_pt, (2, 3, 1, 0))        # (5,5,16,32)

    wlin_pad = jnp.zeros((32 * 7 * 7, 128), jnp.float32).at[:, :10].set(w_out.T)
    blin_pad = jnp.zeros((1, 128), jnp.float32).at[0, :10].set(b_out)

    return {
        "w1mat": w1_hwio.reshape(25, 16),
        "b1row": b1.reshape(1, 16),
        "w2c": _build_w2c(w2_hwio),                     # (36,16,128)
        "b2row": jnp.tile(b2.reshape(1, 32), (1, 4)),   # (1,128)
        "wlin_pad": wlin_pad,
        "blin_pad": blin_pad,
        # PyTorch-layout copies kept for the pure-JAX reference
        "w1_pt": w1_pt, "b1": b1, "w2_pt": w2_pt, "b2": b2,
        "w_out": w_out, "b_out": b_out,
    }


@jax.jit
def cnn_forward(params, x_nchw):
    """Mirrors cnn.forward: returns (logits, flattened_features)."""
    B = x_nchw.shape[0]
    p1 = _conv1_patches(x_nchw)                                   # (B,4,324,25)
    mask = jnp.asarray(_VALID_MASK)                               # (324,1)

    y = fused_conv_stack(p1, params["w1mat"], params["b1row"], mask,
                         params["w2c"], params["b2row"])          # (B,63,128)

    # valid pooled conv2 data: lanes [0:32], rows i2*9+j2 with j2 < 7
    p2 = y[:, :, :32].reshape(B, 7, 9, 32)[:, :, :7, :]           # (B,7,7,32)
    feats = jnp.transpose(p2, (0, 3, 1, 2)).reshape(B, 32 * 7 * 7)  # torch order

    logits = linear_padded(feats, params["wlin_pad"],
                           params["blin_pad"])[:, :10]
    return logits, feats


def reference_forward(params, x_nchw):
    """Pure-JAX (XLA) reference replicating the PyTorch forward."""
    def block(x, w_pt, b):
        y = lax.conv_general_dilated(
            x, w_pt, (1, 1), ((2, 2), (2, 2)),
            dimension_numbers=("NCHW", "OIHW", "NCHW"),
            precision=lax.Precision.HIGHEST)
        y = jnp.maximum(y + b.reshape(1, -1, 1, 1), 0.0)
        return lax.reduce_window(y, -jnp.inf, lax.max,
                                 (1, 1, 2, 2), (1, 1, 2, 2), "VALID")
    a = block(x_nchw, params["w1_pt"], params["b1"])
    a = block(a, params["w2_pt"], params["b2"])
    feats = a.reshape(a.shape[0], -1)
    logits = jnp.dot(feats, params["w_out"].T,
                     precision=lax.Precision.HIGHEST) + params["b_out"]
    return logits, feats


if __name__ == "__main__":
    key = jax.random.PRNGKey(0)
    kp, kx = jax.random.split(key)
    params = init_params(kp)
    # 28x28 input is required by Linear(32*7*7, 10); batch kept small.
    x = jax.random.normal(kx, (2, 1, 28, 28), jnp.float32)

    outp, feats = jax.block_until_ready(cnn_forward(params, x))
    ref_out, ref_feats = reference_forward(params, x)

    assert outp.shape == (2, 10) and feats.shape == (2, 32 * 7 * 7)
    assert jnp.allclose(feats, ref_feats, atol=1e-4, rtol=1e-4)
    assert jnp.allclose(outp, ref_out, atol=1e-3, rtol=1e-3)
    print("KERNEL_OK")
</pallas_src>

<mosaic_0001>
module attributes {stable_mosaic.version = 11 : i64} {
  func.func @_fused_cnn_kernel(%arg0: i32, %arg1: memref<1x4x324x25xf32, #tpu.memory_space<vmem>>, %arg2: memref<25x16xf32, #tpu.memory_space<vmem>>, %arg3: memref<1x16xf32, #tpu.memory_space<vmem>>, %arg4: memref<324x1xf32, #tpu.memory_space<vmem>>, %arg5: memref<36x16x128xf32, #tpu.memory_space<vmem>>, %arg6: memref<1x128xf32, #tpu.memory_space<vmem>>, %arg7: memref<1x63x128xf32, #tpu.memory_space<vmem>>, %arg8: memref<336x16xf32, #tpu.memory_space<vmem>>) attributes {dimension_semantics = [#tpu.dimension_semantics<parallel>], iteration_bounds = array<i64: 2>, scalar_prefetch = 0 : i64, scratch_operands = 1 : i64, tpu.core_type = #tpu.core_type<tc>, window_params = [{transform_indices = @transform_0, window_bounds = array<i64: 1, 4, 324, 25>}, {pipeline_mode = #tpu.pipeline_mode<synchronous>, transform_indices = @transform_1, window_bounds = array<i64: 25, 16>}, {pipeline_mode = #tpu.pipeline_mode<synchronous>, transform_indices = @transform_2, window_bounds = array<i64: 1, 16>}, {pipeline_mode = #tpu.pipeline_mode<synchronous>, transform_indices = @transform_3, window_bounds = array<i64: 324, 1>}, {pipeline_mode = #tpu.pipeline_mode<synchronous>, transform_indices = @transform_4, window_bounds = array<i64: 36, 16, 128>}, {pipeline_mode = #tpu.pipeline_mode<synchronous>, transform_indices = @transform_5, window_bounds = array<i64: 1, 128>}, {transform_indices = @transform_6, window_bounds = array<i64: 1, 63, 128>}]} {
    %c0 = arith.constant 0 : index
    %c0_0 = arith.constant 0 : index
    %0 = vector.load %arg2[%c0, %c0_0] : memref<25x16xf32, #tpu.memory_space<vmem>>, vector<25x16xf32>
    %c0_1 = arith.constant 0 : index
    %c0_2 = arith.constant 0 : index
    %c0_3 = arith.constant 0 : index
    %c0_4 = arith.constant 0 : index
    %1 = vector.load %arg1[%c0_1, %c0_2, %c0_3, %c0_4] : memref<1x4x324x25xf32, #tpu.memory_space<vmem>>, vector<1x1x324x25xf32>
    %2 = vector.shape_cast %1 : vector<1x1x324x25xf32> to vector<324x25xf32>
    %cst = arith.constant dense<0.000000e+00> : vector<324x16xf32>
    %3 = tpu.matmul %2, %0, %cst {dimension_numbers = #tpu.dot_dimension_numbers<[1], [0], [0], [1], [0, 0, 1, 1], [], []>} : vector<324x25xf32>, vector<25x16xf32>, vector<324x16xf32> -> vector<324x16xf32>
    %c0_5 = arith.constant 0 : index
    %c1 = arith.constant 1 : index
    %c0_6 = arith.constant 0 : index
    %c0_7 = arith.constant 0 : index
    %4 = vector.load %arg1[%c0_5, %c1, %c0_6, %c0_7] : memref<1x4x324x25xf32, #tpu.memory_space<vmem>>, vector<1x1x324x25xf32>
    %5 = vector.shape_cast %4 : vector<1x1x324x25xf32> to vector<324x25xf32>
    %cst_8 = arith.constant dense<0.000000e+00> : vector<324x16xf32>
    %6 = tpu.matmul %5, %0, %cst_8 {dimension_numbers = #tpu.dot_dimension_numbers<[1], [0], [0], [1], [0, 0, 1, 1], [], []>} : vector<324x25xf32>, vector<25x16xf32>, vector<324x16xf32> -> vector<324x16xf32>
    %7 = arith.maximumf %3, %6 : vector<324x16xf32>
    %c0_9 = arith.constant 0 : index
    %c2 = arith.constant 2 : index
    %c0_10 = arith.constant 0 : index
    %c0_11 = arith.constant 0 : index
    %8 = vector.load %arg1[%c0_9, %c2, %c0_10, %c0_11] : memref<1x4x324x25xf32, #tpu.memory_space<vmem>>, vector<1x1x324x25xf32>
    %9 = vector.shape_cast %8 : vector<1x1x324x25xf32> to vector<324x25xf32>
    %cst_12 = arith.constant dense<0.000000e+00> : vector<324x16xf32>
    %10 = tpu.matmul %9, %0, %cst_12 {dimension_numbers = #tpu.dot_dimension_numbers<[1], [0], [0], [1], [0, 0, 1, 1], [], []>} : vector<324x25xf32>, vector<25x16xf32>, vector<324x16xf32> -> vector<324x16xf32>
    %11 = arith.maximumf %7, %10 : vector<324x16xf32>
    %c0_13 = arith.constant 0 : index
    %c3 = arith.constant 3 : index
    %c0_14 = arith.constant 0 : index
    %c0_15 = arith.constant 0 : index
    %12 = vector.load %arg1[%c0_13, %c3, %c0_14, %c0_15] : memref<1x4x324x25xf32, #tpu.memory_space<vmem>>, vector<1x1x324x25xf32>
    %13 = vector.shape_cast %12 : vector<1x1x324x25xf32> to vector<324x25xf32>
    %cst_16 = arith.constant dense<0.000000e+00> : vector<324x16xf32>
    %14 = tpu.matmul %13, %0, %cst_16 {dimension_numbers = #tpu.dot_dimension_numbers<[1], [0], [0], [1], [0, 0, 1, 1], [], []>} : vector<324x25xf32>, vector<25x16xf32>, vector<324x16xf32> -> vector<324x16xf32>
    %15 = arith.maximumf %11, %14 : vector<324x16xf32>
    %c0_17 = arith.constant 0 : index
    %c0_18 = arith.constant 0 : index
    %16 = vector.load %arg3[%c0_17, %c0_18] : memref<1x16xf32, #tpu.memory_space<vmem>>, vector<1x16xf32>
    %17 = vector.broadcast %16 : vector<1x16xf32> to vector<324x16xf32>
    %18 = arith.addf %15, %17 : vector<324x16xf32>
    %cst_19 = arith.constant 0.000000e+00 : f32
    %19 = vector.broadcast %cst_19 : f32 to vector<324x16xf32>
    %20 = arith.maximumf %18, %19 : vector<324x16xf32>
    %c0_20 = arith.constant 0 : index
    %c0_21 = arith.constant 0 : index
    %21 = vector.load %arg4[%c0_20, %c0_21] : memref<324x1xf32, #tpu.memory_space<vmem>>, vector<324x1xf32>
    %22 = vector.broadcast %21 : vector<324x1xf32> to vector<324x16xf32>
    %23 = arith.mulf %20, %22 : vector<324x16xf32>
    %cst_22 = arith.constant 0.000000e+00 : f32
    %24 = vector.broadcast %cst_22 : f32 to vector<336x16xf32>
    %c0_23 = arith.constant 0 : index
    %c0_24 = arith.constant 0 : index
    %25 = vector.load %arg8[%c0_23, %c0_24] : memref<336x16xf32, #tpu.memory_space<vmem>>, vector<336x16xf32>
    tpu.vector_store %arg8[%c0_23, %c0_24], %24 {strides = array<i32>} : memref<336x16xf32, #tpu.memory_space<vmem>>, vector<336x16xf32>,
    %c0_25 = arith.constant 0 : index
    %c0_26 = arith.constant 0 : index
    %26 = vector.load %arg8[%c0_25, %c0_26] : memref<336x16xf32, #tpu.memory_space<vmem>>, vector<324x16xf32>
    tpu.vector_store %arg8[%c0_25, %c0_26], %23 {strides = array<i32>} : memref<336x16xf32, #tpu.memory_space<vmem>>, vector<324x16xf32>,
    %cst_27 = arith.constant 0.000000e+00 : f32
    %27 = vector.broadcast %cst_27 : f32 to vector<63x128xf32>
    %c0_28 = arith.constant 0 : index
    %c0_29 = arith.constant 0 : index
    %28 = vector.load %arg8[%c0_28, %c0_29] : memref<336x16xf32, #tpu.memory_space<vmem>>, vector<63x16xf32>
    %c0_30 = arith.constant 0 : index
    %c0_31 = arith.constant 0 : index
    %c0_32 = arith.constant 0 : index
    %29 = vector.load %arg5[%c0_30, %c0_31, %c0_32] : memref<36x16x128xf32, #tpu.memory_space<vmem>>, vector<1x16x128xf32>
    %30 = vector.shape_cast %29 : vector<1x16x128xf32> to vector<16x128xf32>
    %cst_33 = arith.constant dense<0.000000e+00> : vector<63x128xf32>
    %31 = tpu.matmul %28, %30, %cst_33 {dimension_numbers = #tpu.dot_dimension_numbers<[1], [0], [0], [1], [0, 0, 1, 1], [], []>} : vector<63x16xf32>, vector<16x128xf32>, vector<63x128xf32> -> vector<63x128xf32>
    %32 = arith.addf %27, %31 : vector<63x128xf32>
    %c81 = arith.constant 81 : index
    %c0_34 = arith.constant 0 : index
    %33 = vector.load %arg8[%c81, %c0_34] : memref<336x16xf32, #tpu.memory_space<vmem>>, vector<63x16xf32>
    %c1_35 = arith.constant 1 : index
    %c0_36 = arith.constant 0 : index
    %c0_37 = arith.constant 0 : index
    %34 = vector.load %arg5[%c1_35, %c0_36, %c0_37] : memref<36x16x128xf32, #tpu.memory_space<vmem>>, vector<1x16x128xf32>
    %35 = vector.shape_cast %34 : vector<1x16x128xf32> to vector<16x128xf32>
    %cst_38 = arith.constant dense<0.000000e+00> : vector<63x128xf32>
    %36 = tpu.matmul %33, %35, %cst_38 {dimension_numbers = #tpu.dot_dimension_numbers<[1], [0], [0], [1], [0, 0, 1, 1], [], []>} : vector<63x16xf32>, vector<16x128xf32>, vector<63x128xf32> -> vector<63x128xf32>
    %37 = arith.addf %32, %36 : vector<63x128xf32>
    %c1_39 = arith.constant 1 : index
    %c0_40 = arith.constant 0 : index
    %38 = vector.load %arg8[%c1_39, %c0_40] : memref<336x16xf32, #tpu.memory_space<vmem>>, vector<63x16xf32>
    %c2_41 = arith.constant 2 : index
    %c0_42 = arith.constant 0 : index
    %c0_43 = arith.constant 0 : index
    %39 = vector.load %arg5[%c2_41, %c0_42, %c0_43] : memref<36x16x128xf32, #tpu.memory_space<vmem>>, vector<1x16x128xf32>
    %40 = vector.shape_cast %39 : vector<1x16x128xf32> to vector<16x128xf32>
    %cst_44 = arith.constant dense<0.000000e+00> : vector<63x128xf32>
    %41 = tpu.matmul %38, %40, %cst_44 {dimension_numbers = #tpu.dot_dimension_numbers<[1], [0], [0], [1], [0, 0, 1, 1], [], []>} : vector<63x16xf32>, vector<16x128xf32>, vector<63x128xf32> -> vector<63x128xf32>
    %42 = arith.addf %37, %41 : vector<63x128xf32>
    %c82 = arith.constant 82 : index
    %c0_45 = arith.constant 0 : index
    %43 = vector.load %arg8[%c82, %c0_45] : memref<336x16xf32, #tpu.memory_space<vmem>>, vector<63x16xf32>
    %c3_46 = arith.constant 3 : index
    %c0_47 = arith.constant 0 : index
    %c0_48 = arith.constant 0 : index
    %44 = vector.load %arg5[%c3_46, %c0_47, %c0_48] : memref<36x16x128xf32, #tpu.memory_space<vmem>>, vector<1x16x128xf32>
    %45 = vector.shape_cast %44 : vector<1x16x128xf32> to vector<16x128xf32>
    %cst_49 = arith.constant dense<0.000000e+00> : vector<63x128xf32>
    %46 = tpu.matmul %43, %45, %cst_49 {dimension_numbers = #tpu.dot_dimension_numbers<[1], [0], [0], [1], [0, 0, 1, 1], [], []>} : vector<63x16xf32>, vector<16x128xf32>, vector<63x128xf32> -> vector<63x128xf32>
    %47 = arith.addf %42, %46 : vector<63x128xf32>
    %c2_50 = arith.constant 2 : index
    %c0_51 = arith.constant 0 : index
    %48 = vector.load %arg8[%c2_50, %c0_51] : memref<336x16xf32, #tpu.memory_space<vmem>>, vector<63x16xf32>
    %c4 = arith.constant 4 : index
    %c0_52 = arith.constant 0 : index
    %c0_53 = arith.constant 0 : index
    %49 = vector.load %arg5[%c4, %c0_52, %c0_53] : memref<36x16x128xf32, #tpu.memory_space<vmem>>, vector<1x16x128xf32>
    %50 = vector.shape_cast %49 : vector<1x16x128xf32> to vector<16x128xf32>
    %cst_54 = arith.constant dense<0.000000e+00> : vector<63x128xf32>
    %51 = tpu.matmul %48, %50, %cst_54 {dimension_numbers = #tpu.dot_dimension_numbers<[1], [0], [0], [1], [0, 0, 1, 1], [], []>} : vector<63x16xf32>, vector<16x128xf32>, vector<63x128xf32> -> vector<63x128xf32>
    %52 = arith.addf %47, %51 : vector<63x128xf32>
    %c83 = arith.constant 83 : index
    %c0_55 = arith.constant 0 : index
    %53 = vector.load %arg8[%c83, %c0_55] : memref<336x16xf32, #tpu.memory_space<vmem>>, vector<63x16xf32>
    %c5 = arith.constant 5 : index
    %c0_56 = arith.constant 0 : index
    %c0_57 = arith.constant 0 : index
    %54 = vector.load %arg5[%c5, %c0_56, %c0_57] : memref<36x16x128xf32, #tpu.memory_space<vmem>>, vector<1x16x128xf32>
    %55 = vector.shape_cast %54 : vector<1x16x128xf32> to vector<16x128xf32>
    %cst_58 = arith.constant dense<0.000000e+00> : vector<63x128xf32>
    %56 = tpu.matmul %53, %55, %cst_58 {dimension_numbers = #tpu.dot_dimension_numbers<[1], [0], [0], [1], [0, 0, 1, 1], [], []>} : vector<63x16xf32>, vector<16x128xf32>, vector<63x128xf32> -> vector<63x128xf32>
    %57 = arith.addf %52, %56 : vector<63x128xf32>
    %c162 = arith.constant 162 : index
    %c0_59 = arith.constant 0 : index
    %58 = vector.load %arg8[%c162, %c0_59] : memref<336x16xf32, #tpu.memory_space<vmem>>, vector<63x16xf32>
    %c6 = arith.constant 6 : index
    %c0_60 = arith.constant 0 : index
    %c0_61 = arith.constant 0 : index
    %59 = vector.load %arg5[%c6, %c0_60, %c0_61] : memref<36x16x128xf32, #tpu.memory_space<vmem>>, vector<1x16x128xf32>
    %60 = vector.shape_cast %59 : vector<1x16x128xf32> to vector<16x128xf32>
    %cst_62 = arith.constant dense<0.000000e+00> : vector<63x128xf32>
    %61 = tpu.matmul %58, %60, %cst_62 {dimension_numbers = #tpu.dot_dimension_numbers<[1], [0], [0], [1], [0, 0, 1, 1], [], []>} : vector<63x16xf32>, vector<16x128xf32>, vector<63x128xf32> -> vector<63x128xf32>
    %62 = arith.addf %57, %61 : vector<63x128xf32>
    %c243 = arith.constant 243 : index
    %c0_63 = arith.constant 0 : index
    %63 = vector.load %arg8[%c243, %c0_63] : memref<336x16xf32, #tpu.memory_space<vmem>>, vector<63x16xf32>
    %c7 = arith.constant 7 : index
    %c0_64 = arith.constant 0 : index
    %c0_65 = arith.constant 0 : index
    %64 = vector.load %arg5[%c7, %c0_64, %c0_65] : memref<36x16x128xf32, #tpu.memory_space<vmem>>, vector<1x16x128xf32>
    %65 = vector.shape_cast %64 : vector<1x16x128xf32> to vector<16x128xf32>
    %cst_66 = arith.constant dense<0.000000e+00> : vector<63x128xf32>
    %66 = tpu.matmul %63, %65, %cst_66 {dimension_numbers = #tpu.dot_dimension_numbers<[1], [0], [0], [1], [0, 0, 1, 1], [], []>} : vector<63x16xf32>, vector<16x128xf32>, vector<63x128xf32> -> vector<63x128xf32>
    %67 = arith.addf %62, %66 : vector<63x128xf32>
    %c163 = arith.constant 163 : index
    %c0_67 = arith.constant 0 : index
    %68 = vector.load %arg8[%c163, %c0_67] : memref<336x16xf32, #tpu.memory_space<vmem>>, vector<63x16xf32>
    %c8 = arith.constant 8 : index
    %c0_68 = arith.constant 0 : index
    %c0_69 = arith.constant 0 : index
    %69 = vector.load %arg5[%c8, %c0_68, %c0_69] : memref<36x16x128xf32, #tpu.memory_space<vmem>>, vector<1x16x128xf32>
    %70 = vector.shape_cast %69 : vector<1x16x128xf32> to vector<16x128xf32>
    %cst_70 = arith.constant dense<0.000000e+00> : vector<63x128xf32>
    %71 = tpu.matmul %68, %70, %cst_70 {dimension_numbers = #tpu.dot_dimension_numbers<[1], [0], [0], [1], [0, 0, 1, 1], [], []>} : vector<63x16xf32>, vector<16x128xf32>, vector<63x128xf32> -> vector<63x128xf32>
    %72 = arith.addf %67, %71 : vector<63x128xf32>
    %c244 = arith.constant 244 : index
    %c0_71 = arith.constant 0 : index
    %73 = vector.load %arg8[%c244, %c0_71] : memref<336x16xf32, #tpu.memory_space<vmem>>, vector<63x16xf32>
    %c9 = arith.constant 9 : index
    %c0_72 = arith.constant 0 : index
    %c0_73 = arith.constant 0 : index
    %74 = vector.load %arg5[%c9, %c0_72, %c0_73] : memref<36x16x128xf32, #tpu.memory_space<vmem>>, vector<1x16x128xf32>
    %75 = vector.shape_cast %74 : vector<1x16x128xf32> to vector<16x128xf32>
    %cst_74 = arith.constant dense<0.000000e+00> : vector<63x128xf32>
    %76 = tpu.matmul %73, %75, %cst_74 {dimension_numbers = #tpu.dot_dimension_numbers<[1], [0], [0], [1], [0, 0, 1, 1], [], []>} : vector<63x16xf32>, vector<16x128xf32>, vector<63x128xf32> -> vector<63x128xf32>
    %77 = arith.addf %72, %76 : vector<63x128xf32>
    %c164 = arith.constant 164 : index
    %c0_75 = arith.constant 0 : index
    %78 = vector.load %arg8[%c164, %c0_75] : memref<336x16xf32, #tpu.memory_space<vmem>>, vector<63x16xf32>
    %c10 = arith.constant 10 : index
    %c0_76 = arith.constant 0 : index
    %c0_77 = arith.constant 0 : index
    %79 = vector.load %arg5[%c10, %c0_76, %c0_77] : memref<36x16x128xf32, #tpu.memory_space<vmem>>, vector<1x16x128xf32>
    %80 = vector.shape_cast %79 : vector<1x16x128xf32> to vector<16x128xf32>
    %cst_78 = arith.constant dense<0.000000e+00> : vector<63x128xf32>
    %81 = tpu.matmul %78, %80, %cst_78 {dimension_numbers = #tpu.dot_dimension_numbers<[1], [0], [0], [1], [0, 0, 1, 1], [], []>} : vector<63x16xf32>, vector<16x128xf32>, vector<63x128xf32> -> vector<63x128xf32>
    %82 = arith.addf %77, %81 : vector<63x128xf32>
    %c245 = arith.constant 245 : index
    %c0_79 = arith.constant 0 : index
    %83 = vector.load %arg8[%c245, %c0_79] : memref<336x16xf32, #tpu.memory_space<vmem>>, vector<63x16xf32>
    %c11 = arith.constant 11 : index
    %c0_80 = arith.constant 0 : index
    %c0_81 = arith.constant 0 : index
    %84 = vector.load %arg5[%c11, %c0_80, %c0_81] : memref<36x16x128xf32, #tpu.memory_space<vmem>>, vector<1x16x128xf32>
    %85 = vector.shape_cast %84 : vector<1x16x128xf32> to vector<16x128xf32>
    %cst_82 = arith.constant dense<0.000000e+00> : vector<63x128xf32>
    %86 = tpu.matmul %83, %85, %cst_82 {dimension_numbers = #tpu.dot_dimension_numbers<[1], [0], [0], [1], [0, 0, 1, 1], [], []>} : vector<63x16xf32>, vector<16x128xf32>, vector<63x128xf32> -> vector<63x128xf32>
    %87 = arith.addf %82, %86 : vector<63x128xf32>
    %c9_83 = arith.constant 9 : index
    %c0_84 = arith.constant 0 : index
    %88 = vector.load %arg8[%c9_83, %c0_84] : memref<336x16xf32, #tpu.memory_space<vmem>>, vector<63x16xf32>
    %c12 = arith.constant 12 : index
    %c0_85 = arith.constant 0 : index
    %c0_86 = arith.constant 0 : index
    %89 = vector.load %arg5[%c12, %c0_85, %c0_86] : memref<36x16x128xf32, #tpu.memory_space<vmem>>, vector<1x16x128xf32>
    %90 = vector.shape_cast %89 : vector<1x16x128xf32> to vector<16x128xf32>
    %cst_87 = arith.constant dense<0.000000e+00> : vector<63x128xf32>
    %91 = tpu.matmul %88, %90, %cst_87 {dimension_numbers = #tpu.dot_dimension_numbers<[1], [0], [0], [1], [0, 0, 1, 1], [], []>} : vector<63x16xf32>, vector<16x128xf32>, vector<63x128xf32> -> vector<63x128xf32>
    %92 = arith.addf %87, %91 : vector<63x128xf32>
    %c90 = arith.constant 90 : index
    %c0_88 = arith.constant 0 : index
    %93 = vector.load %arg8[%c90, %c0_88] : memref<336x16xf32, #tpu.memory_space<vmem>>, vector<63x16xf32>
    %c13 = arith.constant 13 : index
    %c0_89 = arith.constant 0 : index
    %c0_90 = arith.constant 0 : index
    %94 = vector.load %arg5[%c13, %c0_89, %c0_90] : memref<36x16x128xf32, #tpu.memory_space<vmem>>, vector<1x16x128xf32>
    %95 = vector.shape_cast %94 : vector<1x16x128xf32> to vector<16x128xf32>
    %cst_91 = arith.constant dense<0.000000e+00> : vector<63x128xf32>
    %96 = tpu.matmul %93, %95, %cst_91 {dimension_numbers = #tpu.dot_dimension_numbers<[1], [0], [0], [1], [0, 0, 1, 1], [], []>} : vector<63x16xf32>, vector<16x128xf32>, vector<63x128xf32> -> vector<63x128xf32>
    %97 = arith.addf %92, %96 : vector<63x128xf32>
    %c10_92 = arith.constant 10 : index
    %c0_93 = arith.constant 0 : index
    %98 = vector.load %arg8[%c10_92, %c0_93] : memref<336x16xf32, #tpu.memory_space<vmem>>, vector<63x16xf32>
    %c14 = arith.constant 14 : index
    %c0_94 = arith.constant 0 : index
    %c0_95 = arith.constant 0 : index
    %99 = vector.load %arg5[%c14, %c0_94, %c0_95] : memref<36x16x128xf32, #tpu.memory_space<vmem>>, vector<1x16x128xf32>
    %100 = vector.shape_cast %99 : vector<1x16x128xf32> to vector<16x128xf32>
    %cst_96 = arith.constant dense<0.000000e+00> : vector<63x128xf32>
    %101 = tpu.matmul %98, %100, %cst_96 {dimension_numbers = #tpu.dot_dimension_numbers<[1], [0], [0], [1], [0, 0, 1, 1], [], []>} : vector<63x16xf32>, vector<16x128xf32>, vector<63x128xf32> -> vector<63x128xf32>
    %102 = arith.addf %97, %101 : vector<63x128xf32>
    %c91 = arith.constant 91 : index
    %c0_97 = arith.constant 0 : index
    %103 = vector.load %arg8[%c91, %c0_97] : memref<336x16xf32, #tpu.memory_space<vmem>>, vector<63x16xf32>
    %c15 = arith.constant 15 : index
    %c0_98 = arith.constant 0 : index
    %c0_99 = arith.constant 0 : index
    %104 = vector.load %arg5[%c15, %c0_98, %c0_99] : memref<36x16x128xf32, #tpu.memory_space<vmem>>, vector<1x16x128xf32>
    %105 = vector.shape_cast %104 : vector<1x16x128xf32> to vector<16x128xf32>
    %cst_100 = arith.constant dense<0.000000e+00> : vector<63x128xf32>
    %106 = tpu.matmul %103, %105, %cst_100 {dimension_numbers = #tpu.dot_dimension_numbers<[1], [0], [0], [1], [0, 0, 1, 1], [], []>} : vector<63x16xf32>, vector<16x128xf32>, vector<63x128xf32> -> vector<63x128xf32>
    %107 = arith.addf %102, %106 : vector<63x128xf32>
    %c11_101 = arith.constant 11 : index
    %c0_102 = arith.constant 0 : index
    %108 = vector.load %arg8[%c11_101, %c0_102] : memref<336x16xf32, #tpu.memory_space<vmem>>, vector<63x16xf32>
    %c16 = arith.constant 16 : index
    %c0_103 = arith.constant 0 : index
    %c0_104 = arith.constant 0 : index
    %109 = vector.load %arg5[%c16, %c0_103, %c0_104] : memref<36x16x128xf32, #tpu.memory_space<vmem>>, vector<1x16x128xf32>
    %110 = vector.shape_cast %109 : vector<1x16x128xf32> to vector<16x128xf32>
    %cst_105 = arith.constant dense<0.000000e+00> : vector<63x128xf32>
    %111 = tpu.matmul %108, %110, %cst_105 {dimension_numbers = #tpu.dot_dimension_numbers<[1], [0], [0], [1], [0, 0, 1, 1], [], []>} : vector<63x16xf32>, vector<16x128xf32>, vector<63x128xf32> -> vector<63x128xf32>
    %112 = arith.addf %107, %111 : vector<63x128xf32>
    %c92 = arith.constant 92 : index
    %c0_106 = arith.constant 0 : index
    %113 = vector.load %arg8[%c92, %c0_106] : memref<336x16xf32, #tpu.memory_space<vmem>>, vector<63x16xf32>
    %c17 = arith.constant 17 : index
    %c0_107 = arith.constant 0 : index
    %c0_108 = arith.constant 0 : index
    %114 = vector.load %arg5[%c17, %c0_107, %c0_108] : memref<36x16x128xf32, #tpu.memory_space<vmem>>, vector<1x16x128xf32>
    %115 = vector.shape_cast %114 : vector<1x16x128xf32> to vector<16x128xf32>
    %cst_109 = arith.constant dense<0.000000e+00> : vector<63x128xf32>
    %116 = tpu.matmul %113, %115, %cst_109 {dimension_numbers = #tpu.dot_dimension_numbers<[1], [0], [0], [1], [0, 0, 1, 1], [], []>} : vector<63x16xf32>, vector<16x128xf32>, vector<63x128xf32> -> vector<63x128xf32>
    %117 = arith.addf %112, %116 : vector<63x128xf32>
    %c171 = arith.constant 171 : index
    %c0_110 = arith.constant 0 : index
    %118 = vector.load %arg8[%c171, %c0_110] : memref<336x16xf32, #tpu.memory_space<vmem>>, vector<63x16xf32>
    %c18 = arith.constant 18 : index
    %c0_111 = arith.constant 0 : index
    %c0_112 = arith.constant 0 : index
    %119 = vector.load %arg5[%c18, %c0_111, %c0_112] : memref<36x16x128xf32, #tpu.memory_space<vmem>>, vector<1x16x128xf32>
    %120 = vector.shape_cast %119 : vector<1x16x128xf32> to vector<16x128xf32>
    %cst_113 = arith.constant dense<0.000000e+00> : vector<63x128xf32>
    %121 = tpu.matmul %118, %120, %cst_113 {dimension_numbers = #tpu.dot_dimension_numbers<[1], [0], [0], [1], [0, 0, 1, 1], [], []>} : vector<63x16xf32>, vector<16x128xf32>, vector<63x128xf32> -> vector<63x128xf32>
    %122 = arith.addf %117, %121 : vector<63x128xf32>
    %c252 = arith.constant 252 : index
    %c0_114 = arith.constant 0 : index
    %123 = vector.load %arg8[%c252, %c0_114] : memref<336x16xf32, #tpu.memory_space<vmem>>, vector<63x16xf32>
    %c19 = arith.constant 19 : index
    %c0_115 = arith.constant 0 : index
    %c0_116 = arith.constant 0 : index
    %124 = vector.load %arg5[%c19, %c0_115, %c0_116] : memref<36x16x128xf32, #tpu.memory_space<vmem>>, vector<1x16x128xf32>
    %125 = vector.shape_cast %124 : vector<1x16x128xf32> to vector<16x128xf32>
    %cst_117 = arith.constant dense<0.000000e+00> : vector<63x128xf32>
    %126 = tpu.matmul %123, %125, %cst_117 {dimension_numbers = #tpu.dot_dimension_numbers<[1], [0], [0], [1], [0, 0, 1, 1], [], []>} : vector<63x16xf32>, vector<16x128xf32>, vector<63x128xf32> -> vector<63x128xf32>
    %127 = arith.addf %122, %126 : vector<63x128xf32>
    %c172 = arith.constant 172 : index
    %c0_118 = arith.constant 0 : index
    %128 = vector.load %arg8[%c172, %c0_118] : memref<336x16xf32, #tpu.memory_space<vmem>>, vector<63x16xf32>
    %c20 = arith.constant 20 : index
    %c0_119 = arith.constant 0 : index
    %c0_120 = arith.constant 0 : index
    %129 = vector.load %arg5[%c20, %c0_119, %c0_120] : memref<36x16x128xf32, #tpu.memory_space<vmem>>, vector<1x16x128xf32>
    %130 = vector.shape_cast %129 : vector<1x16x128xf32> to vector<16x128xf32>
    %cst_121 = arith.constant dense<0.000000e+00> : vector<63x128xf32>
    %131 = tpu.matmul %128, %130, %cst_121 {dimension_numbers = #tpu.dot_dimension_numbers<[1], [0], [0], [1], [0, 0, 1, 1], [], []>} : vector<63x16xf32>, vector<16x128xf32>, vector<63x128xf32> -> vector<63x128xf32>
    %132 = arith.addf %127, %131 : vector<63x128xf32>
    %c253 = arith.constant 253 : index
    %c0_122 = arith.constant 0 : index
    %133 = vector.load %arg8[%c253, %c0_122] : memref<336x16xf32, #tpu.memory_space<vmem>>, vector<63x16xf32>
    %c21 = arith.constant 21 : index
    %c0_123 = arith.constant 0 : index
    %c0_124 = arith.constant 0 : index
    %134 = vector.load %arg5[%c21, %c0_123, %c0_124] : memref<36x16x128xf32, #tpu.memory_space<vmem>>, vector<1x16x128xf32>
    %135 = vector.shape_cast %134 : vector<1x16x128xf32> to vector<16x128xf32>
    %cst_125 = arith.constant dense<0.000000e+00> : vector<63x128xf32>
    %136 = tpu.matmul %133, %135, %cst_125 {dimension_numbers = #tpu.dot_dimension_numbers<[1], [0], [0], [1], [0, 0, 1, 1], [], []>} : vector<63x16xf32>, vector<16x128xf32>, vector<63x128xf32> -> vector<63x128xf32>
    %137 = arith.addf %132, %136 : vector<63x128xf32>
    %c173 = arith.constant 173 : index
    %c0_126 = arith.constant 0 : index
    %138 = vector.load %arg8[%c173, %c0_126] : memref<336x16xf32, #tpu.memory_space<vmem>>, vector<63x16xf32>
    %c22 = arith.constant 22 : index
    %c0_127 = arith.constant 0 : index
    %c0_128 = arith.constant 0 : index
    %139 = vector.load %arg5[%c22, %c0_127, %c0_128] : memref<36x16x128xf32, #tpu.memory_space<vmem>>, vector<1x16x128xf32>
    %140 = vector.shape_cast %139 : vector<1x16x128xf32> to vector<16x128xf32>
    %cst_129 = arith.constant dense<0.000000e+00> : vector<63x128xf32>
    %141 = tpu.matmul %138, %140, %cst_129 {dimension_numbers = #tpu.dot_dimension_numbers<[1], [0], [0], [1], [0, 0, 1, 1], [], []>} : vector<63x16xf32>, vector<16x128xf32>, vector<63x128xf32> -> vector<63x128xf32>
    %142 = arith.addf %137, %141 : vector<63x128xf32>
    %c254 = arith.constant 254 : index
    %c0_130 = arith.constant 0 : index
    %143 = vector.load %arg8[%c254, %c0_130] : memref<336x16xf32, #tpu.memory_space<vmem>>, vector<63x16xf32>
    %c23 = arith.constant 23 : index
    %c0_131 = arith.constant 0 : index
    %c0_132 = arith.constant 0 : index
    %144 = vector.load %arg5[%c23, %c0_131, %c0_132] : memref<36x16x128xf32, #tpu.memory_space<vmem>>, vector<1x16x128xf32>
    %145 = vector.shape_cast %144 : vector<1x16x128xf32> to vector<16x128xf32>
    %cst_133 = arith.constant dense<0.000000e+00> : vector<63x128xf32>
    %146 = tpu.matmul %143, %145, %cst_133 {dimension_numbers = #tpu.dot_dimension_numbers<[1], [0], [0], [1], [0, 0, 1, 1], [], []>} : vector<63x16xf32>, vector<16x128xf32>, vector<63x128xf32> -> vector<63x128xf32>
    %147 = arith.addf %142, %146 : vector<63x128xf32>
    %c18_134 = arith.constant 18 : index
    %c0_135 = arith.constant 0 : index
    %148 = vector.load %arg8[%c18_134, %c0_135] : memref<336x16xf32, #tpu.memory_space<vmem>>, vector<63x16xf32>
    %c24 = arith.constant 24 : index
    %c0_136 = arith.constant 0 : index
    %c0_137 = arith.constant 0 : index
    %149 = vector.load %arg5[%c24, %c0_136, %c0_137] : memref<36x16x128xf32, #tpu.memory_space<vmem>>, vector<1x16x128xf32>
    %150 = vector.shape_cast %149 : vector<1x16x128xf32> to vector<16x128xf32>
    %cst_138 = arith.constant dense<0.000000e+00> : vector<63x128xf32>
    %151 = tpu.matmul %148, %150, %cst_138 {dimension_numbers = #tpu.dot_dimension_numbers<[1], [0], [0], [1], [0, 0, 1, 1], [], []>} : vector<63x16xf32>, vector<16x128xf32>, vector<63x128xf32> -> vector<63x128xf32>
    %152 = arith.addf %147, %151 : vector<63x128xf32>
    %c99 = arith.constant 99 : index
    %c0_139 = arith.constant 0 : index
    %153 = vector.load %arg8[%c99, %c0_139] : memref<336x16xf32, #tpu.memory_space<vmem>>, vector<63x16xf32>
    %c25 = arith.constant 25 : index
    %c0_140 = arith.constant 0 : index
    %c0_141 = arith.constant 0 : index
    %154 = vector.load %arg5[%c25, %c0_140, %c0_141] : memref<36x16x128xf32, #tpu.memory_space<vmem>>, vector<1x16x128xf32>
    %155 = vector.shape_cast %154 : vector<1x16x128xf32> to vector<16x128xf32>
    %cst_142 = arith.constant dense<0.000000e+00> : vector<63x128xf32>
    %156 = tpu.matmul %153, %155, %cst_142 {dimension_numbers = #tpu.dot_dimension_numbers<[1], [0], [0], [1], [0, 0, 1, 1], [], []>} : vector<63x16xf32>, vector<16x128xf32>, vector<63x128xf32> -> vector<63x128xf32>
    %157 = arith.addf %152, %156 : vector<63x128xf32>
    %c19_143 = arith.constant 19 : index
    %c0_144 = arith.constant 0 : index
    %158 = vector.load %arg8[%c19_143, %c0_144] : memref<336x16xf32, #tpu.memory_space<vmem>>, vector<63x16xf32>
    %c26 = arith.constant 26 : index
    %c0_145 = arith.constant 0 : index
    %c0_146 = arith.constant 0 : index
    %159 = vector.load %arg5[%c26, %c0_145, %c0_146] : memref<36x16x128xf32, #tpu.memory_space<vmem>>, vector<1x16x128xf32>
    %160 = vector.shape_cast %159 : vector<1x16x128xf32> to vector<16x128xf32>
    %cst_147 = arith.constant dense<0.000000e+00> : vector<63x128xf32>
    %161 = tpu.matmul %158, %160, %cst_147 {dimension_numbers = #tpu.dot_dimension_numbers<[1], [0], [0], [1], [0, 0, 1, 1], [], []>} : vector<63x16xf32>, vector<16x128xf32>, vector<63x128xf32> -> vector<63x128xf32>
    %162 = arith.addf %157, %161 : vector<63x128xf32>
    %c100 = arith.constant 100 : index
    %c0_148 = arith.constant 0 : index
    %163 = vector.load %arg8[%c100, %c0_148] : memref<336x16xf32, #tpu.memory_space<vmem>>, vector<63x16xf32>
    %c27 = arith.constant 27 : index
    %c0_149 = arith.constant 0 : index
    %c0_150 = arith.constant 0 : index
    %164 = vector.load %arg5[%c27, %c0_149, %c0_150] : memref<36x16x128xf32, #tpu.memory_space<vmem>>, vector<1x16x128xf32>
    %165 = vector.shape_cast %164 : vector<1x16x128xf32> to vector<16x128xf32>
    %cst_151 = arith.constant dense<0.000000e+00> : vector<63x128xf32>
    %166 = tpu.matmul %163, %165, %cst_151 {dimension_numbers = #tpu.dot_dimension_numbers<[1], [0], [0], [1], [0, 0, 1, 1], [], []>} : vector<63x16xf32>, vector<16x128xf32>, vector<63x128xf32> -> vector<63x128xf32>
    %167 = arith.addf %162, %166 : vector<63x128xf32>
    %c20_152 = arith.constant 20 : index
    %c0_153 = arith.constant 0 : index
    %168 = vector.load %arg8[%c20_152, %c0_153] : memref<336x16xf32, #tpu.memory_space<vmem>>, vector<63x16xf32>
    %c28 = arith.constant 28 : index
    %c0_154 = arith.constant 0 : index
    %c0_155 = arith.constant 0 : index
    %169 = vector.load %arg5[%c28, %c0_154, %c0_155] : memref<36x16x128xf32, #tpu.memory_space<vmem>>, vector<1x16x128xf32>
    %170 = vector.shape_cast %169 : vector<1x16x128xf32> to vector<16x128xf32>
    %cst_156 = arith.constant dense<0.000000e+00> : vector<63x128xf32>
    %171 = tpu.matmul %168, %170, %cst_156 {dimension_numbers = #tpu.dot_dimension_numbers<[1], [0], [0], [1], [0, 0, 1, 1], [], []>} : vector<63x16xf32>, vector<16x128xf32>, vector<63x128xf32> -> vector<63x128xf32>
    %172 = arith.addf %167, %171 : vector<63x128xf32>
    %c101 = arith.constant 101 : index
    %c0_157 = arith.constant 0 : index
    %173 = vector.load %arg8[%c101, %c0_157] : memref<336x16xf32, #tpu.memory_space<vmem>>, vector<63x16xf32>
    %c29 = arith.constant 29 : index
    %c0_158 = arith.constant 0 : index
    %c0_159 = arith.constant 0 : index
    %174 = vector.load %arg5[%c29, %c0_158, %c0_159] : memref<36x16x128xf32, #tpu.memory_space<vmem>>, vector<1x16x128xf32>
    %175 = vector.shape_cast %174 : vector<1x16x128xf32> to vector<16x128xf32>
    %cst_160 = arith.constant dense<0.000000e+00> : vector<63x128xf32>
    %176 = tpu.matmul %173, %175, %cst_160 {dimension_numbers = #tpu.dot_dimension_numbers<[1], [0], [0], [1], [0, 0, 1, 1], [], []>} : vector<63x16xf32>, vector<16x128xf32>, vector<63x128xf32> -> vector<63x128xf32>
    %177 = arith.addf %172, %176 : vector<63x128xf32>
    %c180 = arith.constant 180 : index
    %c0_161 = arith.constant 0 : index
    %178 = vector.load %arg8[%c180, %c0_161] : memref<336x16xf32, #tpu.memory_space<vmem>>, vector<63x16xf32>
    %c30 = arith.constant 30 : index
    %c0_162 = arith.constant 0 : index
    %c0_163 = arith.constant 0 : index
    %179 = vector.load %arg5[%c30, %c0_162, %c0_163] : memref<36x16x128xf32, #tpu.memory_space<vmem>>, vector<1x16x128xf32>
    %180 = vector.shape_cast %179 : vector<1x16x128xf32> to vector<16x128xf32>
    %cst_164 = arith.constant dense<0.000000e+00> : vector<63x128xf32>
    %181 = tpu.matmul %178, %180, %cst_164 {dimension_numbers = #tpu.dot_dimension_numbers<[1], [0], [0], [1], [0, 0, 1, 1], [], []>} : vector<63x16xf32>, vector<16x128xf32>, vector<63x128xf32> -> vector<63x128xf32>
    %182 = arith.addf %177, %181 : vector<63x128xf32>
    %c261 = arith.constant 261 : index
    %c0_165 = arith.constant 0 : index
    %183 = vector.load %arg8[%c261, %c0_165] : memref<336x16xf32, #tpu.memory_space<vmem>>, vector<63x16xf32>
    %c31 = arith.constant 31 : index
    %c0_166 = arith.constant 0 : index
    %c0_167 = arith.constant 0 : index
    %184 = vector.load %arg5[%c31, %c0_166, %c0_167] : memref<36x16x128xf32, #tpu.memory_space<vmem>>, vector<1x16x128xf32>
    %185 = vector.shape_cast %184 : vector<1x16x128xf32> to vector<16x128xf32>
    %cst_168 = arith.constant dense<0.000000e+00> : vector<63x128xf32>
    %186 = tpu.matmul %183, %185, %cst_168 {dimension_numbers = #tpu.dot_dimension_numbers<[1], [0], [0], [1], [0, 0, 1, 1], [], []>} : vector<63x16xf32>, vector<16x128xf32>, vector<63x128xf32> -> vector<63x128xf32>
    %187 = arith.addf %182, %186 : vector<63x128xf32>
    %c181 = arith.constant 181 : index
    %c0_169 = arith.constant 0 : index
    %188 = vector.load %arg8[%c181, %c0_169] : memref<336x16xf32, #tpu.memory_space<vmem>>, vector<63x16xf32>
    %c32 = arith.constant 32 : index
    %c0_170 = arith.constant 0 : index
    %c0_171 = arith.constant 0 : index
    %189 = vector.load %arg5[%c32, %c0_170, %c0_171] : memref<36x16x128xf32, #tpu.memory_space<vmem>>, vector<1x16x128xf32>
    %190 = vector.shape_cast %189 : vector<1x16x128xf32> to vector<16x128xf32>
    %cst_172 = arith.constant dense<0.000000e+00> : vector<63x128xf32>
    %191 = tpu.matmul %188, %190, %cst_172 {dimension_numbers = #tpu.dot_dimension_numbers<[1], [0], [0], [1], [0, 0, 1, 1], [], []>} : vector<63x16xf32>, vector<16x128xf32>, vector<63x128xf32> -> vector<63x128xf32>
    %192 = arith.addf %187, %191 : vector<63x128xf32>
    %c262 = arith.constant 262 : index
    %c0_173 = arith.constant 0 : index
    %193 = vector.load %arg8[%c262, %c0_173] : memref<336x16xf32, #tpu.memory_space<vmem>>, vector<63x16xf32>
    %c33 = arith.constant 33 : index
    %c0_174 = arith.constant 0 : index
    %c0_175 = arith.constant 0 : index
    %194 = vector.load %arg5[%c33, %c0_174, %c0_175] : memref<36x16x128xf32, #tpu.memory_space<vmem>>, vector<1x16x128xf32>
    %195 = vector.shape_cast %194 : vector<1x16x128xf32> to vector<16x128xf32>
    %cst_176 = arith.constant dense<0.000000e+00> : vector<63x128xf32>
    %196 = tpu.matmul %193, %195, %cst_176 {dimension_numbers = #tpu.dot_dimension_numbers<[1], [0], [0], [1], [0, 0, 1, 1], [], []>} : vector<63x16xf32>, vector<16x128xf32>, vector<63x128xf32> -> vector<63x128xf32>
    %197 = arith.addf %192, %196 : vector<63x128xf32>
    %c182 = arith.constant 182 : index
    %c0_177 = arith.constant 0 : index
    %198 = vector.load %arg8[%c182, %c0_177] : memref<336x16xf32, #tpu.memory_space<vmem>>, vector<63x16xf32>
    %c34 = arith.constant 34 : index
    %c0_178 = arith.constant 0 : index
    %c0_179 = arith.constant 0 : index
    %199 = vector.load %arg5[%c34, %c0_178, %c0_179] : memref<36x16x128xf32, #tpu.memory_space<vmem>>, vector<1x16x128xf32>
    %200 = vector.shape_cast %199 : vector<1x16x128xf32> to vector<16x128xf32>
    %cst_180 = arith.constant dense<0.000000e+00> : vector<63x128xf32>
    %201 = tpu.matmul %198, %200, %cst_180 {dimension_numbers = #tpu.dot_dimension_numbers<[1], [0], [0], [1], [0, 0, 1, 1], [], []>} : vector<63x16xf32>, vector<16x128xf32>, vector<63x128xf32> -> vector<63x128xf32>
    %202 = arith.addf %197, %201 : vector<63x128xf32>
    %c263 = arith.constant 263 : index
    %c0_181 = arith.constant 0 : index
    %203 = vector.load %arg8[%c263, %c0_181] : memref<336x16xf32, #tpu.memory_space<vmem>>, vector<63x16xf32>
    %c35 = arith.constant 35 : index
    %c0_182 = arith.constant 0 : index
    %c0_183 = arith.constant 0 : index
    %204 = vector.load %arg5[%c35, %c0_182, %c0_183] : memref<36x16x128xf32, #tpu.memory_space<vmem>>, vector<1x16x128xf32>
    %205 = vector.shape_cast %204 : vector<1x16x128xf32> to vector<16x128xf32>
    %cst_184 = arith.constant dense<0.000000e+00> : vector<63x128xf32>
    %206 = tpu.matmul %203, %205, %cst_184 {dimension_numbers = #tpu.dot_dimension_numbers<[1], [0], [0], [1], [0, 0, 1, 1], [], []>} : vector<63x16xf32>, vector<16x128xf32>, vector<63x128xf32> -> vector<63x128xf32>
    %207 = arith.addf %202, %206 : vector<63x128xf32>
    %c32_i32 = arith.constant 32 : i32
    %208 = tpu.dynamic_rotate %207 by %c32_i32 dim 1 : vector<63x128xf32>, i32 -> vector<63x128xf32>
    %209 = arith.maximumf %207, %208 : vector<63x128xf32>
    %c64_i32 = arith.constant 64 : i32
    %210 = tpu.dynamic_rotate %209 by %c64_i32 dim 1 : vector<63x128xf32>, i32 -> vector<63x128xf32>
    %211 = arith.maximumf %209, %210 : vector<63x128xf32>
    %c0_185 = arith.constant 0 : index
    %c0_186 = arith.constant 0 : index
    %212 = vector.load %arg6[%c0_185, %c0_186] : memref<1x128xf32, #tpu.memory_space<vmem>>, vector<1x128xf32>
    %213 = vector.broadcast %212 : vector<1x128xf32> to vector<63x128xf32>
    %214 = arith.addf %211, %213 : vector<63x128xf32>
    %cst_187 = arith.constant 0.000000e+00 : f32
    %215 = vector.broadcast %cst_187 : f32 to vector<63x128xf32>
    %216 = arith.maximumf %214, %215 : vector<63x128xf32>
    %c0_188 = arith.constant 0 : index
    %c0_189 = arith.constant 0 : index
    %c0_190 = arith.constant 0 : index
    %217 = vector.load %arg7[%c0_188, %c0_189, %c0_190] : memref<1x63x128xf32, #tpu.memory_space<vmem>>, vector<1x63x128xf32>
    %218 = vector.shape_cast %217 : vector<1x63x128xf32> to vector<63x128xf32>
    %219 = vector.shape_cast %216 : vector<63x128xf32> to vector<1x63x128xf32>
    tpu.vector_store %arg7[%c0_188, %c0_189, %c0_190], %219 {strides = array<i32>} : memref<1x63x128xf32, #tpu.memory_space<vmem>>, vector<1x63x128xf32>,
    return
  }
  func.func @transform_0(%arg0: i32) -> (i32, i32, i32, i32) {
    %c0_i32 = arith.constant 0 : i32
    %c0_i32_0 = arith.constant 0 : i32
    %c0_i32_1 = arith.constant 0 : i32
    %c0_i32_2 = arith.constant 0 : i32
    return %arg0, %c0_i32, %c0_i32_0, %c0_i32_1 : i32, i32, i32, i32
  }
  func.func @transform_1(%arg0: i32) -> (i32, i32) {
    %c0_i32 = arith.constant 0 : i32
    %c0_i32_0 = arith.constant 0 : i32
    %c0_i32_1 = arith.constant 0 : i32
    return %c0_i32, %c0_i32_0 : i32, i32
  }
  func.func @transform_2(%arg0: i32) -> (i32, i32) {
    %c0_i32 = arith.constant 0 : i32
    %c0_i32_0 = arith.constant 0 : i32
    %c0_i32_1 = arith.constant 0 : i32
    return %c0_i32, %c0_i32_0 : i32, i32
  }
  func.func @transform_3(%arg0: i32) -> (i32, i32) {
    %c0_i32 = arith.constant 0 : i32
    %c0_i32_0 = arith.constant 0 : i32
    %c0_i32_1 = arith.constant 0 : i32
    return %c0_i32, %c0_i32_0 : i32, i32
  }
  func.func @transform_4(%arg0: i32) -> (i32, i32, i32) {
    %c0_i32 = arith.constant 0 : i32
    %c0_i32_0 = arith.constant 0 : i32
    %c0_i32_1 = arith.constant 0 : i32
    %c0_i32_2 = arith.constant 0 : i32
    return %c0_i32, %c0_i32_0, %c0_i32_1 : i32, i32, i32
  }
  func.func @transform_5(%arg0: i32) -> (i32, i32) {
    %c0_i32 = arith.constant 0 : i32
    %c0_i32_0 = arith.constant 0 : i32
    %c0_i32_1 = arith.constant 0 : i32
    return %c0_i32, %c0_i32_0 : i32, i32
  }
  func.func @transform_6(%arg0: i32) -> (i32, i32, i32) {
    %c0_i32 = arith.constant 0 : i32
    %c0_i32_0 = arith.constant 0 : i32
    %c0_i32_1 = arith.constant 0 : i32
    return %arg0, %c0_i32, %c0_i32_0 : i32, i32, i32
  }
}

module attributes {stable_mosaic.version = 11 : i64} {
  func.func @_linear_kernel(%arg0: memref<2x1568xf32, #tpu.memory_space<vmem>>, %arg1: memref<1568x128xf32, #tpu.memory_space<vmem>>, %arg2: memref<1x128xf32, #tpu.memory_space<vmem>>, %arg3: memref<2x128xf32, #tpu.memory_space<vmem>>) attributes {dimension_semantics = [], scalar_prefetch = 0 : i64, scratch_operands = 0 : i64, tpu.core_type = #tpu.core_type<tc>} {
    %c0 = arith.constant 0 : index
    %c0_0 = arith.constant 0 : index
    %0 = vector.load %arg0[%c0, %c0_0] : memref<2x1568xf32, #tpu.memory_space<vmem>>, vector<2x1568xf32>
    %c0_1 = arith.constant 0 : index
    %c0_2 = arith.constant 0 : index
    %1 = vector.load %arg1[%c0_1, %c0_2] : memref<1568x128xf32, #tpu.memory_space<vmem>>, vector<1568x128xf32>
    %cst = arith.constant dense<0.000000e+00> : vector<2x128xf32>
    %2 = tpu.matmul %0, %1, %cst {dimension_numbers = #tpu.dot_dimension_numbers<[1], [0], [0], [1], [0, 0, 1, 1], [], []>} : vector<2x1568xf32>, vector<1568x128xf32>, vector<2x128xf32> -> vector<2x128xf32>
    %c0_3 = arith.constant 0 : index
    %c0_4 = arith.constant 0 : index
    %3 = vector.load %arg2[%c0_3, %c0_4] : memref<1x128xf32, #tpu.memory_space<vmem>>, vector<1x128xf32>
    %4 = vector.broadcast %3 : vector<1x128xf32> to vector<2x128xf32>
    %5 = arith.addf %2, %4 : vector<2x128xf32>
    %c0_5 = arith.constant 0 : index
    %c0_6 = arith.constant 0 : index
    %6 = vector.load %arg3[%c0_5, %c0_6] : memref<2x128xf32, #tpu.memory_space<vmem>>, vector<2x128xf32>
    tpu.vector_store %arg3[%c0_5, %c0_6], %5 {strides = array<i32>} : memref<2x128xf32, #tpu.memory_space<vmem>>, vector<2x128xf32>,
    return
  }
}

</mosaic_0001>

<llo_original>
// kernel: cnn_forward.3
$region0: #{cnn_forward.3}
  #allocation0 [shape = 'u32[]', space=smem, size = 0x4, offset = 0x4, fixed_abs, tag = 'smem constant byte address 0x4 - core index']
  #allocation1 [shape = 'u32[144,128]{1,0:T(1,128)}', space=vmem, size = 0x12000, scoped, tag = 'internal scratch']
  %s0 = inlined_call_operand.vmem [shape: f32[2,1568], index: 0, kind: input, shape index: {}]
  %s1 = inlined_call_operand.vmem [shape: f32[1568,128], index: 1, kind: input, shape index: {}]
  %s2 = inlined_call_operand.vmem [shape: f32[1,128], index: 2, kind: input, shape index: {}]
  %s3 = inlined_call_operand.hbm [shape: f32[2,128], index: 3, kind: output, shape index: {}]
  %s4 = sld [smem:[#allocation0]]
  $region22: #{cnn_forward.3} parent=0
    _
  %s6 = ssub.s32 1, %s4
  %s7 = scalar_select 0, %s6, %s4
  $region1: #{cnn_forward.3} parent=0
    #allocation2 [shape = 'u8[1024]{0}', space=vmem, size = 0x400, scoped, tag = 'output window, operand 0, single buffered']
    #allocation3 [shape = 's32[1]{0}', space=sflag, size = 0x4, scoped, tag = 'scoped memory for cnn_forward.3']
    %8 = vsyncpa [#allocation3], 0
    // Predicated region
    $region2: #{cnn_forward.3} parent=1 // pred_check
      _
    $region3: #{cnn_forward.3} parent=1 // pred_check_branch
      %10 = sbr.rel (0) target = $region5
    $region4: #{cnn_forward.3} parent=1 // pred_region
      _
    $region5: #{cnn_forward.3} parent=1 // pred_fallthru
      _
    // Predicated region
    $region6: #{cnn_forward.3} parent=1 // pred_check
      _
    $region7: #{cnn_forward.3} parent=1 // pred_check_branch
      %12 = sbr.rel (0) target = $region9
    $region8: #{cnn_forward.3} parent=1 // pred_region
      _
    $region9: #{cnn_forward.3} parent=1 // pred_fallthru
      _
    // Predicated region
    $region10: #{cnn_forward.3} parent=1 // pred_check
      _
    $region11: #{cnn_forward.3} parent=1 // pred_check_branch
      %14 = sbr.rel (0) target = $region13
    $region12: #{cnn_forward.3} parent=1 // pred_region
      _
    $region13: #{cnn_forward.3} parent=1 // pred_fallthru
      _
    %v15 = vld [vmem:[%s0] sm:$0xff]
    %v16 = vld [vmem:[%s0 + $0x8] sm:$0xff]
    %v17 = vld [vmem:[%s0 + $0x10] sm:$0xff]
    %v18 = vld [vmem:[%s0 + $0x18] sm:$0x3]
    %v19 = vld [vmem:[%s1] sm:$0xff]
    %v20 = vld [vmem:[%s1 + $0x8] sm:$0xff]
    %v21 = vld [vmem:[%s1 + $0x10] sm:$0xff]
    %v22 = vld [vmem:[%s1 + $0x18] sm:$0xff]
    %v23 = vld [vmem:[%s1 + $0x20] sm:$0xff]
    %v24 = vld [vmem:[%s1 + $0x28] sm:$0xff]
    %v25 = vld [vmem:[%s1 + $0x30] sm:$0xff]
    %v26 = vld [vmem:[%s1 + $0x38] sm:$0xff]
    %v27 = vld [vmem:[%s1 + $0x40] sm:$0xff]
    %v28 = vld [vmem:[%s1 + $0x48] sm:$0xff]
    %v29 = vld [vmem:[%s1 + $0x50] sm:$0xff]
    %v30 = vld [vmem:[%s1 + $0x58] sm:$0xff]
    %v31 = vld [vmem:[%s1 + $0x60] sm:$0xff]
    %v32 = vld [vmem:[%s1 + $0x68] sm:$0xff]
    %v33 = vld [vmem:[%s1 + $0x70] sm:$0xff]
    %v34 = vld [vmem:[%s1 + $0x78] sm:$0xff]
    %v35 = vld [vmem:[%s1 + $0x80] sm:$0xff]
    %v36 = vld [vmem:[%s1 + $0x88] sm:$0xff]
    %v37 = vld [vmem:[%s1 + $0x90] sm:$0xff]
    %v38 = vld [vmem:[%s1 + $0x98] sm:$0xff]
    %v39 = vld [vmem:[%s1 + $0xa0] sm:$0xff]
    %v40 = vld [vmem:[%s1 + $0xa8] sm:$0xff]
    %v41 = vld [vmem:[%s1 + $0xb0] sm:$0xff]
    %v42 = vld [vmem:[%s1 + $0xb8] sm:$0xff]
    %v43 = vld [vmem:[%s1 + $0xc0] sm:$0xff]
    %v44 = vld [vmem:[%s1 + $0xc8] sm:$0xff]
    %v45 = vld [vmem:[%s1 + $0xd0] sm:$0xff]
    %v46 = vld [vmem:[%s1 + $0xd8] sm:$0xff]
    %v47 = vld [vmem:[%s1 + $0xe0] sm:$0xff]
    %v48 = vld [vmem:[%s1 + $0xe8] sm:$0xff]
    %v49 = vld [vmem:[%s1 + $0xf0] sm:$0xff]
    %v50 = vld [vmem:[%s1 + $0xf8] sm:$0xff]
    %v51 = vld [vmem:[%s1 + $0x100] sm:$0xff]
    %v52 = vld [vmem:[%s1 + $0x108] sm:$0xff]
    %v53 = vld [vmem:[%s1 + $0x110] sm:$0xff]
    %v54 = vld [vmem:[%s1 + $0x118] sm:$0xff]
    %v55 = vld [vmem:[%s1 + $0x120] sm:$0xff]
    %v56 = vld [vmem:[%s1 + $0x128] sm:$0xff]
    %v57 = vld [vmem:[%s1 + $0x130] sm:$0xff]
    %v58 = vld [vmem:[%s1 + $0x138] sm:$0xff]
    %v59 = vld [vmem:[%s1 + $0x140] sm:$0xff]
    %v60 = vld [vmem:[%s1 + $0x148] sm:$0xff]
    %v61 = vld [vmem:[%s1 + $0x150] sm:$0xff]
    %v62 = vld [vmem:[%s1 + $0x158] sm:$0xff]
    %v63 = vld [vmem:[%s1 + $0x160] sm:$0xff]
    %v64 = vld [vmem:[%s1 + $0x168] sm:$0xff]
    %v65 = vld [vmem:[%s1 + $0x170] sm:$0xff]
    %v66 = vld [vmem:[%s1 + $0x178] sm:$0xff]
    %v67 = vld [vmem:[%s1 + $0x180] sm:$0xff]
    %v68 = vld [vmem:[%s1 + $0x188] sm:$0xff]
    %v69 = vld [vmem:[%s1 + $0x190] sm:$0xff]
    %v70 = vld [vmem:[%s1 + $0x198] sm:$0xff]
    %v71 = vld [vmem:[%s1 + $0x1a0] sm:$0xff]
    %v72 = vld [vmem:[%s1 + $0x1a8] sm:$0xff]
    %v73 = vld [vmem:[%s1 + $0x1b0] sm:$0xff]
    %v74 = vld [vmem:[%s1 + $0x1b8] sm:$0xff]
    %v75 = vld [vmem:[%s1 + $0x1c0] sm:$0xff]
    %v76 = vld [vmem:[%s1 + $0x1c8] sm:$0xff]
    %v77 = vld [vmem:[%s1 + $0x1d0] sm:$0xff]
    %v78 = vld [vmem:[%s1 + $0x1d8] sm:$0xff]
    %v79 = vld [vmem:[%s1 + $0x1e0] sm:$0xff]
    %v80 = vld [vmem:[%s1 + $0x1e8] sm:$0xff]
    %v81 = vld [vmem:[%s1 + $0x1f0] sm:$0xff]
    %v82 = vld [vmem:[%s1 + $0x1f8] sm:$0xff]
    %v83 = vld [vmem:[%s1 + $0x200] sm:$0xff]
    %v84 = vld [vmem:[%s1 + $0x208] sm:$0xff]
    %v85 = vld [vmem:[%s1 + $0x210] sm:$0xff]
    %v86 = vld [vmem:[%s1 + $0x218] sm:$0xff]
    %v87 = vld [vmem:[%s1 + $0x220] sm:$0xff]
    %v88 = vld [vmem:[%s1 + $0x228] sm:$0xff]
    %v89 = vld [vmem:[%s1 + $0x230] sm:$0xff]
    %v90 = vld [vmem:[%s1 + $0x238] sm:$0xff]
    %v91 = vld [vmem:[%s1 + $0x240] sm:$0xff]
    %v92 = vld [vmem:[%s1 + $0x248] sm:$0xff]
    %v93 = vld [vmem:[%s1 + $0x250] sm:$0xff]
    %v94 = vld [vmem:[%s1 + $0x258] sm:$0xff]
    %v95 = vld [vmem:[%s1 + $0x260] sm:$0xff]
    %v96 = vld [vmem:[%s1 + $0x268] sm:$0xff]
    %v97 = vld [vmem:[%s1 + $0x270] sm:$0xff]
    %v98 = vld [vmem:[%s1 + $0x278] sm:$0xff]
    %v99 = vld [vmem:[%s1 + $0x280] sm:$0xff]
    %v100 = vld [vmem:[%s1 + $0x288] sm:$0xff]
    %v101 = vld [vmem:[%s1 + $0x290] sm:$0xff]
    %v102 = vld [vmem:[%s1 + $0x298] sm:$0xff]
    %v103 = vld [vmem:[%s1 + $0x2a0] sm:$0xff]
    %v104 = vld [vmem:[%s1 + $0x2a8] sm:$0xff]
    %v105 = vld [vmem:[%s1 + $0x2b0] sm:$0xff]
    %v106 = vld [vmem:[%s1 + $0x2b8] sm:$0xff]
    %v107 = vld [vmem:[%s1 + $0x2c0] sm:$0xff]
    %v108 = vld [vmem:[%s1 + $0x2c8] sm:$0xff]
    %v109 = vld [vmem:[%s1 + $0x2d0] sm:$0xff]
    %v110 = vld [vmem:[%s1 + $0x2d8] sm:$0xff]
    %v111 = vld [vmem:[%s1 + $0x2e0] sm:$0xff]
    %v112 = vld [vmem:[%s1 + $0x2e8] sm:$0xff]
    %v113 = vld [vmem:[%s1 + $0x2f0] sm:$0xff]
    %v114 = vld [vmem:[%s1 + $0x2f8] sm:$0xff]
    %v115 = vld [vmem:[%s1 + $0x300] sm:$0xff]
    %v116 = vld [vmem:[%s1 + $0x308] sm:$0xff]
    %v117 = vld [vmem:[%s1 + $0x310] sm:$0xff]
    %v118 = vld [vmem:[%s1 + $0x318] sm:$0xff]
    %v119 = vld [vmem:[%s1 + $0x320] sm:$0xff]
    %v120 = vld [vmem:[%s1 + $0x328] sm:$0xff]
    %v121 = vld [vmem:[%s1 + $0x330] sm:$0xff]
    %v122 = vld [vmem:[%s1 + $0x338] sm:$0xff]
    %v123 = vld [vmem:[%s1 + $0x340] sm:$0xff]
    %v124 = vld [vmem:[%s1 + $0x348] sm:$0xff]
    %v125 = vld [vmem:[%s1 + $0x350] sm:$0xff]
    %v126 = vld [vmem:[%s1 + $0x358] sm:$0xff]
    %v127 = vld [vmem:[%s1 + $0x360] sm:$0xff]
    %v128 = vld [vmem:[%s1 + $0x368] sm:$0xff]
    %v129 = vld [vmem:[%s1 + $0x370] sm:$0xff]
    %v130 = vld [vmem:[%s1 + $0x378] sm:$0xff]
    %v131 = vld [vmem:[%s1 + $0x380] sm:$0xff]
    %v132 = vld [vmem:[%s1 + $0x388] sm:$0xff]
    %v133 = vld [vmem:[%s1 + $0x390] sm:$0xff]
    %v134 = vld [vmem:[%s1 + $0x398] sm:$0xff]
    %v135 = vld [vmem:[%s1 + $0x3a0] sm:$0xff]
    %v136 = vld [vmem:[%s1 + $0x3a8] sm:$0xff]
    %v137 = vld [vmem:[%s1 + $0x3b0] sm:$0xff]
    %v138 = vld [vmem:[%s1 + $0x3b8] sm:$0xff]
    %v139 = vld [vmem:[%s1 + $0x3c0] sm:$0xff]
    %v140 = vld [vmem:[%s1 + $0x3c8] sm:$0xff]
    %v141 = vld [vmem:[%s1 + $0x3d0] sm:$0xff]
    %v142 = vld [vmem:[%s1 + $0x3d8] sm:$0xff]
    %v143 = vld [vmem:[%s1 + $0x3e0] sm:$0xff]
    %v144 = vld [vmem:[%s1 + $0x3e8] sm:$0xff]
    %v145 = vld [vmem:[%s1 + $0x3f0] sm:$0xff]
    %v146 = vld [vmem:[%s1 + $0x3f8] sm:$0xff]
    %v147 = vld [vmem:[%s1 + $0x400] sm:$0xff]
    %v148 = vld [vmem:[%s1 + $0x408] sm:$0xff]
    %v149 = vld [vmem:[%s1 + $0x410] sm:$0xff]
    %v150 = vld [vmem:[%s1 + $0x418] sm:$0xff]
    %v151 = vld [vmem:[%s1 + $0x420] sm:$0xff]
    %v152 = vld [vmem:[%s1 + $0x428] sm:$0xff]
    %v153 = vld [vmem:[%s1 + $0x430] sm:$0xff]
    %v154 = vld [vmem:[%s1 + $0x438] sm:$0xff]
    %v155 = vld [vmem:[%s1 + $0x440] sm:$0xff]
    %v156 = vld [vmem:[%s1 + $0x448] sm:$0xff]
    %v157 = vld [vmem:[%s1 + $0x450] sm:$0xff]
    %v158 = vld [vmem:[%s1 + $0x458] sm:$0xff]
    %v159 = vld [vmem:[%s1 + $0x460] sm:$0xff]
    %v160 = vld [vmem:[%s1 + $0x468] sm:$0xff]
    %v161 = vld [vmem:[%s1 + $0x470] sm:$0xff]
    %v162 = vld [vmem:[%s1 + $0x478] sm:$0xff]
    %v163 = vld [vmem:[%s1 + $0x480] sm:$0xff]
    %v164 = vld [vmem:[%s1 + $0x488] sm:$0xff]
    %v165 = vld [vmem:[%s1 + $0x490] sm:$0xff]
    %v166 = vld [vmem:[%s1 + $0x498] sm:$0xff]
    %v167 = vld [vmem:[%s1 + $0x4a0] sm:$0xff]
    %v168 = vld [vmem:[%s1 + $0x4a8] sm:$0xff]
    %v169 = vld [vmem:[%s1 + $0x4b0] sm:$0xff]
    %v170 = vld [vmem:[%s1 + $0x4b8] sm:$0xff]
    %v171 = vld [vmem:[%s1 + $0x4c0] sm:$0xff]
    %v172 = vld [vmem:[%s1 + $0x4c8] sm:$0xff]
    %v173 = vld [vmem:[%s1 + $0x4d0] sm:$0xff]
    %v174 = vld [vmem:[%s1 + $0x4d8] sm:$0xff]
    %v175 = vld [vmem:[%s1 + $0x4e0] sm:$0xff]
    %v176 = vld [vmem:[%s1 + $0x4e8] sm:$0xff]
    %v177 = vld [vmem:[%s1 + $0x4f0] sm:$0xff]
    %v178 = vld [vmem:[%s1 + $0x4f8] sm:$0xff]
    %v179 = vld [vmem:[%s1 + $0x500] sm:$0xff]
    %v180 = vld [vmem:[%s1 + $0x508] sm:$0xff]
    %v181 = vld [vmem:[%s1 + $0x510] sm:$0xff]
    %v182 = vld [vmem:[%s1 + $0x518] sm:$0xff]
    %v183 = vld [vmem:[%s1 + $0x520] sm:$0xff]
    %v184 = vld [vmem:[%s1 + $0x528] sm:$0xff]
    %v185 = vld [vmem:[%s1 + $0x530] sm:$0xff]
    %v186 = vld [vmem:[%s1 + $0x538] sm:$0xff]
    %v187 = vld [vmem:[%s1 + $0x540] sm:$0xff]
    %v188 = vld [vmem:[%s1 + $0x548] sm:$0xff]
    %v189 = vld [vmem:[%s1 + $0x550] sm:$0xff]
    %v190 = vld [vmem:[%s1 + $0x558] sm:$0xff]
    %v191 = vld [vmem:[%s1 + $0x560] sm:$0xff]
    %v192 = vld [vmem:[%s1 + $0x568] sm:$0xff]
    %v193 = vld [vmem:[%s1 + $0x570] sm:$0xff]
    %v194 = vld [vmem:[%s1 + $0x578] sm:$0xff]
    %v195 = vld [vmem:[%s1 + $0x580] sm:$0xff]
    %v196 = vld [vmem:[%s1 + $0x588] sm:$0xff]
    %v197 = vld [vmem:[%s1 + $0x590] sm:$0xff]
    %v198 = vld [vmem:[%s1 + $0x598] sm:$0xff]
    %v199 = vld [vmem:[%s1 + $0x5a0] sm:$0xff]
    %v200 = vld [vmem:[%s1 + $0x5a8] sm:$0xff]
    %v201 = vld [vmem:[%s1 + $0x5b0] sm:$0xff]
    %v202 = vld [vmem:[%s1 + $0x5b8] sm:$0xff]
    %v203 = vld [vmem:[%s1 + $0x5c0] sm:$0xff]
    %v204 = vld [vmem:[%s1 + $0x5c8] sm:$0xff]
    %v205 = vld [vmem:[%s1 + $0x5d0] sm:$0xff]
    %v206 = vld [vmem:[%s1 + $0x5d8] sm:$0xff]
    %v207 = vld [vmem:[%s1 + $0x5e0] sm:$0xff]
    %v208 = vld [vmem:[%s1 + $0x5e8] sm:$0xff]
    %v209 = vld [vmem:[%s1 + $0x5f0] sm:$0xff]
    %v210 = vld [vmem:[%s1 + $0x5f8] sm:$0xff]
    %v211 = vld [vmem:[%s1 + $0x600] sm:$0xff]
    %v212 = vld [vmem:[%s1 + $0x608] sm:$0xff]
    %v213 = vld [vmem:[%s1 + $0x610] sm:$0xff]
    %v214 = vld [vmem:[%s1 + $0x618] sm:$0xff]
    %v215 = vld [vmem:[%s2] sm:$0x1]
    %v217 = vlaneseq
    %v218 = vshrl.u32 %v217, 7
    %v219 = vsub.s32 0, %v218
    %v220 = vrot.slane %v215, %v219
    %v226 = vcombine.high %v15, %v15
    %v228 = vunpack.c.l.s4 1983009808
    %v229 = vunpack.c.0.s8 %v228
    %v230 = vlaneseq
    %v231 = vshrl.u32 %v230, 7
    %v232 = vsub.s32 %v229, %v231
    %v233 = vrot.slane %v15, %v232
    %v235 = vunpack.c.l.s4 1983009808
    %v236 = vunpack.c.0.s8 %v235
    %v237 = vlaneseq
    %v238 = vshrl.u32 %v237, 7
    %v239 = vsub.s32 %v236, %v238
    %v240 = vrot.slane %v226, %v239
    %v241 = vcombine.high %v233, %v233
    %v242 = vcombine.high %v240, %v240
    %v243 = vcombine.high %v16, %v16
    %v245 = vunpack.c.l.s4 1983009808
    %v246 = vunpack.c.0.s8 %v245
    %v247 = vlaneseq
    %v248 = vshrl.u32 %v247, 7
    %v249 = vsub.s32 %v246, %v248
    %v250 = vrot.slane %v16, %v249
    %v252 = vunpack.c.l.s4 1983009808
    %v253 = vunpack.c.0.s8 %v252
    %v254 = vlaneseq
    %v255 = vshrl.u32 %v254, 7
    %v256 = vsub.s32 %v253, %v255
    %v257 = vrot.slane %v243, %v256
    %v258 = vcombine.high %v250, %v250
    %v259 = vcombine.high %v257, %v257
    %v260 = vcombine.high %v17, %v17
    %v262 = vunpack.c.l.s4 1983009808
    %v263 = vunpack.c.0.s8 %v262
    %v264 = vlaneseq
    %v265 = vshrl.u32 %v264, 7
    %v266 = vsub.s32 %v263, %v265
    %v267 = vrot.slane %v17, %v266
    %v269 = vunpack.c.l.s4 1983009808
    %v270 = vunpack.c.0.s8 %v269
    %v271 = vlaneseq
    %v272 = vshrl.u32 %v271, 7
    %v273 = vsub.s32 %v270, %v272
    %v274 = vrot.slane %v260, %v273
    %v275 = vcombine.high %v267, %v267
    %v276 = vcombine.high %v274, %v274
    %v278 = vunpack.c.l.s4 1983009808
    %v279 = vunpack.c.0.s8 %v278
    %v280 = vlaneseq
    %v281 = vshrl.u32 %v280, 7
    %v282 = vsub.s32 %v279, %v281
    %v283 = vrot.slane %v18, %v282
    %vm296 = vcmask 261120
    %v297 = vsel %vm296, %v283, 0
    %299 = vmatprep.subr.mxu0 0.0
    %300 = vmatpush1.msra.mxu0 %v19
    %301 = vmatprep.subr.mxu0 0.0
    %302 = vmatpush1.msra.mxu0 %v20
    %303 = vmatprep.subr.mxu0 0.0
    %304 = vmatpush1.msra.mxu0 %v21
    %305 = vmatprep.subr.mxu0 0.0
    %306 = vmatpush1.msra.mxu0 %v22
    %307 = vmatprep.subr.mxu0 0.0
    %308 = vmatpush1.msra.mxu0 %v23
    %309 = vmatprep.subr.mxu0 0.0
    %310 = vmatpush1.msra.mxu0 %v24
    %311 = vmatprep.subr.mxu0 0.0
    %312 = vmatpush1.msra.mxu0 %v25
    %313 = vmatprep.subr.mxu0 0.0
    %314 = vmatpush1.msra.mxu0 %v26
    %315 = vmatprep.subr.mxu0 0.0
    %316 = vmatpush1.msra.mxu0 %v27
    %317 = vmatprep.subr.mxu0 0.0
    %318 = vmatpush1.msra.mxu0 %v28
    %319 = vmatprep.subr.mxu0 0.0
    %320 = vmatpush1.msra.mxu0 %v29
    %321 = vmatprep.subr.mxu0 0.0
    %322 = vmatpush1.msra.mxu0 %v30
    %323 = vmatprep.subr.mxu0 0.0
    %324 = vmatpush1.msra.mxu0 %v31
    %325 = vmatprep.subr.mxu0 0.0
    %326 = vmatpush1.msra.mxu0 %v32
    %327 = vmatprep.subr.mxu0 0.0
    %328 = vmatpush1.msra.mxu0 %v33
    %329 = vmatprep.subr.mxu0 0.0
    %330 = vmatpush1.msra.mxu0 %v34
    %331 = vmatprep.subr.mxu0 0.0
    %332 = vmatpush1.msra.mxu0 %v35
    %333 = vmatprep.subr.mxu0 0.0
    %334 = vmatpush1.msra.mxu0 %v36
    %335 = vmatprep.subr.mxu0 0.0
    %336 = vmatpush1.msra.mxu0 %v37
    %337 = vmatprep.subr.mxu0 0.0
    %338 = vmatpush1.msra.mxu0 %v38
    %339 = vmatprep.subr.mxu0 0.0
    %340 = vmatpush1.msra.mxu0 %v39
    %341 = vmatprep.subr.mxu0 0.0
    %342 = vmatpush1.msra.mxu0 %v40
    %343 = vmatprep.subr.mxu0 0.0
    %344 = vmatpush1.msra.mxu0 %v41
    %345 = vmatprep.subr.mxu0 0.0
    %346 = vmatpush1.msra.mxu0 %v42
    %347 = vmatprep.subr.mxu0 0.0
    %348 = vmatpush1.msra.mxu0 %v43
    %349 = vmatprep.subr.mxu0 0.0
    %350 = vmatpush1.msra.mxu0 %v44
    %351 = vmatprep.subr.mxu0 0.0
    %352 = vmatpush1.msra.mxu0 %v45
    %353 = vmatprep.subr.mxu0 0.0
    %354 = vmatpush1.msra.mxu0 %v46
    %355 = vmatprep.subr.mxu0 0.0
    %356 = vmatpush1.msra.mxu0 %v47
    %357 = vmatprep.subr.mxu0 0.0
    %358 = vmatpush1.msra.mxu0 %v48
    %359 = vmatprep.subr.mxu0 0.0
    %360 = vmatpush1.msra.mxu0 %v49
    %361 = vmatprep.subr.mxu0 0.0
    %362 = vmatpush1.msra.mxu0 %v50
    %363 = vmatprep.mubr.f32.mxu0 %v241
    %364 = vmatmul.mubr.f32.gmra.mrb[0].mxu0 %v233
    %v365 = vpop.f32.mrb[0].mxu0
    %v366 = vadd.f32 %v220, %v365
    %v367 = vpop.f32.mrb[0].mxu0
    %368 = vdwg.mxu0
    %369 = vmatprep.subr.mxu0 0.0
    %370 = vmatpush1.msra.mxu0 %v51
    %371 = vmatprep.subr.mxu0 0.0
    %372 = vmatpush1.msra.mxu0 %v52
    %373 = vmatprep.subr.mxu0 0.0
    %374 = vmatpush1.msra.mxu0 %v53
    %375 = vmatprep.subr.mxu0 0.0
    %376 = vmatpush1.msra.mxu0 %v54
    %377 = vmatprep.subr.mxu0 0.0
    %378 = vmatpush1.msra.mxu0 %v55
    %379 = vmatprep.subr.mxu0 0.0
    %380 = vmatpush1.msra.mxu0 %v56
    %381 = vmatprep.subr.mxu0 0.0
    %382 = vmatpush1.msra.mxu0 %v57
    %383 = vmatprep.subr.mxu0 0.0
    %384 = vmatpush1.msra.mxu0 %v58
    %385 = vmatprep.subr.mxu0 0.0
    %386 = vmatpush1.msra.mxu0 %v59
    %387 = vmatprep.subr.mxu0 0.0
    %388 = vmatpush1.msra.mxu0 %v60
    %389 = vmatprep.subr.mxu0 0.0
    %390 = vmatpush1.msra.mxu0 %v61
    %391 = vmatprep.subr.mxu0 0.0
    %392 = vmatpush1.msra.mxu0 %v62
    %393 = vmatprep.subr.mxu0 0.0
    %394 = vmatpush1.msra.mxu0 %v63
    %395 = vmatprep.subr.mxu0 0.0
    %396 = vmatpush1.msra.mxu0 %v64
    %397 = vmatprep.subr.mxu0 0.0
    %398 = vmatpush1.msra.mxu0 %v65
    %399 = vmatprep.subr.mxu0 0.0
    %400 = vmatpush1.msra.mxu0 %v66
    %401 = vmatprep.subr.mxu0 0.0
    %402 = vmatpush1.msra.mxu0 %v67
    %403 = vmatprep.subr.mxu0 0.0
    %404 = vmatpush1.msra.mxu0 %v68
    %405 = vmatprep.subr.mxu0 0.0
    %406 = vmatpush1.msra.mxu0 %v69
    %407 = vmatprep.subr.mxu0 0.0
    %408 = vmatpush1.msra.mxu0 %v70
    %409 = vmatprep.subr.mxu0 0.0
    %410 = vmatpush1.msra.mxu0 %v71
    %411 = vmatprep.subr.mxu0 0.0
    %412 = vmatpush1.msra.mxu0 %v72
    %413 = vmatprep.subr.mxu0 0.0
    %414 = vmatpush1.msra.mxu0 %v73
    %415 = vmatprep.subr.mxu0 0.0
    %416 = vmatpush1.msra.mxu0 %v74
    %417 = vmatprep.subr.mxu0 0.0
    %418 = vmatpush1.msra.mxu0 %v75
    %419 = vmatprep.subr.mxu0 0.0
    %420 = vmatpush1.msra.mxu0 %v76
    %421 = vmatprep.subr.mxu0 0.0
    %422 = vmatpush1.msra.mxu0 %v77
    %423 = vmatprep.subr.mxu0 0.0
    %424 = vmatpush1.msra.mxu0 %v78
    %425 = vmatprep.subr.mxu0 0.0
    %426 = vmatpush1.msra.mxu0 %v79
    %427 = vmatprep.subr.mxu0 0.0
    %428 = vmatpush1.msra.mxu0 %v80
    %429 = vmatprep.subr.mxu0 0.0
    %430 = vmatpush1.msra.mxu0 %v81
    %431 = vmatprep.subr.mxu0 0.0
    %432 = vmatpush1.msra.mxu0 %v82
    %433 = vmatprep.mubr.f32.mxu0 %v242
    %434 = vmatmul.mubr.f32.gmra.mrb[0].mxu0 %v240
    %v435 = vpop.f32.mrb[0].mxu0
    %v436 = vadd.f32 %v366, %v435
    %v437 = vpop.f32.mrb[0].mxu0
    %438 = vdwg.mxu0
    %439 = vmatprep.subr.mxu0 0.0
    %440 = vmatpush1.msra.mxu0 %v83
    %441 = vmatprep.subr.mxu0 0.0
    %442 = vmatpush1.msra.mxu0 %v84
    %443 = vmatprep.subr.mxu0 0.0
    %444 = vmatpush1.msra.mxu0 %v85
    %445 = vmatprep.subr.mxu0 0.0
    %446 = vmatpush1.msra.mxu0 %v86
    %447 = vmatprep.subr.mxu0 0.0
    %448 = vmatpush1.msra.mxu0 %v87
    %449 = vmatprep.subr.mxu0 0.0
    %450 = vmatpush1.msra.mxu0 %v88
    %451 = vmatprep.subr.mxu0 0.0
    %452 = vmatpush1.msra.mxu0 %v89
    %453 = vmatprep.subr.mxu0 0.0
    %454 = vmatpush1.msra.mxu0 %v90
    %455 = vmatprep.subr.mxu0 0.0
    %456 = vmatpush1.msra.mxu0 %v91
    %457 = vmatprep.subr.mxu0 0.0
    %458 = vmatpush1.msra.mxu0 %v92
    %459 = vmatprep.subr.mxu0 0.0
    %460 = vmatpush1.msra.mxu0 %v93
    %461 = vmatprep.subr.mxu0 0.0
    %462 = vmatpush1.msra.mxu0 %v94
    %463 = vmatprep.subr.mxu0 0.0
    %464 = vmatpush1.msra.mxu0 %v95
    %465 = vmatprep.subr.mxu0 0.0
    %466 = vmatpush1.msra.mxu0 %v96
    %467 = vmatprep.subr.mxu0 0.0
    %468 = vmatpush1.msra.mxu0 %v97
    %469 = vmatprep.subr.mxu0 0.0
    %470 = vmatpush1.msra.mxu0 %v98
    %471 = vmatprep.subr.mxu0 0.0
    %472 = vmatpush1.msra.mxu0 %v99
    %473 = vmatprep.subr.mxu0 0.0
    %474 = vmatpush1.msra.mxu0 %v100
    %475 = vmatprep.subr.mxu0 0.0
    %476 = vmatpush1.msra.mxu0 %v101
    %477 = vmatprep.subr.mxu0 0.0
    %478 = vmatpush1.msra.mxu0 %v102
    %479 = vmatprep.subr.mxu0 0.0
    %480 = vmatpush1.msra.mxu0 %v103
    %481 = vmatprep.subr.mxu0 0.0
    %482 = vmatpush1.msra.mxu0 %v104
    %483 = vmatprep.subr.mxu0 0.0
    %484 = vmatpush1.msra.mxu0 %v105
    %485 = vmatprep.subr.mxu0 0.0
    %486 = vmatpush1.msra.mxu0 %v106
    %487 = vmatprep.subr.mxu0 0.0
    %488 = vmatpush1.msra.mxu0 %v107
    %489 = vmatprep.subr.mxu0 0.0
    %490 = vmatpush1.msra.mxu0 %v108
    %491 = vmatprep.subr.mxu0 0.0
    %492 = vmatpush1.msra.mxu0 %v109
    %493 = vmatprep.subr.mxu0 0.0
    %494 = vmatpush1.msra.mxu0 %v110
    %495 = vmatprep.subr.mxu0 0.0
    %496 = vmatpush1.msra.mxu0 %v111
    %497 = vmatprep.subr.mxu0 0.0
    %498 = vmatpush1.msra.mxu0 %v112
    %499 = vmatprep.subr.mxu0 0.0
    %500 = vmatpush1.msra.mxu0 %v113
    %501 = vmatprep.subr.mxu0 0.0
    %502 = vmatpush1.msra.mxu0 %v114
    %503 = vmatprep.mubr.f32.mxu0 %v258
    %504 = vmatmul.mubr.f32.gmra.mrb[0].mxu0 %v250
    %v505 = vpop.f32.mrb[0].mxu0
    %v506 = vadd.f32 %v436, %v505
    %v507 = vpop.f32.mrb[0].mxu0
    %508 = vdwg.mxu0
    %509 = vmatprep.subr.mxu0 0.0
    %510 = vmatpush1.msra.mxu0 %v115
    %511 = vmatprep.subr.mxu0 0.0
    %512 = vmatpush1.msra.mxu0 %v116
    %513 = vmatprep.subr.mxu0 0.0
    %514 = vmatpush1.msra.mxu0 %v117
    %515 = vmatprep.subr.mxu0 0.0
    %516 = vmatpush1.msra.mxu0 %v118
    %517 = vmatprep.subr.mxu0 0.0
    %518 = vmatpush1.msra.mxu0 %v119
    %519 = vmatprep.subr.mxu0 0.0
    %520 = vmatpush1.msra.mxu0 %v120
    %521 = vmatprep.subr.mxu0 0.0
    %522 = vmatpush1.msra.mxu0 %v121
    %523 = vmatprep.subr.mxu0 0.0
    %524 = vmatpush1.msra.mxu0 %v122
    %525 = vmatprep.subr.mxu0 0.0
    %526 = vmatpush1.msra.mxu0 %v123
    %527 = vmatprep.subr.mxu0 0.0
    %528 = vmatpush1.msra.mxu0 %v124
    %529 = vmatprep.subr.mxu0 0.0
    %530 = vmatpush1.msra.mxu0 %v125
    %531 = vmatprep.subr.mxu0 0.0
    %532 = vmatpush1.msra.mxu0 %v126
    %533 = vmatprep.subr.mxu0 0.0
    %534 = vmatpush1.msra.mxu0 %v127
    %535 = vmatprep.subr.mxu0 0.0
    %536 = vmatpush1.msra.mxu0 %v128
    %537 = vmatprep.subr.mxu0 0.0
    %538 = vmatpush1.msra.mxu0 %v129
    %539 = vmatprep.subr.mxu0 0.0
    %540 = vmatpush1.msra.mxu0 %v130
    %541 = vmatprep.subr.mxu0 0.0
    %542 = vmatpush1.msra.mxu0 %v131
    %543 = vmatprep.subr.mxu0 0.0
    %544 = vmatpush1.msra.mxu0 %v132
    %545 = vmatprep.subr.mxu0 0.0
    %546 = vmatpush1.msra.mxu0 %v133
    %547 = vmatprep.subr.mxu0 0.0
    %548 = vmatpush1.msra.mxu0 %v134
    %549 = vmatprep.subr.mxu0 0.0
    %550 = vmatpush1.msra.mxu0 %v135
    %551 = vmatprep.subr.mxu0 0.0
    %552 = vmatpush1.msra.mxu0 %v136
    %553 = vmatprep.subr.mxu0 0.0
    %554 = vmatpush1.msra.mxu0 %v137
    %555 = vmatprep.subr.mxu0 0.0
    %556 = vmatpush1.msra.mxu0 %v138
    %557 = vmatprep.subr.mxu0 0.0
    %558 = vmatpush1.msra.mxu0 %v139
    %559 = vmatprep.subr.mxu0 0.0
    %560 = vmatpush1.msra.mxu0 %v140
    %561 = vmatprep.subr.mxu0 0.0
    %562 = vmatpush1.msra.mxu0 %v141
    %563 = vmatprep.subr.mxu0 0.0
    %564 = vmatpush1.msra.mxu0 %v142
    %565 = vmatprep.subr.mxu0 0.0
    %566 = vmatpush1.msra.mxu0 %v143
    %567 = vmatprep.subr.mxu0 0.0
    %568 = vmatpush1.msra.mxu0 %v144
    %569 = vmatprep.subr.mxu0 0.0
    %570 = vmatpush1.msra.mxu0 %v145
    %571 = vmatprep.subr.mxu0 0.0
    %572 = vmatpush1.msra.mxu0 %v146
    %573 = vmatprep.mubr.f32.mxu0 %v259
    %574 = vmatmul.mubr.f32.gmra.mrb[0].mxu0 %v257
    %v575 = vpop.f32.mrb[0].mxu0
    %v576 = vadd.f32 %v506, %v575
    %v577 = vpop.f32.mrb[0].mxu0
    %578 = vdwg.mxu0
    %579 = vmatprep.subr.mxu0 0.0
    %580 = vmatpush1.msra.mxu0 %v147
    %581 = vmatprep.subr.mxu0 0.0
    %582 = vmatpush1.msra.mxu0 %v148
    %583 = vmatprep.subr.mxu0 0.0
    %584 = vmatpush1.msra.mxu0 %v149
    %585 = vmatprep.subr.mxu0 0.0
    %586 = vmatpush1.msra.mxu0 %v150
    %587 = vmatprep.subr.mxu0 0.0
    %588 = vmatpush1.msra.mxu0 %v151
    %589 = vmatprep.subr.mxu0 0.0
    %590 = vmatpush1.msra.mxu0 %v152
    %591 = vmatprep.subr.mxu0 0.0
    %592 = vmatpush1.msra.mxu0 %v153
    %593 = vmatprep.subr.mxu0 0.0
    %594 = vmatpush1.msra.mxu0 %v154
    %595 = vmatprep.subr.mxu0 0.0
    %596 = vmatpush1.msra.mxu0 %v155
    %597 = vmatprep.subr.mxu0 0.0
    %598 = vmatpush1.msra.mxu0 %v156
    %599 = vmatprep.subr.mxu0 0.0
    %600 = vmatpush1.msra.mxu0 %v157
    %601 = vmatprep.subr.mxu0 0.0
    %602 = vmatpush1.msra.mxu0 %v158
    %603 = vmatprep.subr.mxu0 0.0
    %604 = vmatpush1.msra.mxu0 %v159
    %605 = vmatprep.subr.mxu0 0.0
    %606 = vmatpush1.msra.mxu0 %v160
    %607 = vmatprep.subr.mxu0 0.0
    %608 = vmatpush1.msra.mxu0 %v161
    %609 = vmatprep.subr.mxu0 0.0
    %610 = vmatpush1.msra.mxu0 %v162
    %611 = vmatprep.subr.mxu0 0.0
    %612 = vmatpush1.msra.mxu0 %v163
    %613 = vmatprep.subr.mxu0 0.0
    %614 = vmatpush1.msra.mxu0 %v164
    %615 = vmatprep.subr.mxu0 0.0
    %616 = vmatpush1.msra.mxu0 %v165
    %617 = vmatprep.subr.mxu0 0.0
    %618 = vmatpush1.msra.mxu0 %v166
    %619 = vmatprep.subr.mxu0 0.0
    %620 = vmatpush1.msra.mxu0 %v167
    %621 = vmatprep.subr.mxu0 0.0
    %622 = vmatpush1.msra.mxu0 %v168
    %623 = vmatprep.subr.mxu0 0.0
    %624 = vmatpush1.msra.mxu0 %v169
    %625 = vmatprep.subr.mxu0 0.0
    %626 = vmatpush1.msra.mxu0 %v170
    %627 = vmatprep.subr.mxu0 0.0
    %628 = vmatpush1.msra.mxu0 %v171
    %629 = vmatprep.subr.mxu0 0.0
    %630 = vmatpush1.msra.mxu0 %v172
    %631 = vmatprep.subr.mxu0 0.0
    %632 = vmatpush1.msra.mxu0 %v173
    %633 = vmatprep.subr.mxu0 0.0
    %634 = vmatpush1.msra.mxu0 %v174
    %635 = vmatprep.subr.mxu0 0.0
    %636 = vmatpush1.msra.mxu0 %v175
    %637 = vmatprep.subr.mxu0 0.0
    %638 = vmatpush1.msra.mxu0 %v176
    %639 = vmatprep.subr.mxu0 0.0
    %640 = vmatpush1.msra.mxu0 %v177
    %641 = vmatprep.subr.mxu0 0.0
    %642 = vmatpush1.msra.mxu0 %v178
    %643 = vmatprep.mubr.f32.mxu0 %v275
    %644 = vmatmul.mubr.f32.gmra.mrb[0].mxu0 %v267
    %v645 = vpop.f32.mrb[0].mxu0
    %v646 = vadd.f32 %v576, %v645
    %v647 = vpop.f32.mrb[0].mxu0
    %648 = vdwg.mxu0
    %649 = vmatprep.subr.mxu0 0.0
    %650 = vmatpush1.msra.mxu0 %v179
    %651 = vmatprep.subr.mxu0 0.0
    %652 = vmatpush1.msra.mxu0 %v180
    %653 = vmatprep.subr.mxu0 0.0
    %654 = vmatpush1.msra.mxu0 %v181
    %655 = vmatprep.subr.mxu0 0.0
    %656 = vmatpush1.msra.mxu0 %v182
    %657 = vmatprep.subr.mxu0 0.0
    %658 = vmatpush1.msra.mxu0 %v183
    %659 = vmatprep.subr.mxu0 0.0
    %660 = vmatpush1.msra.mxu0 %v184
    %661 = vmatprep.subr.mxu0 0.0
    %662 = vmatpush1.msra.mxu0 %v185
    %663 = vmatprep.subr.mxu0 0.0
    %664 = vmatpush1.msra.mxu0 %v186
    %665 = vmatprep.subr.mxu0 0.0
    %666 = vmatpush1.msra.mxu0 %v187
    %667 = vmatprep.subr.mxu0 0.0
    %668 = vmatpush1.msra.mxu0 %v188
    %669 = vmatprep.subr.mxu0 0.0
    %670 = vmatpush1.msra.mxu0 %v189
    %671 = vmatprep.subr.mxu0 0.0
    %672 = vmatpush1.msra.mxu0 %v190
    %673 = vmatprep.subr.mxu0 0.0
    %674 = vmatpush1.msra.mxu0 %v191
    %675 = vmatprep.subr.mxu0 0.0
    %676 = vmatpush1.msra.mxu0 %v192
    %677 = vmatprep.subr.mxu0 0.0
    %678 = vmatpush1.msra.mxu0 %v193
    %679 = vmatprep.subr.mxu0 0.0
    %680 = vmatpush1.msra.mxu0 %v194
    %681 = vmatprep.subr.mxu0 0.0
    %682 = vmatpush1.msra.mxu0 %v195
    %683 = vmatprep.subr.mxu0 0.0
    %684 = vmatpush1.msra.mxu0 %v196
    %685 = vmatprep.subr.mxu0 0.0
    %686 = vmatpush1.msra.mxu0 %v197
    %687 = vmatprep.subr.mxu0 0.0
    %688 = vmatpush1.msra.mxu0 %v198
    %689 = vmatprep.subr.mxu0 0.0
    %690 = vmatpush1.msra.mxu0 %v199
    %691 = vmatprep.subr.mxu0 0.0
    %692 = vmatpush1.msra.mxu0 %v200
    %693 = vmatprep.subr.mxu0 0.0
    %694 = vmatpush1.msra.mxu0 %v201
    %695 = vmatprep.subr.mxu0 0.0
    %696 = vmatpush1.msra.mxu0 %v202
    %697 = vmatprep.subr.mxu0 0.0
    %698 = vmatpush1.msra.mxu0 %v203
    %699 = vmatprep.subr.mxu0 0.0
    %700 = vmatpush1.msra.mxu0 %v204
    %701 = vmatprep.subr.mxu0 0.0
    %702 = vmatpush1.msra.mxu0 %v205
    %703 = vmatprep.subr.mxu0 0.0
    %704 = vmatpush1.msra.mxu0 %v206
    %705 = vmatprep.subr.mxu0 0.0
    %706 = vmatpush1.msra.mxu0 %v207
    %707 = vmatprep.subr.mxu0 0.0
    %708 = vmatpush1.msra.mxu0 %v208
    %709 = vmatprep.subr.mxu0 0.0
    %710 = vmatpush1.msra.mxu0 %v209
    %711 = vmatprep.subr.mxu0 0.0
    %712 = vmatpush1.msra.mxu0 %v210
    %713 = vmatprep.mubr.f32.mxu0 %v276
    %714 = vmatmul.mubr.f32.gmra.mrb[0].mxu0 %v274
    %v715 = vpop.f32.mrb[0].mxu0
    %v716 = vadd.f32 %v646, %v715
    %v717 = vpop.f32.mrb[0].mxu0
    %718 = vdwg.mxu0
    %719 = vmatprep.subr.mxu0 0.0
    %720 = vmatpush1.msra.mxu0 %v211
    %721 = vmatprep.subr.mxu0 0.0
    %722 = vmatpush1.msra.mxu0 %v212
    %723 = vmatprep.subr.mxu0 0.0
    %724 = vmatpush1.msra.mxu0 %v213
    %725 = vmatprep.subr.mxu0 0.0
    %726 = vmatpush1.msra.mxu0 %v214
    %727 = vmatprep.subr.mxu0 0.0
    %728 = vmatpush1.msra.mxu0 0.0
    %729 = vmatprep.subr.mxu0 0.0
    %730 = vmatpush1.msra.mxu0 0.0
    %731 = vmatprep.subr.mxu0 0.0
    %732 = vmatpush1.msra.mxu0 0.0
    %733 = vmatprep.subr.mxu0 0.0
    %734 = vmatpush1.msra.mxu0 0.0
    %735 = vmatprep.subr.mxu0 0.0
    %736 = vmatpush1.msra.mxu0 0.0
    %737 = vmatprep.subr.mxu0 0.0
    %738 = vmatpush1.msra.mxu0 0.0
    %739 = vmatprep.subr.mxu0 0.0
    %740 = vmatpush1.msra.mxu0 0.0
    %741 = vmatprep.subr.mxu0 0.0
    %742 = vmatpush1.msra.mxu0 0.0
    %743 = vmatprep.subr.mxu0 0.0
    %744 = vmatpush1.msra.mxu0 0.0
    %745 = vmatprep.subr.mxu0 0.0
    %746 = vmatpush1.msra.mxu0 0.0
    %747 = vmatprep.subr.mxu0 0.0
    %748 = vmatpush1.msra.mxu0 0.0
    %749 = vmatprep.subr.mxu0 0.0
    %750 = vmatpush1.msra.mxu0 0.0
    %751 = vmatprep.subr.mxu0 0.0
    %752 = vmatpush1.msra.mxu0 0.0
    %753 = vmatprep.subr.mxu0 0.0
    %754 = vmatpush1.msra.mxu0 0.0
    %755 = vmatprep.subr.mxu0 0.0
    %756 = vmatpush1.msra.mxu0 0.0
    %757 = vmatprep.subr.mxu0 0.0
    %758 = vmatpush1.msra.mxu0 0.0
    %759 = vmatprep.subr.mxu0 0.0
    %760 = vmatpush1.msra.mxu0 0.0
    %761 = vmatprep.subr.mxu0 0.0
    %762 = vmatpush1.msra.mxu0 0.0
    %763 = vmatprep.subr.mxu0 0.0
    %764 = vmatpush1.msra.mxu0 0.0
    %765 = vmatprep.subr.mxu0 0.0
    %766 = vmatpush1.msra.mxu0 0.0
    %767 = vmatprep.subr.mxu0 0.0
    %768 = vmatpush1.msra.mxu0 0.0
    %769 = vmatprep.subr.mxu0 0.0
    %770 = vmatpush1.msra.mxu0 0.0
    %771 = vmatprep.subr.mxu0 0.0
    %772 = vmatpush1.msra.mxu0 0.0
    %773 = vmatprep.subr.mxu0 0.0
    %774 = vmatpush1.msra.mxu0 0.0
    %775 = vmatprep.subr.mxu0 0.0
    %776 = vmatpush1.msra.mxu0 0.0
    %777 = vmatprep.subr.mxu0 0.0
    %778 = vmatpush1.msra.mxu0 0.0
    %779 = vmatprep.subr.mxu0 0.0
    %780 = vmatpush1.msra.mxu0 0.0
    %781 = vmatprep.subr.mxu0 0.0
    %782 = vmatpush1.msra.mxu0 0.0
    %783 = vmatprep.mubr.f32.mxu0 0.0
    %784 = vmatmul.mubr.f32.gmra.mrb[0].mxu0 %v297
    %v785 = vpop.f32.mrb[0].mxu0
    %v786 = vadd.f32 %v716, %v785
    %v787 = vpop.f32.mrb[0].mxu0
    %788 = vdwg.mxu0
    %789 = vst [vmem:[#allocation2] sm:$0x3] %v786
    // Predicated region
    $region14: #{cnn_forward.3} parent=1 // pred_check
      _
    $region15: #{cnn_forward.3} parent=1 // pred_check_branch
      %791 = sbr.rel (0) target = $region17
    $region16: #{cnn_forward.3} parent=1 // pred_region
      %s793 = ssub.s32 32, 32
      %794 = vsyncadd [#allocation3], %s793
      %s796 = sshll.u32 [#allocation2], 4
      %s797 = int_to_ptr.vmem [resolvable:$true] %s796
      %799 = dma.vmem_to_hbm [thread:$0]  %s797, 32, %s3, [#allocation3]
    $region17: #{cnn_forward.3} parent=1 // pred_fallthru
      _
    // Predicated region
    $region18: #{cnn_forward.3} parent=1 // pred_check
      _
    $region19: #{cnn_forward.3} parent=1 // pred_check_branch
      %801 = sbr.rel (0) target = $region21
    $region20: #{cnn_forward.3} parent=1 // pred_region
      %802 = dma.done [#allocation3], 32
    $region21: #{cnn_forward.3} parent=1 // pred_fallthru
      _
    %803 = vsyncpa [#allocation3], 1

// kernel: cnn_forward.2
$region0: #{cnn_forward.2}
  #allocation0 [shape = 'u32[]', space=smem, size = 0x4, offset = 0x4, fixed_abs, tag = 'smem constant byte address 0x4 - core index']
  #allocation1 [shape = 'u32[144,128]{1,0:T(1,128)}', space=vmem, size = 0x12000, scoped, tag = 'internal scratch']
  #allocation2 [shape = 'f32[336,16]{1,0:T(8,128)}', space=vmem, size = 0x2a000, scoped, tag = 'scratch operand']
  %s0 = inlined_call_operand.vmem [shape: f32[2,4,324,25], index: 0, kind: input, shape index: {}]
  %s1 = inlined_call_operand.vmem [shape: f32[25,16], index: 1, kind: input, shape index: {}]
  %s2 = inlined_call_operand.vmem [shape: f32[1,16], index: 2, kind: input, shape index: {}]
  %s3 = inlined_call_operand.vmem [shape: f32[324,1], index: 3, kind: input, shape index: {}]
  %s4 = inlined_call_operand.vmem [shape: f32[36,16,128], index: 4, kind: input, shape index: {}]
  %s5 = inlined_call_operand.vmem [shape: f32[1,128], index: 5, kind: input, shape index: {}]
  %s6 = inlined_call_operand.vmem [shape: f32[2,63,128], index: 6, kind: output, shape index: {}]
  %s7 = sld [smem:[#allocation0]]
  $region57: #{cnn_forward.2} parent=0
    _
  %s9 = ssub.s32 1, %s7
  %s10 = scalar_select 0, %s9, %s7
  loop: start=0, step=1, limit=4
  $region2: #{cnn_forward.2} parent=0 // loop_pre_header
    _
  $region3: #{cnn_forward.2} parent=0 // loop_header
    %s12 = sphi 0, %s16
    %p13 = scmp.ge.s32.totalorder %s12, 4
    %s22 = sphi 0, %s24
    %s25 = sphi 0, %s22
    %s26 = sphi 0, %s25
    %s42 = sphi 0, %s26
    %s46 = sphi 0, %s46
    %s48 = sphi 0, %s46
    %s49 = sphi 0, %s48
    %s63 = sphi 0, %s49
    %s67 = sphi 0, %s67
    %s69 = sphi 0, %s67
    %s70 = sphi 0, %s69
    %s84 = sphi 0, %s70
    %s88 = sphi 0, %s88
    %s90 = sphi 0, %s88
    %s91 = sphi 0, %s90
    %s105 = sphi 0, %s91
    %s109 = sphi 0, %s109
    %s111 = sphi 0, %s109
    %s112 = sphi 0, %s111
    %s126 = sphi 0, %s112
    %s130 = sphi 0, %s130
    %s132 = sphi 0, %s130
    %s133 = sphi 0, %s132
    %s147 = sphi 0, %s133
    %s153 = sphi 0, %s155
    %s156 = sphi 0, %s153
    %s157 = sphi 0, %s156
    %s173 = sphi 0, %s157
  $region4: #{cnn_forward.2} parent=0 // loop_header_branch
    %15 = sbr.rel (%p13) target = $region8
  $region5: #{cnn_forward.2} parent=0 // loop_body
    %s17 = ssub.s32 %s12, 1
    %s18 = ssub.s32 %s12, 2
    %s19 = sadd.s32 %s12, 1
    %s20 = ssub.s32 %s12, %s19
    %p21 = scmp.eq.s32.totalorder %s20, 0
    %s23 = sadd.s32 %s22, 1
    %s24 = scalar_select %p21, %s22, %s23
    %p27 = pneg %p21
    %p28 = scmp.eq.s32.totalorder %s12, 1
    %p29 = por %p27, %p28
    %p30 = scmp.ne.s32.totalorder %s22, %s25
    %p31 = scmp.eq.s32.totalorder %s12, 0
    %p32 = por %p30, %p31
    %p33 = scmp.ne.s32.totalorder %s22, %s25
    %p34 = scmp.eq.s32.totalorder %s17, 1
    %p35 = por %p33, %p34
    %p36 = scmp.ne.s32.totalorder %s25, %s26
    %p37 = scmp.eq.s32.totalorder %s17, 0
    %p38 = por %p36, %p37
    %p39 = scmp.ne.s32.totalorder %s25, %s26
    %p40 = scmp.eq.s32.totalorder %s18, 1
    %p41 = por %p39, %p40
    %p43 = scmp.ne.s32.totalorder %s26, %s42
    %p44 = scmp.eq.s32.totalorder %s18, 0
    %p45 = por %p43, %p44
    %s47 = sadd.s32 %s46, 1
    %p50 = scmp.eq.s32.totalorder %s12, 1
    %p51 = scmp.ne.s32.totalorder %s46, %s48
    %p52 = scmp.eq.s32.totalorder %s12, 0
    %p53 = por %p51, %p52
    %p54 = scmp.ne.s32.totalorder %s46, %s48
    %p55 = scmp.eq.s32.totalorder %s17, 1
    %p56 = por %p54, %p55
    %p57 = scmp.ne.s32.totalorder %s48, %s49
    %p58 = scmp.eq.s32.totalorder %s17, 0
    %p59 = por %p57, %p58
    %p60 = scmp.ne.s32.totalorder %s48, %s49
    %p61 = scmp.eq.s32.totalorder %s18, 1
    %p62 = por %p60, %p61
    %p64 = scmp.ne.s32.totalorder %s49, %s63
    %p65 = scmp.eq.s32.totalorder %s18, 0
    %p66 = por %p64, %p65
    %s68 = sadd.s32 %s67, 1
    %p71 = scmp.eq.s32.totalorder %s12, 1
    %p72 = scmp.ne.s32.totalorder %s67, %s69
    %p73 = scmp.eq.s32.totalorder %s12, 0
    %p74 = por %p72, %p73
    %p75 = scmp.ne.s32.totalorder %s67, %s69
    %p76 = scmp.eq.s32.totalorder %s17, 1
    %p77 = por %p75, %p76
    %p78 = scmp.ne.s32.totalorder %s69, %s70
    %p79 = scmp.eq.s32.totalorder %s17, 0
    %p80 = por %p78, %p79
    %p81 = scmp.ne.s32.totalorder %s69, %s70
    %p82 = scmp.eq.s32.totalorder %s18, 1
    %p83 = por %p81, %p82
    %p85 = scmp.ne.s32.totalorder %s70, %s84
    %p86 = scmp.eq.s32.totalorder %s18, 0
    %p87 = por %p85, %p86
    %s89 = sadd.s32 %s88, 1
    %p92 = scmp.eq.s32.totalorder %s12, 1
    %p93 = scmp.ne.s32.totalorder %s88, %s90
    %p94 = scmp.eq.s32.totalorder %s12, 0
    %p95 = por %p93, %p94
    %p96 = scmp.ne.s32.totalorder %s88, %s90
    %p97 = scmp.eq.s32.totalorder %s17, 1
    %p98 = por %p96, %p97
    %p99 = scmp.ne.s32.totalorder %s90, %s91
    %p100 = scmp.eq.s32.totalorder %s17, 0
    %p101 = por %p99, %p100
    %p102 = scmp.ne.s32.totalorder %s90, %s91
    %p103 = scmp.eq.s32.totalorder %s18, 1
    %p104 = por %p102, %p103
    %p106 = scmp.ne.s32.totalorder %s91, %s105
    %p107 = scmp.eq.s32.totalorder %s18, 0
    %p108 = por %p106, %p107
    %s110 = sadd.s32 %s109, 1
    %p113 = scmp.eq.s32.totalorder %s12, 1
    %p114 = scmp.ne.s32.totalorder %s109, %s111
    %p115 = scmp.eq.s32.totalorder %s12, 0
    %p116 = por %p114, %p115
    %p117 = scmp.ne.s32.totalorder %s109, %s111
    %p118 = scmp.eq.s32.totalorder %s17, 1
    %p119 = por %p117, %p118
    %p120 = scmp.ne.s32.totalorder %s111, %s112
    %p121 = scmp.eq.s32.totalorder %s17, 0
    %p122 = por %p120, %p121
    %p123 = scmp.ne.s32.totalorder %s111, %s112
    %p124 = scmp.eq.s32.totalorder %s18, 1
    %p125 = por %p123, %p124
    %p127 = scmp.ne.s32.totalorder %s112, %s126
    %p128 = scmp.eq.s32.totalorder %s18, 0
    %p129 = por %p127, %p128
    %s131 = sadd.s32 %s130, 1
    %p134 = scmp.eq.s32.totalorder %s12, 1
    %p135 = scmp.ne.s32.totalorder %s130, %s132
    %p136 = scmp.eq.s32.totalorder %s12, 0
    %p137 = por %p135, %p136
    %p138 = scmp.ne.s32.totalorder %s130, %s132
    %p139 = scmp.eq.s32.totalorder %s17, 1
    %p140 = por %p138, %p139
    %p141 = scmp.ne.s32.totalorder %s132, %s133
    %p142 = scmp.eq.s32.totalorder %s17, 0
    %p143 = por %p141, %p142
    %p144 = scmp.ne.s32.totalorder %s132, %s133
    %p145 = scmp.eq.s32.totalorder %s18, 1
    %p146 = por %p144, %p145
    %p148 = scmp.ne.s32.totalorder %s133, %s147
    %p149 = scmp.eq.s32.totalorder %s18, 0
    %p150 = por %p148, %p149
    %s151 = ssub.s32 %s12, %s19
    %p152 = scmp.eq.s32.totalorder %s151, 0
    %s154 = sadd.s32 %s153, 1
    %s155 = scalar_select %p152, %s153, %s154
    %p158 = pneg %p152
    %p159 = scmp.eq.s32.totalorder %s12, 1
    %p160 = por %p158, %p159
    %p161 = scmp.ne.s32.totalorder %s153, %s156
    %p162 = scmp.eq.s32.totalorder %s12, 0
    %p163 = por %p161, %p162
    %p164 = scmp.ne.s32.totalorder %s153, %s156
    %p165 = scmp.eq.s32.totalorder %s17, 1
    %p166 = por %p164, %p165
    %p167 = scmp.ne.s32.totalorder %s156, %s157
    %p168 = scmp.eq.s32.totalorder %s17, 0
    %p169 = por %p167, %p168
    %p170 = scmp.ne.s32.totalorder %s156, %s157
    %p171 = scmp.eq.s32.totalorder %s18, 1
    %p172 = por %p170, %p171
    %p174 = scmp.ne.s32.totalorder %s157, %s173
    %p175 = scmp.eq.s32.totalorder %s18, 0
    %p176 = por %p174, %p175
    %p177 = scmp.le.s32.totalorder 1, %s12
    %p178 = scmp.lt.s32.totalorder %s12, 3
    %p179 = pnand %p177, %p178
    %p180 = pneg %p179
    // Predicated region
    $region9: #{cnn_forward.2} parent=5 // pred_check
      _
    $region10: #{cnn_forward.2} parent=5 // pred_check_branch
      %182 = sbr.rel (%p179) target = $region12
    $region11: #{cnn_forward.2} parent=5 // pred_region
      %s183 = ssub.s32 %s12, 1
      // Predicated region
      $region13: #{cnn_forward.2} parent=11 // pred_check
        %p184 = pneg %p59
      $region14: #{cnn_forward.2} parent=11 // pred_check_branch
        %186 = sbr.rel (%p184) target = $region16
      $region15: #{cnn_forward.2} parent=11 // pred_region
        _
      $region16: #{cnn_forward.2} parent=11 // pred_fallthru
        _
      // Predicated region
      $region17: #{cnn_forward.2} parent=11 // pred_check
        %p187 = pneg %p80
      $region18: #{cnn_forward.2} parent=11 // pred_check_branch
        %189 = sbr.rel (%p187) target = $region20
      $region19: #{cnn_forward.2} parent=11 // pred_region
        _
      $region20: #{cnn_forward.2} parent=11 // pred_fallthru
        _
      // Predicated region
      $region21: #{cnn_forward.2} parent=11 // pred_check
        %p190 = pneg %p101
      $region22: #{cnn_forward.2} parent=11 // pred_check_branch
        %192 = sbr.rel (%p190) target = $region24
      $region23: #{cnn_forward.2} parent=11 // pred_region
        _
      $region24: #{cnn_forward.2} parent=11 // pred_fallthru
        _
      // Predicated region
      $region25: #{cnn_forward.2} parent=11 // pred_check
        %p193 = pneg %p122
      $region26: #{cnn_forward.2} parent=11 // pred_check_branch
        %195 = sbr.rel (%p193) target = $region28
      $region27: #{cnn_forward.2} parent=11 // pred_region
        _
      $region28: #{cnn_forward.2} parent=11 // pred_fallthru
        _
      // Predicated region
      $region29: #{cnn_forward.2} parent=11 // pred_check
        %p196 = pneg %p143
      $region30: #{cnn_forward.2} parent=11 // pred_check_branch
        %198 = sbr.rel (%p196) target = $region32
      $region31: #{cnn_forward.2} parent=11 // pred_region
        _
      $region32: #{cnn_forward.2} parent=11 // pred_fallthru
        _
    $region12: #{cnn_forward.2} parent=5 // pred_fallthru
      _
    %p199 = scmp.lt.s32.totalorder %s12, 2
    // Predicated region
    $region33: #{cnn_forward.2} parent=5 // pred_check
      %p200 = pneg %p199
    $region34: #{cnn_forward.2} parent=5 // pred_check_branch
      %202 = sbr.rel (%p200) target = $region36
    $region35: #{cnn_forward.2} parent=5 // pred_region
      // Predicated region
      $region37: #{cnn_forward.2} parent=35 // pred_check
        %p203 = pneg %p32
      $region38: #{cnn_forward.2} parent=35 // pred_check_branch
        %205 = sbr.rel (%p203) target = $region40
      $region39: #{cnn_forward.2} parent=35 // pred_region
        %p206 = scmp.lt.s32.totalorder %s12, 1
        %s207 = scalar_select %p206, %s12, 1
        %s208 = smul.addr %s207, 164
        %s209 = smul.addr %s208, 8
        %s210 = scalar_lea.vmem %s0, %s209
      $region40: #{cnn_forward.2} parent=35 // pred_fallthru
        _
    $region36: #{cnn_forward.2} parent=5 // pred_fallthru
      _
    %p211 = scmp.le.s32.totalorder 1, %s12
    %p212 = scmp.lt.s32.totalorder %s12, 3
    %p213 = pnand %p211, %p212
    %p214 = pneg %p213
    // Predicated region
    $region41: #{cnn_forward.2} parent=5 // pred_check
      _
    $region42: #{cnn_forward.2} parent=5 // pred_check_branch
      %216 = sbr.rel (%p213) target = $region44
    $region43: #{cnn_forward.2} parent=5 // pred_region
      %s217 = ssub.s32 %s12, 1
      %p218 = scmp.lt.s32.totalorder %s17, 1
      %s219 = scalar_select %p218, %s17, 1
      %s220 = smul.addr %s219, 164
      %s221 = smul.addr %s220, 8
      %s222 = scalar_lea.vmem %s0, %s221
      %p223 = pneg %p38
      %p224 = pneg %p35
      %p225 = pneg %p59
      %p226 = pneg %p56
      %p227 = pneg %p80
      %p228 = pneg %p77
      %p229 = pneg %p101
      %p230 = pneg %p98
      %p231 = pneg %p122
      %p232 = pneg %p119
      %p233 = pneg %p143
      %p234 = pneg %p140
      %p235 = pneg %p169
      %p236 = pneg %p166
      %p237 = scmp.lt.s32.totalorder %s17, 1
      %s238 = scalar_select %p237, %s17, 1
      %s239 = smul.addr %s238, 8
      %s240 = smul.addr %s239, 8
      %s241 = scalar_lea.vmem %s6, %s240
      %p242 = scmp.lt.s32.totalorder %s17, 1
      %s243 = scalar_select %p242, %s17, 1
      %s244 = smul.addr %s243, 164
      %s245 = smul.addr %s244, 8
      %s246 = scalar_lea.vmem %s0, %s245
      %p247 = scmp.lt.s32.totalorder %s17, 1
      %s248 = scalar_select %p247, %s17, 1
      %s249 = smul.addr %s248, 8
      %s250 = smul.addr %s249, 8
      %s251 = scalar_lea.vmem %s6, %s250
      %v252 = vld [vmem:[%s1] sm:$0xff]
      %v253 = vld [vmem:[%s1 + $0x8] sm:$0xff]
      %v254 = vld [vmem:[%s1 + $0x10] sm:$0xff]
      %v255 = vld [vmem:[%s1 + $0x18] sm:$0x1]
      %v256 = vld [vmem:[%s246] sm:$0xff]
      %v257 = vld [vmem:[%s246 + $0x8] sm:$0xff]
      %v258 = vld [vmem:[%s246 + $0x10] sm:$0xff]
      %v259 = vld [vmem:[%s246 + $0x18] sm:$0xff]
      %v260 = vld [vmem:[%s246 + $0x20] sm:$0xff]
      %v261 = vld [vmem:[%s246 + $0x28] sm:$0xff]
      %v262 = vld [vmem:[%s246 + $0x30] sm:$0xff]
      %v263 = vld [vmem:[%s246 + $0x38] sm:$0xff]
      %v264 = vld [vmem:[%s246 + $0x40] sm:$0xff]
      %v265 = vld [vmem:[%s246 + $0x48] sm:$0xff]
      %v266 = vld [vmem:[%s246 + $0x50] sm:$0xff]
      %v267 = vld [vmem:[%s246 + $0x58] sm:$0xff]
      %v268 = vld [vmem:[%s246 + $0x60] sm:$0xff]
      %v269 = vld [vmem:[%s246 + $0x68] sm:$0xff]
      %v270 = vld [vmem:[%s246 + $0x70] sm:$0xff]
      %v271 = vld [vmem:[%s246 + $0x78] sm:$0xff]
      %v272 = vld [vmem:[%s246 + $0x80] sm:$0xff]
      %v273 = vld [vmem:[%s246 + $0x88] sm:$0xff]
      %v274 = vld [vmem:[%s246 + $0x90] sm:$0xff]
      %v275 = vld [vmem:[%s246 + $0x98] sm:$0xff]
      %v276 = vld [vmem:[%s246 + $0xa0] sm:$0xff]
      %v277 = vld [vmem:[%s246 + $0xa8] sm:$0xff]
      %v278 = vld [vmem:[%s246 + $0xb0] sm:$0xff]
      %v279 = vld [vmem:[%s246 + $0xb8] sm:$0xff]
      %v280 = vld [vmem:[%s246 + $0xc0] sm:$0xff]
      %v281 = vld [vmem:[%s246 + $0xc8] sm:$0xff]
      %v282 = vld [vmem:[%s246 + $0xd0] sm:$0xff]
      %v283 = vld [vmem:[%s246 + $0xd8] sm:$0xff]
      %v284 = vld [vmem:[%s246 + $0xe0] sm:$0xff]
      %v285 = vld [vmem:[%s246 + $0xe8] sm:$0xff]
      %v286 = vld [vmem:[%s246 + $0xf0] sm:$0xff]
      %v287 = vld [vmem:[%s246 + $0xf8] sm:$0xff]
      %v288 = vld [vmem:[%s246 + $0x100] sm:$0xff]
      %v289 = vld [vmem:[%s246 + $0x108] sm:$0xff]
      %v290 = vld [vmem:[%s246 + $0x110] sm:$0xff]
      %v291 = vld [vmem:[%s246 + $0x118] sm:$0xff]
      %v292 = vld [vmem:[%s246 + $0x120] sm:$0xff]
      %v293 = vld [vmem:[%s246 + $0x128] sm:$0xff]
      %v294 = vld [vmem:[%s246 + $0x130] sm:$0xff]
      %v295 = vld [vmem:[%s246 + $0x138] sm:$0xff]
      %v296 = vld [vmem:[%s246 + $0x140] sm:$0xf]
      %vm297 = vcmask 203776
      %v299 = vsel %vm297, %v256, 0
      %v302 = vsel %vm297, %v257, 0
      %v305 = vsel %vm297, %v258, 0
      %v308 = vsel %vm297, %v259, 0
      %v311 = vsel %vm297, %v260, 0
      %v314 = vsel %vm297, %v261, 0
      %v317 = vsel %vm297, %v262, 0
      %v320 = vsel %vm297, %v263, 0
      %v323 = vsel %vm297, %v264, 0
      %v326 = vsel %vm297, %v265, 0
      %v329 = vsel %vm297, %v266, 0
      %v332 = vsel %vm297, %v267, 0
      %v335 = vsel %vm297, %v268, 0
      %v338 = vsel %vm297, %v269, 0
      %v341 = vsel %vm297, %v270, 0
      %v344 = vsel %vm297, %v271, 0
      %v347 = vsel %vm297, %v272, 0
      %v350 = vsel %vm297, %v273, 0
      %v353 = vsel %vm297, %v274, 0
      %v356 = vsel %vm297, %v275, 0
      %v359 = vsel %vm297, %v276, 0
      %v362 = vsel %vm297, %v277, 0
      %v365 = vsel %vm297, %v278, 0
      %v368 = vsel %vm297, %v279, 0
      %v371 = vsel %vm297, %v280, 0
      %v374 = vsel %vm297, %v281, 0
      %v377 = vsel %vm297, %v282, 0
      %v380 = vsel %vm297, %v283, 0
      %v383 = vsel %vm297, %v284, 0
      %v386 = vsel %vm297, %v285, 0
      %v389 = vsel %vm297, %v286, 0
      %v392 = vsel %vm297, %v287, 0
      %v395 = vsel %vm297, %v288, 0
      %v398 = vsel %vm297, %v289, 0
      %v401 = vsel %vm297, %v290, 0
      %v404 = vsel %vm297, %v291, 0
      %v407 = vsel %vm297, %v292, 0
      %v410 = vsel %vm297, %v293, 0
      %v413 = vsel %vm297, %v294, 0
      %v416 = vsel %vm297, %v295, 0
      %v419 = vsel %vm297, %v296, 0
      %vm421 = vcmask 1040384
      %v423 = vsel %vm421, %v255, 0
      %425 = vmatprep.subr.mxu0 0.0
      %426 = vmatpush1.msra.mxu0 %v252
      %427 = vmatprep.subr.mxu0 0.0
      %428 = vmatpush1.msra.mxu0 %v253
      %429 = vmatprep.subr.mxu0 0.0
      %430 = vmatpush1.msra.mxu0 %v254
      %431 = vmatprep.subr.mxu0 0.0
      %432 = vmatpush1.msra.mxu0 %v423
      %433 = vmatprep.subr.mxu0 0.0
      %434 = vmatpush1.msra.mxu0 0.0
      %435 = vmatprep.subr.mxu0 0.0
      %436 = vmatpush1.msra.mxu0 0.0
      %437 = vmatprep.subr.mxu0 0.0
      %438 = vmatpush1.msra.mxu0 0.0
      %439 = vmatprep.subr.mxu0 0.0
      %440 = vmatpush1.msra.mxu0 0.0
      %441 = vmatprep.subr.mxu0 0.0
      %442 = vmatpush1.msra.mxu0 0.0
      %443 = vmatprep.subr.mxu0 0.0
      %444 = vmatpush1.msra.mxu0 0.0
      %445 = vmatprep.subr.mxu0 0.0
      %446 = vmatpush1.msra.mxu0 0.0
      %447 = vmatprep.subr.mxu0 0.0
      %448 = vmatpush1.msra.mxu0 0.0
      %449 = vmatprep.subr.mxu0 0.0
      %450 = vmatpush1.msra.mxu0 0.0
      %451 = vmatprep.subr.mxu0 0.0
      %452 = vmatpush1.msra.mxu0 0.0
      %453 = vmatprep.subr.mxu0 0.0
      %454 = vmatpush1.msra.mxu0 0.0
      %455 = vmatprep.subr.mxu0 0.0
      %456 = vmatpush1.msra.mxu0 0.0
      %457 = vmatprep.subr.mxu0 0.0
      %458 = vmatpush1.msra.mxu0 0.0
      %459 = vmatprep.subr.mxu0 0.0
      %460 = vmatpush1.msra.mxu0 0.0
      %461 = vmatprep.subr.mxu0 0.0
      %462 = vmatpush1.msra.mxu0 0.0
      %463 = vmatprep.subr.mxu0 0.0
      %464 = vmatpush1.msra.mxu0 0.0
      %465 = vmatprep.subr.mxu0 0.0
      %466 = vmatpush1.msra.mxu0 0.0
      %467 = vmatprep.subr.mxu0 0.0
      %468 = vmatpush1.msra.mxu0 0.0
      %469 = vmatprep.subr.mxu0 0.0
      %470 = vmatpush1.msra.mxu0 0.0
      %471 = vmatprep.subr.mxu0 0.0
      %472 = vmatpush1.msra.mxu0 0.0
      %473 = vmatprep.subr.mxu0 0.0
      %474 = vmatpush1.msra.mxu0 0.0
      %475 = vmatprep.subr.mxu0 0.0
      %476 = vmatpush1.msra.mxu0 0.0
      %477 = vmatprep.subr.mxu0 0.0
      %478 = vmatpush1.msra.mxu0 0.0
      %479 = vmatprep.subr.mxu0 0.0
      %480 = vmatpush1.msra.mxu0 0.0
      %481 = vmatprep.subr.mxu0 0.0
      %482 = vmatpush1.msra.mxu0 0.0
      %483 = vmatprep.subr.mxu0 0.0
      %484 = vmatpush1.msra.mxu0 0.0
      %485 = vmatprep.subr.mxu0 0.0
      %486 = vmatpush1.msra.mxu0 0.0
      %487 = vmatprep.subr.mxu0 0.0
      %488 = vmatpush1.msra.mxu0 0.0
      %489 = vmatprep.mubr.f32.mxu0 0.0
      %490 = vmatmul.mubr.f32.gmra.mrb[0].mxu0 %v299
      %v491 = vpop.f32.mrb[0].mxu0
      %v492 = vadd.f32 0.0, %v491
      %v493 = vpop.f32.mrb[0].mxu0
      %494 = vmatprep.mubr.f32.mxu0 0.0
      %495 = vmatmul.mubr.f32.gmra.mrb[0].mxu0 %v302
      %v496 = vpop.f32.mrb[0].mxu0
      %v497 = vadd.f32 0.0, %v496
      %v498 = vpop.f32.mrb[0].mxu0
      %499 = vmatprep.mubr.f32.mxu0 0.0
      %500 = vmatmul.mubr.f32.gmra.mrb[0].mxu0 %v305
      %v501 = vpop.f32.mrb[0].mxu0
      %v502 = vadd.f32 0.0, %v501
      %v503 = vpop.f32.mrb[0].mxu0
      %504 = vmatprep.mubr.f32.mxu0 0.0
      %505 = vmatmul.mubr.f32.gmra.mrb[0].mxu0 %v308
      %v506 = vpop.f32.mrb[0].mxu0
      %v507 = vadd.f32 0.0, %v506
      %v508 = vpop.f32.mrb[0].mxu0
      %509 = vmatprep.mubr.f32.mxu0 0.0
      %510 = vmatmul.mubr.f32.gmra.mrb[0].mxu0 %v311
      %v511 = vpop.f32.mrb[0].mxu0
      %v512 = vadd.f32 0.0, %v511
      %v513 = vpop.f32.mrb[0].mxu0
      %514 = vmatprep.mubr.f32.mxu0 0.0
      %515 = vmatmul.mubr.f32.gmra.mrb[0].mxu0 %v314
      %v516 = vpop.f32.mrb[0].mxu0
      %v517 = vadd.f32 0.0, %v516
      %v518 = vpop.f32.mrb[0].mxu0
      %519 = vmatprep.mubr.f32.mxu0 0.0
      %520 = vmatmul.mubr.f32.gmra.mrb[0].mxu0 %v317
      %v521 = vpop.f32.mrb[0].mxu0
      %v522 = vadd.f32 0.0, %v521
      %v523 = vpop.f32.mrb[0].mxu0
      %524 = vmatprep.mubr.f32.mxu0 0.0
      %525 = vmatmul.mubr.f32.gmra.mrb[0].mxu0 %v320
      %v526 = vpop.f32.mrb[0].mxu0
      %v527 = vadd.f32 0.0, %v526
      %v528 = vpop.f32.mrb[0].mxu0
      %529 = vmatprep.mubr.f32.mxu0 0.0
      %530 = vmatmul.mubr.f32.gmra.mrb[0].mxu0 %v323
      %v531 = vpop.f32.mrb[0].mxu0
      %v532 = vadd.f32 0.0, %v531
      %v533 = vpop.f32.mrb[0].mxu0
      %534 = vmatprep.mubr.f32.mxu0 0.0
      %535 = vmatmul.mubr.f32.gmra.mrb[0].mxu0 %v326
      %v536 = vpop.f32.mrb[0].mxu0
      %v537 = vadd.f32 0.0, %v536
      %v538 = vpop.f32.mrb[0].mxu0
      %539 = vmatprep.mubr.f32.mxu0 0.0
      %540 = vmatmul.mubr.f32.gmra.mrb[0].mxu0 %v329
      %v541 = vpop.f32.mrb[0].mxu0
      %v542 = vadd.f32 0.0, %v541
      %v543 = vpop.f32.mrb[0].mxu0
      %544 = vmatprep.mubr.f32.mxu0 0.0
      %545 = vmatmul.mubr.f32.gmra.mrb[0].mxu0 %v332
      %v546 = vpop.f32.mrb[0].mxu0
      %v547 = vadd.f32 0.0, %v546
      %v548 = vpop.f32.mrb[0].mxu0
      %549 = vmatprep.mubr.f32.mxu0 0.0
      %550 = vmatmul.mubr.f32.gmra.mrb[0].mxu0 %v335
      %v551 = vpop.f32.mrb[0].mxu0
      %v552 = vadd.f32 0.0, %v551
      %v553 = vpop.f32.mrb[0].mxu0
      %554 = vmatprep.mubr.f32.mxu0 0.0
      %555 = vmatmul.mubr.f32.gmra.mrb[0].mxu0 %v338
      %v556 = vpop.f32.mrb[0].mxu0
      %v557 = vadd.f32 0.0, %v556
      %v558 = vpop.f32.mrb[0].mxu0
      %559 = vmatprep.mubr.f32.mxu0 0.0
      %560 = vmatmul.mubr.f32.gmra.mrb[0].mxu0 %v341
      %v561 = vpop.f32.mrb[0].mxu0
      %v562 = vadd.f32 0.0, %v561
      %v563 = vpop.f32.mrb[0].mxu0
      %564 = vmatprep.mubr.f32.mxu0 0.0
      %565 = vmatmul.mubr.f32.gmra.mrb[0].mxu0 %v344
      %v566 = vpop.f32.mrb[0].mxu0
      %v567 = vadd.f32 0.0, %v566
      %v568 = vpop.f32.mrb[0].mxu0
      %569 = vmatprep.mubr.f32.mxu0 0.0
      %570 = vmatmul.mubr.f32.gmra.mrb[0].mxu0 %v347
      %v571 = vpop.f32.mrb[0].mxu0
      %v572 = vadd.f32 0.0, %v571
      %v573 = vpop.f32.mrb[0].mxu0
      %574 = vmatprep.mubr.f32.mxu0 0.0
      %575 = vmatmul.mubr.f32.gmra.mrb[0].mxu0 %v350
      %v576 = vpop.f32.mrb[0].mxu0
      %v577 = vadd.f32 0.0, %v576
      %v578 = vpop.f32.mrb[0].mxu0
      %579 = vmatprep.mubr.f32.mxu0 0.0
      %580 = vmatmul.mubr.f32.gmra.mrb[0].mxu0 %v353
      %v581 = vpop.f32.mrb[0].mxu0
      %v582 = vadd.f32 0.0, %v581
      %v583 = vpop.f32.mrb[0].mxu0
      %584 = vmatprep.mubr.f32.mxu0 0.0
      %585 = vmatmul.mubr.f32.gmra.mrb[0].mxu0 %v356
      %v586 = vpop.f32.mrb[0].mxu0
      %v587 = vadd.f32 0.0, %v586
      %v588 = vpop.f32.mrb[0].mxu0
      %589 = vmatprep.mubr.f32.mxu0 0.0
      %590 = vmatmul.mubr.f32.gmra.mrb[0].mxu0 %v359
      %v591 = vpop.f32.mrb[0].mxu0
      %v592 = vadd.f32 0.0, %v591
      %v593 = vpop.f32.mrb[0].mxu0
      %594 = vmatprep.mubr.f32.mxu0 0.0
      %595 = vmatmul.mubr.f32.gmra.mrb[0].mxu0 %v362
      %v596 = vpop.f32.mrb[0].mxu0
      %v597 = vadd.f32 0.0, %v596
      %v598 = vpop.f32.mrb[0].mxu0
      %599 = vmatprep.mubr.f32.mxu0 0.0
      %600 = vmatmul.mubr.f32.gmra.mrb[0].mxu0 %v365
      %v601 = vpop.f32.mrb[0].mxu0
      %v602 = vadd.f32 0.0, %v601
      %v603 = vpop.f32.mrb[0].mxu0
      %604 = vmatprep.mubr.f32.mxu0 0.0
      %605 = vmatmul.mubr.f32.gmra.mrb[0].mxu0 %v368
      %v606 = vpop.f32.mrb[0].mxu0
      %v607 = vadd.f32 0.0, %v606
      %v608 = vpop.f32.mrb[0].mxu0
      %609 = vmatprep.mubr.f32.mxu0 0.0
      %610 = vmatmul.mubr.f32.gmra.mrb[0].mxu0 %v371
      %v611 = vpop.f32.mrb[0].mxu0
      %v612 = vadd.f32 0.0, %v611
      %v613 = vpop.f32.mrb[0].mxu0
      %614 = vmatprep.mubr.f32.mxu0 0.0
      %615 = vmatmul.mubr.f32.gmra.mrb[0].mxu0 %v374
      %v616 = vpop.f32.mrb[0].mxu0
      %v617 = vadd.f32 0.0, %v616
      %v618 = vpop.f32.mrb[0].mxu0
      %619 = vmatprep.mubr.f32.mxu0 0.0
      %620 = vmatmul.mubr.f32.gmra.mrb[0].mxu0 %v377
      %v621 = vpop.f32.mrb[0].mxu0
      %v622 = vadd.f32 0.0, %v621
      %v623 = vpop.f32.mrb[0].mxu0
      %624 = vmatprep.mubr.f32.mxu0 0.0
      %625 = vmatmul.mubr.f32.gmra.mrb[0].mxu0 %v380
      %v626 = vpop.f32.mrb[0].mxu0
      %v627 = vadd.f32 0.0, %v626
      %v628 = vpop.f32.mrb[0].mxu0
      %629 = vmatprep.mubr.f32.mxu0 0.0
      %630 = vmatmul.mubr.f32.gmra.mrb[0].mxu0 %v383
      %v631 = vpop.f32.mrb[0].mxu0
      %v632 = vadd.f32 0.0, %v631
      %v633 = vpop.f32.mrb[0].mxu0
      %634 = vmatprep.mubr.f32.mxu0 0.0
      %635 = vmatmul.mubr.f32.gmra.mrb[0].mxu0 %v386
      %v636 = vpop.f32.mrb[0].mxu0
      %v637 = vadd.f32 0.0, %v636
      %v638 = vpop.f32.mrb[0].mxu0
      %639 = vmatprep.mubr.f32.mxu0 0.0
      %640 = vmatmul.mubr.f32.gmra.mrb[0].mxu0 %v389
      %v641 = vpop.f32.mrb[0].mxu0
      %v642 = vadd.f32 0.0, %v641
      %v643 = vpop.f32.mrb[0].mxu0
      %644 = vmatprep.mubr.f32.mxu0 0.0
      %645 = vmatmul.mubr.f32.gmra.mrb[0].mxu0 %v392
      %v646 = vpop.f32.mrb[0].mxu0
      %v647 = vadd.f32 0.0, %v646
      %v648 = vpop.f32.mrb[0].mxu0
      %649 = vmatprep.mubr.f32.mxu0 0.0
      %650 = vmatmul.mubr.f32.gmra.mrb[0].mxu0 %v395
      %v651 = vpop.f32.mrb[0].mxu0
      %v652 = vadd.f32 0.0, %v651
      %v653 = vpop.f32.mrb[0].mxu0
      %654 = vmatprep.mubr.f32.mxu0 0.0
      %655 = vmatmul.mubr.f32.gmra.mrb[0].mxu0 %v398
      %v656 = vpop.f32.mrb[0].mxu0
      %v657 = vadd.f32 0.0, %v656
      %v658 = vpop.f32.mrb[0].mxu0
      %659 = vmatprep.mubr.f32.mxu0 0.0
      %660 = vmatmul.mubr.f32.gmra.mrb[0].mxu0 %v401
      %v661 = vpop.f32.mrb[0].mxu0
      %v662 = vadd.f32 0.0, %v661
      %v663 = vpop.f32.mrb[0].mxu0
      %664 = vmatprep.mubr.f32.mxu0 0.0
      %665 = vmatmul.mubr.f32.gmra.mrb[0].mxu0 %v404
      %v666 = vpop.f32.mrb[0].mxu0
      %v667 = vadd.f32 0.0, %v666
      %v668 = vpop.f32.mrb[0].mxu0
      %669 = vmatprep.mubr.f32.mxu0 0.0
      %670 = vmatmul.mubr.f32.gmra.mrb[0].mxu0 %v407
      %v671 = vpop.f32.mrb[0].mxu0
      %v672 = vadd.f32 0.0, %v671
      %v673 = vpop.f32.mrb[0].mxu0
      %674 = vmatprep.mubr.f32.mxu0 0.0
      %675 = vmatmul.mubr.f32.gmra.mrb[0].mxu0 %v410
      %v676 = vpop.f32.mrb[0].mxu0
      %v677 = vadd.f32 0.0, %v676
      %v678 = vpop.f32.mrb[0].mxu0
      %679 = vmatprep.mubr.f32.mxu0 0.0
      %680 = vmatmul.mubr.f32.gmra.mrb[0].mxu0 %v413
      %v681 = vpop.f32.mrb[0].mxu0
      %v682 = vadd.f32 0.0, %v681
      %v683 = vpop.f32.mrb[0].mxu0
      %684 = vmatprep.mubr.f32.mxu0 0.0
      %685 = vmatmul.mubr.f32.gmra.mrb[0].mxu0 %v416
      %v686 = vpop.f32.mrb[0].mxu0
      %v687 = vadd.f32 0.0, %v686
      %v688 = vpop.f32.mrb[0].mxu0
      %689 = vmatprep.mubr.f32.mxu0 0.0
      %690 = vmatmul.mubr.f32.gmra.mrb[0].mxu0 %v419
      %v691 = vpop.f32.mrb[0].mxu0
      %v692 = vadd.f32 0.0, %v691
      %v693 = vpop.f32.mrb[0].mxu0
      %694 = vdwg.mxu0
      %s695 = scalar_lea.vmem %s246, 328
      %v696 = vld [vmem:[%s695] sm:$0xff]
      %v697 = vld [vmem:[%s695 + $0x8] sm:$0xff]
      %v698 = vld [vmem:[%s695 + $0x10] sm:$0xff]
      %v699 = vld [vmem:[%s695 + $0x18] sm:$0xff]
      %v700 = vld [vmem:[%s695 + $0x20] sm:$0xff]
      %v701 = vld [vmem:[%s695 + $0x28] sm:$0xff]
      %v702 = vld [vmem:[%s695 + $0x30] sm:$0xff]
      %v703 = vld [vmem:[%s695 + $0x38] sm:$0xff]
      %v704 = vld [vmem:[%s695 + $0x40] sm:$0xff]
      %v705 = vld [vmem:[%s695 + $0x48] sm:$0xff]
      %v706 = vld [vmem:[%s695 + $0x50] sm:$0xff]
      %v707 = vld [vmem:[%s695 + $0x58] sm:$0xff]
      %v708 = vld [vmem:[%s695 + $0x60] sm:$0xff]
      %v709 = vld [vmem:[%s695 + $0x68] sm:$0xff]
      %v710 = vld [vmem:[%s695 + $0x70] sm:$0xff]
      %v711 = vld [vmem:[%s695 + $0x78] sm:$0xff]
      %v712 = vld [vmem:[%s695 + $0x80] sm:$0xff]
      %v713 = vld [vmem:[%s695 + $0x88] sm:$0xff]
      %v714 = vld [vmem:[%s695 + $0x90] sm:$0xff]
      %v715 = vld [vmem:[%s695 + $0x98] sm:$0xff]
      %v716 = vld [vmem:[%s695 + $0xa0] sm:$0xff]
      %v717 = vld [vmem:[%s695 + $0xa8] sm:$0xff]
      %v718 = vld [vmem:[%s695 + $0xb0] sm:$0xff]
      %v719 = vld [vmem:[%s695 + $0xb8] sm:$0xff]
      %v720 = vld [vmem:[%s695 + $0xc0] sm:$0xff]
      %v721 = vld [vmem:[%s695 + $0xc8] sm:$0xff]
      %v722 = vld [vmem:[%s695 + $0xd0] sm:$0xff]
      %v723 = vld [vmem:[%s695 + $0xd8] sm:$0xff]
      %v724 = vld [vmem:[%s695 + $0xe0] sm:$0xff]
      %v725 = vld [vmem:[%s695 + $0xe8] sm:$0xff]
      %v726 = vld [vmem:[%s695 + $0xf0] sm:$0xff]
      %v727 = vld [vmem:[%s695 + $0xf8] sm:$0xff]
      %v728 = vld [vmem:[%s695 + $0x100] sm:$0xff]
      %v729 = vld [vmem:[%s695 + $0x108] sm:$0xff]
      %v730 = vld [vmem:[%s695 + $0x110] sm:$0xff]
      %v731 = vld [vmem:[%s695 + $0x118] sm:$0xff]
      %v732 = vld [vmem:[%s695 + $0x120] sm:$0xff]
      %v733 = vld [vmem:[%s695 + $0x128] sm:$0xff]
      %v734 = vld [vmem:[%s695 + $0x130] sm:$0xff]
      %v735 = vld [vmem:[%s695 + $0x138] sm:$0xff]
      %v736 = vld [vmem:[%s695 + $0x140] sm:$0xf]
      %v738 = vsel %vm297, %v696, 0
      %v741 = vsel %vm297, %v697, 0
      %v744 = vsel %vm297, %v698, 0
      %v747 = vsel %vm297, %v699, 0
      %v750 = vsel %vm297, %v700, 0
      %v753 = vsel %vm297, %v701, 0
      %v756 = vsel %vm297, %v702, 0
      %v759 = vsel %vm297, %v703, 0
      %v762 = vsel %vm297, %v704, 0
      %v765 = vsel %vm297, %v705, 0
      %v768 = vsel %vm297, %v706, 0
      %v771 = vsel %vm297, %v707, 0
      %v774 = vsel %vm297, %v708, 0
      %v777 = vsel %vm297, %v709, 0
      %v780 = vsel %vm297, %v710, 0
      %v783 = vsel %vm297, %v711, 0
      %v786 = vsel %vm297, %v712, 0
      %v789 = vsel %vm297, %v713, 0
      %v792 = vsel %vm297, %v714, 0
      %v795 = vsel %vm297, %v715, 0
      %v798 = vsel %vm297, %v716, 0
      %v801 = vsel %vm297, %v717, 0
      %v804 = vsel %vm297, %v718, 0
      %v807 = vsel %vm297, %v719, 0
      %v810 = vsel %vm297, %v720, 0
      %v813 = vsel %vm297, %v721, 0
      %v816 = vsel %vm297, %v722, 0
      %v819 = vsel %vm297, %v723, 0
      %v822 = vsel %vm297, %v724, 0
      %v825 = vsel %vm297, %v725, 0
      %v828 = vsel %vm297, %v726, 0
      %v831 = vsel %vm297, %v727, 0
      %v834 = vsel %vm297, %v728, 0
      %v837 = vsel %vm297, %v729, 0
      %v840 = vsel %vm297, %v730, 0
      %v843 = vsel %vm297, %v731, 0
      %v846 = vsel %vm297, %v732, 0
      %v849 = vsel %vm297, %v733, 0
      %v852 = vsel %vm297, %v734, 0
      %v855 = vsel %vm297, %v735, 0
      %v858 = vsel %vm297, %v736, 0
      %860 = vmatprep.subr.mxu0 0.0
      %861 = vmatpush1.msra.mxu0 %v252
      %862 = vmatprep.subr.mxu0 0.0
      %863 = vmatpush1.msra.mxu0 %v253
      %864 = vmatprep.subr.mxu0 0.0
      %865 = vmatpush1.msra.mxu0 %v254
      %866 = vmatprep.subr.mxu0 0.0
      %867 = vmatpush1.msra.mxu0 %v423
      %868 = vmatprep.subr.mxu0 0.0
      %869 = vmatpush1.msra.mxu0 0.0
      %870 = vmatprep.subr.mxu0 0.0
      %871 = vmatpush1.msra.mxu0 0.0
      %872 = vmatprep.subr.mxu0 0.0
      %873 = vmatpush1.msra.mxu0 0.0
      %874 = vmatprep.subr.mxu0 0.0
      %875 = vmatpush1.msra.mxu0 0.0
      %876 = vmatprep.subr.mxu0 0.0
      %877 = vmatpush1.msra.mxu0 0.0
      %878 = vmatprep.subr.mxu0 0.0
      %879 = vmatpush1.msra.mxu0 0.0
      %880 = vmatprep.subr.mxu0 0.0
      %881 = vmatpush1.msra.mxu0 0.0
      %882 = vmatprep.subr.mxu0 0.0
      %883 = vmatpush1.msra.mxu0 0.0
      %884 = vmatprep.subr.mxu0 0.0
      %885 = vmatpush1.msra.mxu0 0.0
      %886 = vmatprep.subr.mxu0 0.0
      %887 = vmatpush1.msra.mxu0 0.0
      %888 = vmatprep.subr.mxu0 0.0
      %889 = vmatpush1.msra.mxu0 0.0
      %890 = vmatprep.subr.mxu0 0.0
      %891 = vmatpush1.msra.mxu0 0.0
      %892 = vmatprep.subr.mxu0 0.0
      %893 = vmatpush1.msra.mxu0 0.0
      %894 = vmatprep.subr.mxu0 0.0
      %895 = vmatpush1.msra.mxu0 0.0
      %896 = vmatprep.subr.mxu0 0.0
      %897 = vmatpush1.msra.mxu0 0.0
      %898 = vmatprep.subr.mxu0 0.0
      %899 = vmatpush1.msra.mxu0 0.0
      %900 = vmatprep.subr.mxu0 0.0
      %901 = vmatpush1.msra.mxu0 0.0
      %902 = vmatprep.subr.mxu0 0.0
      %903 = vmatpush1.msra.mxu0 0.0
      %904 = vmatprep.subr.mxu0 0.0
      %905 = vmatpush1.msra.mxu0 0.0
      %906 = vmatprep.subr.mxu0 0.0
      %907 = vmatpush1.msra.mxu0 0.0
      %908 = vmatprep.subr.mxu0 0.0
      %909 = vmatpush1.msra.mxu0 0.0
      %910 = vmatprep.subr.mxu0 0.0
      %911 = vmatpush1.msra.mxu0 0.0
      %912 = vmatprep.subr.mxu0 0.0
      %913 = vmatpush1.msra.mxu0 0.0
      %914 = vmatprep.subr.mxu0 0.0
      %915 = vmatpush1.msra.mxu0 0.0
      %916 = vmatprep.subr.mxu0 0.0
      %917 = vmatpush1.msra.mxu0 0.0
      %918 = vmatprep.subr.mxu0 0.0
      %919 = vmatpush1.msra.mxu0 0.0
      %920 = vmatprep.subr.mxu0 0.0
      %921 = vmatpush1.msra.mxu0 0.0
      %922 = vmatprep.subr.mxu0 0.0
      %923 = vmatpush1.msra.mxu0 0.0
      %924 = vmatprep.mubr.f32.mxu0 0.0
      %925 = vmatmul.mubr.f32.gmra.mrb[0].mxu0 %v738
      %v926 = vpop.f32.mrb[0].mxu0
      %v927 = vadd.f32 0.0, %v926
      %v928 = vpop.f32.mrb[0].mxu0
      %929 = vmatprep.mubr.f32.mxu0 0.0
      %930 = vmatmul.mubr.f32.gmra.mrb[0].mxu0 %v741
      %v931 = vpop.f32.mrb[0].mxu0
      %v932 = vadd.f32 0.0, %v931
      %v933 = vpop.f32.mrb[0].mxu0
      %934 = vmatprep.mubr.f32.mxu0 0.0
      %935 = vmatmul.mubr.f32.gmra.mrb[0].mxu0 %v744
      %v936 = vpop.f32.mrb[0].mxu0
      %v937 = vadd.f32 0.0, %v936
      %v938 = vpop.f32.mrb[0].mxu0
      %939 = vmatprep.mubr.f32.mxu0 0.0
      %940 = vmatmul.mubr.f32.gmra.mrb[0].mxu0 %v747
      %v941 = vpop.f32.mrb[0].mxu0
      %v942 = vadd.f32 0.0, %v941
      %v943 = vpop.f32.mrb[0].mxu0
      %944 = vmatprep.mubr.f32.mxu0 0.0
      %945 = vmatmul.mubr.f32.gmra.mrb[0].mxu0 %v750
      %v946 = vpop.f32.mrb[0].mxu0
      %v947 = vadd.f32 0.0, %v946
      %v948 = vpop.f32.mrb[0].mxu0
      %949 = vmatprep.mubr.f32.mxu0 0.0
      %950 = vmatmul.mubr.f32.gmra.mrb[0].mxu0 %v753
      %v951 = vpop.f32.mrb[0].mxu0
      %v952 = vadd.f32 0.0, %v951
      %v953 = vpop.f32.mrb[0].mxu0
      %954 = vmatprep.mubr.f32.mxu0 0.0
      %955 = vmatmul.mubr.f32.gmra.mrb[0].mxu0 %v756
      %v956 = vpop.f32.mrb[0].mxu0
      %v957 = vadd.f32 0.0, %v956
      %v958 = vpop.f32.mrb[0].mxu0
      %959 = vmatprep.mubr.f32.mxu0 0.0
      %960 = vmatmul.mubr.f32.gmra.mrb[0].mxu0 %v759
      %v961 = vpop.f32.mrb[0].mxu0
      %v962 = vadd.f32 0.0, %v961
      %v963 = vpop.f32.mrb[0].mxu0
      %964 = vmatprep.mubr.f32.mxu0 0.0
      %965 = vmatmul.mubr.f32.gmra.mrb[0].mxu0 %v762
      %v966 = vpop.f32.mrb[0].mxu0
      %v967 = vadd.f32 0.0, %v966
      %v968 = vpop.f32.mrb[0].mxu0
      %969 = vmatprep.mubr.f32.mxu0 0.0
      %970 = vmatmul.mubr.f32.gmra.mrb[0].mxu0 %v765
      %v971 = vpop.f32.mrb[0].mxu0
      %v972 = vadd.f32 0.0, %v971
      %v973 = vpop.f32.mrb[0].mxu0
      %974 = vmatprep.mubr.f32.mxu0 0.0
      %975 = vmatmul.mubr.f32.gmra.mrb[0].mxu0 %v768
      %v976 = vpop.f32.mrb[0].mxu0
      %v977 = vadd.f32 0.0, %v976
      %v978 = vpop.f32.mrb[0].mxu0
      %979 = vmatprep.mubr.f32.mxu0 0.0
      %980 = vmatmul.mubr.f32.gmra.mrb[0].mxu0 %v771
      %v981 = vpop.f32.mrb[0].mxu0
      %v982 = vadd.f32 0.0, %v981
      %v983 = vpop.f32.mrb[0].mxu0
      %984 = vmatprep.mubr.f32.mxu0 0.0
      %985 = vmatmul.mubr.f32.gmra.mrb[0].mxu0 %v774
      %v986 = vpop.f32.mrb[0].mxu0
      %v987 = vadd.f32 0.0, %v986
      %v988 = vpop.f32.mrb[0].mxu0
      %989 = vmatprep.mubr.f32.mxu0 0.0
      %990 = vmatmul.mubr.f32.gmra.mrb[0].mxu0 %v777
      %v991 = vpop.f32.mrb[0].mxu0
      %v992 = vadd.f32 0.0, %v991
      %v993 = vpop.f32.mrb[0].mxu0
      %994 = vmatprep.mubr.f32.mxu0 0.0
      %995 = vmatmul.mubr.f32.gmra.mrb[0].mxu0 %v780
      %v996 = vpop.f32.mrb[0].mxu0
      %v997 = vadd.f32 0.0, %v996
      %v998 = vpop.f32.mrb[0].mxu0
      %999 = vmatprep.mubr.f32.mxu0 0.0
      %1000 = vmatmul.mubr.f32.gmra.mrb[0].mxu0 %v783
      %v1001 = vpop.f32.mrb[0].mxu0
      %v1002 = vadd.f32 0.0, %v1001
      %v1003 = vpop.f32.mrb[0].mxu0
      %1004 = vmatprep.mubr.f32.mxu0 0.0
      %1005 = vmatmul.mubr.f32.gmra.mrb[0].mxu0 %v786
      %v1006 = vpop.f32.mrb[0].mxu0
      %v1007 = vadd.f32 0.0, %v1006
      %v1008 = vpop.f32.mrb[0].mxu0
      %1009 = vmatprep.mubr.f32.mxu0 0.0
      %1010 = vmatmul.mubr.f32.gmra.mrb[0].mxu0 %v789
      %v1011 = vpop.f32.mrb[0].mxu0
      %v1012 = vadd.f32 0.0, %v1011
      %v1013 = vpop.f32.mrb[0].mxu0
      %1014 = vmatprep.mubr.f32.mxu0 0.0
      %1015 = vmatmul.mubr.f32.gmra.mrb[0].mxu0 %v792
      %v1016 = vpop.f32.mrb[0].mxu0
      %v1017 = vadd.f32 0.0, %v1016
      %v1018 = vpop.f32.mrb[0].mxu0
      %1019 = vmatprep.mubr.f32.mxu0 0.0
      %1020 = vmatmul.mubr.f32.gmra.mrb[0].mxu0 %v795
      %v1021 = vpop.f32.mrb[0].mxu0
      %v1022 = vadd.f32 0.0, %v1021
      %v1023 = vpop.f32.mrb[0].mxu0
      %1024 = vmatprep.mubr.f32.mxu0 0.0
      %1025 = vmatmul.mubr.f32.gmra.mrb[0].mxu0 %v798
      %v1026 = vpop.f32.mrb[0].mxu0
      %v1027 = vadd.f32 0.0, %v1026
      %v1028 = vpop.f32.mrb[0].mxu0
      %1029 = vmatprep.mubr.f32.mxu0 0.0
      %1030 = vmatmul.mubr.f32.gmra.mrb[0].mxu0 %v801
      %v1031 = vpop.f32.mrb[0].mxu0
      %v1032 = vadd.f32 0.0, %v1031
      %v1033 = vpop.f32.mrb[0].mxu0
      %1034 = vmatprep.mubr.f32.mxu0 0.0
      %1035 = vmatmul.mubr.f32.gmra.mrb[0].mxu0 %v804
      %v1036 = vpop.f32.mrb[0].mxu0
      %v1037 = vadd.f32 0.0, %v1036
      %v1038 = vpop.f32.mrb[0].mxu0
      %1039 = vmatprep.mubr.f32.mxu0 0.0
      %1040 = vmatmul.mubr.f32.gmra.mrb[0].mxu0 %v807
      %v1041 = vpop.f32.mrb[0].mxu0
      %v1042 = vadd.f32 0.0, %v1041
      %v1043 = vpop.f32.mrb[0].mxu0
      %1044 = vmatprep.mubr.f32.mxu0 0.0
      %1045 = vmatmul.mubr.f32.gmra.mrb[0].mxu0 %v810
      %v1046 = vpop.f32.mrb[0].mxu0
      %v1047 = vadd.f32 0.0, %v1046
      %v1048 = vpop.f32.mrb[0].mxu0
      %1049 = vmatprep.mubr.f32.mxu0 0.0
      %1050 = vmatmul.mubr.f32.gmra.mrb[0].mxu0 %v813
      %v1051 = vpop.f32.mrb[0].mxu0
      %v1052 = vadd.f32 0.0, %v1051
      %v1053 = vpop.f32.mrb[0].mxu0
      %1054 = vmatprep.mubr.f32.mxu0 0.0
      %1055 = vmatmul.mubr.f32.gmra.mrb[0].mxu0 %v816
      %v1056 = vpop.f32.mrb[0].mxu0
      %v1057 = vadd.f32 0.0, %v1056
      %v1058 = vpop.f32.mrb[0].mxu0
      %1059 = vmatprep.mubr.f32.mxu0 0.0
      %1060 = vmatmul.mubr.f32.gmra.mrb[0].mxu0 %v819
      %v1061 = vpop.f32.mrb[0].mxu0
      %v1062 = vadd.f32 0.0, %v1061
      %v1063 = vpop.f32.mrb[0].mxu0
      %1064 = vmatprep.mubr.f32.mxu0 0.0
      %1065 = vmatmul.mubr.f32.gmra.mrb[0].mxu0 %v822
      %v1066 = vpop.f32.mrb[0].mxu0
      %v1067 = vadd.f32 0.0, %v1066
      %v1068 = vpop.f32.mrb[0].mxu0
      %1069 = vmatprep.mubr.f32.mxu0 0.0
      %1070 = vmatmul.mubr.f32.gmra.mrb[0].mxu0 %v825
      %v1071 = vpop.f32.mrb[0].mxu0
      %v1072 = vadd.f32 0.0, %v1071
      %v1073 = vpop.f32.mrb[0].mxu0
      %1074 = vmatprep.mubr.f32.mxu0 0.0
      %1075 = vmatmul.mubr.f32.gmra.mrb[0].mxu0 %v828
      %v1076 = vpop.f32.mrb[0].mxu0
      %v1077 = vadd.f32 0.0, %v1076
      %v1078 = vpop.f32.mrb[0].mxu0
      %1079 = vmatprep.mubr.f32.mxu0 0.0
      %1080 = vmatmul.mubr.f32.gmra.mrb[0].mxu0 %v831
      %v1081 = vpop.f32.mrb[0].mxu0
      %v1082 = vadd.f32 0.0, %v1081
      %v1083 = vpop.f32.mrb[0].mxu0
      %1084 = vmatprep.mubr.f32.mxu0 0.0
      %1085 = vmatmul.mubr.f32.gmra.mrb[0].mxu0 %v834
      %v1086 = vpop.f32.mrb[0].mxu0
      %v1087 = vadd.f32 0.0, %v1086
      %v1088 = vpop.f32.mrb[0].mxu0
      %1089 = vmatprep.mubr.f32.mxu0 0.0
      %1090 = vmatmul.mubr.f32.gmra.mrb[0].mxu0 %v837
      %v1091 = vpop.f32.mrb[0].mxu0
      %v1092 = vadd.f32 0.0, %v1091
      %v1093 = vpop.f32.mrb[0].mxu0
      %1094 = vmatprep.mubr.f32.mxu0 0.0
      %1095 = vmatmul.mubr.f32.gmra.mrb[0].mxu0 %v840
      %v1096 = vpop.f32.mrb[0].mxu0
      %v1097 = vadd.f32 0.0, %v1096
      %v1098 = vpop.f32.mrb[0].mxu0
      %1099 = vmatprep.mubr.f32.mxu0 0.0
      %1100 = vmatmul.mubr.f32.gmra.mrb[0].mxu0 %v843
      %v1101 = vpop.f32.mrb[0].mxu0
      %v1102 = vadd.f32 0.0, %v1101
      %v1103 = vpop.f32.mrb[0].mxu0
      %1104 = vmatprep.mubr.f32.mxu0 0.0
      %1105 = vmatmul.mubr.f32.gmra.mrb[0].mxu0 %v846
      %v1106 = vpop.f32.mrb[0].mxu0
      %v1107 = vadd.f32 0.0, %v1106
      %v1108 = vpop.f32.mrb[0].mxu0
      %1109 = vmatprep.mubr.f32.mxu0 0.0
      %1110 = vmatmul.mubr.f32.gmra.mrb[0].mxu0 %v849
      %v1111 = vpop.f32.mrb[0].mxu0
      %v1112 = vadd.f32 0.0, %v1111
      %v1113 = vpop.f32.mrb[0].mxu0
      %1114 = vmatprep.mubr.f32.mxu0 0.0
      %1115 = vmatmul.mubr.f32.gmra.mrb[0].mxu0 %v852
      %v1116 = vpop.f32.mrb[0].mxu0
      %v1117 = vadd.f32 0.0, %v1116
      %v1118 = vpop.f32.mrb[0].mxu0
      %1119 = vmatprep.mubr.f32.mxu0 0.0
      %1120 = vmatmul.mubr.f32.gmra.mrb[0].mxu0 %v855
      %v1121 = vpop.f32.mrb[0].mxu0
      %v1122 = vadd.f32 0.0, %v1121
      %v1123 = vpop.f32.mrb[0].mxu0
      %1124 = vmatprep.mubr.f32.mxu0 0.0
      %1125 = vmatmul.mubr.f32.gmra.mrb[0].mxu0 %v858
      %v1126 = vpop.f32.mrb[0].mxu0
      %v1127 = vadd.f32 0.0, %v1126
      %v1128 = vpop.f32.mrb[0].mxu0
      %1129 = vdwg.mxu0
      %v1130 = vmax.f32 %v492, %v927
      %v1131 = vmax.f32 %v497, %v932
      %v1132 = vmax.f32 %v502, %v937
      %v1133 = vmax.f32 %v507, %v942
      %v1134 = vmax.f32 %v512, %v947
      %v1135 = vmax.f32 %v517, %v952
      %v1136 = vmax.f32 %v522, %v957
      %v1137 = vmax.f32 %v527, %v962
      %v1138 = vmax.f32 %v532, %v967
      %v1139 = vmax.f32 %v537, %v972
      %v1140 = vmax.f32 %v542, %v977
      %v1141 = vmax.f32 %v547, %v982
      %v1142 = vmax.f32 %v552, %v987
      %v1143 = vmax.f32 %v557, %v992
      %v1144 = vmax.f32 %v562, %v997
      %v1145 = vmax.f32 %v567, %v1002
      %v1146 = vmax.f32 %v572, %v1007
      %v1147 = vmax.f32 %v577, %v1012
      %v1148 = vmax.f32 %v582, %v1017
      %v1149 = vmax.f32 %v587, %v1022
      %v1150 = vmax.f32 %v592, %v1027
      %v1151 = vmax.f32 %v597, %v1032
      %v1152 = vmax.f32 %v602, %v1037
      %v1153 = vmax.f32 %v607, %v1042
      %v1154 = vmax.f32 %v612, %v1047
      %v1155 = vmax.f32 %v617, %v1052
      %v1156 = vmax.f32 %v622, %v1057
      %v1157 = vmax.f32 %v627, %v1062
      %v1158 = vmax.f32 %v632, %v1067
      %v1159 = vmax.f32 %v637, %v1072
      %v1160 = vmax.f32 %v642, %v1077
      %v1161 = vmax.f32 %v647, %v1082
      %v1162 = vmax.f32 %v652, %v1087
      %v1163 = vmax.f32 %v657, %v1092
      %v1164 = vmax.f32 %v662, %v1097
      %v1165 = vmax.f32 %v667, %v1102
      %v1166 = vmax.f32 %v672, %v1107
      %v1167 = vmax.f32 %v677, %v1112
      %v1168 = vmax.f32 %v682, %v1117
      %v1169 = vmax.f32 %v687, %v1122
      %v1170 = vmax.f32 %v692, %v1127
      %s1171 = scalar_lea.vmem %s246, 656
      %v1172 = vld [vmem:[%s1171] sm:$0xff]
      %v1173 = vld [vmem:[%s1171 + $0x8] sm:$0xff]
      %v1174 = vld [vmem:[%s1171 + $0x10] sm:$0xff]
      %v1175 = vld [vmem:[%s1171 + $0x18] sm:$0xff]
      %v1176 = vld [vmem:[%s1171 + $0x20] sm:$0xff]
      %v1177 = vld [vmem:[%s1171 + $0x28] sm:$0xff]
      %v1178 = vld [vmem:[%s1171 + $0x30] sm:$0xff]
      %v1179 = vld [vmem:[%s1171 + $0x38] sm:$0xff]
      %v1180 = vld [vmem:[%s1171 + $0x40] sm:$0xff]
      %v1181 = vld [vmem:[%s1171 + $0x48] sm:$0xff]
      %v1182 = vld [vmem:[%s1171 + $0x50] sm:$0xff]
      %v1183 = vld [vmem:[%s1171 + $0x58] sm:$0xff]
      %v1184 = vld [vmem:[%s1171 + $0x60] sm:$0xff]
      %v1185 = vld [vmem:[%s1171 + $0x68] sm:$0xff]
      %v1186 = vld [vmem:[%s1171 + $0x70] sm:$0xff]
      %v1187 = vld [vmem:[%s1171 + $0x78] sm:$0xff]
      %v1188 = vld [vmem:[%s1171 + $0x80] sm:$0xff]
      %v1189 = vld [vmem:[%s1171 + $0x88] sm:$0xff]
      %v1190 = vld [vmem:[%s1171 + $0x90] sm:$0xff]
      %v1191 = vld [vmem:[%s1171 + $0x98] sm:$0xff]
      %v1192 = vld [vmem:[%s1171 + $0xa0] sm:$0xff]
      %v1193 = vld [vmem:[%s1171 + $0xa8] sm:$0xff]
      %v1194 = vld [vmem:[%s1171 + $0xb0] sm:$0xff]
      %v1195 = vld [vmem:[%s1171 + $0xb8] sm:$0xff]
      %v1196 = vld [vmem:[%s1171 + $0xc0] sm:$0xff]
      %v1197 = vld [vmem:[%s1171 + $0xc8] sm:$0xff]
      %v1198 = vld [vmem:[%s1171 + $0xd0] sm:$0xff]
      %v1199 = vld [vmem:[%s1171 + $0xd8] sm:$0xff]
      %v1200 = vld [vmem:[%s1171 + $0xe0] sm:$0xff]
      %v1201 = vld [vmem:[%s1171 + $0xe8] sm:$0xff]
      %v1202 = vld [vmem:[%s1171 + $0xf0] sm:$0xff]
      %v1203 = vld [vmem:[%s1171 + $0xf8] sm:$0xff]
      %v1204 = vld [vmem:[%s1171 + $0x100] sm:$0xff]
      %v1205 = vld [vmem:[%s1171 + $0x108] sm:$0xff]
      %v1206 = vld [vmem:[%s1171 + $0x110] sm:$0xff]
      %v1207 = vld [vmem:[%s1171 + $0x118] sm:$0xff]
      %v1208 = vld [vmem:[%s1171 + $0x120] sm:$0xff]
      %v1209 = vld [vmem:[%s1171 + $0x128] sm:$0xff]
      %v1210 = vld [vmem:[%s1171 + $0x130] sm:$0xff]
      %v1211 = vld [vmem:[%s1171 + $0x138] sm:$0xff]
      %v1212 = vld [vmem:[%s1171 + $0x140] sm:$0xf]
      %v1214 = vsel %vm297, %v1172, 0
      %v1217 = vsel %vm297, %v1173, 0
      %v1220 = vsel %vm297, %v1174, 0
      %v1223 = vsel %vm297, %v1175, 0
      %v1226 = vsel %vm297, %v1176, 0
      %v1229 = vsel %vm297, %v1177, 0
      %v1232 = vsel %vm297, %v1178, 0
      %v1235 = vsel %vm297, %v1179, 0
      %v1238 = vsel %vm297, %v1180, 0
      %v1241 = vsel %vm297, %v1181, 0
      %v1244 = vsel %vm297, %v1182, 0
      %v1247 = vsel %vm297, %v1183, 0
      %v1250 = vsel %vm297, %v1184, 0
      %v1253 = vsel %vm297, %v1185, 0
      %v1256 = vsel %vm297, %v1186, 0
      %v1259 = vsel %vm297, %v1187, 0
      %v1262 = vsel %vm297, %v1188, 0
      %v1265 = vsel %vm297, %v1189, 0
      %v1268 = vsel %vm297, %v1190, 0
      %v1271 = vsel %vm297, %v1191, 0
      %v1274 = vsel %vm297, %v1192, 0
      %v1277 = vsel %vm297, %v1193, 0
      %v1280 = vsel %vm297, %v1194, 0
      %v1283 = vsel %vm297, %v1195, 0
      %v1286 = vsel %vm297, %v1196, 0
      %v1289 = vsel %vm297, %v1197, 0
      %v1292 = vsel %vm297, %v1198, 0
      %v1295 = vsel %vm297, %v1199, 0
      %v1298 = vsel %vm297, %v1200, 0
      %v1301 = vsel %vm297, %v1201, 0
      %v1304 = vsel %vm297, %v1202, 0
      %v1307 = vsel %vm297, %v1203, 0
      %v1310 = vsel %vm297, %v1204, 0
      %v1313 = vsel %vm297, %v1205, 0
      %v1316 = vsel %vm297, %v1206, 0
      %v1319 = vsel %vm297, %v1207, 0
      %v1322 = vsel %vm297, %v1208, 0
      %v1325 = vsel %vm297, %v1209, 0
      %v1328 = vsel %vm297, %v1210, 0
      %v1331 = vsel %vm297, %v1211, 0
      %v1334 = vsel %vm297, %v1212, 0
      %1336 = vmatprep.subr.mxu0 0.0
      %1337 = vmatpush1.msra.mxu0 %v252
      %1338 = vmatprep.subr.mxu0 0.0
      %1339 = vmatpush1.msra.mxu0 %v253
      %1340 = vmatprep.subr.mxu0 0.0
      %1341 = vmatpush1.msra.mxu0 %v254
      %1342 = vmatprep.subr.mxu0 0.0
      %1343 = vmatpush1.msra.mxu0 %v423
      %1344 = vmatprep.subr.mxu0 0.0
      %1345 = vmatpush1.msra.mxu0 0.0
      %1346 = vmatprep.subr.mxu0 0.0
      %1347 = vmatpush1.msra.mxu0 0.0
      %1348 = vmatprep.subr.mxu0 0.0
      %1349 = vmatpush1.msra.mxu0 0.0
      %1350 = vmatprep.subr.mxu0 0.0
      %1351 = vmatpush1.msra.mxu0 0.0
      %1352 = vmatprep.subr.mxu0 0.0
      %1353 = vmatpush1.msra.mxu0 0.0
      %1354 = vmatprep.subr.mxu0 0.0
      %1355 = vmatpush1.msra.mxu0 0.0
      %1356 = vmatprep.subr.mxu0 0.0
      %1357 = vmatpush1.msra.mxu0 0.0
      %1358 = vmatprep.subr.mxu0 0.0
      %1359 = vmatpush1.msra.mxu0 0.0
      %1360 = vmatprep.subr.mxu0 0.0
      %1361 = vmatpush1.msra.mxu0 0.0
      %1362 = vmatprep.subr.mxu0 0.0
      %1363 = vmatpush1.msra.mxu0 0.0
      %1364 = vmatprep.subr.mxu0 0.0
      %1365 = vmatpush1.msra.mxu0 0.0
      %1366 = vmatprep.subr.mxu0 0.0
      %1367 = vmatpush1.msra.mxu0 0.0
      %1368 = vmatprep.subr.mxu0 0.0
      %1369 = vmatpush1.msra.mxu0 0.0
      %1370 = vmatprep.subr.mxu0 0.0
      %1371 = vmatpush1.msra.mxu0 0.0
      %1372 = vmatprep.subr.mxu0 0.0
      %1373 = vmatpush1.msra.mxu0 0.0
      %1374 = vmatprep.subr.mxu0 0.0
      %1375 = vmatpush1.msra.mxu0 0.0
      %1376 = vmatprep.subr.mxu0 0.0
      %1377 = vmatpush1.msra.mxu0 0.0
      %1378 = vmatprep.subr.mxu0 0.0
      %1379 = vmatpush1.msra.mxu0 0.0
      %1380 = vmatprep.subr.mxu0 0.0
      %1381 = vmatpush1.msra.mxu0 0.0
      %1382 = vmatprep.subr.mxu0 0.0
      %1383 = vmatpush1.msra.mxu0 0.0
      %1384 = vmatprep.subr.mxu0 0.0
      %1385 = vmatpush1.msra.mxu0 0.0
      %1386 = vmatprep.subr.mxu0 0.0
      %1387 = vmatpush1.msra.mxu0 0.0
      %1388 = vmatprep.subr.mxu0 0.0
      %1389 = vmatpush1.msra.mxu0 0.0
      %1390 = vmatprep.subr.mxu0 0.0
      %1391 = vmatpush1.msra.mxu0 0.0
      %1392 = vmatprep.subr.mxu0 0.0
      %1393 = vmatpush1.msra.mxu0 0.0
      %1394 = vmatprep.subr.mxu0 0.0
      %1395 = vmatpush1.msra.mxu0 0.0
      %1396 = vmatprep.subr.mxu0 0.0
      %1397 = vmatpush1.msra.mxu0 0.0
      %1398 = vmatprep.subr.mxu0 0.0
      %1399 = vmatpush1.msra.mxu0 0.0
      %1400 = vmatprep.mubr.f32.mxu0 0.0
      %1401 = vmatmul.mubr.f32.gmra.mrb[0].mxu0 %v1214
      %v1402 = vpop.f32.mrb[0].mxu0
      %v1403 = vadd.f32 0.0, %v1402
      %v1404 = vpop.f32.mrb[0].mxu0
      %1405 = vmatprep.mubr.f32.mxu0 0.0
      %1406 = vmatmul.mubr.f32.gmra.mrb[0].mxu0 %v1217
      %v1407 = vpop.f32.mrb[0].mxu0
      %v1408 = vadd.f32 0.0, %v1407
      %v1409 = vpop.f32.mrb[0].mxu0
      %1410 = vmatprep.mubr.f32.mxu0 0.0
      %1411 = vmatmul.mubr.f32.gmra.mrb[0].mxu0 %v1220
      %v1412 = vpop.f32.mrb[0].mxu0
      %v1413 = vadd.f32 0.0, %v1412
      %v1414 = vpop.f32.mrb[0].mxu0
      %1415 = vmatprep.mubr.f32.mxu0 0.0
      %1416 = vmatmul.mubr.f32.gmra.mrb[0].mxu0 %v1223
      %v1417 = vpop.f32.mrb[0].mxu0
      %v1418 = vadd.f32 0.0, %v1417
      %v1419 = vpop.f32.mrb[0].mxu0
      %1420 = vmatprep.mubr.f32.mxu0 0.0
      %1421 = vmatmul.mubr.f32.gmra.mrb[0].mxu0 %v1226
      %v1422 = vpop.f32.mrb[0].mxu0
      %v1423 = vadd.f32 0.0, %v1422
      %v1424 = vpop.f32.mrb[0].mxu0
      %1425 = vmatprep.mubr.f32.mxu0 0.0
      %1426 = vmatmul.mubr.f32.gmra.mrb[0].mxu0 %v1229
      %v1427 = vpop.f32.mrb[0].mxu0
      %v1428 = vadd.f32 0.0, %v1427
      %v1429 = vpop.f32.mrb[0].mxu0
      %1430 = vmatprep.mubr.f32.mxu0 0.0
      %1431 = vmatmul.mubr.f32.gmra.mrb[0].mxu0 %v1232
      %v1432 = vpop.f32.mrb[0].mxu0
      %v1433 = vadd.f32 0.0, %v1432
      %v1434 = vpop.f32.mrb[0].mxu0
      %1435 = vmatprep.mubr.f32.mxu0 0.0
      %1436 = vmatmul.mubr.f32.gmra.mrb[0].mxu0 %v1235
      %v1437 = vpop.f32.mrb[0].mxu0
      %v1438 = vadd.f32 0.0, %v1437
      %v1439 = vpop.f32.mrb[0].mxu0
      %1440 = vmatprep.mubr.f32.mxu0 0.0
      %1441 = vmatmul.mubr.f32.gmra.mrb[0].mxu0 %v1238
      %v1442 = vpop.f32.mrb[0].mxu0
      %v1443 = vadd.f32 0.0, %v1442
      %v1444 = vpop.f32.mrb[0].mxu0
      %1445 = vmatprep.mubr.f32.mxu0 0.0
      %1446 = vmatmul.mubr.f32.gmra.mrb[0].mxu0 %v1241
      %v1447 = vpop.f32.mrb[0].mxu0
      %v1448 = vadd.f32 0.0, %v1447
      %v1449 = vpop.f32.mrb[0].mxu0
      %1450 = vmatprep.mubr.f32.mxu0 0.0
      %1451 = vmatmul.mubr.f32.gmra.mrb[0].mxu0 %v1244
      %v1452 = vpop.f32.mrb[0].mxu0
      %v1453 = vadd.f32 0.0, %v1452
      %v1454 = vpop.f32.mrb[0].mxu0
      %1455 = vmatprep.mubr.f32.mxu0 0.0
      %1456 = vmatmul.mubr.f32.gmra.mrb[0].mxu0 %v1247
      %v1457 = vpop.f32.mrb[0].mxu0
      %v1458 = vadd.f32 0.0, %v1457
      %v1459 = vpop.f32.mrb[0].mxu0
      %1460 = vmatprep.mubr.f32.mxu0 0.0
      %1461 = vmatmul.mubr.f32.gmra.mrb[0].mxu0 %v1250
      %v1462 = vpop.f32.mrb[0].mxu0
      %v1463 = vadd.f32 0.0, %v1462
      %v1464 = vpop.f32.mrb[0].mxu0
      %1465 = vmatprep.mubr.f32.mxu0 0.0
      %1466 = vmatmul.mubr.f32.gmra.mrb[0].mxu0 %v1253
      %v1467 = vpop.f32.mrb[0].mxu0
      %v1468 = vadd.f32 0.0, %v1467
      %v1469 = vpop.f32.mrb[0].mxu0
      %1470 = vmatprep.mubr.f32.mxu0 0.0
      %1471 = vmatmul.mubr.f32.gmra.mrb[0].mxu0 %v1256
      %v1472 = vpop.f32.mrb[0].mxu0
      %v1473 = vadd.f32 0.0, %v1472
      %v1474 = vpop.f32.mrb[0].mxu0
      %1475 = vmatprep.mubr.f32.mxu0 0.0
      %1476 = vmatmul.mubr.f32.gmra.mrb[0].mxu0 %v1259
      %v1477 = vpop.f32.mrb[0].mxu0
      %v1478 = vadd.f32 0.0, %v1477
      %v1479 = vpop.f32.mrb[0].mxu0
      %1480 = vmatprep.mubr.f32.mxu0 0.0
      %1481 = vmatmul.mubr.f32.gmra.mrb[0].mxu0 %v1262
      %v1482 = vpop.f32.mrb[0].mxu0
      %v1483 = vadd.f32 0.0, %v1482
      %v1484 = vpop.f32.mrb[0].mxu0
      %1485 = vmatprep.mubr.f32.mxu0 0.0
      %1486 = vmatmul.mubr.f32.gmra.mrb[0].mxu0 %v1265
      %v1487 = vpop.f32.mrb[0].mxu0
      %v1488 = vadd.f32 0.0, %v1487
      %v1489 = vpop.f32.mrb[0].mxu0
      %1490 = vmatprep.mubr.f32.mxu0 0.0
      %1491 = vmatmul.mubr.f32.gmra.mrb[0].mxu0 %v1268
      %v1492 = vpop.f32.mrb[0].mxu0
      %v1493 = vadd.f32 0.0, %v1492
      %v1494 = vpop.f32.mrb[0].mxu0
      %1495 = vmatprep.mubr.f32.mxu0 0.0
      %1496 = vmatmul.mubr.f32.gmra.mrb[0].mxu0 %v1271
      %v1497 = vpop.f32.mrb[0].mxu0
      %v1498 = vadd.f32 0.0, %v1497
      %v1499 = vpop.f32.mrb[0].mxu0
      %1500 = vmatprep.mubr.f32.mxu0 0.0
      %1501 = vmatmul.mubr.f32.gmra.mrb[0].mxu0 %v1274
      %v1502 = vpop.f32.mrb[0].mxu0
      %v1503 = vadd.f32 0.0, %v1502
      %v1504 = vpop.f32.mrb[0].mxu0
      %1505 = vmatprep.mubr.f32.mxu0 0.0
      %1506 = vmatmul.mubr.f32.gmra.mrb[0].mxu0 %v1277
      %v1507 = vpop.f32.mrb[0].mxu0
      %v1508 = vadd.f32 0.0, %v1507
      %v1509 = vpop.f32.mrb[0].mxu0
      %1510 = vmatprep.mubr.f32.mxu0 0.0
      %1511 = vmatmul.mubr.f32.gmra.mrb[0].mxu0 %v1280
      %v1512 = vpop.f32.mrb[0].mxu0
      %v1513 = vadd.f32 0.0, %v1512
      %v1514 = vpop.f32.mrb[0].mxu0
      %1515 = vmatprep.mubr.f32.mxu0 0.0
      %1516 = vmatmul.mubr.f32.gmra.mrb[0].mxu0 %v1283
      %v1517 = vpop.f32.mrb[0].mxu0
      %v1518 = vadd.f32 0.0, %v1517
      %v1519 = vpop.f32.mrb[0].mxu0
      %1520 = vmatprep.mubr.f32.mxu0 0.0
      %1521 = vmatmul.mubr.f32.gmra.mrb[0].mxu0 %v1286
      %v1522 = vpop.f32.mrb[0].mxu0
      %v1523 = vadd.f32 0.0, %v1522
      %v1524 = vpop.f32.mrb[0].mxu0
      %1525 = vmatprep.mubr.f32.mxu0 0.0
      %1526 = vmatmul.mubr.f32.gmra.mrb[0].mxu0 %v1289
      %v1527 = vpop.f32.mrb[0].mxu0
      %v1528 = vadd.f32 0.0, %v1527
      %v1529 = vpop.f32.mrb[0].mxu0
      %1530 = vmatprep.mubr.f32.mxu0 0.0
      %1531 = vmatmul.mubr.f32.gmra.mrb[0].mxu0 %v1292
      %v1532 = vpop.f32.mrb[0].mxu0
      %v1533 = vadd.f32 0.0, %v1532
      %v1534 = vpop.f32.mrb[0].mxu0
      %1535 = vmatprep.mubr.f32.mxu0 0.0
      %1536 = vmatmul.mubr.f32.gmra.mrb[0].mxu0 %v1295
      %v1537 = vpop.f32.mrb[0].mxu0
      %v1538 = vadd.f32 0.0, %v1537
      %v1539 = vpop.f32.mrb[0].mxu0
      %1540 = vmatprep.mubr.f32.mxu0 0.0
      %1541 = vmatmul.mubr.f32.gmra.mrb[0].mxu0 %v1298
      %v1542 = vpop.f32.mrb[0].mxu0
      %v1543 = vadd.f32 0.0, %v1542
      %v1544 = vpop.f32.mrb[0].mxu0
      %1545 = vmatprep.mubr.f32.mxu0 0.0
      %1546 = vmatmul.mubr.f32.gmra.mrb[0].mxu0 %v1301
      %v1547 = vpop.f32.mrb[0].mxu0
      %v1548 = vadd.f32 0.0, %v1547
      %v1549 = vpop.f32.mrb[0].mxu0
      %1550 = vmatprep.mubr.f32.mxu0 0.0
      %1551 = vmatmul.mubr.f32.gmra.mrb[0].mxu0 %v1304
      %v1552 = vpop.f32.mrb[0].mxu0
      %v1553 = vadd.f32 0.0, %v1552
      %v1554 = vpop.f32.mrb[0].mxu0
      %1555 = vmatprep.mubr.f32.mxu0 0.0
      %1556 = vmatmul.mubr.f32.gmra.mrb[0].mxu0 %v1307
      %v1557 = vpop.f32.mrb[0].mxu0
      %v1558 = vadd.f32 0.0, %v1557
      %v1559 = vpop.f32.mrb[0].mxu0
      %1560 = vmatprep.mubr.f32.mxu0 0.0
      %1561 = vmatmul.mubr.f32.gmra.mrb[0].mxu0 %v1310
      %v1562 = vpop.f32.mrb[0].mxu0
      %v1563 = vadd.f32 0.0, %v1562
      %v1564 = vpop.f32.mrb[0].mxu0
      %1565 = vmatprep.mubr.f32.mxu0 0.0
      %1566 = vmatmul.mubr.f32.gmra.mrb[0].mxu0 %v1313
      %v1567 = vpop.f32.mrb[0].mxu0
      %v1568 = vadd.f32 0.0, %v1567
      %v1569 = vpop.f32.mrb[0].mxu0
      %1570 = vmatprep.mubr.f32.mxu0 0.0
      %1571 = vmatmul.mubr.f32.gmra.mrb[0].mxu0 %v1316
      %v1572 = vpop.f32.mrb[0].mxu0
      %v1573 = vadd.f32 0.0, %v1572
      %v1574 = vpop.f32.mrb[0].mxu0
      %1575 = vmatprep.mubr.f32.mxu0 0.0
      %1576 = vmatmul.mubr.f32.gmra.mrb[0].mxu0 %v1319
      %v1577 = vpop.f32.mrb[0].mxu0
      %v1578 = vadd.f32 0.0, %v1577
      %v1579 = vpop.f32.mrb[0].mxu0
      %1580 = vmatprep.mubr.f32.mxu0 0.0
      %1581 = vmatmul.mubr.f32.gmra.mrb[0].mxu0 %v1322
      %v1582 = vpop.f32.mrb[0].mxu0
      %v1583 = vadd.f32 0.0, %v1582
      %v1584 = vpop.f32.mrb[0].mxu0
      %1585 = vmatprep.mubr.f32.mxu0 0.0
      %1586 = vmatmul.mubr.f32.gmra.mrb[0].mxu0 %v1325
      %v1587 = vpop.f32.mrb[0].mxu0
      %v1588 = vadd.f32 0.0, %v1587
      %v1589 = vpop.f32.mrb[0].mxu0
      %1590 = vmatprep.mubr.f32.mxu0 0.0
      %1591 = vmatmul.mubr.f32.gmra.mrb[0].mxu0 %v1328
      %v1592 = vpop.f32.mrb[0].mxu0
      %v1593 = vadd.f32 0.0, %v1592
      %v1594 = vpop.f32.mrb[0].mxu0
      %1595 = vmatprep.mubr.f32.mxu0 0.0
      %1596 = vmatmul.mubr.f32.gmra.mrb[0].mxu0 %v1331
      %v1597 = vpop.f32.mrb[0].mxu0
      %v1598 = vadd.f32 0.0, %v1597
      %v1599 = vpop.f32.mrb[0].mxu0
      %1600 = vmatprep.mubr.f32.mxu0 0.0
      %1601 = vmatmul.mubr.f32.gmra.mrb[0].mxu0 %v1334
      %v1602 = vpop.f32.mrb[0].mxu0
      %v1603 = vadd.f32 0.0, %v1602
      %v1604 = vpop.f32.mrb[0].mxu0
      %1605 = vdwg.mxu0
      %v1606 = vmax.f32 %v1130, %v1403
      %v1607 = vmax.f32 %v1131, %v1408
      %v1608 = vmax.f32 %v1132, %v1413
      %v1609 = vmax.f32 %v1133, %v1418
      %v1610 = vmax.f32 %v1134, %v1423
      %v1611 = vmax.f32 %v1135, %v1428
      %v1612 = vmax.f32 %v1136, %v1433
      %v1613 = vmax.f32 %v1137, %v1438
      %v1614 = vmax.f32 %v1138, %v1443
      %v1615 = vmax.f32 %v1139, %v1448
      %v1616 = vmax.f32 %v1140, %v1453
      %v1617 = vmax.f32 %v1141, %v1458
      %v1618 = vmax.f32 %v1142, %v1463
      %v1619 = vmax.f32 %v1143, %v1468
      %v1620 = vmax.f32 %v1144, %v1473
      %v1621 = vmax.f32 %v1145, %v1478
      %v1622 = vmax.f32 %v1146, %v1483
      %v1623 = vmax.f32 %v1147, %v1488
      %v1624 = vmax.f32 %v1148, %v1493
      %v1625 = vmax.f32 %v1149, %v1498
      %v1626 = vmax.f32 %v1150, %v1503
      %v1627 = vmax.f32 %v1151, %v1508
      %v1628 = vmax.f32 %v1152, %v1513
      %v1629 = vmax.f32 %v1153, %v1518
      %v1630 = vmax.f32 %v1154, %v1523
      %v1631 = vmax.f32 %v1155, %v1528
      %v1632 = vmax.f32 %v1156, %v1533
      %v1633 = vmax.f32 %v1157, %v1538
      %v1634 = vmax.f32 %v1158, %v1543
      %v1635 = vmax.f32 %v1159, %v1548
      %v1636 = vmax.f32 %v1160, %v1553
      %v1637 = vmax.f32 %v1161, %v1558
      %v1638 = vmax.f32 %v1162, %v1563
      %v1639 = vmax.f32 %v1163, %v1568
      %v1640 = vmax.f32 %v1164, %v1573
      %v1641 = vmax.f32 %v1165, %v1578
      %v1642 = vmax.f32 %v1166, %v1583
      %v1643 = vmax.f32 %v1167, %v1588
      %v1644 = vmax.f32 %v1168, %v1593
      %v1645 = vmax.f32 %v1169, %v1598
      %v1646 = vmax.f32 %v1170, %v1603
      %s1647 = scalar_lea.vmem %s246, 984
      %v1648 = vld [vmem:[%s1647] sm:$0xff]
      %v1649 = vld [vmem:[%s1647 + $0x8] sm:$0xff]
      %v1650 = vld [vmem:[%s1647 + $0x10] sm:$0xff]
      %v1651 = vld [vmem:[%s1647 + $0x18] sm:$0xff]
      %v1652 = vld [vmem:[%s1647 + $0x20] sm:$0xff]
      %v1653 = vld [vmem:[%s1647 + $0x28] sm:$0xff]
      %v1654 = vld [vmem:[%s1647 + $0x30] sm:$0xff]
      %v1655 = vld [vmem:[%s1647 + $0x38] sm:$0xff]
      %v1656 = vld [vmem:[%s1647 + $0x40] sm:$0xff]
      %v1657 = vld [vmem:[%s1647 + $0x48] sm:$0xff]
      %v1658 = vld [vmem:[%s1647 + $0x50] sm:$0xff]
      %v1659 = vld [vmem:[%s1647 + $0x58] sm:$0xff]
      %v1660 = vld [vmem:[%s1647 + $0x60] sm:$0xff]
      %v1661 = vld [vmem:[%s1647 + $0x68] sm:$0xff]
      %v1662 = vld [vmem:[%s1647 + $0x70] sm:$0xff]
      %v1663 = vld [vmem:[%s1647 + $0x78] sm:$0xff]
      %v1664 = vld [vmem:[%s1647 + $0x80] sm:$0xff]
      %v1665 = vld [vmem:[%s1647 + $0x88] sm:$0xff]
      %v1666 = vld [vmem:[%s1647 + $0x90] sm:$0xff]
      %v1667 = vld [vmem:[%s1647 + $0x98] sm:$0xff]
      %v1668 = vld [vmem:[%s1647 + $0xa0] sm:$0xff]
      %v1669 = vld [vmem:[%s1647 + $0xa8] sm:$0xff]
      %v1670 = vld [vmem:[%s1647 + $0xb0] sm:$0xff]
      %v1671 = vld [vmem:[%s1647 + $0xb8] sm:$0xff]
      %v1672 = vld [vmem:[%s1647 + $0xc0] sm:$0xff]
      %v1673 = vld [vmem:[%s1647 + $0xc8] sm:$0xff]
      %v1674 = vld [vmem:[%s1647 + $0xd0] sm:$0xff]
      %v1675 = vld [vmem:[%s1647 + $0xd8] sm:$0xff]
      %v1676 = vld [vmem:[%s1647 + $0xe0] sm:$0xff]
      %v1677 = vld [vmem:[%s1647 + $0xe8] sm:$0xff]
      %v1678 = vld [vmem:[%s1647 + $0xf0] sm:$0xff]
      %v1679 = vld [vmem:[%s1647 + $0xf8] sm:$0xff]
      %v1680 = vld [vmem:[%s1647 + $0x100] sm:$0xff]
      %v1681 = vld [vmem:[%s1647 + $0x108] sm:$0xff]
      %v1682 = vld [vmem:[%s1647 + $0x110] sm:$0xff]
      %v1683 = vld [vmem:[%s1647 + $0x118] sm:$0xff]
      %v1684 = vld [vmem:[%s1647 + $0x120] sm:$0xff]
      %v1685 = vld [vmem:[%s1647 + $0x128] sm:$0xff]
      %v1686 = vld [vmem:[%s1647 + $0x130] sm:$0xff]
      %v1687 = vld [vmem:[%s1647 + $0x138] sm:$0xff]
      %v1688 = vld [vmem:[%s1647 + $0x140] sm:$0xf]
      %v1690 = vsel %vm297, %v1648, 0
      %v1693 = vsel %vm297, %v1649, 0
      %v1696 = vsel %vm297, %v1650, 0
      %v1699 = vsel %vm297, %v1651, 0
      %v1702 = vsel %vm297, %v1652, 0
      %v1705 = vsel %vm297, %v1653, 0
      %v1708 = vsel %vm297, %v1654, 0
      %v1711 = vsel %vm297, %v1655, 0
      %v1714 = vsel %vm297, %v1656, 0
      %v1717 = vsel %vm297, %v1657, 0
      %v1720 = vsel %vm297, %v1658, 0
      %v1723 = vsel %vm297, %v1659, 0
      %v1726 = vsel %vm297, %v1660, 0
      %v1729 = vsel %vm297, %v1661, 0
      %v1732 = vsel %vm297, %v1662, 0
      %v1735 = vsel %vm297, %v1663, 0
      %v1738 = vsel %vm297, %v1664, 0
      %v1741 = vsel %vm297, %v1665, 0
      %v1744 = vsel %vm297, %v1666, 0
      %v1747 = vsel %vm297, %v1667, 0
      %v1750 = vsel %vm297, %v1668, 0
      %v1753 = vsel %vm297, %v1669, 0
      %v1756 = vsel %vm297, %v1670, 0
      %v1759 = vsel %vm297, %v1671, 0
      %v1762 = vsel %vm297, %v1672, 0
      %v1765 = vsel %vm297, %v1673, 0
      %v1768 = vsel %vm297, %v1674, 0
      %v1771 = vsel %vm297, %v1675, 0
      %v1774 = vsel %vm297, %v1676, 0
      %v1777 = vsel %vm297, %v1677, 0
      %v1780 = vsel %vm297, %v1678, 0
      %v1783 = vsel %vm297, %v1679, 0
      %v1786 = vsel %vm297, %v1680, 0
      %v1789 = vsel %vm297, %v1681, 0
      %v1792 = vsel %vm297, %v1682, 0
      %v1795 = vsel %vm297, %v1683, 0
      %v1798 = vsel %vm297, %v1684, 0
      %v1801 = vsel %vm297, %v1685, 0
      %v1804 = vsel %vm297, %v1686, 0
      %v1807 = vsel %vm297, %v1687, 0
      %v1810 = vsel %vm297, %v1688, 0
      %1812 = vmatprep.subr.mxu0 0.0
      %1813 = vmatpush1.msra.mxu0 %v252
      %1814 = vmatprep.subr.mxu0 0.0
      %1815 = vmatpush1.msra.mxu0 %v253
      %1816 = vmatprep.subr.mxu0 0.0
      %1817 = vmatpush1.msra.mxu0 %v254
      %1818 = vmatprep.subr.mxu0 0.0
      %1819 = vmatpush1.msra.mxu0 %v423
      %1820 = vmatprep.subr.mxu0 0.0
      %1821 = vmatpush1.msra.mxu0 0.0
      %1822 = vmatprep.subr.mxu0 0.0
      %1823 = vmatpush1.msra.mxu0 0.0
      %1824 = vmatprep.subr.mxu0 0.0
      %1825 = vmatpush1.msra.mxu0 0.0
      %1826 = vmatprep.subr.mxu0 0.0
      %1827 = vmatpush1.msra.mxu0 0.0
      %1828 = vmatprep.subr.mxu0 0.0
      %1829 = vmatpush1.msra.mxu0 0.0
      %1830 = vmatprep.subr.mxu0 0.0
      %1831 = vmatpush1.msra.mxu0 0.0
      %1832 = vmatprep.subr.mxu0 0.0
      %1833 = vmatpush1.msra.mxu0 0.0
      %1834 = vmatprep.subr.mxu0 0.0
      %1835 = vmatpush1.msra.mxu0 0.0
      %1836 = vmatprep.subr.mxu0 0.0
      %1837 = vmatpush1.msra.mxu0 0.0
      %1838 = vmatprep.subr.mxu0 0.0
      %1839 = vmatpush1.msra.mxu0 0.0
      %1840 = vmatprep.subr.mxu0 0.0
      %1841 = vmatpush1.msra.mxu0 0.0
      %1842 = vmatprep.subr.mxu0 0.0
      %1843 = vmatpush1.msra.mxu0 0.0
      %1844 = vmatprep.subr.mxu0 0.0
      %1845 = vmatpush1.msra.mxu0 0.0
      %1846 = vmatprep.subr.mxu0 0.0
      %1847 = vmatpush1.msra.mxu0 0.0
      %1848 = vmatprep.subr.mxu0 0.0
      %1849 = vmatpush1.msra.mxu0 0.0
      %1850 = vmatprep.subr.mxu0 0.0
      %1851 = vmatpush1.msra.mxu0 0.0
      %1852 = vmatprep.subr.mxu0 0.0
      %1853 = vmatpush1.msra.mxu0 0.0
      %1854 = vmatprep.subr.mxu0 0.0
      %1855 = vmatpush1.msra.mxu0 0.0
      %1856 = vmatprep.subr.mxu0 0.0
      %1857 = vmatpush1.msra.mxu0 0.0
      %1858 = vmatprep.subr.mxu0 0.0
      %1859 = vmatpush1.msra.mxu0 0.0
      %1860 = vmatprep.subr.mxu0 0.0
      %1861 = vmatpush1.msra.mxu0 0.0
      %1862 = vmatprep.subr.mxu0 0.0
      %1863 = vmatpush1.msra.mxu0 0.0
      %1864 = vmatprep.subr.mxu0 0.0
      %1865 = vmatpush1.msra.mxu0 0.0
      %1866 = vmatprep.subr.mxu0 0.0
      %1867 = vmatpush1.msra.mxu0 0.0
      %1868 = vmatprep.subr.mxu0 0.0
      %1869 = vmatpush1.msra.mxu0 0.0
      %1870 = vmatprep.subr.mxu0 0.0
      %1871 = vmatpush1.msra.mxu0 0.0
      %1872 = vmatprep.subr.mxu0 0.0
      %1873 = vmatpush1.msra.mxu0 0.0
      %1874 = vmatprep.subr.mxu0 0.0
      %1875 = vmatpush1.msra.mxu0 0.0
      %1876 = vmatprep.mubr.f32.mxu0 0.0
      %1877 = vmatmul.mubr.f32.gmra.mrb[0].mxu0 %v1690
      %v1878 = vpop.f32.mrb[0].mxu0
      %v1879 = vadd.f32 0.0, %v1878
      %v1880 = vpop.f32.mrb[0].mxu0
      %1881 = vmatprep.mubr.f32.mxu0 0.0
      %1882 = vmatmul.mubr.f32.gmra.mrb[0].mxu0 %v1693
      %v1883 = vpop.f32.mrb[0].mxu0
      %v1884 = vadd.f32 0.0, %v1883
      %v1885 = vpop.f32.mrb[0].mxu0
      %1886 = vmatprep.mubr.f32.mxu0 0.0
      %1887 = vmatmul.mubr.f32.gmra.mrb[0].mxu0 %v1696
      %v1888 = vpop.f32.mrb[0].mxu0
      %v1889 = vadd.f32 0.0, %v1888
      %v1890 = vpop.f32.mrb[0].mxu0
      %1891 = vmatprep.mubr.f32.mxu0 0.0
      %1892 = vmatmul.mubr.f32.gmra.mrb[0].mxu0 %v1699
      %v1893 = vpop.f32.mrb[0].mxu0
      %v1894 = vadd.f32 0.0, %v1893
      %v1895 = vpop.f32.mrb[0].mxu0
      %1896 = vmatprep.mubr.f32.mxu0 0.0
      %1897 = vmatmul.mubr.f32.gmra.mrb[0].mxu0 %v1702
      %v1898 = vpop.f32.mrb[0].mxu0
      %v1899 = vadd.f32 0.0, %v1898
      %v1900 = vpop.f32.mrb[0].mxu0
      %1901 = vmatprep.mubr.f32.mxu0 0.0
      %1902 = vmatmul.mubr.f32.gmra.mrb[0].mxu0 %v1705
      %v1903 = vpop.f32.mrb[0].mxu0
      %v1904 = vadd.f32 0.0, %v1903
      %v1905 = vpop.f32.mrb[0].mxu0
      %1906 = vmatprep.mubr.f32.mxu0 0.0
      %1907 = vmatmul.mubr.f32.gmra.mrb[0].mxu0 %v1708
      %v1908 = vpop.f32.mrb[0].mxu0
      %v1909 = vadd.f32 0.0, %v1908
      %v1910 = vpop.f32.mrb[0].mxu0
      %1911 = vmatprep.mubr.f32.mxu0 0.0
      %1912 = vmatmul.mubr.f32.gmra.mrb[0].mxu0 %v1711
      %v1913 = vpop.f32.mrb[0].mxu0
      %v1914 = vadd.f32 0.0, %v1913
      %v1915 = vpop.f32.mrb[0].mxu0
      %1916 = vmatprep.mubr.f32.mxu0 0.0
      %1917 = vmatmul.mubr.f32.gmra.mrb[0].mxu0 %v1714
      %v1918 = vpop.f32.mrb[0].mxu0
      %v1919 = vadd.f32 0.0, %v1918
      %v1920 = vpop.f32.mrb[0].mxu0
      %1921 = vmatprep.mubr.f32.mxu0 0.0
      %1922 = vmatmul.mubr.f32.gmra.mrb[0].mxu0 %v1717
      %v1923 = vpop.f32.mrb[0].mxu0
      %v1924 = vadd.f32 0.0, %v1923
      %v1925 = vpop.f32.mrb[0].mxu0
      %1926 = vmatprep.mubr.f32.mxu0 0.0
      %1927 = vmatmul.mubr.f32.gmra.mrb[0].mxu0 %v1720
      %v1928 = vpop.f32.mrb[0].mxu0
      %v1929 = vadd.f32 0.0, %v1928
      %v1930 = vpop.f32.mrb[0].mxu0
      %1931 = vmatprep.mubr.f32.mxu0 0.0
      %1932 = vmatmul.mubr.f32.gmra.mrb[0].mxu0 %v1723
      %v1933 = vpop.f32.mrb[0].mxu0
      %v1934 = vadd.f32 0.0, %v1933
      %v1935 = vpop.f32.mrb[0].mxu0
      %1936 = vmatprep.mubr.f32.mxu0 0.0
      %1937 = vmatmul.mubr.f32.gmra.mrb[0].mxu0 %v1726
      %v1938 = vpop.f32.mrb[0].mxu0
      %v1939 = vadd.f32 0.0, %v1938
      %v1940 = vpop.f32.mrb[0].mxu0
      %1941 = vmatprep.mubr.f32.mxu0 0.0
      %1942 = vmatmul.mubr.f32.gmra.mrb[0].mxu0 %v1729
      %v1943 = vpop.f32.mrb[0].mxu0
      %v1944 = vadd.f32 0.0, %v1943
      %v1945 = vpop.f32.mrb[0].mxu0
      %1946 = vmatprep.mubr.f32.mxu0 0.0
      %1947 = vmatmul.mubr.f32.gmra.mrb[0].mxu0 %v1732
      %v1948 = vpop.f32.mrb[0].mxu0
      %v1949 = vadd.f32 0.0, %v1948
      %v1950 = vpop.f32.mrb[0].mxu0
      %1951 = vmatprep.mubr.f32.mxu0 0.0
      %1952 = vmatmul.mubr.f32.gmra.mrb[0].mxu0 %v1735
      %v1953 = vpop.f32.mrb[0].mxu0
      %v1954 = vadd.f32 0.0, %v1953
      %v1955 = vpop.f32.mrb[0].mxu0
      %1956 = vmatprep.mubr.f32.mxu0 0.0
      %1957 = vmatmul.mubr.f32.gmra.mrb[0].mxu0 %v1738
      %v1958 = vpop.f32.mrb[0].mxu0
      %v1959 = vadd.f32 0.0, %v1958
      %v1960 = vpop.f32.mrb[0].mxu0
      %1961 = vmatprep.mubr.f32.mxu0 0.0
      %1962 = vmatmul.mubr.f32.gmra.mrb[0].mxu0 %v1741
      %v1963 = vpop.f32.mrb[0].mxu0
      %v1964 = vadd.f32 0.0, %v1963
      %v1965 = vpop.f32.mrb[0].mxu0
      %1966 = vmatprep.mubr.f32.mxu0 0.0
      %1967 = vmatmul.mubr.f32.gmra.mrb[0].mxu0 %v1744
      %v1968 = vpop.f32.mrb[0].mxu0
      %v1969 = vadd.f32 0.0, %v1968
      %v1970 = vpop.f32.mrb[0].mxu0
      %1971 = vmatprep.mubr.f32.mxu0 0.0
      %1972 = vmatmul.mubr.f32.gmra.mrb[0].mxu0 %v1747
      %v1973 = vpop.f32.mrb[0].mxu0
      %v1974 = vadd.f32 0.0, %v1973
      %v1975 = vpop.f32.mrb[0].mxu0
      %1976 = vmatprep.mubr.f32.mxu0 0.0
      %1977 = vmatmul.mubr.f32.gmra.mrb[0].mxu0 %v1750
      %v1978 = vpop.f32.mrb[0].mxu0
      %v1979 = vadd.f32 0.0, %v1978
      %v1980 = vpop.f32.mrb[0].mxu0
      %1981 = vmatprep.mubr.f32.mxu0 0.0
      %1982 = vmatmul.mubr.f32.gmra.mrb[0].mxu0 %v1753
      %v1983 = vpop.f32.mrb[0].mxu0
      %v1984 = vadd.f32 0.0, %v1983
      %v1985 = vpop.f32.mrb[0].mxu0
      %1986 = vmatprep.mubr.f32.mxu0 0.0
      %1987 = vmatmul.mubr.f32.gmra.mrb[0].mxu0 %v1756
      %v1988 = vpop.f32.mrb[0].mxu0
      %v1989 = vadd.f32 0.0, %v1988
      %v1990 = vpop.f32.mrb[0].mxu0
      %1991 = vmatprep.mubr.f32.mxu0 0.0
      %1992 = vmatmul.mubr.f32.gmra.mrb[0].mxu0 %v1759
      %v1993 = vpop.f32.mrb[0].mxu0
      %v1994 = vadd.f32 0.0, %v1993
      %v1995 = vpop.f32.mrb[0].mxu0
      %1996 = vmatprep.mubr.f32.mxu0 0.0
      %1997 = vmatmul.mubr.f32.gmra.mrb[0].mxu0 %v1762
      %v1998 = vpop.f32.mrb[0].mxu0
      %v1999 = vadd.f32 0.0, %v1998
      %v2000 = vpop.f32.mrb[0].mxu0
      %2001 = vmatprep.mubr.f32.mxu0 0.0
      %2002 = vmatmul.mubr.f32.gmra.mrb[0].mxu0 %v1765
      %v2003 = vpop.f32.mrb[0].mxu0
      %v2004 = vadd.f32 0.0, %v2003
      %v2005 = vpop.f32.mrb[0].mxu0
      %2006 = vmatprep.mubr.f32.mxu0 0.0
      %2007 = vmatmul.mubr.f32.gmra.mrb[0].mxu0 %v1768
      %v2008 = vpop.f32.mrb[0].mxu0
      %v2009 = vadd.f32 0.0, %v2008
      %v2010 = vpop.f32.mrb[0].mxu0
      %2011 = vmatprep.mubr.f32.mxu0 0.0
      %2012 = vmatmul.mubr.f32.gmra.mrb[0].mxu0 %v1771
      %v2013 = vpop.f32.mrb[0].mxu0
      %v2014 = vadd.f32 0.0, %v2013
      %v2015 = vpop.f32.mrb[0].mxu0
      %2016 = vmatprep.mubr.f32.mxu0 0.0
      %2017 = vmatmul.mubr.f32.gmra.mrb[0].mxu0 %v1774
      %v2018 = vpop.f32.mrb[0].mxu0
      %v2019 = vadd.f32 0.0, %v2018
      %v2020 = vpop.f32.mrb[0].mxu0
      %2021 = vmatprep.mubr.f32.mxu0 0.0
      %2022 = vmatmul.mubr.f32.gmra.mrb[0].mxu0 %v1777
      %v2023 = vpop.f32.mrb[0].mxu0
      %v2024 = vadd.f32 0.0, %v2023
      %v2025 = vpop.f32.mrb[0].mxu0
      %2026 = vmatprep.mubr.f32.mxu0 0.0
      %2027 = vmatmul.mubr.f32.gmra.mrb[0].mxu0 %v1780
      %v2028 = vpop.f32.mrb[0].mxu0
      %v2029 = vadd.f32 0.0, %v2028
      %v2030 = vpop.f32.mrb[0].mxu0
      %2031 = vmatprep.mubr.f32.mxu0 0.0
      %2032 = vmatmul.mubr.f32.gmra.mrb[0].mxu0 %v1783
      %v2033 = vpop.f32.mrb[0].mxu0
      %v2034 = vadd.f32 0.0, %v2033
      %v2035 = vpop.f32.mrb[0].mxu0
      %2036 = vmatprep.mubr.f32.mxu0 0.0
      %2037 = vmatmul.mubr.f32.gmra.mrb[0].mxu0 %v1786
      %v2038 = vpop.f32.mrb[0].mxu0
      %v2039 = vadd.f32 0.0, %v2038
      %v2040 = vpop.f32.mrb[0].mxu0
      %2041 = vmatprep.mubr.f32.mxu0 0.0
      %2042 = vmatmul.mubr.f32.gmra.mrb[0].mxu0 %v1789
      %v2043 = vpop.f32.mrb[0].mxu0
      %v2044 = vadd.f32 0.0, %v2043
      %v2045 = vpop.f32.mrb[0].mxu0
      %2046 = vmatprep.mubr.f32.mxu0 0.0
      %2047 = vmatmul.mubr.f32.gmra.mrb[0].mxu0 %v1792
      %v2048 = vpop.f32.mrb[0].mxu0
      %v2049 = vadd.f32 0.0, %v2048
      %v2050 = vpop.f32.mrb[0].mxu0
      %2051 = vmatprep.mubr.f32.mxu0 0.0
      %2052 = vmatmul.mubr.f32.gmra.mrb[0].mxu0 %v1795
      %v2053 = vpop.f32.mrb[0].mxu0
      %v2054 = vadd.f32 0.0, %v2053
      %v2055 = vpop.f32.mrb[0].mxu0
      %2056 = vmatprep.mubr.f32.mxu0 0.0
      %2057 = vmatmul.mubr.f32.gmra.mrb[0].mxu0 %v1798
      %v2058 = vpop.f32.mrb[0].mxu0
      %v2059 = vadd.f32 0.0, %v2058
      %v2060 = vpop.f32.mrb[0].mxu0
      %2061 = vmatprep.mubr.f32.mxu0 0.0
      %2062 = vmatmul.mubr.f32.gmra.mrb[0].mxu0 %v1801
      %v2063 = vpop.f32.mrb[0].mxu0
      %v2064 = vadd.f32 0.0, %v2063
      %v2065 = vpop.f32.mrb[0].mxu0
      %2066 = vmatprep.mubr.f32.mxu0 0.0
      %2067 = vmatmul.mubr.f32.gmra.mrb[0].mxu0 %v1804
      %v2068 = vpop.f32.mrb[0].mxu0
      %v2069 = vadd.f32 0.0, %v2068
      %v2070 = vpop.f32.mrb[0].mxu0
      %2071 = vmatprep.mubr.f32.mxu0 0.0
      %2072 = vmatmul.mubr.f32.gmra.mrb[0].mxu0 %v1807
      %v2073 = vpop.f32.mrb[0].mxu0
      %v2074 = vadd.f32 0.0, %v2073
      %v2075 = vpop.f32.mrb[0].mxu0
      %2076 = vmatprep.mubr.f32.mxu0 0.0
      %2077 = vmatmul.mubr.f32.gmra.mrb[0].mxu0 %v1810
      %v2078 = vpop.f32.mrb[0].mxu0
      %v2079 = vadd.f32 0.0, %v2078
      %v2080 = vpop.f32.mrb[0].mxu0
      %2081 = vdwg.mxu0
      %v2082 = vmax.f32 %v1606, %v1879
      %v2083 = vmax.f32 %v1607, %v1884
      %v2084 = vmax.f32 %v1608, %v1889
      %v2085 = vmax.f32 %v1609, %v1894
      %v2086 = vmax.f32 %v1610, %v1899
      %v2087 = vmax.f32 %v1611, %v1904
      %v2088 = vmax.f32 %v1612, %v1909
      %v2089 = vmax.f32 %v1613, %v1914
      %v2090 = vmax.f32 %v1614, %v1919
      %v2091 = vmax.f32 %v1615, %v1924
      %v2092 = vmax.f32 %v1616, %v1929
      %v2093 = vmax.f32 %v1617, %v1934
      %v2094 = vmax.f32 %v1618, %v1939
      %v2095 = vmax.f32 %v1619, %v1944
      %v2096 = vmax.f32 %v1620, %v1949
      %v2097 = vmax.f32 %v1621, %v1954
      %v2098 = vmax.f32 %v1622, %v1959
      %v2099 = vmax.f32 %v1623, %v1964
      %v2100 = vmax.f32 %v1624, %v1969
      %v2101 = vmax.f32 %v1625, %v1974
      %v2102 = vmax.f32 %v1626, %v1979
      %v2103 = vmax.f32 %v1627, %v1984
      %v2104 = vmax.f32 %v1628, %v1989
      %v2105 = vmax.f32 %v1629, %v1994
      %v2106 = vmax.f32 %v1630, %v1999
      %v2107 = vmax.f32 %v1631, %v2004
      %v2108 = vmax.f32 %v1632, %v2009
      %v2109 = vmax.f32 %v1633, %v2014
      %v2110 = vmax.f32 %v1634, %v2019
      %v2111 = vmax.f32 %v1635, %v2024
      %v2112 = vmax.f32 %v1636, %v2029
      %v2113 = vmax.f32 %v1637, %v2034
      %v2114 = vmax.f32 %v1638, %v2039
      %v2115 = vmax.f32 %v1639, %v2044
      %v2116 = vmax.f32 %v1640, %v2049
      %v2117 = vmax.f32 %v1641, %v2054
      %v2118 = vmax.f32 %v1642, %v2059
      %v2119 = vmax.f32 %v1643, %v2064
      %v2120 = vmax.f32 %v1644, %v2069
      %v2121 = vmax.f32 %v1645, %v2074
      %v2122 = vmax.f32 %v1646, %v2079
      %v2123 = vld [vmem:[%s2] sm:$0x1]
      %v2125 = vlaneseq
      %v2126 = vshrl.u32 %v2125, 7
      %v2127 = vsub.s32 0, %v2126
      %v2128 = vrot.slane %v2123, %v2127
      %v2130 = vadd.f32 %v2082, %v2128
      %v2131 = vadd.f32 %v2083, %v2128
      %v2132 = vadd.f32 %v2084, %v2128
      %v2133 = vadd.f32 %v2085, %v2128
      %v2134 = vadd.f32 %v2086, %v2128
      %v2135 = vadd.f32 %v2087, %v2128
      %v2136 = vadd.f32 %v2088, %v2128
      %v2137 = vadd.f32 %v2089, %v2128
      %v2138 = vadd.f32 %v2090, %v2128
      %v2139 = vadd.f32 %v2091, %v2128
      %v2140 = vadd.f32 %v2092, %v2128
      %v2141 = vadd.f32 %v2093, %v2128
      %v2142 = vadd.f32 %v2094, %v2128
      %v2143 = vadd.f32 %v2095, %v2128
      %v2144 = vadd.f32 %v2096, %v2128
      %v2145 = vadd.f32 %v2097, %v2128
      %v2146 = vadd.f32 %v2098, %v2128
      %v2147 = vadd.f32 %v2099, %v2128
      %v2148 = vadd.f32 %v2100, %v2128
      %v2149 = vadd.f32 %v2101, %v2128
      %v2150 = vadd.f32 %v2102, %v2128
      %v2151 = vadd.f32 %v2103, %v2128
      %v2152 = vadd.f32 %v2104, %v2128
      %v2153 = vadd.f32 %v2105, %v2128
      %v2154 = vadd.f32 %v2106, %v2128
      %v2155 = vadd.f32 %v2107, %v2128
      %v2156 = vadd.f32 %v2108, %v2128
      %v2157 = vadd.f32 %v2109, %v2128
      %v2158 = vadd.f32 %v2110, %v2128
      %v2159 = vadd.f32 %v2111, %v2128
      %v2160 = vadd.f32 %v2112, %v2128
      %v2161 = vadd.f32 %v2113, %v2128
      %v2162 = vadd.f32 %v2114, %v2128
      %v2163 = vadd.f32 %v2115, %v2128
      %v2164 = vadd.f32 %v2116, %v2128
      %v2165 = vadd.f32 %v2117, %v2128
      %v2166 = vadd.f32 %v2118, %v2128
      %v2167 = vadd.f32 %v2119, %v2128
      %v2168 = vadd.f32 %v2120, %v2128
      %v2169 = vadd.f32 %v2121, %v2128
      %v2170 = vadd.f32 %v2122, %v2128
      %v2171 = vmax.f32 %v2130, 0.0
      %v2172 = vmax.f32 %v2131, 0.0
      %v2173 = vmax.f32 %v2132, 0.0
      %v2174 = vmax.f32 %v2133, 0.0
      %v2175 = vmax.f32 %v2134, 0.0
      %v2176 = vmax.f32 %v2135, 0.0
      %v2177 = vmax.f32 %v2136, 0.0
      %v2178 = vmax.f32 %v2137, 0.0
      %v2179 = vmax.f32 %v2138, 0.0
      %v2180 = vmax.f32 %v2139, 0.0
      %v2181 = vmax.f32 %v2140, 0.0
      %v2182 = vmax.f32 %v2141, 0.0
      %v2183 = vmax.f32 %v2142, 0.0
      %v2184 = vmax.f32 %v2143, 0.0
      %v2185 = vmax.f32 %v2144, 0.0
      %v2186 = vmax.f32 %v2145, 0.0
      %v2187 = vmax.f32 %v2146, 0.0
      %v2188 = vmax.f32 %v2147, 0.0
      %v2189 = vmax.f32 %v2148, 0.0
      %v2190 = vmax.f32 %v2149, 0.0
      %v2191 = vmax.f32 %v2150, 0.0
      %v2192 = vmax.f32 %v2151, 0.0
      %v2193 = vmax.f32 %v2152, 0.0
      %v2194 = vmax.f32 %v2153, 0.0
      %v2195 = vmax.f32 %v2154, 0.0
      %v2196 = vmax.f32 %v2155, 0.0
      %v2197 = vmax.f32 %v2156, 0.0
      %v2198 = vmax.f32 %v2157, 0.0
      %v2199 = vmax.f32 %v2158, 0.0
      %v2200 = vmax.f32 %v2159, 0.0
      %v2201 = vmax.f32 %v2160, 0.0
      %v2202 = vmax.f32 %v2161, 0.0
      %v2203 = vmax.f32 %v2162, 0.0
      %v2204 = vmax.f32 %v2163, 0.0
      %v2205 = vmax.f32 %v2164, 0.0
      %v2206 = vmax.f32 %v2165, 0.0
      %v2207 = vmax.f32 %v2166, 0.0
      %v2208 = vmax.f32 %v2167, 0.0
      %v2209 = vmax.f32 %v2168, 0.0
      %v2210 = vmax.f32 %v2169, 0.0
      %v2211 = vmax.f32 %v2170, 0.0
      %v2212 = vld [vmem:[%s3] sm:$0xff]
      %v2213 = vld [vmem:[%s3 + $0x8] sm:$0xff]
      %v2214 = vld [vmem:[%s3 + $0x10] sm:$0xff]
      %v2215 = vld [vmem:[%s3 + $0x18] sm:$0xff]
      %v2216 = vld [vmem:[%s3 + $0x20] sm:$0xff]
      %v2217 = vld [vmem:[%s3 + $0x28] sm:$0xff]
      %v2218 = vld [vmem:[%s3 + $0x30] sm:$0xff]
      %v2219 = vld [vmem:[%s3 + $0x38] sm:$0xff]
      %v2220 = vld [vmem:[%s3 + $0x40] sm:$0xff]
      %v2221 = vld [vmem:[%s3 + $0x48] sm:$0xff]
      %v2222 = vld [vmem:[%s3 + $0x50] sm:$0xff]
      %v2223 = vld [vmem:[%s3 + $0x58] sm:$0xff]
      %v2224 = vld [vmem:[%s3 + $0x60] sm:$0xff]
      %v2225 = vld [vmem:[%s3 + $0x68] sm:$0xff]
      %v2226 = vld [vmem:[%s3 + $0x70] sm:$0xff]
      %v2227 = vld [vmem:[%s3 + $0x78] sm:$0xff]
      %v2228 = vld [vmem:[%s3 + $0x80] sm:$0xff]
      %v2229 = vld [vmem:[%s3 + $0x88] sm:$0xff]
      %v2230 = vld [vmem:[%s3 + $0x90] sm:$0xff]
      %v2231 = vld [vmem:[%s3 + $0x98] sm:$0xff]
      %v2232 = vld [vmem:[%s3 + $0xa0] sm:$0xff]
      %v2233 = vld [vmem:[%s3 + $0xa8] sm:$0xff]
      %v2234 = vld [vmem:[%s3 + $0xb0] sm:$0xff]
      %v2235 = vld [vmem:[%s3 + $0xb8] sm:$0xff]
      %v2236 = vld [vmem:[%s3 + $0xc0] sm:$0xff]
      %v2237 = vld [vmem:[%s3 + $0xc8] sm:$0xff]
      %v2238 = vld [vmem:[%s3 + $0xd0] sm:$0xff]
      %v2239 = vld [vmem:[%s3 + $0xd8] sm:$0xff]
      %v2240 = vld [vmem:[%s3 + $0xe0] sm:$0xff]
      %v2241 = vld [vmem:[%s3 + $0xe8] sm:$0xff]
      %v2242 = vld [vmem:[%s3 + $0xf0] sm:$0xff]
      %v2243 = vld [vmem:[%s3 + $0xf8] sm:$0xff]
      %v2244 = vld [vmem:[%s3 + $0x100] sm:$0xff]
      %v2245 = vld [vmem:[%s3 + $0x108] sm:$0xff]
      %v2246 = vld [vmem:[%s3 + $0x110] sm:$0xff]
      %v2247 = vld [vmem:[%s3 + $0x118] sm:$0xff]
      %v2248 = vld [vmem:[%s3 + $0x120] sm:$0xff]
      %v2249 = vld [vmem:[%s3 + $0x128] sm:$0xff]
      %v2250 = vld [vmem:[%s3 + $0x130] sm:$0xff]
      %v2251 = vld [vmem:[%s3 + $0x138] sm:$0xff]
      %v2252 = vld [vmem:[%s3 + $0x140] sm:$0xf]
      %2254 = vset.pattern.permute.xlu0 0
      %2255 = vperm.xlu0 %2254, %v2212
      %v2256 = vpop.permute.xlu0 %2255
      %2259 = vset.pattern.permute.xlu0 0
      %2260 = vperm.xlu0 %2259, %v2213
      %v2261 = vpop.permute.xlu0 %2260
      %2264 = vset.pattern.permute.xlu0 0
      %2265 = vperm.xlu0 %2264, %v2214
      %v2266 = vpop.permute.xlu0 %2265
      %2269 = vset.pattern.permute.xlu0 0
      %2270 = vperm.xlu0 %2269, %v2215
      %v2271 = vpop.permute.xlu0 %2270
      %2274 = vset.pattern.permute.xlu0 0
      %2275 = vperm.xlu0 %2274, %v2216
      %v2276 = vpop.permute.xlu0 %2275
      %2279 = vset.pattern.permute.xlu0 0
      %2280 = vperm.xlu0 %2279, %v2217
      %v2281 = vpop.permute.xlu0 %2280
      %2284 = vset.pattern.permute.xlu0 0
      %2285 = vperm.xlu0 %2284, %v2218
      %v2286 = vpop.permute.xlu0 %2285
      %2289 = vset.pattern.permute.xlu0 0
      %2290 = vperm.xlu0 %2289, %v2219
      %v2291 = vpop.permute.xlu0 %2290
      %2294 = vset.pattern.permute.xlu0 0
      %2295 = vperm.xlu0 %2294, %v2220
      %v2296 = vpop.permute.xlu0 %2295
      %2299 = vset.pattern.permute.xlu0 0
      %2300 = vperm.xlu0 %2299, %v2221
      %v2301 = vpop.permute.xlu0 %2300
      %2304 = vset.pattern.permute.xlu0 0
      %2305 = vperm.xlu0 %2304, %v2222
      %v2306 = vpop.permute.xlu0 %2305
      %2309 = vset.pattern.permute.xlu0 0
      %2310 = vperm.xlu0 %2309, %v2223
      %v2311 = vpop.permute.xlu0 %2310
      %2314 = vset.pattern.permute.xlu0 0
      %2315 = vperm.xlu0 %2314, %v2224
      %v2316 = vpop.permute.xlu0 %2315
      %2319 = vset.pattern.permute.xlu0 0
      %2320 = vperm.xlu0 %2319, %v2225
      %v2321 = vpop.permute.xlu0 %2320
      %2324 = vset.pattern.permute.xlu0 0
      %2325 = vperm.xlu0 %2324, %v2226
      %v2326 = vpop.permute.xlu0 %2325
      %2329 = vset.pattern.permute.xlu0 0
      %2330 = vperm.xlu0 %2329, %v2227
      %v2331 = vpop.permute.xlu0 %2330
      %2334 = vset.pattern.permute.xlu0 0
      %2335 = vperm.xlu0 %2334, %v2228
      %v2336 = vpop.permute.xlu0 %2335
      %2339 = vset.pattern.permute.xlu0 0
      %2340 = vperm.xlu0 %2339, %v2229
      %v2341 = vpop.permute.xlu0 %2340
      %2344 = vset.pattern.permute.xlu0 0
      %2345 = vperm.xlu0 %2344, %v2230
      %v2346 = vpop.permute.xlu0 %2345
      %2349 = vset.pattern.permute.xlu0 0
      %2350 = vperm.xlu0 %2349, %v2231
      %v2351 = vpop.permute.xlu0 %2350
      %2354 = vset.pattern.permute.xlu0 0
      %2355 = vperm.xlu0 %2354, %v2232
      %v2356 = vpop.permute.xlu0 %2355
      %2359 = vset.pattern.permute.xlu0 0
      %2360 = vperm.xlu0 %2359, %v2233
      %v2361 = vpop.permute.xlu0 %2360
      %2364 = vset.pattern.permute.xlu0 0
      %2365 = vperm.xlu0 %2364, %v2234
      %v2366 = vpop.permute.xlu0 %2365
      %2369 = vset.pattern.permute.xlu0 0
      %2370 = vperm.xlu0 %2369, %v2235
      %v2371 = vpop.permute.xlu0 %2370
      %2374 = vset.pattern.permute.xlu0 0
      %2375 = vperm.xlu0 %2374, %v2236
      %v2376 = vpop.permute.xlu0 %2375
      %2379 = vset.pattern.permute.xlu0 0
      %2380 = vperm.xlu0 %2379, %v2237
      %v2381 = vpop.permute.xlu0 %2380
      %2384 = vset.pattern.permute.xlu0 0
      %2385 = vperm.xlu0 %2384, %v2238
      %v2386 = vpop.permute.xlu0 %2385
      %2389 = vset.pattern.permute.xlu0 0
      %2390 = vperm.xlu0 %2389, %v2239
      %v2391 = vpop.permute.xlu0 %2390
      %2394 = vset.pattern.permute.xlu0 0
      %2395 = vperm.xlu0 %2394, %v2240
      %v2396 = vpop.permute.xlu0 %2395
      %2399 = vset.pattern.permute.xlu0 0
      %2400 = vperm.xlu0 %2399, %v2241
      %v2401 = vpop.permute.xlu0 %2400
      %2404 = vset.pattern.permute.xlu0 0
      %2405 = vperm.xlu0 %2404, %v2242
      %v2406 = vpop.permute.xlu0 %2405
      %2409 = vset.pattern.permute.xlu0 0
      %2410 = vperm.xlu0 %2409, %v2243
      %v2411 = vpop.permute.xlu0 %2410
      %2414 = vset.pattern.permute.xlu0 0
      %2415 = vperm.xlu0 %2414, %v2244
      %v2416 = vpop.permute.xlu0 %2415
      %2419 = vset.pattern.permute.xlu0 0
      %2420 = vperm.xlu0 %2419, %v2245
      %v2421 = vpop.permute.xlu0 %2420
      %2424 = vset.pattern.permute.xlu0 0
      %2425 = vperm.xlu0 %2424, %v2246
      %v2426 = vpop.permute.xlu0 %2425
      %2429 = vset.pattern.permute.xlu0 0
      %2430 = vperm.xlu0 %2429, %v2247
      %v2431 = vpop.permute.xlu0 %2430
      %2434 = vset.pattern.permute.xlu0 0
      %2435 = vperm.xlu0 %2434, %v2248
      %v2436 = vpop.permute.xlu0 %2435
      %2439 = vset.pattern.permute.xlu0 0
      %2440 = vperm.xlu0 %2439, %v2249
      %v2441 = vpop.permute.xlu0 %2440
      %2444 = vset.pattern.permute.xlu0 0
      %2445 = vperm.xlu0 %2444, %v2250
      %v2446 = vpop.permute.xlu0 %2445
      %2449 = vset.pattern.permute.xlu0 0
      %2450 = vperm.xlu0 %2449, %v2251
      %v2451 = vpop.permute.xlu0 %2450
      %2454 = vset.pattern.permute.xlu0 0
      %2455 = vperm.xlu0 %2454, %v2252
      %v2456 = vpop.permute.xlu0 %2455
      %v2458 = vmul.f32 %v2171, %v2256
      %v2459 = vmul.f32 %v2172, %v2261
      %v2460 = vmul.f32 %v2173, %v2266
      %v2461 = vmul.f32 %v2174, %v2271
      %v2462 = vmul.f32 %v2175, %v2276
      %v2463 = vmul.f32 %v2176, %v2281
      %v2464 = vmul.f32 %v2177, %v2286
      %v2465 = vmul.f32 %v2178, %v2291
      %v2466 = vmul.f32 %v2179, %v2296
      %v2467 = vmul.f32 %v2180, %v2301
      %v2468 = vmul.f32 %v2181, %v2306
      %v2469 = vmul.f32 %v2182, %v2311
      %v2470 = vmul.f32 %v2183, %v2316
      %v2471 = vmul.f32 %v2184, %v2321
      %v2472 = vmul.f32 %v2185, %v2326
      %v2473 = vmul.f32 %v2186, %v2331
      %v2474 = vmul.f32 %v2187, %v2336
      %v2475 = vmul.f32 %v2188, %v2341
      %v2476 = vmul.f32 %v2189, %v2346
      %v2477 = vmul.f32 %v2190, %v2351
      %v2478 = vmul.f32 %v2191, %v2356
      %v2479 = vmul.f32 %v2192, %v2361
      %v2480 = vmul.f32 %v2193, %v2366
      %v2481 = vmul.f32 %v2194, %v2371
      %v2482 = vmul.f32 %v2195, %v2376
      %v2483 = vmul.f32 %v2196, %v2381
      %v2484 = vmul.f32 %v2197, %v2386
      %v2485 = vmul.f32 %v2198, %v2391
      %v2486 = vmul.f32 %v2199, %v2396
      %v2487 = vmul.f32 %v2200, %v2401
      %v2488 = vmul.f32 %v2201, %v2406
      %v2489 = vmul.f32 %v2202, %v2411
      %v2490 = vmul.f32 %v2203, %v2416
      %v2491 = vmul.f32 %v2204, %v2421
      %v2492 = vmul.f32 %v2205, %v2426
      %v2493 = vmul.f32 %v2206, %v2431
      %v2494 = vmul.f32 %v2207, %v2436
      %v2495 = vmul.f32 %v2208, %v2441
      %v2496 = vmul.f32 %v2209, %v2446
      %v2497 = vmul.f32 %v2210, %v2451
      %v2498 = vmul.f32 %v2211, %v2456
      %vm2499 = vcmask 130048
      %2500 = vst.msk [vmem:[#allocation2] sm:$0xff] %vm2499, 0.0
      %2501 = vst.msk [vmem:[#allocation2 + $0x8] sm:$0xff] %vm2499, 0.0
      %2502 = vst.msk [vmem:[#allocation2 + $0x10] sm:$0xff] %vm2499, 0.0
      %2503 = vst.msk [vmem:[#allocation2 + $0x18] sm:$0xff] %vm2499, 0.0
      %2504 = vst.msk [vmem:[#allocation2 + $0x20] sm:$0xff] %vm2499, 0.0
      %2505 = vst.msk [vmem:[#allocation2 + $0x28] sm:$0xff] %vm2499, 0.0
      %2506 = vst.msk [vmem:[#allocation2 + $0x30] sm:$0xff] %vm2499, 0.0
      %2507 = vst.msk [vmem:[#allocation2 + $0x38] sm:$0xff] %vm2499, 0.0
      %2508 = vst.msk [vmem:[#allocation2 + $0x40] sm:$0xff] %vm2499, 0.0
      %2509 = vst.msk [vmem:[#allocation2 + $0x48] sm:$0xff] %vm2499, 0.0
      %2510 = vst.msk [vmem:[#allocation2 + $0x50] sm:$0xff] %vm2499, 0.0
      %2511 = vst.msk [vmem:[#allocation2 + $0x58] sm:$0xff] %vm2499, 0.0
      %2512 = vst.msk [vmem:[#allocation2 + $0x60] sm:$0xff] %vm2499, 0.0
      %2513 = vst.msk [vmem:[#allocation2 + $0x68] sm:$0xff] %vm2499, 0.0
      %2514 = vst.msk [vmem:[#allocation2 + $0x70] sm:$0xff] %vm2499, 0.0
      %2515 = vst.msk [vmem:[#allocation2 + $0x78] sm:$0xff] %vm2499, 0.0
      %2516 = vst.msk [vmem:[#allocation2 + $0x80] sm:$0xff] %vm2499, 0.0
      %2517 = vst.msk [vmem:[#allocation2 + $0x88] sm:$0xff] %vm2499, 0.0
      %2518 = vst.msk [vmem:[#allocation2 + $0x90] sm:$0xff] %vm2499, 0.0
      %2519 = vst.msk [vmem:[#allocation2 + $0x98] sm:$0xff] %vm2499, 0.0
      %2520 = vst.msk [vmem:[#allocation2 + $0xa0] sm:$0xff] %vm2499, 0.0
      %2521 = vst.msk [vmem:[#allocation2 + $0xa8] sm:$0xff] %vm2499, 0.0
      %2522 = vst.msk [vmem:[#allocation2 + $0xb0] sm:$0xff] %vm2499, 0.0
      %2523 = vst.msk [vmem:[#allocation2 + $0xb8] sm:$0xff] %vm2499, 0.0
      %2524 = vst.msk [vmem:[#allocation2 + $0xc0] sm:$0xff] %vm2499, 0.0
      %2525 = vst.msk [vmem:[#allocation2 + $0xc8] sm:$0xff] %vm2499, 0.0
      %2526 = vst.msk [vmem:[#allocation2 + $0xd0] sm:$0xff] %vm2499, 0.0
      %2527 = vst.msk [vmem:[#allocation2 + $0xd8] sm:$0xff] %vm2499, 0.0
      %2528 = vst.msk [vmem:[#allocation2 + $0xe0] sm:$0xff] %vm2499, 0.0
      %2529 = vst.msk [vmem:[#allocation2 + $0xe8] sm:$0xff] %vm2499, 0.0
      %2530 = vst.msk [vmem:[#allocation2 + $0xf0] sm:$0xff] %vm2499, 0.0
      %2531 = vst.msk [vmem:[#allocation2 + $0xf8] sm:$0xff] %vm2499, 0.0
      %2532 = vst.msk [vmem:[#allocation2 + $0x100] sm:$0xff] %vm2499, 0.0
      %2533 = vst.msk [vmem:[#allocation2 + $0x108] sm:$0xff] %vm2499, 0.0
      %2534 = vst.msk [vmem:[#allocation2 + $0x110] sm:$0xff] %vm2499, 0.0
      %2535 = vst.msk [vmem:[#allocation2 + $0x118] sm:$0xff] %vm2499, 0.0
      %2536 = vst.msk [vmem:[#allocation2 + $0x120] sm:$0xff] %vm2499, 0.0
      %2537 = vst.msk [vmem:[#allocation2 + $0x128] sm:$0xff] %vm2499, 0.0
      %2538 = vst.msk [vmem:[#allocation2 + $0x130] sm:$0xff] %vm2499, 0.0
      %2539 = vst.msk [vmem:[#allocation2 + $0x138] sm:$0xff] %vm2499, 0.0
      %2540 = vst.msk [vmem:[#allocation2 + $0x140] sm:$0xff] %vm2499, 0.0
      %2541 = vst.msk [vmem:[#allocation2 + $0x148] sm:$0xff] %vm2499, 0.0
      %2542 = vst.msk [vmem:[#allocation2] sm:$0xff] %vm2499, %v2458
      %2543 = vst.msk [vmem:[#allocation2 + $0x8] sm:$0xff] %vm2499, %v2459
      %2544 = vst.msk [vmem:[#allocation2 + $0x10] sm:$0xff] %vm2499, %v2460
      %2545 = vst.msk [vmem:[#allocation2 + $0x18] sm:$0xff] %vm2499, %v2461
      %2546 = vst.msk [vmem:[#allocation2 + $0x20] sm:$0xff] %vm2499, %v2462
      %2547 = vst.msk [vmem:[#allocation2 + $0x28] sm:$0xff] %vm2499, %v2463
      %2548 = vst.msk [vmem:[#allocation2 + $0x30] sm:$0xff] %vm2499, %v2464
      %2549 = vst.msk [vmem:[#allocation2 + $0x38] sm:$0xff] %vm2499, %v2465
      %2550 = vst.msk [vmem:[#allocation2 + $0x40] sm:$0xff] %vm2499, %v2466
      %2551 = vst.msk [vmem:[#allocation2 + $0x48] sm:$0xff] %vm2499, %v2467
      %2552 = vst.msk [vmem:[#allocation2 + $0x50] sm:$0xff] %vm2499, %v2468
      %2553 = vst.msk [vmem:[#allocation2 + $0x58] sm:$0xff] %vm2499, %v2469
      %2554 = vst.msk [vmem:[#allocation2 + $0x60] sm:$0xff] %vm2499, %v2470
      %2555 = vst.msk [vmem:[#allocation2 + $0x68] sm:$0xff] %vm2499, %v2471
      %2556 = vst.msk [vmem:[#allocation2 + $0x70] sm:$0xff] %vm2499, %v2472
      %2557 = vst.msk [vmem:[#allocation2 + $0x78] sm:$0xff] %vm2499, %v2473
      %2558 = vst.msk [vmem:[#allocation2 + $0x80] sm:$0xff] %vm2499, %v2474
      %2559 = vst.msk [vmem:[#allocation2 + $0x88] sm:$0xff] %vm2499, %v2475
      %2560 = vst.msk [vmem:[#allocation2 + $0x90] sm:$0xff] %vm2499, %v2476
      %2561 = vst.msk [vmem:[#allocation2 + $0x98] sm:$0xff] %vm2499, %v2477
      %2562 = vst.msk [vmem:[#allocation2 + $0xa0] sm:$0xff] %vm2499, %v2478
      %2563 = vst.msk [vmem:[#allocation2 + $0xa8] sm:$0xff] %vm2499, %v2479
      %2564 = vst.msk [vmem:[#allocation2 + $0xb0] sm:$0xff] %vm2499, %v2480
      %2565 = vst.msk [vmem:[#allocation2 + $0xb8] sm:$0xff] %vm2499, %v2481
      %2566 = vst.msk [vmem:[#allocation2 + $0xc0] sm:$0xff] %vm2499, %v2482
      %2567 = vst.msk [vmem:[#allocation2 + $0xc8] sm:$0xff] %vm2499, %v2483
      %2568 = vst.msk [vmem:[#allocation2 + $0xd0] sm:$0xff] %vm2499, %v2484
      %2569 = vst.msk [vmem:[#allocation2 + $0xd8] sm:$0xff] %vm2499, %v2485
      %2570 = vst.msk [vmem:[#allocation2 + $0xe0] sm:$0xff] %vm2499, %v2486
      %2571 = vst.msk [vmem:[#allocation2 + $0xe8] sm:$0xff] %vm2499, %v2487
      %2572 = vst.msk [vmem:[#allocation2 + $0xf0] sm:$0xff] %vm2499, %v2488
      %2573 = vst.msk [vmem:[#allocation2 + $0xf8] sm:$0xff] %vm2499, %v2489
      %2574 = vst.msk [vmem:[#allocation2 + $0x100] sm:$0xff] %vm2499, %v2490
      %2575 = vst.msk [vmem:[#allocation2 + $0x108] sm:$0xff] %vm2499, %v2491
      %2576 = vst.msk [vmem:[#allocation2 + $0x110] sm:$0xff] %vm2499, %v2492
      %2577 = vst.msk [vmem:[#allocation2 + $0x118] sm:$0xff] %vm2499, %v2493
      %2578 = vst.msk [vmem:[#allocation2 + $0x120] sm:$0xff] %vm2499, %v2494
      %2579 = vst.msk [vmem:[#allocation2 + $0x128] sm:$0xff] %vm2499, %v2495
      %2580 = vst.msk [vmem:[#allocation2 + $0x130] sm:$0xff] %vm2499, %v2496
      %2581 = vst.msk [vmem:[#allocation2 + $0x138] sm:$0xff] %vm2499, %v2497
      %vm2582 = vcmask 125952
      %2583 = vst.msk [vmem:[#allocation2 + $0x140] sm:$0xf] %vm2582, %v2498
      %v2584 = vld [vmem:[#allocation2] sm:$0xff]
      %v2585 = vld [vmem:[#allocation2 + $0x8] sm:$0xff]
      %v2586 = vld [vmem:[#allocation2 + $0x10] sm:$0xff]
      %v2587 = vld [vmem:[#allocation2 + $0x18] sm:$0xff]
      %v2588 = vld [vmem:[#allocation2 + $0x20] sm:$0xff]
      %v2589 = vld [vmem:[#allocation2 + $0x28] sm:$0xff]
      %v2590 = vld [vmem:[#allocation2 + $0x30] sm:$0xff]
      %v2591 = vld [vmem:[#allocation2 + $0x38] sm:$0x7f]
      %v2592 = vld [vmem:[%s4] sm:$0xff]
      %v2593 = vld [vmem:[%s4 + $0x8] sm:$0xff]
      %v2594 = vld [vmem:[#allocation2 + $0x51] sm:$0xff]
      %v2595 = vld [vmem:[#allocation2 + $0x59] sm:$0xff]
      %v2596 = vld [vmem:[#allocation2 + $0x61] sm:$0xff]
      %v2597 = vld [vmem:[#allocation2 + $0x69] sm:$0xff]
      %v2598 = vld [vmem:[#allocation2 + $0x71] sm:$0xff]
      %v2599 = vld [vmem:[#allocation2 + $0x79] sm:$0xff]
      %v2600 = vld [vmem:[#allocation2 + $0x81] sm:$0xff]
      %v2601 = vld [vmem:[#allocation2 + $0x89] sm:$0x7f]
      %s2602 = scalar_lea.vmem %s4, 16
      %v2603 = vld [vmem:[%s2602] sm:$0xff]
      %v2604 = vld [vmem:[%s2602 + $0x8] sm:$0xff]
      %v2606 = vsel %vm2499, %v2594, 0
      %v2609 = vsel %vm2499, %v2595, 0
      %v2612 = vsel %vm2499, %v2596, 0
      %v2615 = vsel %vm2499, %v2597, 0
      %v2618 = vsel %vm2499, %v2598, 0
      %v2621 = vsel %vm2499, %v2599, 0
      %v2624 = vsel %vm2499, %v2600, 0
      %v2627 = vsel %vm2499, %v2601, 0
      %2629 = vmatprep.subr.mxu0 0.0
      %2630 = vmatpush1.msra.mxu0 %v2603
      %2631 = vmatprep.subr.mxu0 0.0
      %2632 = vmatpush1.msra.mxu0 %v2604
      %2633 = vmatprep.subr.mxu0 0.0
      %2634 = vmatpush1.msra.mxu0 0.0
      %2635 = vmatprep.subr.mxu0 0.0
      %2636 = vmatpush1.msra.mxu0 0.0
      %2637 = vmatprep.subr.mxu0 0.0
      %2638 = vmatpush1.msra.mxu0 0.0
      %2639 = vmatprep.subr.mxu0 0.0
      %2640 = vmatpush1.msra.mxu0 0.0
      %2641 = vmatprep.subr.mxu0 0.0
      %2642 = vmatpush1.msra.mxu0 0.0
      %2643 = vmatprep.subr.mxu0 0.0
      %2644 = vmatpush1.msra.mxu0 0.0
      %2645 = vmatprep.subr.mxu0 0.0
      %2646 = vmatpush1.msra.mxu0 0.0
      %2647 = vmatprep.subr.mxu0 0.0
      %2648 = vmatpush1.msra.mxu0 0.0
      %2649 = vmatprep.subr.mxu0 0.0
      %2650 = vmatpush1.msra.mxu0 0.0
      %2651 = vmatprep.subr.mxu0 0.0
      %2652 = vmatpush1.msra.mxu0 0.0
      %2653 = vmatprep.subr.mxu0 0.0
      %2654 = vmatpush1.msra.mxu0 0.0
      %2655 = vmatprep.subr.mxu0 0.0
      %2656 = vmatpush1.msra.mxu0 0.0
      %2657 = vmatprep.subr.mxu0 0.0
      %2658 = vmatpush1.msra.mxu0 0.0
      %2659 = vmatprep.subr.mxu0 0.0
      %2660 = vmatpush1.msra.mxu0 0.0
      %2661 = vmatprep.subr.mxu0 0.0
      %2662 = vmatpush1.msra.mxu0 0.0
      %2663 = vmatprep.subr.mxu0 0.0
      %2664 = vmatpush1.msra.mxu0 0.0
      %2665 = vmatprep.subr.mxu0 0.0
      %2666 = vmatpush1.msra.mxu0 0.0
      %2667 = vmatprep.subr.mxu0 0.0
      %2668 = vmatpush1.msra.mxu0 0.0
      %2669 = vmatprep.subr.mxu0 0.0
      %2670 = vmatpush1.msra.mxu0 0.0
      %2671 = vmatprep.subr.mxu0 0.0
      %2672 = vmatpush1.msra.mxu0 0.0
      %2673 = vmatprep.subr.mxu0 0.0
      %2674 = vmatpush1.msra.mxu0 0.0
      %2675 = vmatprep.subr.mxu0 0.0
      %2676 = vmatpush1.msra.mxu0 0.0
      %2677 = vmatprep.subr.mxu0 0.0
      %2678 = vmatpush1.msra.mxu0 0.0
      %2679 = vmatprep.subr.mxu0 0.0
      %2680 = vmatpush1.msra.mxu0 0.0
      %2681 = vmatprep.subr.mxu0 0.0
      %2682 = vmatpush1.msra.mxu0 0.0
      %2683 = vmatprep.subr.mxu0 0.0
      %2684 = vmatpush1.msra.mxu0 0.0
      %2685 = vmatprep.subr.mxu0 0.0
      %2686 = vmatpush1.msra.mxu0 0.0
      %2687 = vmatprep.subr.mxu0 0.0
      %2688 = vmatpush1.msra.mxu0 0.0
      %2689 = vmatprep.subr.mxu0 0.0
      %2690 = vmatpush1.msra.mxu0 0.0
      %2691 = vmatprep.subr.mxu0 0.0
      %2692 = vmatpush1.msra.mxu0 0.0
      %2693 = vmatprep.mubr.f32.mxu0 0.0
      %2694 = vmatmul.mubr.f32.gmra.mrb[0].mxu0 %v2606
      %v2695 = vpop.f32.mrb[0].mxu0
      %v2696 = vadd.f32 0.0, %v2695
      %v2697 = vpop.f32.mrb[0].mxu0
      %2698 = vmatprep.mubr.f32.mxu0 0.0
      %2699 = vmatmul.mubr.f32.gmra.mrb[0].mxu0 %v2609
      %v2700 = vpop.f32.mrb[0].mxu0
      %v2701 = vadd.f32 0.0, %v2700
      %v2702 = vpop.f32.mrb[0].mxu0
      %2703 = vmatprep.mubr.f32.mxu0 0.0
      %2704 = vmatmul.mubr.f32.gmra.mrb[0].mxu0 %v2612
      %v2705 = vpop.f32.mrb[0].mxu0
      %v2706 = vadd.f32 0.0, %v2705
      %v2707 = vpop.f32.mrb[0].mxu0
      %2708 = vmatprep.mubr.f32.mxu0 0.0
      %2709 = vmatmul.mubr.f32.gmra.mrb[0].mxu0 %v2615
      %v2710 = vpop.f32.mrb[0].mxu0
      %v2711 = vadd.f32 0.0, %v2710
      %v2712 = vpop.f32.mrb[0].mxu0
      %2713 = vmatprep.mubr.f32.mxu0 0.0
      %2714 = vmatmul.mubr.f32.gmra.mrb[0].mxu0 %v2618
      %v2715 = vpop.f32.mrb[0].mxu0
      %v2716 = vadd.f32 0.0, %v2715
      %v2717 = vpop.f32.mrb[0].mxu0
      %2718 = vmatprep.mubr.f32.mxu0 0.0
      %2719 = vmatmul.mubr.f32.gmra.mrb[0].mxu0 %v2621
      %v2720 = vpop.f32.mrb[0].mxu0
      %v2721 = vadd.f32 0.0, %v2720
      %v2722 = vpop.f32.mrb[0].mxu0
      %2723 = vmatprep.mubr.f32.mxu0 0.0
      %2724 = vmatmul.mubr.f32.gmra.mrb[0].mxu0 %v2624
      %v2725 = vpop.f32.mrb[0].mxu0
      %v2726 = vadd.f32 0.0, %v2725
      %v2727 = vpop.f32.mrb[0].mxu0
      %2728 = vmatprep.mubr.f32.mxu0 0.0
      %2729 = vmatmul.mubr.f32.gmra.mrb[0].mxu0 %v2627
      %v2730 = vpop.f32.mrb[0].mxu0
      %v2731 = vadd.f32 0.0, %v2730
      %v2732 = vpop.f32.mrb[0].mxu0
      %2733 = vdwg.mxu0
      %v2735 = vsel %vm2499, %v2584, 0
      %v2738 = vsel %vm2499, %v2585, 0
      %v2741 = vsel %vm2499, %v2586, 0
      %v2744 = vsel %vm2499, %v2587, 0
      %v2747 = vsel %vm2499, %v2588, 0
      %v2750 = vsel %vm2499, %v2589, 0
      %v2753 = vsel %vm2499, %v2590, 0
      %v2756 = vsel %vm2499, %v2591, 0
      %2758 = vmatprep.subr.mxu0 0.0
      %2759 = vmatpush1.msra.mxu0 %v2592
      %2760 = vmatprep.subr.mxu0 0.0
      %2761 = vmatpush1.msra.mxu0 %v2593
      %2762 = vmatprep.subr.mxu0 0.0
      %2763 = vmatpush1.msra.mxu0 0.0
      %2764 = vmatprep.subr.mxu0 0.0
      %2765 = vmatpush1.msra.mxu0 0.0
      %2766 = vmatprep.subr.mxu0 0.0
      %2767 = vmatpush1.msra.mxu0 0.0
      %2768 = vmatprep.subr.mxu0 0.0
      %2769 = vmatpush1.msra.mxu0 0.0
      %2770 = vmatprep.subr.mxu0 0.0
      %2771 = vmatpush1.msra.mxu0 0.0
      %2772 = vmatprep.subr.mxu0 0.0
      %2773 = vmatpush1.msra.mxu0 0.0
      %2774 = vmatprep.subr.mxu0 0.0
      %2775 = vmatpush1.msra.mxu0 0.0
      %2776 = vmatprep.subr.mxu0 0.0
      %2777 = vmatpush1.msra.mxu0 0.0
      %2778 = vmatprep.subr.mxu0 0.0
      %2779 = vmatpush1.msra.mxu0 0.0
      %2780 = vmatprep.subr.mxu0 0.0
      %2781 = vmatpush1.msra.mxu0 0.0
      %2782 = vmatprep.subr.mxu0 0.0
      %2783 = vmatpush1.msra.mxu0 0.0
      %2784 = vmatprep.subr.mxu0 0.0
      %2785 = vmatpush1.msra.mxu0 0.0
      %2786 = vmatprep.subr.mxu0 0.0
      %2787 = vmatpush1.msra.mxu0 0.0
      %2788 = vmatprep.subr.mxu0 0.0
      %2789 = vmatpush1.msra.mxu0 0.0
      %2790 = vmatprep.subr.mxu0 0.0
      %2791 = vmatpush1.msra.mxu0 0.0
      %2792 = vmatprep.subr.mxu0 0.0
      %2793 = vmatpush1.msra.mxu0 0.0
      %2794 = vmatprep.subr.mxu0 0.0
      %2795 = vmatpush1.msra.mxu0 0.0
      %2796 = vmatprep.subr.mxu0 0.0
      %2797 = vmatpush1.msra.mxu0 0.0
      %2798 = vmatprep.subr.mxu0 0.0
      %2799 = vmatpush1.msra.mxu0 0.0
      %2800 = vmatprep.subr.mxu0 0.0
      %2801 = vmatpush1.msra.mxu0 0.0
      %2802 = vmatprep.subr.mxu0 0.0
      %2803 = vmatpush1.msra.mxu0 0.0
      %2804 = vmatprep.subr.mxu0 0.0
      %2805 = vmatpush1.msra.mxu0 0.0
      %2806 = vmatprep.subr.mxu0 0.0
      %2807 = vmatpush1.msra.mxu0 0.0
      %2808 = vmatprep.subr.mxu0 0.0
      %2809 = vmatpush1.msra.mxu0 0.0
      %2810 = vmatprep.subr.mxu0 0.0
      %2811 = vmatpush1.msra.mxu0 0.0
      %2812 = vmatprep.subr.mxu0 0.0
      %2813 = vmatpush1.msra.mxu0 0.0
      %2814 = vmatprep.subr.mxu0 0.0
      %2815 = vmatpush1.msra.mxu0 0.0
      %2816 = vmatprep.subr.mxu0 0.0
      %2817 = vmatpush1.msra.mxu0 0.0
      %2818 = vmatprep.subr.mxu0 0.0
      %2819 = vmatpush1.msra.mxu0 0.0
      %2820 = vmatprep.subr.mxu0 0.0
      %2821 = vmatpush1.msra.mxu0 0.0
      %2822 = vmatprep.mubr.f32.mxu0 0.0
      %2823 = vmatmul.mubr.f32.gmra.mrb[0].mxu0 %v2735
      %v2824 = vpop.f32.mrb[0].mxu0
      %v2825 = vadd.f32 %v2696, %v2824
      %v2826 = vpop.f32.mrb[0].mxu0
      %2827 = vmatprep.mubr.f32.mxu0 0.0
      %2828 = vmatmul.mubr.f32.gmra.mrb[0].mxu0 %v2738
      %v2829 = vpop.f32.mrb[0].mxu0
      %v2830 = vadd.f32 %v2701, %v2829
      %v2831 = vpop.f32.mrb[0].mxu0
      %2832 = vmatprep.mubr.f32.mxu0 0.0
      %2833 = vmatmul.mubr.f32.gmra.mrb[0].mxu0 %v2741
      %v2834 = vpop.f32.mrb[0].mxu0
      %v2835 = vadd.f32 %v2706, %v2834
      %v2836 = vpop.f32.mrb[0].mxu0
      %2837 = vmatprep.mubr.f32.mxu0 0.0
      %2838 = vmatmul.mubr.f32.gmra.mrb[0].mxu0 %v2744
      %v2839 = vpop.f32.mrb[0].mxu0
      %v2840 = vadd.f32 %v2711, %v2839
      %v2841 = vpop.f32.mrb[0].mxu0
      %2842 = vmatprep.mubr.f32.mxu0 0.0
      %2843 = vmatmul.mubr.f32.gmra.mrb[0].mxu0 %v2747
      %v2844 = vpop.f32.mrb[0].mxu0
      %v2845 = vadd.f32 %v2716, %v2844
      %v2846 = vpop.f32.mrb[0].mxu0
      %2847 = vmatprep.mubr.f32.mxu0 0.0
      %2848 = vmatmul.mubr.f32.gmra.mrb[0].mxu0 %v2750
      %v2849 = vpop.f32.mrb[0].mxu0
      %v2850 = vadd.f32 %v2721, %v2849
      %v2851 = vpop.f32.mrb[0].mxu0
      %2852 = vmatprep.mubr.f32.mxu0 0.0
      %2853 = vmatmul.mubr.f32.gmra.mrb[0].mxu0 %v2753
      %v2854 = vpop.f32.mrb[0].mxu0
      %v2855 = vadd.f32 %v2726, %v2854
      %v2856 = vpop.f32.mrb[0].mxu0
      %2857 = vmatprep.mubr.f32.mxu0 0.0
      %2858 = vmatmul.mubr.f32.gmra.mrb[0].mxu0 %v2756
      %v2859 = vpop.f32.mrb[0].mxu0
      %v2860 = vadd.f32 %v2731, %v2859
      %v2861 = vpop.f32.mrb[0].mxu0
      %2862 = vdwg.mxu0
      %v2863 = vld [vmem:[#allocation2 + $0x1] sm:$0xff]
      %v2864 = vld [vmem:[#allocation2 + $0x9] sm:$0xff]
      %v2865 = vld [vmem:[#allocation2 + $0x11] sm:$0xff]
      %v2866 = vld [vmem:[#allocation2 + $0x19] sm:$0xff]
      %v2867 = vld [vmem:[#allocation2 + $0x21] sm:$0xff]
      %v2868 = vld [vmem:[#allocation2 + $0x29] sm:$0xff]
      %v2869 = vld [vmem:[#allocation2 + $0x31] sm:$0xff]
      %v2870 = vld [vmem:[#allocation2 + $0x39] sm:$0x7f]
      %s2871 = scalar_lea.vmem %s4, 32
      %v2872 = vld [vmem:[%s2871] sm:$0xff]
      %v2873 = vld [vmem:[%s2871 + $0x8] sm:$0xff]
      %v2875 = vsel %vm2499, %v2863, 0
      %v2878 = vsel %vm2499, %v2864, 0
      %v2881 = vsel %vm2499, %v2865, 0
      %v2884 = vsel %vm2499, %v2866, 0
      %v2887 = vsel %vm2499, %v2867, 0
      %v2890 = vsel %vm2499, %v2868, 0
      %v2893 = vsel %vm2499, %v2869, 0
      %v2896 = vsel %vm2499, %v2870, 0
      %2898 = vmatprep.subr.mxu0 0.0
      %2899 = vmatpush1.msra.mxu0 %v2872
      %2900 = vmatprep.subr.mxu0 0.0
      %2901 = vmatpush1.msra.mxu0 %v2873
      %2902 = vmatprep.subr.mxu0 0.0
      %2903 = vmatpush1.msra.mxu0 0.0
      %2904 = vmatprep.subr.mxu0 0.0
      %2905 = vmatpush1.msra.mxu0 0.0
      %2906 = vmatprep.subr.mxu0 0.0
      %2907 = vmatpush1.msra.mxu0 0.0
      %2908 = vmatprep.subr.mxu0 0.0
      %2909 = vmatpush1.msra.mxu0 0.0
      %2910 = vmatprep.subr.mxu0 0.0
      %2911 = vmatpush1.msra.mxu0 0.0
      %2912 = vmatprep.subr.mxu0 0.0
      %2913 = vmatpush1.msra.mxu0 0.0
      %2914 = vmatprep.subr.mxu0 0.0
      %2915 = vmatpush1.msra.mxu0 0.0
      %2916 = vmatprep.subr.mxu0 0.0
      %2917 = vmatpush1.msra.mxu0 0.0
      %2918 = vmatprep.subr.mxu0 0.0
      %2919 = vmatpush1.msra.mxu0 0.0
      %2920 = vmatprep.subr.mxu0 0.0
      %2921 = vmatpush1.msra.mxu0 0.0
      %2922 = vmatprep.subr.mxu0 0.0
      %2923 = vmatpush1.msra.mxu0 0.0
      %2924 = vmatprep.subr.mxu0 0.0
      %2925 = vmatpush1.msra.mxu0 0.0
      %2926 = vmatprep.subr.mxu0 0.0
      %2927 = vmatpush1.msra.mxu0 0.0
      %2928 = vmatprep.subr.mxu0 0.0
      %2929 = vmatpush1.msra.mxu0 0.0
      %2930 = vmatprep.subr.mxu0 0.0
      %2931 = vmatpush1.msra.mxu0 0.0
      %2932 = vmatprep.subr.mxu0 0.0
      %2933 = vmatpush1.msra.mxu0 0.0
      %2934 = vmatprep.subr.mxu0 0.0
      %2935 = vmatpush1.msra.mxu0 0.0
      %2936 = vmatprep.subr.mxu0 0.0
      %2937 = vmatpush1.msra.mxu0 0.0
      %2938 = vmatprep.subr.mxu0 0.0
      %2939 = vmatpush1.msra.mxu0 0.0
      %2940 = vmatprep.subr.mxu0 0.0
      %2941 = vmatpush1.msra.mxu0 0.0
      %2942 = vmatprep.subr.mxu0 0.0
      %2943 = vmatpush1.msra.mxu0 0.0
      %2944 = vmatprep.subr.mxu0 0.0
      %2945 = vmatpush1.msra.mxu0 0.0
      %2946 = vmatprep.subr.mxu0 0.0
      %2947 = vmatpush1.msra.mxu0 0.0
      %2948 = vmatprep.subr.mxu0 0.0
      %2949 = vmatpush1.msra.mxu0 0.0
      %2950 = vmatprep.subr.mxu0 0.0
      %2951 = vmatpush1.msra.mxu0 0.0
      %2952 = vmatprep.subr.mxu0 0.0
      %2953 = vmatpush1.msra.mxu0 0.0
      %2954 = vmatprep.subr.mxu0 0.0
      %2955 = vmatpush1.msra.mxu0 0.0
      %2956 = vmatprep.subr.mxu0 0.0
      %2957 = vmatpush1.msra.mxu0 0.0
      %2958 = vmatprep.subr.mxu0 0.0
      %2959 = vmatpush1.msra.mxu0 0.0
      %2960 = vmatprep.subr.mxu0 0.0
      %2961 = vmatpush1.msra.mxu0 0.0
      %2962 = vmatprep.mubr.f32.mxu0 0.0
      %2963 = vmatmul.mubr.f32.gmra.mrb[0].mxu0 %v2875
      %v2964 = vpop.f32.mrb[0].mxu0
      %v2965 = vadd.f32 0.0, %v2964
      %v2966 = vpop.f32.mrb[0].mxu0
      %2967 = vmatprep.mubr.f32.mxu0 0.0
      %2968 = vmatmul.mubr.f32.gmra.mrb[0].mxu0 %v2878
      %v2969 = vpop.f32.mrb[0].mxu0
      %v2970 = vadd.f32 0.0, %v2969
      %v2971 = vpop.f32.mrb[0].mxu0
      %2972 = vmatprep.mubr.f32.mxu0 0.0
      %2973 = vmatmul.mubr.f32.gmra.mrb[0].mxu0 %v2881
      %v2974 = vpop.f32.mrb[0].mxu0
      %v2975 = vadd.f32 0.0, %v2974
      %v2976 = vpop.f32.mrb[0].mxu0
      %2977 = vmatprep.mubr.f32.mxu0 0.0
      %2978 = vmatmul.mubr.f32.gmra.mrb[0].mxu0 %v2884
      %v2979 = vpop.f32.mrb[0].mxu0
      %v2980 = vadd.f32 0.0, %v2979
      %v2981 = vpop.f32.mrb[0].mxu0
      %2982 = vmatprep.mubr.f32.mxu0 0.0
      %2983 = vmatmul.mubr.f32.gmra.mrb[0].mxu0 %v2887
      %v2984 = vpop.f32.mrb[0].mxu0
      %v2985 = vadd.f32 0.0, %v2984
      %v2986 = vpop.f32.mrb[0].mxu0
      %2987 = vmatprep.mubr.f32.mxu0 0.0
      %2988 = vmatmul.mubr.f32.gmra.mrb[0].mxu0 %v2890
      %v2989 = vpop.f32.mrb[0].mxu0
      %v2990 = vadd.f32 0.0, %v2989
      %v2991 = vpop.f32.mrb[0].mxu0
      %2992 = vmatprep.mubr.f32.mxu0 0.0
      %2993 = vmatmul.mubr.f32.gmra.mrb[0].mxu0 %v2893
      %v2994 = vpop.f32.mrb[0].mxu0
      %v2995 = vadd.f32 0.0, %v2994
      %v2996 = vpop.f32.mrb[0].mxu0
      %2997 = vmatprep.mubr.f32.mxu0 0.0
      %2998 = vmatmul.mubr.f32.gmra.mrb[0].mxu0 %v2896
      %v2999 = vpop.f32.mrb[0].mxu0
      %v3000 = vadd.f32 0.0, %v2999
      %v3001 = vpop.f32.mrb[0].mxu0
      %3002 = vdwg.mxu0
      %v3003 = vadd.f32 %v2825, %v2965
      %v3004 = vadd.f32 %v2830, %v2970
      %v3005 = vadd.f32 %v2835, %v2975
      %v3006 = vadd.f32 %v2840, %v2980
      %v3007 = vadd.f32 %v2845, %v2985
      %v3008 = vadd.f32 %v2850, %v2990
      %v3009 = vadd.f32 %v2855, %v2995
      %v3010 = vadd.f32 %v2860, %v3000
      %v3011 = vld [vmem:[#allocation2 + $0x52] sm:$0xff]
      %v3012 = vld [vmem:[#allocation2 + $0x5a] sm:$0xff]
      %v3013 = vld [vmem:[#allocation2 + $0x62] sm:$0xff]
      %v3014 = vld [vmem:[#allocation2 + $0x6a] sm:$0xff]
      %v3015 = vld [vmem:[#allocation2 + $0x72] sm:$0xff]
      %v3016 = vld [vmem:[#allocation2 + $0x7a] sm:$0xff]
      %v3017 = vld [vmem:[#allocation2 + $0x82] sm:$0xff]
      %v3018 = vld [vmem:[#allocation2 + $0x8a] sm:$0x7f]
      %s3019 = scalar_lea.vmem %s4, 48
      %v3020 = vld [vmem:[%s3019] sm:$0xff]
      %v3021 = vld [vmem:[%s3019 + $0x8] sm:$0xff]
      %v3023 = vsel %vm2499, %v3011, 0
      %v3026 = vsel %vm2499, %v3012, 0
      %v3029 = vsel %vm2499, %v3013, 0
      %v3032 = vsel %vm2499, %v3014, 0
      %v3035 = vsel %vm2499, %v3015, 0
      %v3038 = vsel %vm2499, %v3016, 0
      %v3041 = vsel %vm2499, %v3017, 0
      %v3044 = vsel %vm2499, %v3018, 0
      %3046 = vmatprep.subr.mxu0 0.0
      %3047 = vmatpush1.msra.mxu0 %v3020
      %3048 = vmatprep.subr.mxu0 0.0
      %3049 = vmatpush1.msra.mxu0 %v3021
      %3050 = vmatprep.subr.mxu0 0.0
      %3051 = vmatpush1.msra.mxu0 0.0
      %3052 = vmatprep.subr.mxu0 0.0
      %3053 = vmatpush1.msra.mxu0 0.0
      %3054 = vmatprep.subr.mxu0 0.0
      %3055 = vmatpush1.msra.mxu0 0.0
      %3056 = vmatprep.subr.mxu0 0.0
      %3057 = vmatpush1.msra.mxu0 0.0
      %3058 = vmatprep.subr.mxu0 0.0
      %3059 = vmatpush1.msra.mxu0 0.0
      %3060 = vmatprep.subr.mxu0 0.0
      %3061 = vmatpush1.msra.mxu0 0.0
      %3062 = vmatprep.subr.mxu0 0.0
      %3063 = vmatpush1.msra.mxu0 0.0
      %3064 = vmatprep.subr.mxu0 0.0
      %3065 = vmatpush1.msra.mxu0 0.0
      %3066 = vmatprep.subr.mxu0 0.0
      %3067 = vmatpush1.msra.mxu0 0.0
      %3068 = vmatprep.subr.mxu0 0.0
      %3069 = vmatpush1.msra.mxu0 0.0
      %3070 = vmatprep.subr.mxu0 0.0
      %3071 = vmatpush1.msra.mxu0 0.0
      %3072 = vmatprep.subr.mxu0 0.0
      %3073 = vmatpush1.msra.mxu0 0.0
      %3074 = vmatprep.subr.mxu0 0.0
      %3075 = vmatpush1.msra.mxu0 0.0
      %3076 = vmatprep.subr.mxu0 0.0
      %3077 = vmatpush1.msra.mxu0 0.0
      %3078 = vmatprep.subr.mxu0 0.0
      %3079 = vmatpush1.msra.mxu0 0.0
      %3080 = vmatprep.subr.mxu0 0.0
      %3081 = vmatpush1.msra.mxu0 0.0
      %3082 = vmatprep.subr.mxu0 0.0
      %3083 = vmatpush1.msra.mxu0 0.0
      %3084 = vmatprep.subr.mxu0 0.0
      %3085 = vmatpush1.msra.mxu0 0.0
      %3086 = vmatprep.subr.mxu0 0.0
      %3087 = vmatpush1.msra.mxu0 0.0
      %3088 = vmatprep.subr.mxu0 0.0
      %3089 = vmatpush1.msra.mxu0 0.0
      %3090 = vmatprep.subr.mxu0 0.0
      %3091 = vmatpush1.msra.mxu0 0.0
      %3092 = vmatprep.subr.mxu0 0.0
      %3093 = vmatpush1.msra.mxu0 0.0
      %3094 = vmatprep.subr.mxu0 0.0
      %3095 = vmatpush1.msra.mxu0 0.0
      %3096 = vmatprep.subr.mxu0 0.0
      %3097 = vmatpush1.msra.mxu0 0.0
      %3098 = vmatprep.subr.mxu0 0.0
      %3099 = vmatpush1.msra.mxu0 0.0
      %3100 = vmatprep.subr.mxu0 0.0
      %3101 = vmatpush1.msra.mxu0 0.0
      %3102 = vmatprep.subr.mxu0 0.0
      %3103 = vmatpush1.msra.mxu0 0.0
      %3104 = vmatprep.subr.mxu0 0.0
      %3105 = vmatpush1.msra.mxu0 0.0
      %3106 = vmatprep.subr.mxu0 0.0
      %3107 = vmatpush1.msra.mxu0 0.0
      %3108 = vmatprep.subr.mxu0 0.0
      %3109 = vmatpush1.msra.mxu0 0.0
      %3110 = vmatprep.mubr.f32.mxu0 0.0
      %3111 = vmatmul.mubr.f32.gmra.mrb[0].mxu0 %v3023
      %v3112 = vpop.f32.mrb[0].mxu0
      %v3113 = vadd.f32 0.0, %v3112
      %v3114 = vpop.f32.mrb[0].mxu0
      %3115 = vmatprep.mubr.f32.mxu0 0.0
      %3116 = vmatmul.mubr.f32.gmra.mrb[0].mxu0 %v3026
      %v3117 = vpop.f32.mrb[0].mxu0
      %v3118 = vadd.f32 0.0, %v3117
      %v3119 = vpop.f32.mrb[0].mxu0
      %3120 = vmatprep.mubr.f32.mxu0 0.0
      %3121 = vmatmul.mubr.f32.gmra.mrb[0].mxu0 %v3029
      %v3122 = vpop.f32.mrb[0].mxu0
      %v3123 = vadd.f32 0.0, %v3122
      %v3124 = vpop.f32.mrb[0].mxu0
      %3125 = vmatprep.mubr.f32.mxu0 0.0
      %3126 = vmatmul.mubr.f32.gmra.mrb[0].mxu0 %v3032
      %v3127 = vpop.f32.mrb[0].mxu0
      %v3128 = vadd.f32 0.0, %v3127
      %v3129 = vpop.f32.mrb[0].mxu0
      %3130 = vmatprep.mubr.f32.mxu0 0.0
      %3131 = vmatmul.mubr.f32.gmra.mrb[0].mxu0 %v3035
      %v3132 = vpop.f32.mrb[0].mxu0
      %v3133 = vadd.f32 0.0, %v3132
      %v3134 = vpop.f32.mrb[0].mxu0
      %3135 = vmatprep.mubr.f32.mxu0 0.0
      %3136 = vmatmul.mubr.f32.gmra.mrb[0].mxu0 %v3038
      %v3137 = vpop.f32.mrb[0].mxu0
      %v3138 = vadd.f32 0.0, %v3137
      %v3139 = vpop.f32.mrb[0].mxu0
      %3140 = vmatprep.mubr.f32.mxu0 0.0
      %3141 = vmatmul.mubr.f32.gmra.mrb[0].mxu0 %v3041
      %v3142 = vpop.f32.mrb[0].mxu0
      %v3143 = vadd.f32 0.0, %v3142
      %v3144 = vpop.f32.mrb[0].mxu0
      %3145 = vmatprep.mubr.f32.mxu0 0.0
      %3146 = vmatmul.mubr.f32.gmra.mrb[0].mxu0 %v3044
      %v3147 = vpop.f32.mrb[0].mxu0
      %v3148 = vadd.f32 0.0, %v3147
      %v3149 = vpop.f32.mrb[0].mxu0
      %3150 = vdwg.mxu0
      %v3151 = vadd.f32 %v3003, %v3113
      %v3152 = vadd.f32 %v3004, %v3118
      %v3153 = vadd.f32 %v3005, %v3123
      %v3154 = vadd.f32 %v3006, %v3128
      %v3155 = vadd.f32 %v3007, %v3133
      %v3156 = vadd.f32 %v3008, %v3138
      %v3157 = vadd.f32 %v3009, %v3143
      %v3158 = vadd.f32 %v3010, %v3148
      %v3159 = vld [vmem:[#allocation2 + $0x2] sm:$0xff]
      %v3160 = vld [vmem:[#allocation2 + $0xa] sm:$0xff]
      %v3161 = vld [vmem:[#allocation2 + $0x12] sm:$0xff]
      %v3162 = vld [vmem:[#allocation2 + $0x1a] sm:$0xff]
      %v3163 = vld [vmem:[#allocation2 + $0x22] sm:$0xff]
      %v3164 = vld [vmem:[#allocation2 + $0x2a] sm:$0xff]
      %v3165 = vld [vmem:[#allocation2 + $0x32] sm:$0xff]
      %v3166 = vld [vmem:[#allocation2 + $0x3a] sm:$0x7f]
      %s3167 = scalar_lea.vmem %s4, 64
      %v3168 = vld [vmem:[%s3167] sm:$0xff]
      %v3169 = vld [vmem:[%s3167 + $0x8] sm:$0xff]
      %v3171 = vsel %vm2499, %v3159, 0
      %v3174 = vsel %vm2499, %v3160, 0
      %v3177 = vsel %vm2499, %v3161, 0
      %v3180 = vsel %vm2499, %v3162, 0
      %v3183 = vsel %vm2499, %v3163, 0
      %v3186 = vsel %vm2499, %v3164, 0
      %v3189 = vsel %vm2499, %v3165, 0
      %v3192 = vsel %vm2499, %v3166, 0
      %3194 = vmatprep.subr.mxu0 0.0
      %3195 = vmatpush1.msra.mxu0 %v3168
      %3196 = vmatprep.subr.mxu0 0.0
      %3197 = vmatpush1.msra.mxu0 %v3169
      %3198 = vmatprep.subr.mxu0 0.0
      %3199 = vmatpush1.msra.mxu0 0.0
      %3200 = vmatprep.subr.mxu0 0.0
      %3201 = vmatpush1.msra.mxu0 0.0
      %3202 = vmatprep.subr.mxu0 0.0
      %3203 = vmatpush1.msra.mxu0 0.0
      %3204 = vmatprep.subr.mxu0 0.0
      %3205 = vmatpush1.msra.mxu0 0.0
      %3206 = vmatprep.subr.mxu0 0.0
      %3207 = vmatpush1.msra.mxu0 0.0
      %3208 = vmatprep.subr.mxu0 0.0
      %3209 = vmatpush1.msra.mxu0 0.0
      %3210 = vmatprep.subr.mxu0 0.0
      %3211 = vmatpush1.msra.mxu0 0.0
      %3212 = vmatprep.subr.mxu0 0.0
      %3213 = vmatpush1.msra.mxu0 0.0
      %3214 = vmatprep.subr.mxu0 0.0
      %3215 = vmatpush1.msra.mxu0 0.0
      %3216 = vmatprep.subr.mxu0 0.0
      %3217 = vmatpush1.msra.mxu0 0.0
      %3218 = vmatprep.subr.mxu0 0.0
      %3219 = vmatpush1.msra.mxu0 0.0
      %3220 = vmatprep.subr.mxu0 0.0
      %3221 = vmatpush1.msra.mxu0 0.0
      %3222 = vmatprep.subr.mxu0 0.0
      %3223 = vmatpush1.msra.mxu0 0.0
      %3224 = vmatprep.subr.mxu0 0.0
      %3225 = vmatpush1.msra.mxu0 0.0
      %3226 = vmatprep.subr.mxu0 0.0
      %3227 = vmatpush1.msra.mxu0 0.0
      %3228 = vmatprep.subr.mxu0 0.0
      %3229 = vmatpush1.msra.mxu0 0.0
      %3230 = vmatprep.subr.mxu0 0.0
      %3231 = vmatpush1.msra.mxu0 0.0
      %3232 = vmatprep.subr.mxu0 0.0
      %3233 = vmatpush1.msra.mxu0 0.0
      %3234 = vmatprep.subr.mxu0 0.0
      %3235 = vmatpush1.msra.mxu0 0.0
      %3236 = vmatprep.subr.mxu0 0.0
      %3237 = vmatpush1.msra.mxu0 0.0
      %3238 = vmatprep.subr.mxu0 0.0
      %3239 = vmatpush1.msra.mxu0 0.0
      %3240 = vmatprep.subr.mxu0 0.0
      %3241 = vmatpush1.msra.mxu0 0.0
      %3242 = vmatprep.subr.mxu0 0.0
      %3243 = vmatpush1.msra.mxu0 0.0
      %3244 = vmatprep.subr.mxu0 0.0
      %3245 = vmatpush1.msra.mxu0 0.0
      %3246 = vmatprep.subr.mxu0 0.0
      %3247 = vmatpush1.msra.mxu0 0.0
      %3248 = vmatprep.subr.mxu0 0.0
      %3249 = vmatpush1.msra.mxu0 0.0
      %3250 = vmatprep.subr.mxu0 0.0
      %3251 = vmatpush1.msra.mxu0 0.0
      %3252 = vmatprep.subr.mxu0 0.0
      %3253 = vmatpush1.msra.mxu0 0.0
      %3254 = vmatprep.subr.mxu0 0.0
      %3255 = vmatpush1.msra.mxu0 0.0
      %3256 = vmatprep.subr.mxu0 0.0
      %3257 = vmatpush1.msra.mxu0 0.0
      %3258 = vmatprep.mubr.f32.mxu0 0.0
      %3259 = vmatmul.mubr.f32.gmra.mrb[0].mxu0 %v3171
      %v3260 = vpop.f32.mrb[0].mxu0
      %v3261 = vadd.f32 0.0, %v3260
      %v3262 = vpop.f32.mrb[0].mxu0
      %3263 = vmatprep.mubr.f32.mxu0 0.0
      %3264 = vmatmul.mubr.f32.gmra.mrb[0].mxu0 %v3174
      %v3265 = vpop.f32.mrb[0].mxu0
      %v3266 = vadd.f32 0.0, %v3265
      %v3267 = vpop.f32.mrb[0].mxu0
      %3268 = vmatprep.mubr.f32.mxu0 0.0
      %3269 = vmatmul.mubr.f32.gmra.mrb[0].mxu0 %v3177
      %v3270 = vpop.f32.mrb[0].mxu0
      %v3271 = vadd.f32 0.0, %v3270
      %v3272 = vpop.f32.mrb[0].mxu0
      %3273 = vmatprep.mubr.f32.mxu0 0.0
      %3274 = vmatmul.mubr.f32.gmra.mrb[0].mxu0 %v3180
      %v3275 = vpop.f32.mrb[0].mxu0
      %v3276 = vadd.f32 0.0, %v3275
      %v3277 = vpop.f32.mrb[0].mxu0
      %3278 = vmatprep.mubr.f32.mxu0 0.0
      %3279 = vmatmul.mubr.f32.gmra.mrb[0].mxu0 %v3183
      %v3280 = vpop.f32.mrb[0].mxu0
      %v3281 = vadd.f32 0.0, %v3280
      %v3282 = vpop.f32.mrb[0].mxu0
      %3283 = vmatprep.mubr.f32.mxu0 0.0
      %3284 = vmatmul.mubr.f32.gmra.mrb[0].mxu0 %v3186
      %v3285 = vpop.f32.mrb[0].mxu0
      %v3286 = vadd.f32 0.0, %v3285
      %v3287 = vpop.f32.mrb[0].mxu0
      %3288 = vmatprep.mubr.f32.mxu0 0.0
      %3289 = vmatmul.mubr.f32.gmra.mrb[0].mxu0 %v3189
      %v3290 = vpop.f32.mrb[0].mxu0
      %v3291 = vadd.f32 0.0, %v3290
      %v3292 = vpop.f32.mrb[0].mxu0
      %3293 = vmatprep.mubr.f32.mxu0 0.0
      %3294 = vmatmul.mubr.f32.gmra.mrb[0].mxu0 %v3192
      %v3295 = vpop.f32.mrb[0].mxu0
      %v3296 = vadd.f32 0.0, %v3295
      %v3297 = vpop.f32.mrb[0].mxu0
      %3298 = vdwg.mxu0
      %v3299 = vadd.f32 %v3151, %v3261
      %v3300 = vadd.f32 %v3152, %v3266
      %v3301 = vadd.f32 %v3153, %v3271
      %v3302 = vadd.f32 %v3154, %v3276
      %v3303 = vadd.f32 %v3155, %v3281
      %v3304 = vadd.f32 %v3156, %v3286
      %v3305 = vadd.f32 %v3157, %v3291
      %v3306 = vadd.f32 %v3158, %v3296
      %v3307 = vld [vmem:[#allocation2 + $0x53] sm:$0xff]
      %v3308 = vld [vmem:[#allocation2 + $0x5b] sm:$0xff]
      %v3309 = vld [vmem:[#allocation2 + $0x63] sm:$0xff]
      %v3310 = vld [vmem:[#allocation2 + $0x6b] sm:$0xff]
      %v3311 = vld [vmem:[#allocation2 + $0x73] sm:$0xff]
      %v3312 = vld [vmem:[#allocation2 + $0x7b] sm:$0xff]
      %v3313 = vld [vmem:[#allocation2 + $0x83] sm:$0xff]
      %v3314 = vld [vmem:[#allocation2 + $0x8b] sm:$0x7f]
      %s3315 = scalar_lea.vmem %s4, 80
      %v3316 = vld [vmem:[%s3315] sm:$0xff]
      %v3317 = vld [vmem:[%s3315 + $0x8] sm:$0xff]
      %v3319 = vsel %vm2499, %v3307, 0
      %v3322 = vsel %vm2499, %v3308, 0
      %v3325 = vsel %vm2499, %v3309, 0
      %v3328 = vsel %vm2499, %v3310, 0
      %v3331 = vsel %vm2499, %v3311, 0
      %v3334 = vsel %vm2499, %v3312, 0
      %v3337 = vsel %vm2499, %v3313, 0
      %v3340 = vsel %vm2499, %v3314, 0
      %3342 = vmatprep.subr.mxu0 0.0
      %3343 = vmatpush1.msra.mxu0 %v3316
      %3344 = vmatprep.subr.mxu0 0.0
      %3345 = vmatpush1.msra.mxu0 %v3317
      %3346 = vmatprep.subr.mxu0 0.0
      %3347 = vmatpush1.msra.mxu0 0.0
      %3348 = vmatprep.subr.mxu0 0.0
      %3349 = vmatpush1.msra.mxu0 0.0
      %3350 = vmatprep.subr.mxu0 0.0
      %3351 = vmatpush1.msra.mxu0 0.0
      %3352 = vmatprep.subr.mxu0 0.0
      %3353 = vmatpush1.msra.mxu0 0.0
      %3354 = vmatprep.subr.mxu0 0.0
      %3355 = vmatpush1.msra.mxu0 0.0
      %3356 = vmatprep.subr.mxu0 0.0
      %3357 = vmatpush1.msra.mxu0 0.0
      %3358 = vmatprep.subr.mxu0 0.0
      %3359 = vmatpush1.msra.mxu0 0.0
      %3360 = vmatprep.subr.mxu0 0.0
      %3361 = vmatpush1.msra.mxu0 0.0
      %3362 = vmatprep.subr.mxu0 0.0
      %3363 = vmatpush1.msra.mxu0 0.0
      %3364 = vmatprep.subr.mxu0 0.0
      %3365 = vmatpush1.msra.mxu0 0.0
      %3366 = vmatprep.subr.mxu0 0.0
      %3367 = vmatpush1.msra.mxu0 0.0
      %3368 = vmatprep.subr.mxu0 0.0
      %3369 = vmatpush1.msra.mxu0 0.0
      %3370 = vmatprep.subr.mxu0 0.0
      %3371 = vmatpush1.msra.mxu0 0.0
      %3372 = vmatprep.subr.mxu0 0.0
      %3373 = vmatpush1.msra.mxu0 0.0
      %3374 = vmatprep.subr.mxu0 0.0
      %3375 = vmatpush1.msra.mxu0 0.0
      %3376 = vmatprep.subr.mxu0 0.0
      %3377 = vmatpush1.msra.mxu0 0.0
      %3378 = vmatprep.subr.mxu0 0.0
      %3379 = vmatpush1.msra.mxu0 0.0
      %3380 = vmatprep.subr.mxu0 0.0
      %3381 = vmatpush1.msra.mxu0 0.0
      %3382 = vmatprep.subr.mxu0 0.0
      %3383 = vmatpush1.msra.mxu0 0.0
      %3384 = vmatprep.subr.mxu0 0.0
      %3385 = vmatpush1.msra.mxu0 0.0
      %3386 = vmatprep.subr.mxu0 0.0
      %3387 = vmatpush1.msra.mxu0 0.0
      %3388 = vmatprep.subr.mxu0 0.0
      %3389 = vmatpush1.msra.mxu0 0.0
      %3390 = vmatprep.subr.mxu0 0.0
      %3391 = vmatpush1.msra.mxu0 0.0
      %3392 = vmatprep.subr.mxu0 0.0
      %3393 = vmatpush1.msra.mxu0 0.0
      %3394 = vmatprep.subr.mxu0 0.0
      %3395 = vmatpush1.msra.mxu0 0.0
      %3396 = vmatprep.subr.mxu0 0.0
      %3397 = vmatpush1.msra.mxu0 0.0
      %3398 = vmatprep.subr.mxu0 0.0
      %3399 = vmatpush1.msra.mxu0 0.0
      %3400 = vmatprep.subr.mxu0 0.0
      %3401 = vmatpush1.msra.mxu0 0.0
      %3402 = vmatprep.subr.mxu0 0.0
      %3403 = vmatpush1.msra.mxu0 0.0
      %3404 = vmatprep.subr.mxu0 0.0
      %3405 = vmatpush1.msra.mxu0 0.0
      %3406 = vmatprep.mubr.f32.mxu0 0.0
      %3407 = vmatmul.mubr.f32.gmra.mrb[0].mxu0 %v3319
      %v3408 = vpop.f32.mrb[0].mxu0
      %v3409 = vadd.f32 0.0, %v3408
      %v3410 = vpop.f32.mrb[0].mxu0
      %3411 = vmatprep.mubr.f32.mxu0 0.0
      %3412 = vmatmul.mubr.f32.gmra.mrb[0].mxu0 %v3322
      %v3413 = vpop.f32.mrb[0].mxu0
      %v3414 = vadd.f32 0.0, %v3413
      %v3415 = vpop.f32.mrb[0].mxu0
      %3416 = vmatprep.mubr.f32.mxu0 0.0
      %3417 = vmatmul.mubr.f32.gmra.mrb[0].mxu0 %v3325
      %v3418 = vpop.f32.mrb[0].mxu0
      %v3419 = vadd.f32 0.0, %v3418
      %v3420 = vpop.f32.mrb[0].mxu0
      %3421 = vmatprep.mubr.f32.mxu0 0.0
      %3422 = vmatmul.mubr.f32.gmra.mrb[0].mxu0 %v3328
      %v3423 = vpop.f32.mrb[0].mxu0
      %v3424 = vadd.f32 0.0, %v3423
      %v3425 = vpop.f32.mrb[0].mxu0
      %3426 = vmatprep.mubr.f32.mxu0 0.0
      %3427 = vmatmul.mubr.f32.gmra.mrb[0].mxu0 %v3331
      %v3428 = vpop.f32.mrb[0].mxu0
      %v3429 = vadd.f32 0.0, %v3428
      %v3430 = vpop.f32.mrb[0].mxu0
      %3431 = vmatprep.mubr.f32.mxu0 0.0
      %3432 = vmatmul.mubr.f32.gmra.mrb[0].mxu0 %v3334
      %v3433 = vpop.f32.mrb[0].mxu0
      %v3434 = vadd.f32 0.0, %v3433
      %v3435 = vpop.f32.mrb[0].mxu0
      %3436 = vmatprep.mubr.f32.mxu0 0.0
      %3437 = vmatmul.mubr.f32.gmra.mrb[0].mxu0 %v3337
      %v3438 = vpop.f32.mrb[0].mxu0
      %v3439 = vadd.f32 0.0, %v3438
      %v3440 = vpop.f32.mrb[0].mxu0
      %3441 = vmatprep.mubr.f32.mxu0 0.0
      %3442 = vmatmul.mubr.f32.gmra.mrb[0].mxu0 %v3340
      %v3443 = vpop.f32.mrb[0].mxu0
      %v3444 = vadd.f32 0.0, %v3443
      %v3445 = vpop.f32.mrb[0].mxu0
      %3446 = vdwg.mxu0
      %v3447 = vadd.f32 %v3299, %v3409
      %v3448 = vadd.f32 %v3300, %v3414
      %v3449 = vadd.f32 %v3301, %v3419
      %v3450 = vadd.f32 %v3302, %v3424
      %v3451 = vadd.f32 %v3303, %v3429
      %v3452 = vadd.f32 %v3304, %v3434
      %v3453 = vadd.f32 %v3305, %v3439
      %v3454 = vadd.f32 %v3306, %v3444
      %v3455 = vld [vmem:[#allocation2 + $0xa2] sm:$0xff]
      %v3456 = vld [vmem:[#allocation2 + $0xaa] sm:$0xff]
      %v3457 = vld [vmem:[#allocation2 + $0xb2] sm:$0xff]
      %v3458 = vld [vmem:[#allocation2 + $0xba] sm:$0xff]
      %v3459 = vld [vmem:[#allocation2 + $0xc2] sm:$0xff]
      %v3460 = vld [vmem:[#allocation2 + $0xca] sm:$0xff]
      %v3461 = vld [vmem:[#allocation2 + $0xd2] sm:$0xff]
      %v3462 = vld [vmem:[#allocation2 + $0xda] sm:$0x7f]
      %s3463 = scalar_lea.vmem %s4, 96
      %v3464 = vld [vmem:[%s3463] sm:$0xff]
      %v3465 = vld [vmem:[%s3463 + $0x8] sm:$0xff]
      %v3467 = vsel %vm2499, %v3455, 0
      %v3470 = vsel %vm2499, %v3456, 0
      %v3473 = vsel %vm2499, %v3457, 0
      %v3476 = vsel %vm2499, %v3458, 0
      %v3479 = vsel %vm2499, %v3459, 0
      %v3482 = vsel %vm2499, %v3460, 0
      %v3485 = vsel %vm2499, %v3461, 0
      %v3488 = vsel %vm2499, %v3462, 0
      %3490 = vmatprep.subr.mxu0 0.0
      %3491 = vmatpush1.msra.mxu0 %v3464
      %3492 = vmatprep.subr.mxu0 0.0
      %3493 = vmatpush1.msra.mxu0 %v3465
      %3494 = vmatprep.subr.mxu0 0.0
      %3495 = vmatpush1.msra.mxu0 0.0
      %3496 = vmatprep.subr.mxu0 0.0
      %3497 = vmatpush1.msra.mxu0 0.0
      %3498 = vmatprep.subr.mxu0 0.0
      %3499 = vmatpush1.msra.mxu0 0.0
      %3500 = vmatprep.subr.mxu0 0.0
      %3501 = vmatpush1.msra.mxu0 0.0
      %3502 = vmatprep.subr.mxu0 0.0
      %3503 = vmatpush1.msra.mxu0 0.0
      %3504 = vmatprep.subr.mxu0 0.0
      %3505 = vmatpush1.msra.mxu0 0.0
      %3506 = vmatprep.subr.mxu0 0.0
      %3507 = vmatpush1.msra.mxu0 0.0
      %3508 = vmatprep.subr.mxu0 0.0
      %3509 = vmatpush1.msra.mxu0 0.0
      %3510 = vmatprep.subr.mxu0 0.0
      %3511 = vmatpush1.msra.mxu0 0.0
      %3512 = vmatprep.subr.mxu0 0.0
      %3513 = vmatpush1.msra.mxu0 0.0
      %3514 = vmatprep.subr.mxu0 0.0
      %3515 = vmatpush1.msra.mxu0 0.0
      %3516 = vmatprep.subr.mxu0 0.0
      %3517 = vmatpush1.msra.mxu0 0.0
      %3518 = vmatprep.subr.mxu0 0.0
      %3519 = vmatpush1.msra.mxu0 0.0
      %3520 = vmatprep.subr.mxu0 0.0
      %3521 = vmatpush1.msra.mxu0 0.0
      %3522 = vmatprep.subr.mxu0 0.0
      %3523 = vmatpush1.msra.mxu0 0.0
      %3524 = vmatprep.subr.mxu0 0.0
      %3525 = vmatpush1.msra.mxu0 0.0
      %3526 = vmatprep.subr.mxu0 0.0
      %3527 = vmatpush1.msra.mxu0 0.0
      %3528 = vmatprep.subr.mxu0 0.0
      %3529 = vmatpush1.msra.mxu0 0.0
      %3530 = vmatprep.subr.mxu0 0.0
      %3531 = vmatpush1.msra.mxu0 0.0
      %3532 = vmatprep.subr.mxu0 0.0
      %3533 = vmatpush1.msra.mxu0 0.0
      %3534 = vmatprep.subr.mxu0 0.0
      %3535 = vmatpush1.msra.mxu0 0.0
      %3536 = vmatprep.subr.mxu0 0.0
      %3537 = vmatpush1.msra.mxu0 0.0
      %3538 = vmatprep.subr.mxu0 0.0
      %3539 = vmatpush1.msra.mxu0 0.0
      %3540 = vmatprep.subr.mxu0 0.0
      %3541 = vmatpush1.msra.mxu0 0.0
      %3542 = vmatprep.subr.mxu0 0.0
      %3543 = vmatpush1.msra.mxu0 0.0
      %3544 = vmatprep.subr.mxu0 0.0
      %3545 = vmatpush1.msra.mxu0 0.0
      %3546 = vmatprep.subr.mxu0 0.0
      %3547 = vmatpush1.msra.mxu0 0.0
      %3548 = vmatprep.subr.mxu0 0.0
      %3549 = vmatpush1.msra.mxu0 0.0
      %3550 = vmatprep.subr.mxu0 0.0
      %3551 = vmatpush1.msra.mxu0 0.0
      %3552 = vmatprep.subr.mxu0 0.0
      %3553 = vmatpush1.msra.mxu0 0.0
      %3554 = vmatprep.mubr.f32.mxu0 0.0
      %3555 = vmatmul.mubr.f32.gmra.mrb[0].mxu0 %v3467
      %v3556 = vpop.f32.mrb[0].mxu0
      %v3557 = vadd.f32 0.0, %v3556
      %v3558 = vpop.f32.mrb[0].mxu0
      %3559 = vmatprep.mubr.f32.mxu0 0.0
      %3560 = vmatmul.mubr.f32.gmra.mrb[0].mxu0 %v3470
      %v3561 = vpop.f32.mrb[0].mxu0
      %v3562 = vadd.f32 0.0, %v3561
      %v3563 = vpop.f32.mrb[0].mxu0
      %3564 = vmatprep.mubr.f32.mxu0 0.0
      %3565 = vmatmul.mubr.f32.gmra.mrb[0].mxu0 %v3473
      %v3566 = vpop.f32.mrb[0].mxu0
      %v3567 = vadd.f32 0.0, %v3566
      %v3568 = vpop.f32.mrb[0].mxu0
      %3569 = vmatprep.mubr.f32.mxu0 0.0
      %3570 = vmatmul.mubr.f32.gmra.mrb[0].mxu0 %v3476
      %v3571 = vpop.f32.mrb[0].mxu0
      %v3572 = vadd.f32 0.0, %v3571
      %v3573 = vpop.f32.mrb[0].mxu0
      %3574 = vmatprep.mubr.f32.mxu0 0.0
      %3575 = vmatmul.mubr.f32.gmra.mrb[0].mxu0 %v3479
      %v3576 = vpop.f32.mrb[0].mxu0
      %v3577 = vadd.f32 0.0, %v3576
      %v3578 = vpop.f32.mrb[0].mxu0
      %3579 = vmatprep.mubr.f32.mxu0 0.0
      %3580 = vmatmul.mubr.f32.gmra.mrb[0].mxu0 %v3482
      %v3581 = vpop.f32.mrb[0].mxu0
      %v3582 = vadd.f32 0.0, %v3581
      %v3583 = vpop.f32.mrb[0].mxu0
      %3584 = vmatprep.mubr.f32.mxu0 0.0
      %3585 = vmatmul.mubr.f32.gmra.mrb[0].mxu0 %v3485
      %v3586 = vpop.f32.mrb[0].mxu0
      %v3587 = vadd.f32 0.0, %v3586
      %v3588 = vpop.f32.mrb[0].mxu0
      %3589 = vmatprep.mubr.f32.mxu0 0.0
      %3590 = vmatmul.mubr.f32.gmra.mrb[0].mxu0 %v3488
      %v3591 = vpop.f32.mrb[0].mxu0
      %v3592 = vadd.f32 0.0, %v3591
      %v3593 = vpop.f32.mrb[0].mxu0
      %3594 = vdwg.mxu0
      %v3595 = vadd.f32 %v3447, %v3557
      %v3596 = vadd.f32 %v3448, %v3562
      %v3597 = vadd.f32 %v3449, %v3567
      %v3598 = vadd.f32 %v3450, %v3572
      %v3599 = vadd.f32 %v3451, %v3577
      %v3600 = vadd.f32 %v3452, %v3582
      %v3601 = vadd.f32 %v3453, %v3587
      %v3602 = vadd.f32 %v3454, %v3592
      %v3603 = vld [vmem:[#allocation2 + $0xf3] sm:$0xff]
      %v3604 = vld [vmem:[#allocation2 + $0xfb] sm:$0xff]
      %v3605 = vld [vmem:[#allocation2 + $0x103] sm:$0xff]
      %v3606 = vld [vmem:[#allocation2 + $0x10b] sm:$0xff]
      %v3607 = vld [vmem:[#allocation2 + $0x113] sm:$0xff]
      %v3608 = vld [vmem:[#allocation2 + $0x11b] sm:$0xff]
      %v3609 = vld [vmem:[#allocation2 + $0x123] sm:$0xff]
      %v3610 = vld [vmem:[#allocation2 + $0x12b] sm:$0x7f]
      %s3611 = scalar_lea.vmem %s4, 112
      %v3612 = vld [vmem:[%s3611] sm:$0xff]
      %v3613 = vld [vmem:[%s3611 + $0x8] sm:$0xff]
      %v3615 = vsel %vm2499, %v3603, 0
      %v3618 = vsel %vm2499, %v3604, 0
      %v3621 = vsel %vm2499, %v3605, 0
      %v3624 = vsel %vm2499, %v3606, 0
      %v3627 = vsel %vm2499, %v3607, 0
      %v3630 = vsel %vm2499, %v3608, 0
      %v3633 = vsel %vm2499, %v3609, 0
      %v3636 = vsel %vm2499, %v3610, 0
      %3638 = vmatprep.subr.mxu0 0.0
      %3639 = vmatpush1.msra.mxu0 %v3612
      %3640 = vmatprep.subr.mxu0 0.0
      %3641 = vmatpush1.msra.mxu0 %v3613
      %3642 = vmatprep.subr.mxu0 0.0
      %3643 = vmatpush1.msra.mxu0 0.0
      %3644 = vmatprep.subr.mxu0 0.0
      %3645 = vmatpush1.msra.mxu0 0.0
      %3646 = vmatprep.subr.mxu0 0.0
      %3647 = vmatpush1.msra.mxu0 0.0
      %3648 = vmatprep.subr.mxu0 0.0
      %3649 = vmatpush1.msra.mxu0 0.0
      %3650 = vmatprep.subr.mxu0 0.0
      %3651 = vmatpush1.msra.mxu0 0.0
      %3652 = vmatprep.subr.mxu0 0.0
      %3653 = vmatpush1.msra.mxu0 0.0
      %3654 = vmatprep.subr.mxu0 0.0
      %3655 = vmatpush1.msra.mxu0 0.0
      %3656 = vmatprep.subr.mxu0 0.0
      %3657 = vmatpush1.msra.mxu0 0.0
      %3658 = vmatprep.subr.mxu0 0.0
      %3659 = vmatpush1.msra.mxu0 0.0
      %3660 = vmatprep.subr.mxu0 0.0
      %3661 = vmatpush1.msra.mxu0 0.0
      %3662 = vmatprep.subr.mxu0 0.0
      %3663 = vmatpush1.msra.mxu0 0.0
      %3664 = vmatprep.subr.mxu0 0.0
      %3665 = vmatpush1.msra.mxu0 0.0
      %3666 = vmatprep.subr.mxu0 0.0
      %3667 = vmatpush1.msra.mxu0 0.0
      %3668 = vmatprep.subr.mxu0 0.0
      %3669 = vmatpush1.msra.mxu0 0.0
      %3670 = vmatprep.subr.mxu0 0.0
      %3671 = vmatpush1.msra.mxu0 0.0
      %3672 = vmatprep.subr.mxu0 0.0
      %3673 = vmatpush1.msra.mxu0 0.0
      %3674 = vmatprep.subr.mxu0 0.0
      %3675 = vmatpush1.msra.mxu0 0.0
      %3676 = vmatprep.subr.mxu0 0.0
      %3677 = vmatpush1.msra.mxu0 0.0
      %3678 = vmatprep.subr.mxu0 0.0
      %3679 = vmatpush1.msra.mxu0 0.0
      %3680 = vmatprep.subr.mxu0 0.0
      %3681 = vmatpush1.msra.mxu0 0.0
      %3682 = vmatprep.subr.mxu0 0.0
      %3683 = vmatpush1.msra.mxu0 0.0
      %3684 = vmatprep.subr.mxu0 0.0
      %3685 = vmatpush1.msra.mxu0 0.0
      %3686 = vmatprep.subr.mxu0 0.0
      %3687 = vmatpush1.msra.mxu0 0.0
      %3688 = vmatprep.subr.mxu0 0.0
      %3689 = vmatpush1.msra.mxu0 0.0
      %3690 = vmatprep.subr.mxu0 0.0
      %3691 = vmatpush1.msra.mxu0 0.0
      %3692 = vmatprep.subr.mxu0 0.0
      %3693 = vmatpush1.msra.mxu0 0.0
      %3694 = vmatprep.subr.mxu0 0.0
      %3695 = vmatpush1.msra.mxu0 0.0
      %3696 = vmatprep.subr.mxu0 0.0
      %3697 = vmatpush1.msra.mxu0 0.0
      %3698 = vmatprep.subr.mxu0 0.0
      %3699 = vmatpush1.msra.mxu0 0.0
      %3700 = vmatprep.subr.mxu0 0.0
      %3701 = vmatpush1.msra.mxu0 0.0
      %3702 = vmatprep.mubr.f32.mxu0 0.0
      %3703 = vmatmul.mubr.f32.gmra.mrb[0].mxu0 %v3615
      %v3704 = vpop.f32.mrb[0].mxu0
      %v3705 = vadd.f32 0.0, %v3704
      %v3706 = vpop.f32.mrb[0].mxu0
      %3707 = vmatprep.mubr.f32.mxu0 0.0
      %3708 = vmatmul.mubr.f32.gmra.mrb[0].mxu0 %v3618
      %v3709 = vpop.f32.mrb[0].mxu0
      %v3710 = vadd.f32 0.0, %v3709
      %v3711 = vpop.f32.mrb[0].mxu0
      %3712 = vmatprep.mubr.f32.mxu0 0.0
      %3713 = vmatmul.mubr.f32.gmra.mrb[0].mxu0 %v3621
      %v3714 = vpop.f32.mrb[0].mxu0
      %v3715 = vadd.f32 0.0, %v3714
      %v3716 = vpop.f32.mrb[0].mxu0
      %3717 = vmatprep.mubr.f32.mxu0 0.0
      %3718 = vmatmul.mubr.f32.gmra.mrb[0].mxu0 %v3624
      %v3719 = vpop.f32.mrb[0].mxu0
      %v3720 = vadd.f32 0.0, %v3719
      %v3721 = vpop.f32.mrb[0].mxu0
      %3722 = vmatprep.mubr.f32.mxu0 0.0
      %3723 = vmatmul.mubr.f32.gmra.mrb[0].mxu0 %v3627
      %v3724 = vpop.f32.mrb[0].mxu0
      %v3725 = vadd.f32 0.0, %v3724
      %v3726 = vpop.f32.mrb[0].mxu0
      %3727 = vmatprep.mubr.f32.mxu0 0.0
      %3728 = vmatmul.mubr.f32.gmra.mrb[0].mxu0 %v3630
      %v3729 = vpop.f32.mrb[0].mxu0
      %v3730 = vadd.f32 0.0, %v3729
      %v3731 = vpop.f32.mrb[0].mxu0
      %3732 = vmatprep.mubr.f32.mxu0 0.0
      %3733 = vmatmul.mubr.f32.gmra.mrb[0].mxu0 %v3633
      %v3734 = vpop.f32.mrb[0].mxu0
      %v3735 = vadd.f32 0.0, %v3734
      %v3736 = vpop.f32.mrb[0].mxu0
      %3737 = vmatprep.mubr.f32.mxu0 0.0
      %3738 = vmatmul.mubr.f32.gmra.mrb[0].mxu0 %v3636
      %v3739 = vpop.f32.mrb[0].mxu0
      %v3740 = vadd.f32 0.0, %v3739
      %v3741 = vpop.f32.mrb[0].mxu0
      %3742 = vdwg.mxu0
      %v3743 = vadd.f32 %v3595, %v3705
      %v3744 = vadd.f32 %v3596, %v3710
      %v3745 = vadd.f32 %v3597, %v3715
      %v3746 = vadd.f32 %v3598, %v3720
      %v3747 = vadd.f32 %v3599, %v3725
      %v3748 = vadd.f32 %v3600, %v3730
      %v3749 = vadd.f32 %v3601, %v3735
      %v3750 = vadd.f32 %v3602, %v3740
      %v3751 = vld [vmem:[#allocation2 + $0xa3] sm:$0xff]
      %v3752 = vld [vmem:[#allocation2 + $0xab] sm:$0xff]
      %v3753 = vld [vmem:[#allocation2 + $0xb3] sm:$0xff]
      %v3754 = vld [vmem:[#allocation2 + $0xbb] sm:$0xff]
      %v3755 = vld [vmem:[#allocation2 + $0xc3] sm:$0xff]
      %v3756 = vld [vmem:[#allocation2 + $0xcb] sm:$0xff]
      %v3757 = vld [vmem:[#allocation2 + $0xd3] sm:$0xff]
      %v3758 = vld [vmem:[#allocation2 + $0xdb] sm:$0x7f]
      %s3759 = scalar_lea.vmem %s4, 128
      %v3760 = vld [vmem:[%s3759] sm:$0xff]
      %v3761 = vld [vmem:[%s3759 + $0x8] sm:$0xff]
      %v3763 = vsel %vm2499, %v3751, 0
      %v3766 = vsel %vm2499, %v3752, 0
      %v3769 = vsel %vm2499, %v3753, 0
      %v3772 = vsel %vm2499, %v3754, 0
      %v3775 = vsel %vm2499, %v3755, 0
      %v3778 = vsel %vm2499, %v3756, 0
      %v3781 = vsel %vm2499, %v3757, 0
      %v3784 = vsel %vm2499, %v3758, 0
      %3786 = vmatprep.subr.mxu0 0.0
      %3787 = vmatpush1.msra.mxu0 %v3760
      %3788 = vmatprep.subr.mxu0 0.0
      %3789 = vmatpush1.msra.mxu0 %v3761
      %3790 = vmatprep.subr.mxu0 0.0
      %3791 = vmatpush1.msra.mxu0 0.0
      %3792 = vmatprep.subr.mxu0 0.0
      %3793 = vmatpush1.msra.mxu0 0.0
      %3794 = vmatprep.subr.mxu0 0.0
      %3795 = vmatpush1.msra.mxu0 0.0
      %3796 = vmatprep.subr.mxu0 0.0
      %3797 = vmatpush1.msra.mxu0 0.0
      %3798 = vmatprep.subr.mxu0 0.0
      %3799 = vmatpush1.msra.mxu0 0.0
      %3800 = vmatprep.subr.mxu0 0.0
      %3801 = vmatpush1.msra.mxu0 0.0
      %3802 = vmatprep.subr.mxu0 0.0
      %3803 = vmatpush1.msra.mxu0 0.0
      %3804 = vmatprep.subr.mxu0 0.0
      %3805 = vmatpush1.msra.mxu0 0.0
      %3806 = vmatprep.subr.mxu0 0.0
      %3807 = vmatpush1.msra.mxu0 0.0
      %3808 = vmatprep.subr.mxu0 0.0
      %3809 = vmatpush1.msra.mxu0 0.0
      %3810 = vmatprep.subr.mxu0 0.0
      %3811 = vmatpush1.msra.mxu0 0.0
      %3812 = vmatprep.subr.mxu0 0.0
      %3813 = vmatpush1.msra.mxu0 0.0
      %3814 = vmatprep.subr.mxu0 0.0
      %3815 = vmatpush1.msra.mxu0 0.0
      %3816 = vmatprep.subr.mxu0 0.0
      %3817 = vmatpush1.msra.mxu0 0.0
      %3818 = vmatprep.subr.mxu0 0.0
      %3819 = vmatpush1.msra.mxu0 0.0
      %3820 = vmatprep.subr.mxu0 0.0
      %3821 = vmatpush1.msra.mxu0 0.0
      %3822 = vmatprep.subr.mxu0 0.0
      %3823 = vmatpush1.msra.mxu0 0.0
      %3824 = vmatprep.subr.mxu0 0.0
      %3825 = vmatpush1.msra.mxu0 0.0
      %3826 = vmatprep.subr.mxu0 0.0
      %3827 = vmatpush1.msra.mxu0 0.0
      %3828 = vmatprep.subr.mxu0 0.0
      %3829 = vmatpush1.msra.mxu0 0.0
      %3830 = vmatprep.subr.mxu0 0.0
      %3831 = vmatpush1.msra.mxu0 0.0
      %3832 = vmatprep.subr.mxu0 0.0
      %3833 = vmatpush1.msra.mxu0 0.0
      %3834 = vmatprep.subr.mxu0 0.0
      %3835 = vmatpush1.msra.mxu0 0.0
      %3836 = vmatprep.subr.mxu0 0.0
      %3837 = vmatpush1.msra.mxu0 0.0
      %3838 = vmatprep.subr.mxu0 0.0
      %3839 = vmatpush1.msra.mxu0 0.0
      %3840 = vmatprep.subr.mxu0 0.0
      %3841 = vmatpush1.msra.mxu0 0.0
      %3842 = vmatprep.subr.mxu0 0.0
      %3843 = vmatpush1.msra.mxu0 0.0
      %3844 = vmatprep.subr.mxu0 0.0
      %3845 = vmatpush1.msra.mxu0 0.0
      %3846 = vmatprep.subr.mxu0 0.0
      %3847 = vmatpush1.msra.mxu0 0.0
      %3848 = vmatprep.subr.mxu0 0.0
      %3849 = vmatpush1.msra.mxu0 0.0
      %3850 = vmatprep.mubr.f32.mxu0 0.0
      %3851 = vmatmul.mubr.f32.gmra.mrb[0].mxu0 %v3763
      %v3852 = vpop.f32.mrb[0].mxu0
      %v3853 = vadd.f32 0.0, %v3852
      %v3854 = vpop.f32.mrb[0].mxu0
      %3855 = vmatprep.mubr.f32.mxu0 0.0
      %3856 = vmatmul.mubr.f32.gmra.mrb[0].mxu0 %v3766
      %v3857 = vpop.f32.mrb[0].mxu0
      %v3858 = vadd.f32 0.0, %v3857
      %v3859 = vpop.f32.mrb[0].mxu0
      %3860 = vmatprep.mubr.f32.mxu0 0.0
      %3861 = vmatmul.mubr.f32.gmra.mrb[0].mxu0 %v3769
      %v3862 = vpop.f32.mrb[0].mxu0
      %v3863 = vadd.f32 0.0, %v3862
      %v3864 = vpop.f32.mrb[0].mxu0
      %3865 = vmatprep.mubr.f32.mxu0 0.0
      %3866 = vmatmul.mubr.f32.gmra.mrb[0].mxu0 %v3772
      %v3867 = vpop.f32.mrb[0].mxu0
      %v3868 = vadd.f32 0.0, %v3867
      %v3869 = vpop.f32.mrb[0].mxu0
      %3870 = vmatprep.mubr.f32.mxu0 0.0
      %3871 = vmatmul.mubr.f32.gmra.mrb[0].mxu0 %v3775
      %v3872 = vpop.f32.mrb[0].mxu0
      %v3873 = vadd.f32 0.0, %v3872
      %v3874 = vpop.f32.mrb[0].mxu0
      %3875 = vmatprep.mubr.f32.mxu0 0.0
      %3876 = vmatmul.mubr.f32.gmra.mrb[0].mxu0 %v3778
      %v3877 = vpop.f32.mrb[0].mxu0
      %v3878 = vadd.f32 0.0, %v3877
      %v3879 = vpop.f32.mrb[0].mxu0
      %3880 = vmatprep.mubr.f32.mxu0 0.0
      %3881 = vmatmul.mubr.f32.gmra.mrb[0].mxu0 %v3781
      %v3882 = vpop.f32.mrb[0].mxu0
      %v3883 = vadd.f32 0.0, %v3882
      %v3884 = vpop.f32.mrb[0].mxu0
      %3885 = vmatprep.mubr.f32.mxu0 0.0
      %3886 = vmatmul.mubr.f32.gmra.mrb[0].mxu0 %v3784
      %v3887 = vpop.f32.mrb[0].mxu0
      %v3888 = vadd.f32 0.0, %v3887
      %v3889 = vpop.f32.mrb[0].mxu0
      %3890 = vdwg.mxu0
      %v3891 = vadd.f32 %v3743, %v3853
      %v3892 = vadd.f32 %v3744, %v3858
      %v3893 = vadd.f32 %v3745, %v3863
      %v3894 = vadd.f32 %v3746, %v3868
      %v3895 = vadd.f32 %v3747, %v3873
      %v3896 = vadd.f32 %v3748, %v3878
      %v3897 = vadd.f32 %v3749, %v3883
      %v3898 = vadd.f32 %v3750, %v3888
      %v3899 = vld [vmem:[#allocation2 + $0xf4] sm:$0xff]
      %v3900 = vld [vmem:[#allocation2 + $0xfc] sm:$0xff]
      %v3901 = vld [vmem:[#allocation2 + $0x104] sm:$0xff]
      %v3902 = vld [vmem:[#allocation2 + $0x10c] sm:$0xff]
      %v3903 = vld [vmem:[#allocation2 + $0x114] sm:$0xff]
      %v3904 = vld [vmem:[#allocation2 + $0x11c] sm:$0xff]
      %v3905 = vld [vmem:[#allocation2 + $0x124] sm:$0xff]
      %v3906 = vld [vmem:[#allocation2 + $0x12c] sm:$0x7f]
      %s3907 = scalar_lea.vmem %s4, 144
      %v3908 = vld [vmem:[%s3907] sm:$0xff]
      %v3909 = vld [vmem:[%s3907 + $0x8] sm:$0xff]
      %v3911 = vsel %vm2499, %v3899, 0
      %v3914 = vsel %vm2499, %v3900, 0
      %v3917 = vsel %vm2499, %v3901, 0
      %v3920 = vsel %vm2499, %v3902, 0
      %v3923 = vsel %vm2499, %v3903, 0
      %v3926 = vsel %vm2499, %v3904, 0
      %v3929 = vsel %vm2499, %v3905, 0
      %v3932 = vsel %vm2499, %v3906, 0
      %3934 = vmatprep.subr.mxu0 0.0
      %3935 = vmatpush1.msra.mxu0 %v3908
      %3936 = vmatprep.subr.mxu0 0.0
      %3937 = vmatpush1.msra.mxu0 %v3909
      %3938 = vmatprep.subr.mxu0 0.0
      %3939 = vmatpush1.msra.mxu0 0.0
      %3940 = vmatprep.subr.mxu0 0.0
      %3941 = vmatpush1.msra.mxu0 0.0
      %3942 = vmatprep.subr.mxu0 0.0
      %3943 = vmatpush1.msra.mxu0 0.0
      %3944 = vmatprep.subr.mxu0 0.0
      %3945 = vmatpush1.msra.mxu0 0.0
      %3946 = vmatprep.subr.mxu0 0.0
      %3947 = vmatpush1.msra.mxu0 0.0
      %3948 = vmatprep.subr.mxu0 0.0
      %3949 = vmatpush1.msra.mxu0 0.0
      %3950 = vmatprep.subr.mxu0 0.0
      %3951 = vmatpush1.msra.mxu0 0.0
      %3952 = vmatprep.subr.mxu0 0.0
      %3953 = vmatpush1.msra.mxu0 0.0
      %3954 = vmatprep.subr.mxu0 0.0
      %3955 = vmatpush1.msra.mxu0 0.0
      %3956 = vmatprep.subr.mxu0 0.0
      %3957 = vmatpush1.msra.mxu0 0.0
      %3958 = vmatprep.subr.mxu0 0.0
      %3959 = vmatpush1.msra.mxu0 0.0
      %3960 = vmatprep.subr.mxu0 0.0
      %3961 = vmatpush1.msra.mxu0 0.0
      %3962 = vmatprep.subr.mxu0 0.0
      %3963 = vmatpush1.msra.mxu0 0.0
      %3964 = vmatprep.subr.mxu0 0.0
      %3965 = vmatpush1.msra.mxu0 0.0
      %3966 = vmatprep.subr.mxu0 0.0
      %3967 = vmatpush1.msra.mxu0 0.0
      %3968 = vmatprep.subr.mxu0 0.0
      %3969 = vmatpush1.msra.mxu0 0.0
      %3970 = vmatprep.subr.mxu0 0.0
      %3971 = vmatpush1.msra.mxu0 0.0
      %3972 = vmatprep.subr.mxu0 0.0
      %3973 = vmatpush1.msra.mxu0 0.0
      %3974 = vmatprep.subr.mxu0 0.0
      %3975 = vmatpush1.msra.mxu0 0.0
      %3976 = vmatprep.subr.mxu0 0.0
      %3977 = vmatpush1.msra.mxu0 0.0
      %3978 = vmatprep.subr.mxu0 0.0
      %3979 = vmatpush1.msra.mxu0 0.0
      %3980 = vmatprep.subr.mxu0 0.0
      %3981 = vmatpush1.msra.mxu0 0.0
      %3982 = vmatprep.subr.mxu0 0.0
      %3983 = vmatpush1.msra.mxu0 0.0
      %3984 = vmatprep.subr.mxu0 0.0
      %3985 = vmatpush1.msra.mxu0 0.0
      %3986 = vmatprep.subr.mxu0 0.0
      %3987 = vmatpush1.msra.mxu0 0.0
      %3988 = vmatprep.subr.mxu0 0.0
      %3989 = vmatpush1.msra.mxu0 0.0
      %3990 = vmatprep.subr.mxu0 0.0
      %3991 = vmatpush1.msra.mxu0 0.0
      %3992 = vmatprep.subr.mxu0 0.0
      %3993 = vmatpush1.msra.mxu0 0.0
      %3994 = vmatprep.subr.mxu0 0.0
      %3995 = vmatpush1.msra.mxu0 0.0
      %3996 = vmatprep.subr.mxu0 0.0
      %3997 = vmatpush1.msra.mxu0 0.0
      %3998 = vmatprep.mubr.f32.mxu0 0.0
      %3999 = vmatmul.mubr.f32.gmra.mrb[0].mxu0 %v3911
      %v4000 = vpop.f32.mrb[0].mxu0
      %v4001 = vadd.f32 0.0, %v4000
      %v4002 = vpop.f32.mrb[0].mxu0
      %4003 = vmatprep.mubr.f32.mxu0 0.0
      %4004 = vmatmul.mubr.f32.gmra.mrb[0].mxu0 %v3914
      %v4005 = vpop.f32.mrb[0].mxu0
      %v4006 = vadd.f32 0.0, %v4005
      %v4007 = vpop.f32.mrb[0].mxu0
      %4008 = vmatprep.mubr.f32.mxu0 0.0
      %4009 = vmatmul.mubr.f32.gmra.mrb[0].mxu0 %v3917
      %v4010 = vpop.f32.mrb[0].mxu0
      %v4011 = vadd.f32 0.0, %v4010
      %v4012 = vpop.f32.mrb[0].mxu0
      %4013 = vmatprep.mubr.f32.mxu0 0.0
      %4014 = vmatmul.mubr.f32.gmra.mrb[0].mxu0 %v3920
      %v4015 = vpop.f32.mrb[0].mxu0
      %v4016 = vadd.f32 0.0, %v4015
      %v4017 = vpop.f32.mrb[0].mxu0
      %4018 = vmatprep.mubr.f32.mxu0 0.0
      %4019 = vmatmul.mubr.f32.gmra.mrb[0].mxu0 %v3923
      %v4020 = vpop.f32.mrb[0].mxu0
      %v4021 = vadd.f32 0.0, %v4020
      %v4022 = vpop.f32.mrb[0].mxu0
      %4023 = vmatprep.mubr.f32.mxu0 0.0
      %4024 = vmatmul.mubr.f32.gmra.mrb[0].mxu0 %v3926
      %v4025 = vpop.f32.mrb[0].mxu0
      %v4026 = vadd.f32 0.0, %v4025
      %v4027 = vpop.f32.mrb[0].mxu0
      %4028 = vmatprep.mubr.f32.mxu0 0.0
      %4029 = vmatmul.mubr.f32.gmra.mrb[0].mxu0 %v3929
      %v4030 = vpop.f32.mrb[0].mxu0
      %v4031 = vadd.f32 0.0, %v4030
      %v4032 = vpop.f32.mrb[0].mxu0
      %4033 = vmatprep.mubr.f32.mxu0 0.0
      %4034 = vmatmul.mubr.f32.gmra.mrb[0].mxu0 %v3932
      %v4035 = vpop.f32.mrb[0].mxu0
      %v4036 = vadd.f32 0.0, %v4035
      %v4037 = vpop.f32.mrb[0].mxu0
      %4038 = vdwg.mxu0
      %v4039 = vadd.f32 %v3891, %v4001
      %v4040 = vadd.f32 %v3892, %v4006
      %v4041 = vadd.f32 %v3893, %v4011
      %v4042 = vadd.f32 %v3894, %v4016
      %v4043 = vadd.f32 %v3895, %v4021
      %v4044 = vadd.f32 %v3896, %v4026
      %v4045 = vadd.f32 %v3897, %v4031
      %v4046 = vadd.f32 %v3898, %v4036
      %v4047 = vld [vmem:[#allocation2 + $0xa4] sm:$0xff]
      %v4048 = vld [vmem:[#allocation2 + $0xac] sm:$0xff]
      %v4049 = vld [vmem:[#allocation2 + $0xb4] sm:$0xff]
      %v4050 = vld [vmem:[#allocation2 + $0xbc] sm:$0xff]
      %v4051 = vld [vmem:[#allocation2 + $0xc4] sm:$0xff]
      %v4052 = vld [vmem:[#allocation2 + $0xcc] sm:$0xff]
      %v4053 = vld [vmem:[#allocation2 + $0xd4] sm:$0xff]
      %v4054 = vld [vmem:[#allocation2 + $0xdc] sm:$0x7f]
      %s4055 = scalar_lea.vmem %s4, 160
      %v4056 = vld [vmem:[%s4055] sm:$0xff]
      %v4057 = vld [vmem:[%s4055 + $0x8] sm:$0xff]
      %v4059 = vsel %vm2499, %v4047, 0
      %v4062 = vsel %vm2499, %v4048, 0
      %v4065 = vsel %vm2499, %v4049, 0
      %v4068 = vsel %vm2499, %v4050, 0
      %v4071 = vsel %vm2499, %v4051, 0
      %v4074 = vsel %vm2499, %v4052, 0
      %v4077 = vsel %vm2499, %v4053, 0
      %v4080 = vsel %vm2499, %v4054, 0
      %4082 = vmatprep.subr.mxu0 0.0
      %4083 = vmatpush1.msra.mxu0 %v4056
      %4084 = vmatprep.subr.mxu0 0.0
      %4085 = vmatpush1.msra.mxu0 %v4057
      %4086 = vmatprep.subr.mxu0 0.0
      %4087 = vmatpush1.msra.mxu0 0.0
      %4088 = vmatprep.subr.mxu0 0.0
      %4089 = vmatpush1.msra.mxu0 0.0
      %4090 = vmatprep.subr.mxu0 0.0
      %4091 = vmatpush1.msra.mxu0 0.0
      %4092 = vmatprep.subr.mxu0 0.0
      %4093 = vmatpush1.msra.mxu0 0.0
      %4094 = vmatprep.subr.mxu0 0.0
      %4095 = vmatpush1.msra.mxu0 0.0
      %4096 = vmatprep.subr.mxu0 0.0
      %4097 = vmatpush1.msra.mxu0 0.0
      %4098 = vmatprep.subr.mxu0 0.0
      %4099 = vmatpush1.msra.mxu0 0.0
      %4100 = vmatprep.subr.mxu0 0.0
      %4101 = vmatpush1.msra.mxu0 0.0
      %4102 = vmatprep.subr.mxu0 0.0
      %4103 = vmatpush1.msra.mxu0 0.0
      %4104 = vmatprep.subr.mxu0 0.0
      %4105 = vmatpush1.msra.mxu0 0.0
      %4106 = vmatprep.subr.mxu0 0.0
      %4107 = vmatpush1.msra.mxu0 0.0
      %4108 = vmatprep.subr.mxu0 0.0
      %4109 = vmatpush1.msra.mxu0 0.0
      %4110 = vmatprep.subr.mxu0 0.0
      %4111 = vmatpush1.msra.mxu0 0.0
      %4112 = vmatprep.subr.mxu0 0.0
      %4113 = vmatpush1.msra.mxu0 0.0
      %4114 = vmatprep.subr.mxu0 0.0
      %4115 = vmatpush1.msra.mxu0 0.0
      %4116 = vmatprep.subr.mxu0 0.0
      %4117 = vmatpush1.msra.mxu0 0.0
      %4118 = vmatprep.subr.mxu0 0.0
      %4119 = vmatpush1.msra.mxu0 0.0
      %4120 = vmatprep.subr.mxu0 0.0
      %4121 = vmatpush1.msra.mxu0 0.0
      %4122 = vmatprep.subr.mxu0 0.0
      %4123 = vmatpush1.msra.mxu0 0.0
      %4124 = vmatprep.subr.mxu0 0.0
      %4125 = vmatpush1.msra.mxu0 0.0
      %4126 = vmatprep.subr.mxu0 0.0
      %4127 = vmatpush1.msra.mxu0 0.0
      %4128 = vmatprep.subr.mxu0 0.0
      %4129 = vmatpush1.msra.mxu0 0.0
      %4130 = vmatprep.subr.mxu0 0.0
      %4131 = vmatpush1.msra.mxu0 0.0
      %4132 = vmatprep.subr.mxu0 0.0
      %4133 = vmatpush1.msra.mxu0 0.0
      %4134 = vmatprep.subr.mxu0 0.0
      %4135 = vmatpush1.msra.mxu0 0.0
      %4136 = vmatprep.subr.mxu0 0.0
      %4137 = vmatpush1.msra.mxu0 0.0
      %4138 = vmatprep.subr.mxu0 0.0
      %4139 = vmatpush1.msra.mxu0 0.0
      %4140 = vmatprep.subr.mxu0 0.0
      %4141 = vmatpush1.msra.mxu0 0.0
      %4142 = vmatprep.subr.mxu0 0.0
      %4143 = vmatpush1.msra.mxu0 0.0
      %4144 = vmatprep.subr.mxu0 0.0
      %4145 = vmatpush1.msra.mxu0 0.0
      %4146 = vmatprep.mubr.f32.mxu0 0.0
      %4147 = vmatmul.mubr.f32.gmra.mrb[0].mxu0 %v4059
      %v4148 = vpop.f32.mrb[0].mxu0
      %v4149 = vadd.f32 0.0, %v4148
      %v4150 = vpop.f32.mrb[0].mxu0
      %4151 = vmatprep.mubr.f32.mxu0 0.0
      %4152 = vmatmul.mubr.f32.gmra.mrb[0].mxu0 %v4062
      %v4153 = vpop.f32.mrb[0].mxu0
      %v4154 = vadd.f32 0.0, %v4153
      %v4155 = vpop.f32.mrb[0].mxu0
      %4156 = vmatprep.mubr.f32.mxu0 0.0
      %4157 = vmatmul.mubr.f32.gmra.mrb[0].mxu0 %v4065
      %v4158 = vpop.f32.mrb[0].mxu0
      %v4159 = vadd.f32 0.0, %v4158
      %v4160 = vpop.f32.mrb[0].mxu0
      %4161 = vmatprep.mubr.f32.mxu0 0.0
      %4162 = vmatmul.mubr.f32.gmra.mrb[0].mxu0 %v4068
      %v4163 = vpop.f32.mrb[0].mxu0
      %v4164 = vadd.f32 0.0, %v4163
      %v4165 = vpop.f32.mrb[0].mxu0
      %4166 = vmatprep.mubr.f32.mxu0 0.0
      %4167 = vmatmul.mubr.f32.gmra.mrb[0].mxu0 %v4071
      %v4168 = vpop.f32.mrb[0].mxu0
      %v4169 = vadd.f32 0.0, %v4168
      %v4170 = vpop.f32.mrb[0].mxu0
      %4171 = vmatprep.mubr.f32.mxu0 0.0
      %4172 = vmatmul.mubr.f32.gmra.mrb[0].mxu0 %v4074
      %v4173 = vpop.f32.mrb[0].mxu0
      %v4174 = vadd.f32 0.0, %v4173
      %v4175 = vpop.f32.mrb[0].mxu0
      %4176 = vmatprep.mubr.f32.mxu0 0.0
      %4177 = vmatmul.mubr.f32.gmra.mrb[0].mxu0 %v4077
      %v4178 = vpop.f32.mrb[0].mxu0
      %v4179 = vadd.f32 0.0, %v4178
      %v4180 = vpop.f32.mrb[0].mxu0
      %4181 = vmatprep.mubr.f32.mxu0 0.0
      %4182 = vmatmul.mubr.f32.gmra.mrb[0].mxu0 %v4080
      %v4183 = vpop.f32.mrb[0].mxu0
      %v4184 = vadd.f32 0.0, %v4183
      %v4185 = vpop.f32.mrb[0].mxu0
      %4186 = vdwg.mxu0
      %v4187 = vadd.f32 %v4039, %v4149
      %v4188 = vadd.f32 %v4040, %v4154
      %v4189 = vadd.f32 %v4041, %v4159
      %v4190 = vadd.f32 %v4042, %v4164
      %v4191 = vadd.f32 %v4043, %v4169
      %v4192 = vadd.f32 %v4044, %v4174
      %v4193 = vadd.f32 %v4045, %v4179
      %v4194 = vadd.f32 %v4046, %v4184
      %v4195 = vld [vmem:[#allocation2 + $0xf5] sm:$0xff]
      %v4196 = vld [vmem:[#allocation2 + $0xfd] sm:$0xff]
      %v4197 = vld [vmem:[#allocation2 + $0x105] sm:$0xff]
      %v4198 = vld [vmem:[#allocation2 + $0x10d] sm:$0xff]
      %v4199 = vld [vmem:[#allocation2 + $0x115] sm:$0xff]
      %v4200 = vld [vmem:[#allocation2 + $0x11d] sm:$0xff]
      %v4201 = vld [vmem:[#allocation2 + $0x125] sm:$0xff]
      %v4202 = vld [vmem:[#allocation2 + $0x12d] sm:$0x7f]
      %s4203 = scalar_lea.vmem %s4, 176
      %v4204 = vld [vmem:[%s4203] sm:$0xff]
      %v4205 = vld [vmem:[%s4203 + $0x8] sm:$0xff]
      %v4207 = vsel %vm2499, %v4195, 0
      %v4210 = vsel %vm2499, %v4196, 0
      %v4213 = vsel %vm2499, %v4197, 0
      %v4216 = vsel %vm2499, %v4198, 0
      %v4219 = vsel %vm2499, %v4199, 0
      %v4222 = vsel %vm2499, %v4200, 0
      %v4225 = vsel %vm2499, %v4201, 0
      %v4228 = vsel %vm2499, %v4202, 0
      %4230 = vmatprep.subr.mxu0 0.0
      %4231 = vmatpush1.msra.mxu0 %v4204
      %4232 = vmatprep.subr.mxu0 0.0
      %4233 = vmatpush1.msra.mxu0 %v4205
      %4234 = vmatprep.subr.mxu0 0.0
      %4235 = vmatpush1.msra.mxu0 0.0
      %4236 = vmatprep.subr.mxu0 0.0
      %4237 = vmatpush1.msra.mxu0 0.0
      %4238 = vmatprep.subr.mxu0 0.0
      %4239 = vmatpush1.msra.mxu0 0.0
      %4240 = vmatprep.subr.mxu0 0.0
      %4241 = vmatpush1.msra.mxu0 0.0
      %4242 = vmatprep.subr.mxu0 0.0
      %4243 = vmatpush1.msra.mxu0 0.0
      %4244 = vmatprep.subr.mxu0 0.0
      %4245 = vmatpush1.msra.mxu0 0.0
      %4246 = vmatprep.subr.mxu0 0.0
      %4247 = vmatpush1.msra.mxu0 0.0
      %4248 = vmatprep.subr.mxu0 0.0
      %4249 = vmatpush1.msra.mxu0 0.0
      %4250 = vmatprep.subr.mxu0 0.0
      %4251 = vmatpush1.msra.mxu0 0.0
      %4252 = vmatprep.subr.mxu0 0.0
      %4253 = vmatpush1.msra.mxu0 0.0
      %4254 = vmatprep.subr.mxu0 0.0
      %4255 = vmatpush1.msra.mxu0 0.0
      %4256 = vmatprep.subr.mxu0 0.0
      %4257 = vmatpush1.msra.mxu0 0.0
      %4258 = vmatprep.subr.mxu0 0.0
      %4259 = vmatpush1.msra.mxu0 0.0
      %4260 = vmatprep.subr.mxu0 0.0
      %4261 = vmatpush1.msra.mxu0 0.0
      %4262 = vmatprep.subr.mxu0 0.0
      %4263 = vmatpush1.msra.mxu0 0.0
      %4264 = vmatprep.subr.mxu0 0.0
      %4265 = vmatpush1.msra.mxu0 0.0
      %4266 = vmatprep.subr.mxu0 0.0
      %4267 = vmatpush1.msra.mxu0 0.0
      %4268 = vmatprep.subr.mxu0 0.0
      %4269 = vmatpush1.msra.mxu0 0.0
      %4270 = vmatprep.subr.mxu0 0.0
      %4271 = vmatpush1.msra.mxu0 0.0
      %4272 = vmatprep.subr.mxu0 0.0
      %4273 = vmatpush1.msra.mxu0 0.0
      %4274 = vmatprep.subr.mxu0 0.0
      %4275 = vmatpush1.msra.mxu0 0.0
      %4276 = vmatprep.subr.mxu0 0.0
      %4277 = vmatpush1.msra.mxu0 0.0
      %4278 = vmatprep.subr.mxu0 0.0
      %4279 = vmatpush1.msra.mxu0 0.0
      %4280 = vmatprep.subr.mxu0 0.0
      %4281 = vmatpush1.msra.mxu0 0.0
      %4282 = vmatprep.subr.mxu0 0.0
      %4283 = vmatpush1.msra.mxu0 0.0
      %4284 = vmatprep.subr.mxu0 0.0
      %4285 = vmatpush1.msra.mxu0 0.0
      %4286 = vmatprep.subr.mxu0 0.0
      %4287 = vmatpush1.msra.mxu0 0.0
      %4288 = vmatprep.subr.mxu0 0.0
      %4289 = vmatpush1.msra.mxu0 0.0
      %4290 = vmatprep.subr.mxu0 0.0
      %4291 = vmatpush1.msra.mxu0 0.0
      %4292 = vmatprep.subr.mxu0 0.0
      %4293 = vmatpush1.msra.mxu0 0.0
      %4294 = vmatprep.mubr.f32.mxu0 0.0
      %4295 = vmatmul.mubr.f32.gmra.mrb[0].mxu0 %v4207
      %v4296 = vpop.f32.mrb[0].mxu0
      %v4297 = vadd.f32 0.0, %v4296
      %v4298 = vpop.f32.mrb[0].mxu0
      %4299 = vmatprep.mubr.f32.mxu0 0.0
      %4300 = vmatmul.mubr.f32.gmra.mrb[0].mxu0 %v4210
      %v4301 = vpop.f32.mrb[0].mxu0
      %v4302 = vadd.f32 0.0, %v4301
      %v4303 = vpop.f32.mrb[0].mxu0
      %4304 = vmatprep.mubr.f32.mxu0 0.0
      %4305 = vmatmul.mubr.f32.gmra.mrb[0].mxu0 %v4213
      %v4306 = vpop.f32.mrb[0].mxu0
      %v4307 = vadd.f32 0.0, %v4306
      %v4308 = vpop.f32.mrb[0].mxu0
      %4309 = vmatprep.mubr.f32.mxu0 0.0
      %4310 = vmatmul.mubr.f32.gmra.mrb[0].mxu0 %v4216
      %v4311 = vpop.f32.mrb[0].mxu0
      %v4312 = vadd.f32 0.0, %v4311
      %v4313 = vpop.f32.mrb[0].mxu0
      %4314 = vmatprep.mubr.f32.mxu0 0.0
      %4315 = vmatmul.mubr.f32.gmra.mrb[0].mxu0 %v4219
      %v4316 = vpop.f32.mrb[0].mxu0
      %v4317 = vadd.f32 0.0, %v4316
      %v4318 = vpop.f32.mrb[0].mxu0
      %4319 = vmatprep.mubr.f32.mxu0 0.0
      %4320 = vmatmul.mubr.f32.gmra.mrb[0].mxu0 %v4222
      %v4321 = vpop.f32.mrb[0].mxu0
      %v4322 = vadd.f32 0.0, %v4321
      %v4323 = vpop.f32.mrb[0].mxu0
      %4324 = vmatprep.mubr.f32.mxu0 0.0
      %4325 = vmatmul.mubr.f32.gmra.mrb[0].mxu0 %v4225
      %v4326 = vpop.f32.mrb[0].mxu0
      %v4327 = vadd.f32 0.0, %v4326
      %v4328 = vpop.f32.mrb[0].mxu0
      %4329 = vmatprep.mubr.f32.mxu0 0.0
      %4330 = vmatmul.mubr.f32.gmra.mrb[0].mxu0 %v4228
      %v4331 = vpop.f32.mrb[0].mxu0
      %v4332 = vadd.f32 0.0, %v4331
      %v4333 = vpop.f32.mrb[0].mxu0
      %4334 = vdwg.mxu0
      %v4335 = vadd.f32 %v4187, %v4297
      %v4336 = vadd.f32 %v4188, %v4302
      %v4337 = vadd.f32 %v4189, %v4307
      %v4338 = vadd.f32 %v4190, %v4312
      %v4339 = vadd.f32 %v4191, %v4317
      %v4340 = vadd.f32 %v4192, %v4322
      %v4341 = vadd.f32 %v4193, %v4327
      %v4342 = vadd.f32 %v4194, %v4332
      %v4343 = vld [vmem:[#allocation2 + $0x9] sm:$0xff]
      %v4344 = vld [vmem:[#allocation2 + $0x11] sm:$0xff]
      %v4345 = vld [vmem:[#allocation2 + $0x19] sm:$0xff]
      %v4346 = vld [vmem:[#allocation2 + $0x21] sm:$0xff]
      %v4347 = vld [vmem:[#allocation2 + $0x29] sm:$0xff]
      %v4348 = vld [vmem:[#allocation2 + $0x31] sm:$0xff]
      %v4349 = vld [vmem:[#allocation2 + $0x39] sm:$0xff]
      %v4350 = vld [vmem:[#allocation2 + $0x41] sm:$0x7f]
      %s4351 = scalar_lea.vmem %s4, 192
      %v4352 = vld [vmem:[%s4351] sm:$0xff]
      %v4353 = vld [vmem:[%s4351 + $0x8] sm:$0xff]
      %v4355 = vsel %vm2499, %v4343, 0
      %v4358 = vsel %vm2499, %v4344, 0
      %v4361 = vsel %vm2499, %v4345, 0
      %v4364 = vsel %vm2499, %v4346, 0
      %v4367 = vsel %vm2499, %v4347, 0
      %v4370 = vsel %vm2499, %v4348, 0
      %v4373 = vsel %vm2499, %v4349, 0
      %v4376 = vsel %vm2499, %v4350, 0
      %4378 = vmatprep.subr.mxu0 0.0
      %4379 = vmatpush1.msra.mxu0 %v4352
      %4380 = vmatprep.subr.mxu0 0.0
      %4381 = vmatpush1.msra.mxu0 %v4353
      %4382 = vmatprep.subr.mxu0 0.0
      %4383 = vmatpush1.msra.mxu0 0.0
      %4384 = vmatprep.subr.mxu0 0.0
      %4385 = vmatpush1.msra.mxu0 0.0
      %4386 = vmatprep.subr.mxu0 0.0
      %4387 = vmatpush1.msra.mxu0 0.0
      %4388 = vmatprep.subr.mxu0 0.0
      %4389 = vmatpush1.msra.mxu0 0.0
      %4390 = vmatprep.subr.mxu0 0.0
      %4391 = vmatpush1.msra.mxu0 0.0
      %4392 = vmatprep.subr.mxu0 0.0
      %4393 = vmatpush1.msra.mxu0 0.0
      %4394 = vmatprep.subr.mxu0 0.0
      %4395 = vmatpush1.msra.mxu0 0.0
      %4396 = vmatprep.subr.mxu0 0.0
      %4397 = vmatpush1.msra.mxu0 0.0
      %4398 = vmatprep.subr.mxu0 0.0
      %4399 = vmatpush1.msra.mxu0 0.0
      %4400 = vmatprep.subr.mxu0 0.0
      %4401 = vmatpush1.msra.mxu0 0.0
      %4402 = vmatprep.subr.mxu0 0.0
      %4403 = vmatpush1.msra.mxu0 0.0
      %4404 = vmatprep.subr.mxu0 0.0
      %4405 = vmatpush1.msra.mxu0 0.0
      %4406 = vmatprep.subr.mxu0 0.0
      %4407 = vmatpush1.msra.mxu0 0.0
      %4408 = vmatprep.subr.mxu0 0.0
      %4409 = vmatpush1.msra.mxu0 0.0
      %4410 = vmatprep.subr.mxu0 0.0
      %4411 = vmatpush1.msra.mxu0 0.0
      %4412 = vmatprep.subr.mxu0 0.0
      %4413 = vmatpush1.msra.mxu0 0.0
      %4414 = vmatprep.subr.mxu0 0.0
      %4415 = vmatpush1.msra.mxu0 0.0
      %4416 = vmatprep.subr.mxu0 0.0
      %4417 = vmatpush1.msra.mxu0 0.0
      %4418 = vmatprep.subr.mxu0 0.0
      %4419 = vmatpush1.msra.mxu0 0.0
      %4420 = vmatprep.subr.mxu0 0.0
      %4421 = vmatpush1.msra.mxu0 0.0
      %4422 = vmatprep.subr.mxu0 0.0
      %4423 = vmatpush1.msra.mxu0 0.0
      %4424 = vmatprep.subr.mxu0 0.0
      %4425 = vmatpush1.msra.mxu0 0.0
      %4426 = vmatprep.subr.mxu0 0.0
      %4427 = vmatpush1.msra.mxu0 0.0
      %4428 = vmatprep.subr.mxu0 0.0
      %4429 = vmatpush1.msra.mxu0 0.0
      %4430 = vmatprep.subr.mxu0 0.0
      %4431 = vmatpush1.msra.mxu0 0.0
      %4432 = vmatprep.subr.mxu0 0.0
      %4433 = vmatpush1.msra.mxu0 0.0
      %4434 = vmatprep.subr.mxu0 0.0
      %4435 = vmatpush1.msra.mxu0 0.0
      %4436 = vmatprep.subr.mxu0 0.0
      %4437 = vmatpush1.msra.mxu0 0.0
      %4438 = vmatprep.subr.mxu0 0.0
      %4439 = vmatpush1.msra.mxu0 0.0
      %4440 = vmatprep.subr.mxu0 0.0
      %4441 = vmatpush1.msra.mxu0 0.0
      %4442 = vmatprep.mubr.f32.mxu0 0.0
      %4443 = vmatmul.mubr.f32.gmra.mrb[0].mxu0 %v4355
      %v4444 = vpop.f32.mrb[0].mxu0
      %v4445 = vadd.f32 0.0, %v4444
      %v4446 = vpop.f32.mrb[0].mxu0
      %4447 = vmatprep.mubr.f32.mxu0 0.0
      %4448 = vmatmul.mubr.f32.gmra.mrb[0].mxu0 %v4358
      %v4449 = vpop.f32.mrb[0].mxu0
      %v4450 = vadd.f32 0.0, %v4449
      %v4451 = vpop.f32.mrb[0].mxu0
      %4452 = vmatprep.mubr.f32.mxu0 0.0
      %4453 = vmatmul.mubr.f32.gmra.mrb[0].mxu0 %v4361
      %v4454 = vpop.f32.mrb[0].mxu0
      %v4455 = vadd.f32 0.0, %v4454
      %v4456 = vpop.f32.mrb[0].mxu0
      %4457 = vmatprep.mubr.f32.mxu0 0.0
      %4458 = vmatmul.mubr.f32.gmra.mrb[0].mxu0 %v4364
      %v4459 = vpop.f32.mrb[0].mxu0
      %v4460 = vadd.f32 0.0, %v4459
      %v4461 = vpop.f32.mrb[0].mxu0
      %4462 = vmatprep.mubr.f32.mxu0 0.0
      %4463 = vmatmul.mubr.f32.gmra.mrb[0].mxu0 %v4367
      %v4464 = vpop.f32.mrb[0].mxu0
      %v4465 = vadd.f32 0.0, %v4464
      %v4466 = vpop.f32.mrb[0].mxu0
      %4467 = vmatprep.mubr.f32.mxu0 0.0
      %4468 = vmatmul.mubr.f32.gmra.mrb[0].mxu0 %v4370
      %v4469 = vpop.f32.mrb[0].mxu0
      %v4470 = vadd.f32 0.0, %v4469
      %v4471 = vpop.f32.mrb[0].mxu0
      %4472 = vmatprep.mubr.f32.mxu0 0.0
      %4473 = vmatmul.mubr.f32.gmra.mrb[0].mxu0 %v4373
      %v4474 = vpop.f32.mrb[0].mxu0
      %v4475 = vadd.f32 0.0, %v4474
      %v4476 = vpop.f32.mrb[0].mxu0
      %4477 = vmatprep.mubr.f32.mxu0 0.0
      %4478 = vmatmul.mubr.f32.gmra.mrb[0].mxu0 %v4376
      %v4479 = vpop.f32.mrb[0].mxu0
      %v4480 = vadd.f32 0.0, %v4479
      %v4481 = vpop.f32.mrb[0].mxu0
      %4482 = vdwg.mxu0
      %v4483 = vadd.f32 %v4335, %v4445
      %v4484 = vadd.f32 %v4336, %v4450
      %v4485 = vadd.f32 %v4337, %v4455
      %v4486 = vadd.f32 %v4338, %v4460
      %v4487 = vadd.f32 %v4339, %v4465
      %v4488 = vadd.f32 %v4340, %v4470
      %v4489 = vadd.f32 %v4341, %v4475
      %v4490 = vadd.f32 %v4342, %v4480
      %v4491 = vld [vmem:[#allocation2 + $0x5a] sm:$0xff]
      %v4492 = vld [vmem:[#allocation2 + $0x62] sm:$0xff]
      %v4493 = vld [vmem:[#allocation2 + $0x6a] sm:$0xff]
      %v4494 = vld [vmem:[#allocation2 + $0x72] sm:$0xff]
      %v4495 = vld [vmem:[#allocation2 + $0x7a] sm:$0xff]
      %v4496 = vld [vmem:[#allocation2 + $0x82] sm:$0xff]
      %v4497 = vld [vmem:[#allocation2 + $0x8a] sm:$0xff]
      %v4498 = vld [vmem:[#allocation2 + $0x92] sm:$0x7f]
      %s4499 = scalar_lea.vmem %s4, 208
      %v4500 = vld [vmem:[%s4499] sm:$0xff]
      %v4501 = vld [vmem:[%s4499 + $0x8] sm:$0xff]
      %v4503 = vsel %vm2499, %v4491, 0
      %v4506 = vsel %vm2499, %v4492, 0
      %v4509 = vsel %vm2499, %v4493, 0
      %v4512 = vsel %vm2499, %v4494, 0
      %v4515 = vsel %vm2499, %v4495, 0
      %v4518 = vsel %vm2499, %v4496, 0
      %v4521 = vsel %vm2499, %v4497, 0
      %v4524 = vsel %vm2499, %v4498, 0
      %4526 = vmatprep.subr.mxu0 0.0
      %4527 = vmatpush1.msra.mxu0 %v4500
      %4528 = vmatprep.subr.mxu0 0.0
      %4529 = vmatpush1.msra.mxu0 %v4501
      %4530 = vmatprep.subr.mxu0 0.0
      %4531 = vmatpush1.msra.mxu0 0.0
      %4532 = vmatprep.subr.mxu0 0.0
      %4533 = vmatpush1.msra.mxu0 0.0
      %4534 = vmatprep.subr.mxu0 0.0
      %4535 = vmatpush1.msra.mxu0 0.0
      %4536 = vmatprep.subr.mxu0 0.0
      %4537 = vmatpush1.msra.mxu0 0.0
      %4538 = vmatprep.subr.mxu0 0.0
      %4539 = vmatpush1.msra.mxu0 0.0
      %4540 = vmatprep.subr.mxu0 0.0
      %4541 = vmatpush1.msra.mxu0 0.0
      %4542 = vmatprep.subr.mxu0 0.0
      %4543 = vmatpush1.msra.mxu0 0.0
      %4544 = vmatprep.subr.mxu0 0.0
      %4545 = vmatpush1.msra.mxu0 0.0
      %4546 = vmatprep.subr.mxu0 0.0
      %4547 = vmatpush1.msra.mxu0 0.0
      %4548 = vmatprep.subr.mxu0 0.0
      %4549 = vmatpush1.msra.mxu0 0.0
      %4550 = vmatprep.subr.mxu0 0.0
      %4551 = vmatpush1.msra.mxu0 0.0
      %4552 = vmatprep.subr.mxu0 0.0
      %4553 = vmatpush1.msra.mxu0 0.0
      %4554 = vmatprep.subr.mxu0 0.0
      %4555 = vmatpush1.msra.mxu0 0.0
      %4556 = vmatprep.subr.mxu0 0.0
      %4557 = vmatpush1.msra.mxu0 0.0
      %4558 = vmatprep.subr.mxu0 0.0
      %4559 = vmatpush1.msra.mxu0 0.0
      %4560 = vmatprep.subr.mxu0 0.0
      %4561 = vmatpush1.msra.mxu0 0.0
      %4562 = vmatprep.subr.mxu0 0.0
      %4563 = vmatpush1.msra.mxu0 0.0
      %4564 = vmatprep.subr.mxu0 0.0
      %4565 = vmatpush1.msra.mxu0 0.0
      %4566 = vmatprep.subr.mxu0 0.0
      %4567 = vmatpush1.msra.mxu0 0.0
      %4568 = vmatprep.subr.mxu0 0.0
      %4569 = vmatpush1.msra.mxu0 0.0
      %4570 = vmatprep.subr.mxu0 0.0
      %4571 = vmatpush1.msra.mxu0 0.0
      %4572 = vmatprep.subr.mxu0 0.0
      %4573 = vmatpush1.msra.mxu0 0.0
      %4574 = vmatprep.subr.mxu0 0.0
      %4575 = vmatpush1.msra.mxu0 0.0
      %4576 = vmatprep.subr.mxu0 0.0
      %4577 = vmatpush1.msra.mxu0 0.0
      %4578 = vmatprep.subr.mxu0 0.0
      %4579 = vmatpush1.msra.mxu0 0.0
      %4580 = vmatprep.subr.mxu0 0.0
      %4581 = vmatpush1.msra.mxu0 0.0
      %4582 = vmatprep.subr.mxu0 0.0
      %4583 = vmatpush1.msra.mxu0 0.0
      %4584 = vmatprep.subr.mxu0 0.0
      %4585 = vmatpush1.msra.mxu0 0.0
      %4586 = vmatprep.subr.mxu0 0.0
      %4587 = vmatpush1.msra.mxu0 0.0
      %4588 = vmatprep.subr.mxu0 0.0
      %4589 = vmatpush1.msra.mxu0 0.0
      %4590 = vmatprep.mubr.f32.mxu0 0.0
      %4591 = vmatmul.mubr.f32.gmra.mrb[0].mxu0 %v4503
      %v4592 = vpop.f32.mrb[0].mxu0
      %v4593 = vadd.f32 0.0, %v4592
      %v4594 = vpop.f32.mrb[0].mxu0
      %4595 = vmatprep.mubr.f32.mxu0 0.0
      %4596 = vmatmul.mubr.f32.gmra.mrb[0].mxu0 %v4506
      %v4597 = vpop.f32.mrb[0].mxu0
      %v4598 = vadd.f32 0.0, %v4597
      %v4599 = vpop.f32.mrb[0].mxu0
      %4600 = vmatprep.mubr.f32.mxu0 0.0
      %4601 = vmatmul.mubr.f32.gmra.mrb[0].mxu0 %v4509
      %v4602 = vpop.f32.mrb[0].mxu0
      %v4603 = vadd.f32 0.0, %v4602
      %v4604 = vpop.f32.mrb[0].mxu0
      %4605 = vmatprep.mubr.f32.mxu0 0.0
      %4606 = vmatmul.mubr.f32.gmra.mrb[0].mxu0 %v4512
      %v4607 = vpop.f32.mrb[0].mxu0
      %v4608 = vadd.f32 0.0, %v4607
      %v4609 = vpop.f32.mrb[0].mxu0
      %4610 = vmatprep.mubr.f32.mxu0 0.0
      %4611 = vmatmul.mubr.f32.gmra.mrb[0].mxu0 %v4515
      %v4612 = vpop.f32.mrb[0].mxu0
      %v4613 = vadd.f32 0.0, %v4612
      %v4614 = vpop.f32.mrb[0].mxu0
      %4615 = vmatprep.mubr.f32.mxu0 0.0
      %4616 = vmatmul.mubr.f32.gmra.mrb[0].mxu0 %v4518
      %v4617 = vpop.f32.mrb[0].mxu0
      %v4618 = vadd.f32 0.0, %v4617
      %v4619 = vpop.f32.mrb[0].mxu0
      %4620 = vmatprep.mubr.f32.mxu0 0.0
      %4621 = vmatmul.mubr.f32.gmra.mrb[0].mxu0 %v4521
      %v4622 = vpop.f32.mrb[0].mxu0
      %v4623 = vadd.f32 0.0, %v4622
      %v4624 = vpop.f32.mrb[0].mxu0
      %4625 = vmatprep.mubr.f32.mxu0 0.0
      %4626 = vmatmul.mubr.f32.gmra.mrb[0].mxu0 %v4524
      %v4627 = vpop.f32.mrb[0].mxu0
      %v4628 = vadd.f32 0.0, %v4627
      %v4629 = vpop.f32.mrb[0].mxu0
      %4630 = vdwg.mxu0
      %v4631 = vadd.f32 %v4483, %v4593
      %v4632 = vadd.f32 %v4484, %v4598
      %v4633 = vadd.f32 %v4485, %v4603
      %v4634 = vadd.f32 %v4486, %v4608
      %v4635 = vadd.f32 %v4487, %v4613
      %v4636 = vadd.f32 %v4488, %v4618
      %v4637 = vadd.f32 %v4489, %v4623
      %v4638 = vadd.f32 %v4490, %v4628
      %v4639 = vld [vmem:[#allocation2 + $0xa] sm:$0xff]
      %v4640 = vld [vmem:[#allocation2 + $0x12] sm:$0xff]
      %v4641 = vld [vmem:[#allocation2 + $0x1a] sm:$0xff]
      %v4642 = vld [vmem:[#allocation2 + $0x22] sm:$0xff]
      %v4643 = vld [vmem:[#allocation2 + $0x2a] sm:$0xff]
      %v4644 = vld [vmem:[#allocation2 + $0x32] sm:$0xff]
      %v4645 = vld [vmem:[#allocation2 + $0x3a] sm:$0xff]
      %v4646 = vld [vmem:[#allocation2 + $0x42] sm:$0x7f]
      %s4647 = scalar_lea.vmem %s4, 224
      %v4648 = vld [vmem:[%s4647] sm:$0xff]
      %v4649 = vld [vmem:[%s4647 + $0x8] sm:$0xff]
      %v4651 = vsel %vm2499, %v4639, 0
      %v4654 = vsel %vm2499, %v4640, 0
      %v4657 = vsel %vm2499, %v4641, 0
      %v4660 = vsel %vm2499, %v4642, 0
      %v4663 = vsel %vm2499, %v4643, 0
      %v4666 = vsel %vm2499, %v4644, 0
      %v4669 = vsel %vm2499, %v4645, 0
      %v4672 = vsel %vm2499, %v4646, 0
      %4674 = vmatprep.subr.mxu0 0.0
      %4675 = vmatpush1.msra.mxu0 %v4648
      %4676 = vmatprep.subr.mxu0 0.0
      %4677 = vmatpush1.msra.mxu0 %v4649
      %4678 = vmatprep.subr.mxu0 0.0
      %4679 = vmatpush1.msra.mxu0 0.0
      %4680 = vmatprep.subr.mxu0 0.0
      %4681 = vmatpush1.msra.mxu0 0.0
      %4682 = vmatprep.subr.mxu0 0.0
      %4683 = vmatpush1.msra.mxu0 0.0
      %4684 = vmatprep.subr.mxu0 0.0
      %4685 = vmatpush1.msra.mxu0 0.0
      %4686 = vmatprep.subr.mxu0 0.0
      %4687 = vmatpush1.msra.mxu0 0.0
      %4688 = vmatprep.subr.mxu0 0.0
      %4689 = vmatpush1.msra.mxu0 0.0
      %4690 = vmatprep.subr.mxu0 0.0
      %4691 = vmatpush1.msra.mxu0 0.0
      %4692 = vmatprep.subr.mxu0 0.0
      %4693 = vmatpush1.msra.mxu0 0.0
      %4694 = vmatprep.subr.mxu0 0.0
      %4695 = vmatpush1.msra.mxu0 0.0
      %4696 = vmatprep.subr.mxu0 0.0
      %4697 = vmatpush1.msra.mxu0 0.0
      %4698 = vmatprep.subr.mxu0 0.0
      %4699 = vmatpush1.msra.mxu0 0.0
      %4700 = vmatprep.subr.mxu0 0.0
      %4701 = vmatpush1.msra.mxu0 0.0
      %4702 = vmatprep.subr.mxu0 0.0
      %4703 = vmatpush1.msra.mxu0 0.0
      %4704 = vmatprep.subr.mxu0 0.0
      %4705 = vmatpush1.msra.mxu0 0.0
      %4706 = vmatprep.subr.mxu0 0.0
      %4707 = vmatpush1.msra.mxu0 0.0
      %4708 = vmatprep.subr.mxu0 0.0
      %4709 = vmatpush1.msra.mxu0 0.0
      %4710 = vmatprep.subr.mxu0 0.0
      %4711 = vmatpush1.msra.mxu0 0.0
      %4712 = vmatprep.subr.mxu0 0.0
      %4713 = vmatpush1.msra.mxu0 0.0
      %4714 = vmatprep.subr.mxu0 0.0
      %4715 = vmatpush1.msra.mxu0 0.0
      %4716 = vmatprep.subr.mxu0 0.0
      %4717 = vmatpush1.msra.mxu0 0.0
      %4718 = vmatprep.subr.mxu0 0.0
      %4719 = vmatpush1.msra.mxu0 0.0
      %4720 = vmatprep.subr.mxu0 0.0
      %4721 = vmatpush1.msra.mxu0 0.0
      %4722 = vmatprep.subr.mxu0 0.0
      %4723 = vmatpush1.msra.mxu0 0.0
      %4724 = vmatprep.subr.mxu0 0.0
      %4725 = vmatpush1.msra.mxu0 0.0
      %4726 = vmatprep.subr.mxu0 0.0
      %4727 = vmatpush1.msra.mxu0 0.0
      %4728 = vmatprep.subr.mxu0 0.0
      %4729 = vmatpush1.msra.mxu0 0.0
      %4730 = vmatprep.subr.mxu0 0.0
      %4731 = vmatpush1.msra.mxu0 0.0
      %4732 = vmatprep.subr.mxu0 0.0
      %4733 = vmatpush1.msra.mxu0 0.0
      %4734 = vmatprep.subr.mxu0 0.0
      %4735 = vmatpush1.msra.mxu0 0.0
      %4736 = vmatprep.subr.mxu0 0.0
      %4737 = vmatpush1.msra.mxu0 0.0
      %4738 = vmatprep.mubr.f32.mxu0 0.0
      %4739 = vmatmul.mubr.f32.gmra.mrb[0].mxu0 %v4651
      %v4740 = vpop.f32.mrb[0].mxu0
      %v4741 = vadd.f32 0.0, %v4740
      %v4742 = vpop.f32.mrb[0].mxu0
      %4743 = vmatprep.mubr.f32.mxu0 0.0
      %4744 = vmatmul.mubr.f32.gmra.mrb[0].mxu0 %v4654
      %v4745 = vpop.f32.mrb[0].mxu0
      %v4746 = vadd.f32 0.0, %v4745
      %v4747 = vpop.f32.mrb[0].mxu0
      %4748 = vmatprep.mubr.f32.mxu0 0.0
      %4749 = vmatmul.mubr.f32.gmra.mrb[0].mxu0 %v4657
      %v4750 = vpop.f32.mrb[0].mxu0
      %v4751 = vadd.f32 0.0, %v4750
      %v4752 = vpop.f32.mrb[0].mxu0
      %4753 = vmatprep.mubr.f32.mxu0 0.0
      %4754 = vmatmul.mubr.f32.gmra.mrb[0].mxu0 %v4660
      %v4755 = vpop.f32.mrb[0].mxu0
      %v4756 = vadd.f32 0.0, %v4755
      %v4757 = vpop.f32.mrb[0].mxu0
      %4758 = vmatprep.mubr.f32.mxu0 0.0
      %4759 = vmatmul.mubr.f32.gmra.mrb[0].mxu0 %v4663
      %v4760 = vpop.f32.mrb[0].mxu0
      %v4761 = vadd.f32 0.0, %v4760
      %v4762 = vpop.f32.mrb[0].mxu0
      %4763 = vmatprep.mubr.f32.mxu0 0.0
      %4764 = vmatmul.mubr.f32.gmra.mrb[0].mxu0 %v4666
      %v4765 = vpop.f32.mrb[0].mxu0
      %v4766 = vadd.f32 0.0, %v4765
      %v4767 = vpop.f32.mrb[0].mxu0
      %4768 = vmatprep.mubr.f32.mxu0 0.0
      %4769 = vmatmul.mubr.f32.gmra.mrb[0].mxu0 %v4669
      %v4770 = vpop.f32.mrb[0].mxu0
      %v4771 = vadd.f32 0.0, %v4770
      %v4772 = vpop.f32.mrb[0].mxu0
      %4773 = vmatprep.mubr.f32.mxu0 0.0
      %4774 = vmatmul.mubr.f32.gmra.mrb[0].mxu0 %v4672
      %v4775 = vpop.f32.mrb[0].mxu0
      %v4776 = vadd.f32 0.0, %v4775
      %v4777 = vpop.f32.mrb[0].mxu0
      %4778 = vdwg.mxu0
      %v4779 = vadd.f32 %v4631, %v4741
      %v4780 = vadd.f32 %v4632, %v4746
      %v4781 = vadd.f32 %v4633, %v4751
      %v4782 = vadd.f32 %v4634, %v4756
      %v4783 = vadd.f32 %v4635, %v4761
      %v4784 = vadd.f32 %v4636, %v4766
      %v4785 = vadd.f32 %v4637, %v4771
      %v4786 = vadd.f32 %v4638, %v4776
      %v4787 = vld [vmem:[#allocation2 + $0x5b] sm:$0xff]
      %v4788 = vld [vmem:[#allocation2 + $0x63] sm:$0xff]
      %v4789 = vld [vmem:[#allocation2 + $0x6b] sm:$0xff]
      %v4790 = vld [vmem:[#allocation2 + $0x73] sm:$0xff]
      %v4791 = vld [vmem:[#allocation2 + $0x7b] sm:$0xff]
      %v4792 = vld [vmem:[#allocation2 + $0x83] sm:$0xff]
      %v4793 = vld [vmem:[#allocation2 + $0x8b] sm:$0xff]
      %v4794 = vld [vmem:[#allocation2 + $0x93] sm:$0x7f]
      %s4795 = scalar_lea.vmem %s4, 240
      %v4796 = vld [vmem:[%s4795] sm:$0xff]
      %v4797 = vld [vmem:[%s4795 + $0x8] sm:$0xff]
      %v4799 = vsel %vm2499, %v4787, 0
      %v4802 = vsel %vm2499, %v4788, 0
      %v4805 = vsel %vm2499, %v4789, 0
      %v4808 = vsel %vm2499, %v4790, 0
      %v4811 = vsel %vm2499, %v4791, 0
      %v4814 = vsel %vm2499, %v4792, 0
      %v4817 = vsel %vm2499, %v4793, 0
      %v4820 = vsel %vm2499, %v4794, 0
      %4822 = vmatprep.subr.mxu0 0.0
      %4823 = vmatpush1.msra.mxu0 %v4796
      %4824 = vmatprep.subr.mxu0 0.0
      %4825 = vmatpush1.msra.mxu0 %v4797
      %4826 = vmatprep.subr.mxu0 0.0
      %4827 = vmatpush1.msra.mxu0 0.0
      %4828 = vmatprep.subr.mxu0 0.0
      %4829 = vmatpush1.msra.mxu0 0.0
      %4830 = vmatprep.subr.mxu0 0.0
      %4831 = vmatpush1.msra.mxu0 0.0
      %4832 = vmatprep.subr.mxu0 0.0
      %4833 = vmatpush1.msra.mxu0 0.0
      %4834 = vmatprep.subr.mxu0 0.0
      %4835 = vmatpush1.msra.mxu0 0.0
      %4836 = vmatprep.subr.mxu0 0.0
      %4837 = vmatpush1.msra.mxu0 0.0
      %4838 = vmatprep.subr.mxu0 0.0
      %4839 = vmatpush1.msra.mxu0 0.0
      %4840 = vmatprep.subr.mxu0 0.0
      %4841 = vmatpush1.msra.mxu0 0.0
      %4842 = vmatprep.subr.mxu0 0.0
      %4843 = vmatpush1.msra.mxu0 0.0
      %4844 = vmatprep.subr.mxu0 0.0
      %4845 = vmatpush1.msra.mxu0 0.0
      %4846 = vmatprep.subr.mxu0 0.0
      %4847 = vmatpush1.msra.mxu0 0.0
      %4848 = vmatprep.subr.mxu0 0.0
      %4849 = vmatpush1.msra.mxu0 0.0
      %4850 = vmatprep.subr.mxu0 0.0
      %4851 = vmatpush1.msra.mxu0 0.0
      %4852 = vmatprep.subr.mxu0 0.0
      %4853 = vmatpush1.msra.mxu0 0.0
      %4854 = vmatprep.subr.mxu0 0.0
      %4855 = vmatpush1.msra.mxu0 0.0
      %4856 = vmatprep.subr.mxu0 0.0
      %4857 = vmatpush1.msra.mxu0 0.0
      %4858 = vmatprep.subr.mxu0 0.0
      %4859 = vmatpush1.msra.mxu0 0.0
      %4860 = vmatprep.subr.mxu0 0.0
      %4861 = vmatpush1.msra.mxu0 0.0
      %4862 = vmatprep.subr.mxu0 0.0
      %4863 = vmatpush1.msra.mxu0 0.0
      %4864 = vmatprep.subr.mxu0 0.0
      %4865 = vmatpush1.msra.mxu0 0.0
      %4866 = vmatprep.subr.mxu0 0.0
      %4867 = vmatpush1.msra.mxu0 0.0
      %4868 = vmatprep.subr.mxu0 0.0
      %4869 = vmatpush1.msra.mxu0 0.0
      %4870 = vmatprep.subr.mxu0 0.0
      %4871 = vmatpush1.msra.mxu0 0.0
      %4872 = vmatprep.subr.mxu0 0.0
      %4873 = vmatpush1.msra.mxu0 0.0
      %4874 = vmatprep.subr.mxu0 0.0
      %4875 = vmatpush1.msra.mxu0 0.0
      %4876 = vmatprep.subr.mxu0 0.0
      %4877 = vmatpush1.msra.mxu0 0.0
      %4878 = vmatprep.subr.mxu0 0.0
      %4879 = vmatpush1.msra.mxu0 0.0
      %4880 = vmatprep.subr.mxu0 0.0
      %4881 = vmatpush1.msra.mxu0 0.0
      %4882 = vmatprep.subr.mxu0 0.0
      %4883 = vmatpush1.msra.mxu0 0.0
      %4884 = vmatprep.subr.mxu0 0.0
      %4885 = vmatpush1.msra.mxu0 0.0
      %4886 = vmatprep.mubr.f32.mxu0 0.0
      %4887 = vmatmul.mubr.f32.gmra.mrb[0].mxu0 %v4799
      %v4888 = vpop.f32.mrb[0].mxu0
      %v4889 = vadd.f32 0.0, %v4888
      %v4890 = vpop.f32.mrb[0].mxu0
      %4891 = vmatprep.mubr.f32.mxu0 0.0
      %4892 = vmatmul.mubr.f32.gmra.mrb[0].mxu0 %v4802
      %v4893 = vpop.f32.mrb[0].mxu0
      %v4894 = vadd.f32 0.0, %v4893
      %v4895 = vpop.f32.mrb[0].mxu0
      %4896 = vmatprep.mubr.f32.mxu0 0.0
      %4897 = vmatmul.mubr.f32.gmra.mrb[0].mxu0 %v4805
      %v4898 = vpop.f32.mrb[0].mxu0
      %v4899 = vadd.f32 0.0, %v4898
      %v4900 = vpop.f32.mrb[0].mxu0
      %4901 = vmatprep.mubr.f32.mxu0 0.0
      %4902 = vmatmul.mubr.f32.gmra.mrb[0].mxu0 %v4808
      %v4903 = vpop.f32.mrb[0].mxu0
      %v4904 = vadd.f32 0.0, %v4903
      %v4905 = vpop.f32.mrb[0].mxu0
      %4906 = vmatprep.mubr.f32.mxu0 0.0
      %4907 = vmatmul.mubr.f32.gmra.mrb[0].mxu0 %v4811
      %v4908 = vpop.f32.mrb[0].mxu0
      %v4909 = vadd.f32 0.0, %v4908
      %v4910 = vpop.f32.mrb[0].mxu0
      %4911 = vmatprep.mubr.f32.mxu0 0.0
      %4912 = vmatmul.mubr.f32.gmra.mrb[0].mxu0 %v4814
      %v4913 = vpop.f32.mrb[0].mxu0
      %v4914 = vadd.f32 0.0, %v4913
      %v4915 = vpop.f32.mrb[0].mxu0
      %4916 = vmatprep.mubr.f32.mxu0 0.0
      %4917 = vmatmul.mubr.f32.gmra.mrb[0].mxu0 %v4817
      %v4918 = vpop.f32.mrb[0].mxu0
      %v4919 = vadd.f32 0.0, %v4918
      %v4920 = vpop.f32.mrb[0].mxu0
      %4921 = vmatprep.mubr.f32.mxu0 0.0
      %4922 = vmatmul.mubr.f32.gmra.mrb[0].mxu0 %v4820
      %v4923 = vpop.f32.mrb[0].mxu0
      %v4924 = vadd.f32 0.0, %v4923
      %v4925 = vpop.f32.mrb[0].mxu0
      %4926 = vdwg.mxu0
      %v4927 = vadd.f32 %v4779, %v4889
      %v4928 = vadd.f32 %v4780, %v4894
      %v4929 = vadd.f32 %v4781, %v4899
      %v4930 = vadd.f32 %v4782, %v4904
      %v4931 = vadd.f32 %v4783, %v4909
      %v4932 = vadd.f32 %v4784, %v4914
      %v4933 = vadd.f32 %v4785, %v4919
      %v4934 = vadd.f32 %v4786, %v4924
      %v4935 = vld [vmem:[#allocation2 + $0xb] sm:$0xff]
      %v4936 = vld [vmem:[#allocation2 + $0x13] sm:$0xff]
      %v4937 = vld [vmem:[#allocation2 + $0x1b] sm:$0xff]
      %v4938 = vld [vmem:[#allocation2 + $0x23] sm:$0xff]
      %v4939 = vld [vmem:[#allocation2 + $0x2b] sm:$0xff]
      %v4940 = vld [vmem:[#allocation2 + $0x33] sm:$0xff]
      %v4941 = vld [vmem:[#allocation2 + $0x3b] sm:$0xff]
      %v4942 = vld [vmem:[#allocation2 + $0x43] sm:$0x7f]
      %s4943 = scalar_lea.vmem %s4, 256
      %v4944 = vld [vmem:[%s4943] sm:$0xff]
      %v4945 = vld [vmem:[%s4943 + $0x8] sm:$0xff]
      %v4947 = vsel %vm2499, %v4935, 0
      %v4950 = vsel %vm2499, %v4936, 0
      %v4953 = vsel %vm2499, %v4937, 0
      %v4956 = vsel %vm2499, %v4938, 0
      %v4959 = vsel %vm2499, %v4939, 0
      %v4962 = vsel %vm2499, %v4940, 0
      %v4965 = vsel %vm2499, %v4941, 0
      %v4968 = vsel %vm2499, %v4942, 0
      %4970 = vmatprep.subr.mxu0 0.0
      %4971 = vmatpush1.msra.mxu0 %v4944
      %4972 = vmatprep.subr.mxu0 0.0
      %4973 = vmatpush1.msra.mxu0 %v4945
      %4974 = vmatprep.subr.mxu0 0.0
      %4975 = vmatpush1.msra.mxu0 0.0
      %4976 = vmatprep.subr.mxu0 0.0
      %4977 = vmatpush1.msra.mxu0 0.0
      %4978 = vmatprep.subr.mxu0 0.0
      %4979 = vmatpush1.msra.mxu0 0.0
      %4980 = vmatprep.subr.mxu0 0.0
      %4981 = vmatpush1.msra.mxu0 0.0
      %4982 = vmatprep.subr.mxu0 0.0
      %4983 = vmatpush1.msra.mxu0 0.0
      %4984 = vmatprep.subr.mxu0 0.0
      %4985 = vmatpush1.msra.mxu0 0.0
      %4986 = vmatprep.subr.mxu0 0.0
      %4987 = vmatpush1.msra.mxu0 0.0
      %4988 = vmatprep.subr.mxu0 0.0
      %4989 = vmatpush1.msra.mxu0 0.0
      %4990 = vmatprep.subr.mxu0 0.0
      %4991 = vmatpush1.msra.mxu0 0.0
      %4992 = vmatprep.subr.mxu0 0.0
      %4993 = vmatpush1.msra.mxu0 0.0
      %4994 = vmatprep.subr.mxu0 0.0
      %4995 = vmatpush1.msra.mxu0 0.0
      %4996 = vmatprep.subr.mxu0 0.0
      %4997 = vmatpush1.msra.mxu0 0.0
      %4998 = vmatprep.subr.mxu0 0.0
      %4999 = vmatpush1.msra.mxu0 0.0
      %5000 = vmatprep.subr.mxu0 0.0
      %5001 = vmatpush1.msra.mxu0 0.0
      %5002 = vmatprep.subr.mxu0 0.0
      %5003 = vmatpush1.msra.mxu0 0.0
      %5004 = vmatprep.subr.mxu0 0.0
      %5005 = vmatpush1.msra.mxu0 0.0
      %5006 = vmatprep.subr.mxu0 0.0
      %5007 = vmatpush1.msra.mxu0 0.0
      %5008 = vmatprep.subr.mxu0 0.0
      %5009 = vmatpush1.msra.mxu0 0.0
      %5010 = vmatprep.subr.mxu0 0.0
      %5011 = vmatpush1.msra.mxu0 0.0
      %5012 = vmatprep.subr.mxu0 0.0
      %5013 = vmatpush1.msra.mxu0 0.0
      %5014 = vmatprep.subr.mxu0 0.0
      %5015 = vmatpush1.msra.mxu0 0.0
      %5016 = vmatprep.subr.mxu0 0.0
      %5017 = vmatpush1.msra.mxu0 0.0
      %5018 = vmatprep.subr.mxu0 0.0
      %5019 = vmatpush1.msra.mxu0 0.0
      %5020 = vmatprep.subr.mxu0 0.0
      %5021 = vmatpush1.msra.mxu0 0.0
      %5022 = vmatprep.subr.mxu0 0.0
      %5023 = vmatpush1.msra.mxu0 0.0
      %5024 = vmatprep.subr.mxu0 0.0
      %5025 = vmatpush1.msra.mxu0 0.0
      %5026 = vmatprep.subr.mxu0 0.0
      %5027 = vmatpush1.msra.mxu0 0.0
      %5028 = vmatprep.subr.mxu0 0.0
      %5029 = vmatpush1.msra.mxu0 0.0
      %5030 = vmatprep.subr.mxu0 0.0
      %5031 = vmatpush1.msra.mxu0 0.0
      %5032 = vmatprep.subr.mxu0 0.0
      %5033 = vmatpush1.msra.mxu0 0.0
      %5034 = vmatprep.mubr.f32.mxu0 0.0
      %5035 = vmatmul.mubr.f32.gmra.mrb[0].mxu0 %v4947
      %v5036 = vpop.f32.mrb[0].mxu0
      %v5037 = vadd.f32 0.0, %v5036
      %v5038 = vpop.f32.mrb[0].mxu0
      %5039 = vmatprep.mubr.f32.mxu0 0.0
      %5040 = vmatmul.mubr.f32.gmra.mrb[0].mxu0 %v4950
      %v5041 = vpop.f32.mrb[0].mxu0
      %v5042 = vadd.f32 0.0, %v5041
      %v5043 = vpop.f32.mrb[0].mxu0
      %5044 = vmatprep.mubr.f32.mxu0 0.0
      %5045 = vmatmul.mubr.f32.gmra.mrb[0].mxu0 %v4953
      %v5046 = vpop.f32.mrb[0].mxu0
      %v5047 = vadd.f32 0.0, %v5046
      %v5048 = vpop.f32.mrb[0].mxu0
      %5049 = vmatprep.mubr.f32.mxu0 0.0
      %5050 = vmatmul.mubr.f32.gmra.mrb[0].mxu0 %v4956
      %v5051 = vpop.f32.mrb[0].mxu0
      %v5052 = vadd.f32 0.0, %v5051
      %v5053 = vpop.f32.mrb[0].mxu0
      %5054 = vmatprep.mubr.f32.mxu0 0.0
      %5055 = vmatmul.mubr.f32.gmra.mrb[0].mxu0 %v4959
      %v5056 = vpop.f32.mrb[0].mxu0
      %v5057 = vadd.f32 0.0, %v5056
      %v5058 = vpop.f32.mrb[0].mxu0
      %5059 = vmatprep.mubr.f32.mxu0 0.0
      %5060 = vmatmul.mubr.f32.gmra.mrb[0].mxu0 %v4962
      %v5061 = vpop.f32.mrb[0].mxu0
      %v5062 = vadd.f32 0.0, %v5061
      %v5063 = vpop.f32.mrb[0].mxu0
      %5064 = vmatprep.mubr.f32.mxu0 0.0
      %5065 = vmatmul.mubr.f32.gmra.mrb[0].mxu0 %v4965
      %v5066 = vpop.f32.mrb[0].mxu0
      %v5067 = vadd.f32 0.0, %v5066
      %v5068 = vpop.f32.mrb[0].mxu0
      %5069 = vmatprep.mubr.f32.mxu0 0.0
      %5070 = vmatmul.mubr.f32.gmra.mrb[0].mxu0 %v4968
      %v5071 = vpop.f32.mrb[0].mxu0
      %v5072 = vadd.f32 0.0, %v5071
      %v5073 = vpop.f32.mrb[0].mxu0
      %5074 = vdwg.mxu0
      %v5075 = vadd.f32 %v4927, %v5037
      %v5076 = vadd.f32 %v4928, %v5042
      %v5077 = vadd.f32 %v4929, %v5047
      %v5078 = vadd.f32 %v4930, %v5052
      %v5079 = vadd.f32 %v4931, %v5057
      %v5080 = vadd.f32 %v4932, %v5062
      %v5081 = vadd.f32 %v4933, %v5067
      %v5082 = vadd.f32 %v4934, %v5072
      %v5083 = vld [vmem:[#allocation2 + $0x5c] sm:$0xff]
      %v5084 = vld [vmem:[#allocation2 + $0x64] sm:$0xff]
      %v5085 = vld [vmem:[#allocation2 + $0x6c] sm:$0xff]
      %v5086 = vld [vmem:[#allocation2 + $0x74] sm:$0xff]
      %v5087 = vld [vmem:[#allocation2 + $0x7c] sm:$0xff]
      %v5088 = vld [vmem:[#allocation2 + $0x84] sm:$0xff]
      %v5089 = vld [vmem:[#allocation2 + $0x8c] sm:$0xff]
      %v5090 = vld [vmem:[#allocation2 + $0x94] sm:$0x7f]
      %s5091 = scalar_lea.vmem %s4, 272
      %v5092 = vld [vmem:[%s5091] sm:$0xff]
      %v5093 = vld [vmem:[%s5091 + $0x8] sm:$0xff]
      %v5095 = vsel %vm2499, %v5083, 0
      %v5098 = vsel %vm2499, %v5084, 0
      %v5101 = vsel %vm2499, %v5085, 0
      %v5104 = vsel %vm2499, %v5086, 0
      %v5107 = vsel %vm2499, %v5087, 0
      %v5110 = vsel %vm2499, %v5088, 0
      %v5113 = vsel %vm2499, %v5089, 0
      %v5116 = vsel %vm2499, %v5090, 0
      %5118 = vmatprep.subr.mxu0 0.0
      %5119 = vmatpush1.msra.mxu0 %v5092
      %5120 = vmatprep.subr.mxu0 0.0
      %5121 = vmatpush1.msra.mxu0 %v5093
      %5122 = vmatprep.subr.mxu0 0.0
      %5123 = vmatpush1.msra.mxu0 0.0
      %5124 = vmatprep.subr.mxu0 0.0
      %5125 = vmatpush1.msra.mxu0 0.0
      %5126 = vmatprep.subr.mxu0 0.0
      %5127 = vmatpush1.msra.mxu0 0.0
      %5128 = vmatprep.subr.mxu0 0.0
      %5129 = vmatpush1.msra.mxu0 0.0
      %5130 = vmatprep.subr.mxu0 0.0
      %5131 = vmatpush1.msra.mxu0 0.0
      %5132 = vmatprep.subr.mxu0 0.0
      %5133 = vmatpush1.msra.mxu0 0.0
      %5134 = vmatprep.subr.mxu0 0.0
      %5135 = vmatpush1.msra.mxu0 0.0
      %5136 = vmatprep.subr.mxu0 0.0
      %5137 = vmatpush1.msra.mxu0 0.0
      %5138 = vmatprep.subr.mxu0 0.0
      %5139 = vmatpush1.msra.mxu0 0.0
      %5140 = vmatprep.subr.mxu0 0.0
      %5141 = vmatpush1.msra.mxu0 0.0
      %5142 = vmatprep.subr.mxu0 0.0
      %5143 = vmatpush1.msra.mxu0 0.0
      %5144 = vmatprep.subr.mxu0 0.0
      %5145 = vmatpush1.msra.mxu0 0.0
      %5146 = vmatprep.subr.mxu0 0.0
      %5147 = vmatpush1.msra.mxu0 0.0
      %5148 = vmatprep.subr.mxu0 0.0
      %5149 = vmatpush1.msra.mxu0 0.0
      %5150 = vmatprep.subr.mxu0 0.0
      %5151 = vmatpush1.msra.mxu0 0.0
      %5152 = vmatprep.subr.mxu0 0.0
      %5153 = vmatpush1.msra.mxu0 0.0
      %5154 = vmatprep.subr.mxu0 0.0
      %5155 = vmatpush1.msra.mxu0 0.0
      %5156 = vmatprep.subr.mxu0 0.0
      %5157 = vmatpush1.msra.mxu0 0.0
      %5158 = vmatprep.subr.mxu0 0.0
      %5159 = vmatpush1.msra.mxu0 0.0
      %5160 = vmatprep.subr.mxu0 0.0
      %5161 = vmatpush1.msra.mxu0 0.0
      %5162 = vmatprep.subr.mxu0 0.0
      %5163 = vmatpush1.msra.mxu0 0.0
      %5164 = vmatprep.subr.mxu0 0.0
      %5165 = vmatpush1.msra.mxu0 0.0
      %5166 = vmatprep.subr.mxu0 0.0
      %5167 = vmatpush1.msra.mxu0 0.0
      %5168 = vmatprep.subr.mxu0 0.0
      %5169 = vmatpush1.msra.mxu0 0.0
      %5170 = vmatprep.subr.mxu0 0.0
      %5171 = vmatpush1.msra.mxu0 0.0
      %5172 = vmatprep.subr.mxu0 0.0
      %5173 = vmatpush1.msra.mxu0 0.0
      %5174 = vmatprep.subr.mxu0 0.0
      %5175 = vmatpush1.msra.mxu0 0.0
      %5176 = vmatprep.subr.mxu0 0.0
      %5177 = vmatpush1.msra.mxu0 0.0
      %5178 = vmatprep.subr.mxu0 0.0
      %5179 = vmatpush1.msra.mxu0 0.0
      %5180 = vmatprep.subr.mxu0 0.0
      %5181 = vmatpush1.msra.mxu0 0.0
      %5182 = vmatprep.mubr.f32.mxu0 0.0
      %5183 = vmatmul.mubr.f32.gmra.mrb[0].mxu0 %v5095
      %v5184 = vpop.f32.mrb[0].mxu0
      %v5185 = vadd.f32 0.0, %v5184
      %v5186 = vpop.f32.mrb[0].mxu0
      %5187 = vmatprep.mubr.f32.mxu0 0.0
      %5188 = vmatmul.mubr.f32.gmra.mrb[0].mxu0 %v5098
      %v5189 = vpop.f32.mrb[0].mxu0
      %v5190 = vadd.f32 0.0, %v5189
      %v5191 = vpop.f32.mrb[0].mxu0
      %5192 = vmatprep.mubr.f32.mxu0 0.0
      %5193 = vmatmul.mubr.f32.gmra.mrb[0].mxu0 %v5101
      %v5194 = vpop.f32.mrb[0].mxu0
      %v5195 = vadd.f32 0.0, %v5194
      %v5196 = vpop.f32.mrb[0].mxu0
      %5197 = vmatprep.mubr.f32.mxu0 0.0
      %5198 = vmatmul.mubr.f32.gmra.mrb[0].mxu0 %v5104
      %v5199 = vpop.f32.mrb[0].mxu0
      %v5200 = vadd.f32 0.0, %v5199
      %v5201 = vpop.f32.mrb[0].mxu0
      %5202 = vmatprep.mubr.f32.mxu0 0.0
      %5203 = vmatmul.mubr.f32.gmra.mrb[0].mxu0 %v5107
      %v5204 = vpop.f32.mrb[0].mxu0
      %v5205 = vadd.f32 0.0, %v5204
      %v5206 = vpop.f32.mrb[0].mxu0
      %5207 = vmatprep.mubr.f32.mxu0 0.0
      %5208 = vmatmul.mubr.f32.gmra.mrb[0].mxu0 %v5110
      %v5209 = vpop.f32.mrb[0].mxu0
      %v5210 = vadd.f32 0.0, %v5209
      %v5211 = vpop.f32.mrb[0].mxu0
      %5212 = vmatprep.mubr.f32.mxu0 0.0
      %5213 = vmatmul.mubr.f32.gmra.mrb[0].mxu0 %v5113
      %v5214 = vpop.f32.mrb[0].mxu0
      %v5215 = vadd.f32 0.0, %v5214
      %v5216 = vpop.f32.mrb[0].mxu0
      %5217 = vmatprep.mubr.f32.mxu0 0.0
      %5218 = vmatmul.mubr.f32.gmra.mrb[0].mxu0 %v5116
      %v5219 = vpop.f32.mrb[0].mxu0
      %v5220 = vadd.f32 0.0, %v5219
      %v5221 = vpop.f32.mrb[0].mxu0
      %5222 = vdwg.mxu0
      %v5223 = vadd.f32 %v5075, %v5185
      %v5224 = vadd.f32 %v5076, %v5190
      %v5225 = vadd.f32 %v5077, %v5195
      %v5226 = vadd.f32 %v5078, %v5200
      %v5227 = vadd.f32 %v5079, %v5205
      %v5228 = vadd.f32 %v5080, %v5210
      %v5229 = vadd.f32 %v5081, %v5215
      %v5230 = vadd.f32 %v5082, %v5220
      %v5231 = vld [vmem:[#allocation2 + $0xab] sm:$0xff]
      %v5232 = vld [vmem:[#allocation2 + $0xb3] sm:$0xff]
      %v5233 = vld [vmem:[#allocation2 + $0xbb] sm:$0xff]
      %v5234 = vld [vmem:[#allocation2 + $0xc3] sm:$0xff]
      %v5235 = vld [vmem:[#allocation2 + $0xcb] sm:$0xff]
      %v5236 = vld [vmem:[#allocation2 + $0xd3] sm:$0xff]
      %v5237 = vld [vmem:[#allocation2 + $0xdb] sm:$0xff]
      %v5238 = vld [vmem:[#allocation2 + $0xe3] sm:$0x7f]
      %s5239 = scalar_lea.vmem %s4, 288
      %v5240 = vld [vmem:[%s5239] sm:$0xff]
      %v5241 = vld [vmem:[%s5239 + $0x8] sm:$0xff]
      %v5243 = vsel %vm2499, %v5231, 0
      %v5246 = vsel %vm2499, %v5232, 0
      %v5249 = vsel %vm2499, %v5233, 0
      %v5252 = vsel %vm2499, %v5234, 0
      %v5255 = vsel %vm2499, %v5235, 0
      %v5258 = vsel %vm2499, %v5236, 0
      %v5261 = vsel %vm2499, %v5237, 0
      %v5264 = vsel %vm2499, %v5238, 0
      %5266 = vmatprep.subr.mxu0 0.0
      %5267 = vmatpush1.msra.mxu0 %v5240
      %5268 = vmatprep.subr.mxu0 0.0
      %5269 = vmatpush1.msra.mxu0 %v5241
      %5270 = vmatprep.subr.mxu0 0.0
      %5271 = vmatpush1.msra.mxu0 0.0
      %5272 = vmatprep.subr.mxu0 0.0
      %5273 = vmatpush1.msra.mxu0 0.0
      %5274 = vmatprep.subr.mxu0 0.0
      %5275 = vmatpush1.msra.mxu0 0.0
      %5276 = vmatprep.subr.mxu0 0.0
      %5277 = vmatpush1.msra.mxu0 0.0
      %5278 = vmatprep.subr.mxu0 0.0
      %5279 = vmatpush1.msra.mxu0 0.0
      %5280 = vmatprep.subr.mxu0 0.0
      %5281 = vmatpush1.msra.mxu0 0.0
      %5282 = vmatprep.subr.mxu0 0.0
      %5283 = vmatpush1.msra.mxu0 0.0
      %5284 = vmatprep.subr.mxu0 0.0
      %5285 = vmatpush1.msra.mxu0 0.0
      %5286 = vmatprep.subr.mxu0 0.0
      %5287 = vmatpush1.msra.mxu0 0.0
      %5288 = vmatprep.subr.mxu0 0.0
      %5289 = vmatpush1.msra.mxu0 0.0
      %5290 = vmatprep.subr.mxu0 0.0
      %5291 = vmatpush1.msra.mxu0 0.0
      %5292 = vmatprep.subr.mxu0 0.0
      %5293 = vmatpush1.msra.mxu0 0.0
      %5294 = vmatprep.subr.mxu0 0.0
      %5295 = vmatpush1.msra.mxu0 0.0
      %5296 = vmatprep.subr.mxu0 0.0
      %5297 = vmatpush1.msra.mxu0 0.0
      %5298 = vmatprep.subr.mxu0 0.0
      %5299 = vmatpush1.msra.mxu0 0.0
      %5300 = vmatprep.subr.mxu0 0.0
      %5301 = vmatpush1.msra.mxu0 0.0
      %5302 = vmatprep.subr.mxu0 0.0
      %5303 = vmatpush1.msra.mxu0 0.0
      %5304 = vmatprep.subr.mxu0 0.0
      %5305 = vmatpush1.msra.mxu0 0.0
      %5306 = vmatprep.subr.mxu0 0.0
      %5307 = vmatpush1.msra.mxu0 0.0
      %5308 = vmatprep.subr.mxu0 0.0
      %5309 = vmatpush1.msra.mxu0 0.0
      %5310 = vmatprep.subr.mxu0 0.0
      %5311 = vmatpush1.msra.mxu0 0.0
      %5312 = vmatprep.subr.mxu0 0.0
      %5313 = vmatpush1.msra.mxu0 0.0
      %5314 = vmatprep.subr.mxu0 0.0
      %5315 = vmatpush1.msra.mxu0 0.0
      %5316 = vmatprep.subr.mxu0 0.0
      %5317 = vmatpush1.msra.mxu0 0.0
      %5318 = vmatprep.subr.mxu0 0.0
      %5319 = vmatpush1.msra.mxu0 0.0
      %5320 = vmatprep.subr.mxu0 0.0
      %5321 = vmatpush1.msra.mxu0 0.0
      %5322 = vmatprep.subr.mxu0 0.0
      %5323 = vmatpush1.msra.mxu0 0.0
      %5324 = vmatprep.subr.mxu0 0.0
      %5325 = vmatpush1.msra.mxu0 0.0
      %5326 = vmatprep.subr.mxu0 0.0
      %5327 = vmatpush1.msra.mxu0 0.0
      %5328 = vmatprep.subr.mxu0 0.0
      %5329 = vmatpush1.msra.mxu0 0.0
      %5330 = vmatprep.mubr.f32.mxu0 0.0
      %5331 = vmatmul.mubr.f32.gmra.mrb[0].mxu0 %v5243
      %v5332 = vpop.f32.mrb[0].mxu0
      %v5333 = vadd.f32 0.0, %v5332
      %v5334 = vpop.f32.mrb[0].mxu0
      %5335 = vmatprep.mubr.f32.mxu0 0.0
      %5336 = vmatmul.mubr.f32.gmra.mrb[0].mxu0 %v5246
      %v5337 = vpop.f32.mrb[0].mxu0
      %v5338 = vadd.f32 0.0, %v5337
      %v5339 = vpop.f32.mrb[0].mxu0
      %5340 = vmatprep.mubr.f32.mxu0 0.0
      %5341 = vmatmul.mubr.f32.gmra.mrb[0].mxu0 %v5249
      %v5342 = vpop.f32.mrb[0].mxu0
      %v5343 = vadd.f32 0.0, %v5342
      %v5344 = vpop.f32.mrb[0].mxu0
      %5345 = vmatprep.mubr.f32.mxu0 0.0
      %5346 = vmatmul.mubr.f32.gmra.mrb[0].mxu0 %v5252
      %v5347 = vpop.f32.mrb[0].mxu0
      %v5348 = vadd.f32 0.0, %v5347
      %v5349 = vpop.f32.mrb[0].mxu0
      %5350 = vmatprep.mubr.f32.mxu0 0.0
      %5351 = vmatmul.mubr.f32.gmra.mrb[0].mxu0 %v5255
      %v5352 = vpop.f32.mrb[0].mxu0
      %v5353 = vadd.f32 0.0, %v5352
      %v5354 = vpop.f32.mrb[0].mxu0
      %5355 = vmatprep.mubr.f32.mxu0 0.0
      %5356 = vmatmul.mubr.f32.gmra.mrb[0].mxu0 %v5258
      %v5357 = vpop.f32.mrb[0].mxu0
      %v5358 = vadd.f32 0.0, %v5357
      %v5359 = vpop.f32.mrb[0].mxu0
      %5360 = vmatprep.mubr.f32.mxu0 0.0
      %5361 = vmatmul.mubr.f32.gmra.mrb[0].mxu0 %v5261
      %v5362 = vpop.f32.mrb[0].mxu0
      %v5363 = vadd.f32 0.0, %v5362
      %v5364 = vpop.f32.mrb[0].mxu0
      %5365 = vmatprep.mubr.f32.mxu0 0.0
      %5366 = vmatmul.mubr.f32.gmra.mrb[0].mxu0 %v5264
      %v5367 = vpop.f32.mrb[0].mxu0
      %v5368 = vadd.f32 0.0, %v5367
      %v5369 = vpop.f32.mrb[0].mxu0
      %5370 = vdwg.mxu0
      %v5371 = vadd.f32 %v5223, %v5333
      %v5372 = vadd.f32 %v5224, %v5338
      %v5373 = vadd.f32 %v5225, %v5343
      %v5374 = vadd.f32 %v5226, %v5348
      %v5375 = vadd.f32 %v5227, %v5353
      %v5376 = vadd.f32 %v5228, %v5358
      %v5377 = vadd.f32 %v5229, %v5363
      %v5378 = vadd.f32 %v5230, %v5368
      %v5379 = vld [vmem:[#allocation2 + $0xfc] sm:$0xff]
      %v5380 = vld [vmem:[#allocation2 + $0x104] sm:$0xff]
      %v5381 = vld [vmem:[#allocation2 + $0x10c] sm:$0xff]
      %v5382 = vld [vmem:[#allocation2 + $0x114] sm:$0xff]
      %v5383 = vld [vmem:[#allocation2 + $0x11c] sm:$0xff]
      %v5384 = vld [vmem:[#allocation2 + $0x124] sm:$0xff]
      %v5385 = vld [vmem:[#allocation2 + $0x12c] sm:$0xff]
      %v5386 = vld [vmem:[#allocation2 + $0x134] sm:$0x7f]
      %s5387 = scalar_lea.vmem %s4, 304
      %v5388 = vld [vmem:[%s5387] sm:$0xff]
      %v5389 = vld [vmem:[%s5387 + $0x8] sm:$0xff]
      %v5391 = vsel %vm2499, %v5379, 0
      %v5394 = vsel %vm2499, %v5380, 0
      %v5397 = vsel %vm2499, %v5381, 0
      %v5400 = vsel %vm2499, %v5382, 0
      %v5403 = vsel %vm2499, %v5383, 0
      %v5406 = vsel %vm2499, %v5384, 0
      %v5409 = vsel %vm2499, %v5385, 0
      %v5412 = vsel %vm2499, %v5386, 0
      %5414 = vmatprep.subr.mxu0 0.0
      %5415 = vmatpush1.msra.mxu0 %v5388
      %5416 = vmatprep.subr.mxu0 0.0
      %5417 = vmatpush1.msra.mxu0 %v5389
      %5418 = vmatprep.subr.mxu0 0.0
      %5419 = vmatpush1.msra.mxu0 0.0
      %5420 = vmatprep.subr.mxu0 0.0
      %5421 = vmatpush1.msra.mxu0 0.0
      %5422 = vmatprep.subr.mxu0 0.0
      %5423 = vmatpush1.msra.mxu0 0.0
      %5424 = vmatprep.subr.mxu0 0.0
      %5425 = vmatpush1.msra.mxu0 0.0
      %5426 = vmatprep.subr.mxu0 0.0
      %5427 = vmatpush1.msra.mxu0 0.0
      %5428 = vmatprep.subr.mxu0 0.0
      %5429 = vmatpush1.msra.mxu0 0.0
      %5430 = vmatprep.subr.mxu0 0.0
      %5431 = vmatpush1.msra.mxu0 0.0
      %5432 = vmatprep.subr.mxu0 0.0
      %5433 = vmatpush1.msra.mxu0 0.0
      %5434 = vmatprep.subr.mxu0 0.0
      %5435 = vmatpush1.msra.mxu0 0.0
      %5436 = vmatprep.subr.mxu0 0.0
      %5437 = vmatpush1.msra.mxu0 0.0
      %5438 = vmatprep.subr.mxu0 0.0
      %5439 = vmatpush1.msra.mxu0 0.0
      %5440 = vmatprep.subr.mxu0 0.0
      %5441 = vmatpush1.msra.mxu0 0.0
      %5442 = vmatprep.subr.mxu0 0.0
      %5443 = vmatpush1.msra.mxu0 0.0
      %5444 = vmatprep.subr.mxu0 0.0
      %5445 = vmatpush1.msra.mxu0 0.0
      %5446 = vmatprep.subr.mxu0 0.0
      %5447 = vmatpush1.msra.mxu0 0.0
      %5448 = vmatprep.subr.mxu0 0.0
      %5449 = vmatpush1.msra.mxu0 0.0
      %5450 = vmatprep.subr.mxu0 0.0
      %5451 = vmatpush1.msra.mxu0 0.0
      %5452 = vmatprep.subr.mxu0 0.0
      %5453 = vmatpush1.msra.mxu0 0.0
      %5454 = vmatprep.subr.mxu0 0.0
      %5455 = vmatpush1.msra.mxu0 0.0
      %5456 = vmatprep.subr.mxu0 0.0
      %5457 = vmatpush1.msra.mxu0 0.0
      %5458 = vmatprep.subr.mxu0 0.0
      %5459 = vmatpush1.msra.mxu0 0.0
      %5460 = vmatprep.subr.mxu0 0.0
      %5461 = vmatpush1.msra.mxu0 0.0
      %5462 = vmatprep.subr.mxu0 0.0
      %5463 = vmatpush1.msra.mxu0 0.0
      %5464 = vmatprep.subr.mxu0 0.0
      %5465 = vmatpush1.msra.mxu0 0.0
      %5466 = vmatprep.subr.mxu0 0.0
      %5467 = vmatpush1.msra.mxu0 0.0
      %5468 = vmatprep.subr.mxu0 0.0
      %5469 = vmatpush1.msra.mxu0 0.0
      %5470 = vmatprep.subr.mxu0 0.0
      %5471 = vmatpush1.msra.mxu0 0.0
      %5472 = vmatprep.subr.mxu0 0.0
      %5473 = vmatpush1.msra.mxu0 0.0
      %5474 = vmatprep.subr.mxu0 0.0
      %5475 = vmatpush1.msra.mxu0 0.0
      %5476 = vmatprep.subr.mxu0 0.0
      %5477 = vmatpush1.msra.mxu0 0.0
      %5478 = vmatprep.mubr.f32.mxu0 0.0
      %5479 = vmatmul.mubr.f32.gmra.mrb[0].mxu0 %v5391
      %v5480 = vpop.f32.mrb[0].mxu0
      %v5481 = vadd.f32 0.0, %v5480
      %v5482 = vpop.f32.mrb[0].mxu0
      %5483 = vmatprep.mubr.f32.mxu0 0.0
      %5484 = vmatmul.mubr.f32.gmra.mrb[0].mxu0 %v5394
      %v5485 = vpop.f32.mrb[0].mxu0
      %v5486 = vadd.f32 0.0, %v5485
      %v5487 = vpop.f32.mrb[0].mxu0
      %5488 = vmatprep.mubr.f32.mxu0 0.0
      %5489 = vmatmul.mubr.f32.gmra.mrb[0].mxu0 %v5397
      %v5490 = vpop.f32.mrb[0].mxu0
      %v5491 = vadd.f32 0.0, %v5490
      %v5492 = vpop.f32.mrb[0].mxu0
      %5493 = vmatprep.mubr.f32.mxu0 0.0
      %5494 = vmatmul.mubr.f32.gmra.mrb[0].mxu0 %v5400
      %v5495 = vpop.f32.mrb[0].mxu0
      %v5496 = vadd.f32 0.0, %v5495
      %v5497 = vpop.f32.mrb[0].mxu0
      %5498 = vmatprep.mubr.f32.mxu0 0.0
      %5499 = vmatmul.mubr.f32.gmra.mrb[0].mxu0 %v5403
      %v5500 = vpop.f32.mrb[0].mxu0
      %v5501 = vadd.f32 0.0, %v5500
      %v5502 = vpop.f32.mrb[0].mxu0
      %5503 = vmatprep.mubr.f32.mxu0 0.0
      %5504 = vmatmul.mubr.f32.gmra.mrb[0].mxu0 %v5406
      %v5505 = vpop.f32.mrb[0].mxu0
      %v5506 = vadd.f32 0.0, %v5505
      %v5507 = vpop.f32.mrb[0].mxu0
      %5508 = vmatprep.mubr.f32.mxu0 0.0
      %5509 = vmatmul.mubr.f32.gmra.mrb[0].mxu0 %v5409
      %v5510 = vpop.f32.mrb[0].mxu0
      %v5511 = vadd.f32 0.0, %v5510
      %v5512 = vpop.f32.mrb[0].mxu0
      %5513 = vmatprep.mubr.f32.mxu0 0.0
      %5514 = vmatmul.mubr.f32.gmra.mrb[0].mxu0 %v5412
      %v5515 = vpop.f32.mrb[0].mxu0
      %v5516 = vadd.f32 0.0, %v5515
      %v5517 = vpop.f32.mrb[0].mxu0
      %5518 = vdwg.mxu0
      %v5519 = vadd.f32 %v5371, %v5481
      %v5520 = vadd.f32 %v5372, %v5486
      %v5521 = vadd.f32 %v5373, %v5491
      %v5522 = vadd.f32 %v5374, %v5496
      %v5523 = vadd.f32 %v5375, %v5501
      %v5524 = vadd.f32 %v5376, %v5506
      %v5525 = vadd.f32 %v5377, %v5511
      %v5526 = vadd.f32 %v5378, %v5516
      %v5527 = vld [vmem:[#allocation2 + $0xac] sm:$0xff]
      %v5528 = vld [vmem:[#allocation2 + $0xb4] sm:$0xff]
      %v5529 = vld [vmem:[#allocation2 + $0xbc] sm:$0xff]
      %v5530 = vld [vmem:[#allocation2 + $0xc4] sm:$0xff]
      %v5531 = vld [vmem:[#allocation2 + $0xcc] sm:$0xff]
      %v5532 = vld [vmem:[#allocation2 + $0xd4] sm:$0xff]
      %v5533 = vld [vmem:[#allocation2 + $0xdc] sm:$0xff]
      %v5534 = vld [vmem:[#allocation2 + $0xe4] sm:$0x7f]
      %s5535 = scalar_lea.vmem %s4, 320
      %v5536 = vld [vmem:[%s5535] sm:$0xff]
      %v5537 = vld [vmem:[%s5535 + $0x8] sm:$0xff]
      %v5539 = vsel %vm2499, %v5527, 0
      %v5542 = vsel %vm2499, %v5528, 0
      %v5545 = vsel %vm2499, %v5529, 0
      %v5548 = vsel %vm2499, %v5530, 0
      %v5551 = vsel %vm2499, %v5531, 0
      %v5554 = vsel %vm2499, %v5532, 0
      %v5557 = vsel %vm2499, %v5533, 0
      %v5560 = vsel %vm2499, %v5534, 0
      %5562 = vmatprep.subr.mxu0 0.0
      %5563 = vmatpush1.msra.mxu0 %v5536
      %5564 = vmatprep.subr.mxu0 0.0
      %5565 = vmatpush1.msra.mxu0 %v5537
      %5566 = vmatprep.subr.mxu0 0.0
      %5567 = vmatpush1.msra.mxu0 0.0
      %5568 = vmatprep.subr.mxu0 0.0
      %5569 = vmatpush1.msra.mxu0 0.0
      %5570 = vmatprep.subr.mxu0 0.0
      %5571 = vmatpush1.msra.mxu0 0.0
      %5572 = vmatprep.subr.mxu0 0.0
      %5573 = vmatpush1.msra.mxu0 0.0
      %5574 = vmatprep.subr.mxu0 0.0
      %5575 = vmatpush1.msra.mxu0 0.0
      %5576 = vmatprep.subr.mxu0 0.0
      %5577 = vmatpush1.msra.mxu0 0.0
      %5578 = vmatprep.subr.mxu0 0.0
      %5579 = vmatpush1.msra.mxu0 0.0
      %5580 = vmatprep.subr.mxu0 0.0
      %5581 = vmatpush1.msra.mxu0 0.0
      %5582 = vmatprep.subr.mxu0 0.0
      %5583 = vmatpush1.msra.mxu0 0.0
      %5584 = vmatprep.subr.mxu0 0.0
      %5585 = vmatpush1.msra.mxu0 0.0
      %5586 = vmatprep.subr.mxu0 0.0
      %5587 = vmatpush1.msra.mxu0 0.0
      %5588 = vmatprep.subr.mxu0 0.0
      %5589 = vmatpush1.msra.mxu0 0.0
      %5590 = vmatprep.subr.mxu0 0.0
      %5591 = vmatpush1.msra.mxu0 0.0
      %5592 = vmatprep.subr.mxu0 0.0
      %5593 = vmatpush1.msra.mxu0 0.0
      %5594 = vmatprep.subr.mxu0 0.0
      %5595 = vmatpush1.msra.mxu0 0.0
      %5596 = vmatprep.subr.mxu0 0.0
      %5597 = vmatpush1.msra.mxu0 0.0
      %5598 = vmatprep.subr.mxu0 0.0
      %5599 = vmatpush1.msra.mxu0 0.0
      %5600 = vmatprep.subr.mxu0 0.0
      %5601 = vmatpush1.msra.mxu0 0.0
      %5602 = vmatprep.subr.mxu0 0.0
      %5603 = vmatpush1.msra.mxu0 0.0
      %5604 = vmatprep.subr.mxu0 0.0
      %5605 = vmatpush1.msra.mxu0 0.0
      %5606 = vmatprep.subr.mxu0 0.0
      %5607 = vmatpush1.msra.mxu0 0.0
      %5608 = vmatprep.subr.mxu0 0.0
      %5609 = vmatpush1.msra.mxu0 0.0
      %5610 = vmatprep.subr.mxu0 0.0
      %5611 = vmatpush1.msra.mxu0 0.0
      %5612 = vmatprep.subr.mxu0 0.0
      %5613 = vmatpush1.msra.mxu0 0.0
      %5614 = vmatprep.subr.mxu0 0.0
      %5615 = vmatpush1.msra.mxu0 0.0
      %5616 = vmatprep.subr.mxu0 0.0
      %5617 = vmatpush1.msra.mxu0 0.0
      %5618 = vmatprep.subr.mxu0 0.0
      %5619 = vmatpush1.msra.mxu0 0.0
      %5620 = vmatprep.subr.mxu0 0.0
      %5621 = vmatpush1.msra.mxu0 0.0
      %5622 = vmatprep.subr.mxu0 0.0
      %5623 = vmatpush1.msra.mxu0 0.0
      %5624 = vmatprep.subr.mxu0 0.0
      %5625 = vmatpush1.msra.mxu0 0.0
      %5626 = vmatprep.mubr.f32.mxu0 0.0
      %5627 = vmatmul.mubr.f32.gmra.mrb[0].mxu0 %v5539
      %v5628 = vpop.f32.mrb[0].mxu0
      %v5629 = vadd.f32 0.0, %v5628
      %v5630 = vpop.f32.mrb[0].mxu0
      %5631 = vmatprep.mubr.f32.mxu0 0.0
      %5632 = vmatmul.mubr.f32.gmra.mrb[0].mxu0 %v5542
      %v5633 = vpop.f32.mrb[0].mxu0
      %v5634 = vadd.f32 0.0, %v5633
      %v5635 = vpop.f32.mrb[0].mxu0
      %5636 = vmatprep.mubr.f32.mxu0 0.0
      %5637 = vmatmul.mubr.f32.gmra.mrb[0].mxu0 %v5545
      %v5638 = vpop.f32.mrb[0].mxu0
      %v5639 = vadd.f32 0.0, %v5638
      %v5640 = vpop.f32.mrb[0].mxu0
      %5641 = vmatprep.mubr.f32.mxu0 0.0
      %5642 = vmatmul.mubr.f32.gmra.mrb[0].mxu0 %v5548
      %v5643 = vpop.f32.mrb[0].mxu0
      %v5644 = vadd.f32 0.0, %v5643
      %v5645 = vpop.f32.mrb[0].mxu0
      %5646 = vmatprep.mubr.f32.mxu0 0.0
      %5647 = vmatmul.mubr.f32.gmra.mrb[0].mxu0 %v5551
      %v5648 = vpop.f32.mrb[0].mxu0
      %v5649 = vadd.f32 0.0, %v5648
      %v5650 = vpop.f32.mrb[0].mxu0
      %5651 = vmatprep.mubr.f32.mxu0 0.0
      %5652 = vmatmul.mubr.f32.gmra.mrb[0].mxu0 %v5554
      %v5653 = vpop.f32.mrb[0].mxu0
      %v5654 = vadd.f32 0.0, %v5653
      %v5655 = vpop.f32.mrb[0].mxu0
      %5656 = vmatprep.mubr.f32.mxu0 0.0
      %5657 = vmatmul.mubr.f32.gmra.mrb[0].mxu0 %v5557
      %v5658 = vpop.f32.mrb[0].mxu0
      %v5659 = vadd.f32 0.0, %v5658
      %v5660 = vpop.f32.mrb[0].mxu0
      %5661 = vmatprep.mubr.f32.mxu0 0.0
      %5662 = vmatmul.mubr.f32.gmra.mrb[0].mxu0 %v5560
      %v5663 = vpop.f32.mrb[0].mxu0
      %v5664 = vadd.f32 0.0, %v5663
      %v5665 = vpop.f32.mrb[0].mxu0
      %5666 = vdwg.mxu0
      %v5667 = vadd.f32 %v5519, %v5629
      %v5668 = vadd.f32 %v5520, %v5634
      %v5669 = vadd.f32 %v5521, %v5639
      %v5670 = vadd.f32 %v5522, %v5644
      %v5671 = vadd.f32 %v5523, %v5649
      %v5672 = vadd.f32 %v5524, %v5654
      %v5673 = vadd.f32 %v5525, %v5659
      %v5674 = vadd.f32 %v5526, %v5664
      %v5675 = vld [vmem:[#allocation2 + $0xfd] sm:$0xff]
      %v5676 = vld [vmem:[#allocation2 + $0x105] sm:$0xff]
      %v5677 = vld [vmem:[#allocation2 + $0x10d] sm:$0xff]
      %v5678 = vld [vmem:[#allocation2 + $0x115] sm:$0xff]
      %v5679 = vld [vmem:[#allocation2 + $0x11d] sm:$0xff]
      %v5680 = vld [vmem:[#allocation2 + $0x125] sm:$0xff]
      %v5681 = vld [vmem:[#allocation2 + $0x12d] sm:$0xff]
      %v5682 = vld [vmem:[#allocation2 + $0x135] sm:$0x7f]
      %s5683 = scalar_lea.vmem %s4, 336
      %v5684 = vld [vmem:[%s5683] sm:$0xff]
      %v5685 = vld [vmem:[%s5683 + $0x8] sm:$0xff]
      %v5687 = vsel %vm2499, %v5675, 0
      %v5690 = vsel %vm2499, %v5676, 0
      %v5693 = vsel %vm2499, %v5677, 0
      %v5696 = vsel %vm2499, %v5678, 0
      %v5699 = vsel %vm2499, %v5679, 0
      %v5702 = vsel %vm2499, %v5680, 0
      %v5705 = vsel %vm2499, %v5681, 0
      %v5708 = vsel %vm2499, %v5682, 0
      %5710 = vmatprep.subr.mxu0 0.0
      %5711 = vmatpush1.msra.mxu0 %v5684
      %5712 = vmatprep.subr.mxu0 0.0
      %5713 = vmatpush1.msra.mxu0 %v5685
      %5714 = vmatprep.subr.mxu0 0.0
      %5715 = vmatpush1.msra.mxu0 0.0
      %5716 = vmatprep.subr.mxu0 0.0
      %5717 = vmatpush1.msra.mxu0 0.0
      %5718 = vmatprep.subr.mxu0 0.0
      %5719 = vmatpush1.msra.mxu0 0.0
      %5720 = vmatprep.subr.mxu0 0.0
      %5721 = vmatpush1.msra.mxu0 0.0
      %5722 = vmatprep.subr.mxu0 0.0
      %5723 = vmatpush1.msra.mxu0 0.0
      %5724 = vmatprep.subr.mxu0 0.0
      %5725 = vmatpush1.msra.mxu0 0.0
      %5726 = vmatprep.subr.mxu0 0.0
      %5727 = vmatpush1.msra.mxu0 0.0
      %5728 = vmatprep.subr.mxu0 0.0
      %5729 = vmatpush1.msra.mxu0 0.0
      %5730 = vmatprep.subr.mxu0 0.0
      %5731 = vmatpush1.msra.mxu0 0.0
      %5732 = vmatprep.subr.mxu0 0.0
      %5733 = vmatpush1.msra.mxu0 0.0
      %5734 = vmatprep.subr.mxu0 0.0
      %5735 = vmatpush1.msra.mxu0 0.0
      %5736 = vmatprep.subr.mxu0 0.0
      %5737 = vmatpush1.msra.mxu0 0.0
      %5738 = vmatprep.subr.mxu0 0.0
      %5739 = vmatpush1.msra.mxu0 0.0
      %5740 = vmatprep.subr.mxu0 0.0
      %5741 = vmatpush1.msra.mxu0 0.0
      %5742 = vmatprep.subr.mxu0 0.0
      %5743 = vmatpush1.msra.mxu0 0.0
      %5744 = vmatprep.subr.mxu0 0.0
      %5745 = vmatpush1.msra.mxu0 0.0
      %5746 = vmatprep.subr.mxu0 0.0
      %5747 = vmatpush1.msra.mxu0 0.0
      %5748 = vmatprep.subr.mxu0 0.0
      %5749 = vmatpush1.msra.mxu0 0.0
      %5750 = vmatprep.subr.mxu0 0.0
      %5751 = vmatpush1.msra.mxu0 0.0
      %5752 = vmatprep.subr.mxu0 0.0
      %5753 = vmatpush1.msra.mxu0 0.0
      %5754 = vmatprep.subr.mxu0 0.0
      %5755 = vmatpush1.msra.mxu0 0.0
      %5756 = vmatprep.subr.mxu0 0.0
      %5757 = vmatpush1.msra.mxu0 0.0
      %5758 = vmatprep.subr.mxu0 0.0
      %5759 = vmatpush1.msra.mxu0 0.0
      %5760 = vmatprep.subr.mxu0 0.0
      %5761 = vmatpush1.msra.mxu0 0.0
      %5762 = vmatprep.subr.mxu0 0.0
      %5763 = vmatpush1.msra.mxu0 0.0
      %5764 = vmatprep.subr.mxu0 0.0
      %5765 = vmatpush1.msra.mxu0 0.0
      %5766 = vmatprep.subr.mxu0 0.0
      %5767 = vmatpush1.msra.mxu0 0.0
      %5768 = vmatprep.subr.mxu0 0.0
      %5769 = vmatpush1.msra.mxu0 0.0
      %5770 = vmatprep.subr.mxu0 0.0
      %5771 = vmatpush1.msra.mxu0 0.0
      %5772 = vmatprep.subr.mxu0 0.0
      %5773 = vmatpush1.msra.mxu0 0.0
      %5774 = vmatprep.mubr.f32.mxu0 0.0
      %5775 = vmatmul.mubr.f32.gmra.mrb[0].mxu0 %v5687
      %v5776 = vpop.f32.mrb[0].mxu0
      %v5777 = vadd.f32 0.0, %v5776
      %v5778 = vpop.f32.mrb[0].mxu0
      %5779 = vmatprep.mubr.f32.mxu0 0.0
      %5780 = vmatmul.mubr.f32.gmra.mrb[0].mxu0 %v5690
      %v5781 = vpop.f32.mrb[0].mxu0
      %v5782 = vadd.f32 0.0, %v5781
      %v5783 = vpop.f32.mrb[0].mxu0
      %5784 = vmatprep.mubr.f32.mxu0 0.0
      %5785 = vmatmul.mubr.f32.gmra.mrb[0].mxu0 %v5693
      %v5786 = vpop.f32.mrb[0].mxu0
      %v5787 = vadd.f32 0.0, %v5786
      %v5788 = vpop.f32.mrb[0].mxu0
      %5789 = vmatprep.mubr.f32.mxu0 0.0
      %5790 = vmatmul.mubr.f32.gmra.mrb[0].mxu0 %v5696
      %v5791 = vpop.f32.mrb[0].mxu0
      %v5792 = vadd.f32 0.0, %v5791
      %v5793 = vpop.f32.mrb[0].mxu0
      %5794 = vmatprep.mubr.f32.mxu0 0.0
      %5795 = vmatmul.mubr.f32.gmra.mrb[0].mxu0 %v5699
      %v5796 = vpop.f32.mrb[0].mxu0
      %v5797 = vadd.f32 0.0, %v5796
      %v5798 = vpop.f32.mrb[0].mxu0
      %5799 = vmatprep.mubr.f32.mxu0 0.0
      %5800 = vmatmul.mubr.f32.gmra.mrb[0].mxu0 %v5702
      %v5801 = vpop.f32.mrb[0].mxu0
      %v5802 = vadd.f32 0.0, %v5801
      %v5803 = vpop.f32.mrb[0].mxu0
      %5804 = vmatprep.mubr.f32.mxu0 0.0
      %5805 = vmatmul.mubr.f32.gmra.mrb[0].mxu0 %v5705
      %v5806 = vpop.f32.mrb[0].mxu0
      %v5807 = vadd.f32 0.0, %v5806
      %v5808 = vpop.f32.mrb[0].mxu0
      %5809 = vmatprep.mubr.f32.mxu0 0.0
      %5810 = vmatmul.mubr.f32.gmra.mrb[0].mxu0 %v5708
      %v5811 = vpop.f32.mrb[0].mxu0
      %v5812 = vadd.f32 0.0, %v5811
      %v5813 = vpop.f32.mrb[0].mxu0
      %5814 = vdwg.mxu0
      %v5815 = vadd.f32 %v5667, %v5777
      %v5816 = vadd.f32 %v5668, %v5782
      %v5817 = vadd.f32 %v5669, %v5787
      %v5818 = vadd.f32 %v5670, %v5792
      %v5819 = vadd.f32 %v5671, %v5797
      %v5820 = vadd.f32 %v5672, %v5802
      %v5821 = vadd.f32 %v5673, %v5807
      %v5822 = vadd.f32 %v5674, %v5812
      %v5823 = vld [vmem:[#allocation2 + $0xad] sm:$0xff]
      %v5824 = vld [vmem:[#allocation2 + $0xb5] sm:$0xff]
      %v5825 = vld [vmem:[#allocation2 + $0xbd] sm:$0xff]
      %v5826 = vld [vmem:[#allocation2 + $0xc5] sm:$0xff]
      %v5827 = vld [vmem:[#allocation2 + $0xcd] sm:$0xff]
      %v5828 = vld [vmem:[#allocation2 + $0xd5] sm:$0xff]
      %v5829 = vld [vmem:[#allocation2 + $0xdd] sm:$0xff]
      %v5830 = vld [vmem:[#allocation2 + $0xe5] sm:$0x7f]
      %s5831 = scalar_lea.vmem %s4, 352
      %v5832 = vld [vmem:[%s5831] sm:$0xff]
      %v5833 = vld [vmem:[%s5831 + $0x8] sm:$0xff]
      %v5835 = vsel %vm2499, %v5823, 0
      %v5838 = vsel %vm2499, %v5824, 0
      %v5841 = vsel %vm2499, %v5825, 0
      %v5844 = vsel %vm2499, %v5826, 0
      %v5847 = vsel %vm2499, %v5827, 0
      %v5850 = vsel %vm2499, %v5828, 0
      %v5853 = vsel %vm2499, %v5829, 0
      %v5856 = vsel %vm2499, %v5830, 0
      %5858 = vmatprep.subr.mxu0 0.0
      %5859 = vmatpush1.msra.mxu0 %v5832
      %5860 = vmatprep.subr.mxu0 0.0
      %5861 = vmatpush1.msra.mxu0 %v5833
      %5862 = vmatprep.subr.mxu0 0.0
      %5863 = vmatpush1.msra.mxu0 0.0
      %5864 = vmatprep.subr.mxu0 0.0
      %5865 = vmatpush1.msra.mxu0 0.0
      %5866 = vmatprep.subr.mxu0 0.0
      %5867 = vmatpush1.msra.mxu0 0.0
      %5868 = vmatprep.subr.mxu0 0.0
      %5869 = vmatpush1.msra.mxu0 0.0
      %5870 = vmatprep.subr.mxu0 0.0
      %5871 = vmatpush1.msra.mxu0 0.0
      %5872 = vmatprep.subr.mxu0 0.0
      %5873 = vmatpush1.msra.mxu0 0.0
      %5874 = vmatprep.subr.mxu0 0.0
      %5875 = vmatpush1.msra.mxu0 0.0
      %5876 = vmatprep.subr.mxu0 0.0
      %5877 = vmatpush1.msra.mxu0 0.0
      %5878 = vmatprep.subr.mxu0 0.0
      %5879 = vmatpush1.msra.mxu0 0.0
      %5880 = vmatprep.subr.mxu0 0.0
      %5881 = vmatpush1.msra.mxu0 0.0
      %5882 = vmatprep.subr.mxu0 0.0
      %5883 = vmatpush1.msra.mxu0 0.0
      %5884 = vmatprep.subr.mxu0 0.0
      %5885 = vmatpush1.msra.mxu0 0.0
      %5886 = vmatprep.subr.mxu0 0.0
      %5887 = vmatpush1.msra.mxu0 0.0
      %5888 = vmatprep.subr.mxu0 0.0
      %5889 = vmatpush1.msra.mxu0 0.0
      %5890 = vmatprep.subr.mxu0 0.0
      %5891 = vmatpush1.msra.mxu0 0.0
      %5892 = vmatprep.subr.mxu0 0.0
      %5893 = vmatpush1.msra.mxu0 0.0
      %5894 = vmatprep.subr.mxu0 0.0
      %5895 = vmatpush1.msra.mxu0 0.0
      %5896 = vmatprep.subr.mxu0 0.0
      %5897 = vmatpush1.msra.mxu0 0.0
      %5898 = vmatprep.subr.mxu0 0.0
      %5899 = vmatpush1.msra.mxu0 0.0
      %5900 = vmatprep.subr.mxu0 0.0
      %5901 = vmatpush1.msra.mxu0 0.0
      %5902 = vmatprep.subr.mxu0 0.0
      %5903 = vmatpush1.msra.mxu0 0.0
      %5904 = vmatprep.subr.mxu0 0.0
      %5905 = vmatpush1.msra.mxu0 0.0
      %5906 = vmatprep.subr.mxu0 0.0
      %5907 = vmatpush1.msra.mxu0 0.0
      %5908 = vmatprep.subr.mxu0 0.0
      %5909 = vmatpush1.msra.mxu0 0.0
      %5910 = vmatprep.subr.mxu0 0.0
      %5911 = vmatpush1.msra.mxu0 0.0
      %5912 = vmatprep.subr.mxu0 0.0
      %5913 = vmatpush1.msra.mxu0 0.0
      %5914 = vmatprep.subr.mxu0 0.0
      %5915 = vmatpush1.msra.mxu0 0.0
      %5916 = vmatprep.subr.mxu0 0.0
      %5917 = vmatpush1.msra.mxu0 0.0
      %5918 = vmatprep.subr.mxu0 0.0
      %5919 = vmatpush1.msra.mxu0 0.0
      %5920 = vmatprep.subr.mxu0 0.0
      %5921 = vmatpush1.msra.mxu0 0.0
      %5922 = vmatprep.mubr.f32.mxu0 0.0
      %5923 = vmatmul.mubr.f32.gmra.mrb[0].mxu0 %v5835
      %v5924 = vpop.f32.mrb[0].mxu0
      %v5925 = vadd.f32 0.0, %v5924
      %v5926 = vpop.f32.mrb[0].mxu0
      %5927 = vmatprep.mubr.f32.mxu0 0.0
      %5928 = vmatmul.mubr.f32.gmra.mrb[0].mxu0 %v5838
      %v5929 = vpop.f32.mrb[0].mxu0
      %v5930 = vadd.f32 0.0, %v5929
      %v5931 = vpop.f32.mrb[0].mxu0
      %5932 = vmatprep.mubr.f32.mxu0 0.0
      %5933 = vmatmul.mubr.f32.gmra.mrb[0].mxu0 %v5841
      %v5934 = vpop.f32.mrb[0].mxu0
      %v5935 = vadd.f32 0.0, %v5934
      %v5936 = vpop.f32.mrb[0].mxu0
      %5937 = vmatprep.mubr.f32.mxu0 0.0
      %5938 = vmatmul.mubr.f32.gmra.mrb[0].mxu0 %v5844
      %v5939 = vpop.f32.mrb[0].mxu0
      %v5940 = vadd.f32 0.0, %v5939
      %v5941 = vpop.f32.mrb[0].mxu0
      %5942 = vmatprep.mubr.f32.mxu0 0.0
      %5943 = vmatmul.mubr.f32.gmra.mrb[0].mxu0 %v5847
      %v5944 = vpop.f32.mrb[0].mxu0
      %v5945 = vadd.f32 0.0, %v5944
      %v5946 = vpop.f32.mrb[0].mxu0
      %5947 = vmatprep.mubr.f32.mxu0 0.0
      %5948 = vmatmul.mubr.f32.gmra.mrb[0].mxu0 %v5850
      %v5949 = vpop.f32.mrb[0].mxu0
      %v5950 = vadd.f32 0.0, %v5949
      %v5951 = vpop.f32.mrb[0].mxu0
      %5952 = vmatprep.mubr.f32.mxu0 0.0
      %5953 = vmatmul.mubr.f32.gmra.mrb[0].mxu0 %v5853
      %v5954 = vpop.f32.mrb[0].mxu0
      %v5955 = vadd.f32 0.0, %v5954
      %v5956 = vpop.f32.mrb[0].mxu0
      %5957 = vmatprep.mubr.f32.mxu0 0.0
      %5958 = vmatmul.mubr.f32.gmra.mrb[0].mxu0 %v5856
      %v5959 = vpop.f32.mrb[0].mxu0
      %v5960 = vadd.f32 0.0, %v5959
      %v5961 = vpop.f32.mrb[0].mxu0
      %5962 = vdwg.mxu0
      %v5963 = vadd.f32 %v5815, %v5925
      %v5964 = vadd.f32 %v5816, %v5930
      %v5965 = vadd.f32 %v5817, %v5935
      %v5966 = vadd.f32 %v5818, %v5940
      %v5967 = vadd.f32 %v5819, %v5945
      %v5968 = vadd.f32 %v5820, %v5950
      %v5969 = vadd.f32 %v5821, %v5955
      %v5970 = vadd.f32 %v5822, %v5960
      %v5971 = vld [vmem:[#allocation2 + $0xfe] sm:$0xff]
      %v5972 = vld [vmem:[#allocation2 + $0x106] sm:$0xff]
      %v5973 = vld [vmem:[#allocation2 + $0x10e] sm:$0xff]
      %v5974 = vld [vmem:[#allocation2 + $0x116] sm:$0xff]
      %v5975 = vld [vmem:[#allocation2 + $0x11e] sm:$0xff]
      %v5976 = vld [vmem:[#allocation2 + $0x126] sm:$0xff]
      %v5977 = vld [vmem:[#allocation2 + $0x12e] sm:$0xff]
      %v5978 = vld [vmem:[#allocation2 + $0x136] sm:$0x7f]
      %s5979 = scalar_lea.vmem %s4, 368
      %v5980 = vld [vmem:[%s5979] sm:$0xff]
      %v5981 = vld [vmem:[%s5979 + $0x8] sm:$0xff]
      %v5983 = vsel %vm2499, %v5971, 0
      %v5986 = vsel %vm2499, %v5972, 0
      %v5989 = vsel %vm2499, %v5973, 0
      %v5992 = vsel %vm2499, %v5974, 0
      %v5995 = vsel %vm2499, %v5975, 0
      %v5998 = vsel %vm2499, %v5976, 0
      %v6001 = vsel %vm2499, %v5977, 0
      %v6004 = vsel %vm2499, %v5978, 0
      %6006 = vmatprep.subr.mxu0 0.0
      %6007 = vmatpush1.msra.mxu0 %v5980
      %6008 = vmatprep.subr.mxu0 0.0
      %6009 = vmatpush1.msra.mxu0 %v5981
      %6010 = vmatprep.subr.mxu0 0.0
      %6011 = vmatpush1.msra.mxu0 0.0
      %6012 = vmatprep.subr.mxu0 0.0
      %6013 = vmatpush1.msra.mxu0 0.0
      %6014 = vmatprep.subr.mxu0 0.0
      %6015 = vmatpush1.msra.mxu0 0.0
      %6016 = vmatprep.subr.mxu0 0.0
      %6017 = vmatpush1.msra.mxu0 0.0
      %6018 = vmatprep.subr.mxu0 0.0
      %6019 = vmatpush1.msra.mxu0 0.0
      %6020 = vmatprep.subr.mxu0 0.0
      %6021 = vmatpush1.msra.mxu0 0.0
      %6022 = vmatprep.subr.mxu0 0.0
      %6023 = vmatpush1.msra.mxu0 0.0
      %6024 = vmatprep.subr.mxu0 0.0
      %6025 = vmatpush1.msra.mxu0 0.0
      %6026 = vmatprep.subr.mxu0 0.0
      %6027 = vmatpush1.msra.mxu0 0.0
      %6028 = vmatprep.subr.mxu0 0.0
      %6029 = vmatpush1.msra.mxu0 0.0
      %6030 = vmatprep.subr.mxu0 0.0
      %6031 = vmatpush1.msra.mxu0 0.0
      %6032 = vmatprep.subr.mxu0 0.0
      %6033 = vmatpush1.msra.mxu0 0.0
      %6034 = vmatprep.subr.mxu0 0.0
      %6035 = vmatpush1.msra.mxu0 0.0
      %6036 = vmatprep.subr.mxu0 0.0
      %6037 = vmatpush1.msra.mxu0 0.0
      %6038 = vmatprep.subr.mxu0 0.0
      %6039 = vmatpush1.msra.mxu0 0.0
      %6040 = vmatprep.subr.mxu0 0.0
      %6041 = vmatpush1.msra.mxu0 0.0
      %6042 = vmatprep.subr.mxu0 0.0
      %6043 = vmatpush1.msra.mxu0 0.0
      %6044 = vmatprep.subr.mxu0 0.0
      %6045 = vmatpush1.msra.mxu0 0.0
      %6046 = vmatprep.subr.mxu0 0.0
      %6047 = vmatpush1.msra.mxu0 0.0
      %6048 = vmatprep.subr.mxu0 0.0
      %6049 = vmatpush1.msra.mxu0 0.0
      %6050 = vmatprep.subr.mxu0 0.0
      %6051 = vmatpush1.msra.mxu0 0.0
      %6052 = vmatprep.subr.mxu0 0.0
      %6053 = vmatpush1.msra.mxu0 0.0
      %6054 = vmatprep.subr.mxu0 0.0
      %6055 = vmatpush1.msra.mxu0 0.0
      %6056 = vmatprep.subr.mxu0 0.0
      %6057 = vmatpush1.msra.mxu0 0.0
      %6058 = vmatprep.subr.mxu0 0.0
      %6059 = vmatpush1.msra.mxu0 0.0
      %6060 = vmatprep.subr.mxu0 0.0
      %6061 = vmatpush1.msra.mxu0 0.0
      %6062 = vmatprep.subr.mxu0 0.0
      %6063 = vmatpush1.msra.mxu0 0.0
      %6064 = vmatprep.subr.mxu0 0.0
      %6065 = vmatpush1.msra.mxu0 0.0
      %6066 = vmatprep.subr.mxu0 0.0
      %6067 = vmatpush1.msra.mxu0 0.0
      %6068 = vmatprep.subr.mxu0 0.0
      %6069 = vmatpush1.msra.mxu0 0.0
      %6070 = vmatprep.mubr.f32.mxu0 0.0
      %6071 = vmatmul.mubr.f32.gmra.mrb[0].mxu0 %v5983
      %v6072 = vpop.f32.mrb[0].mxu0
      %v6073 = vadd.f32 0.0, %v6072
      %v6074 = vpop.f32.mrb[0].mxu0
      %6075 = vmatprep.mubr.f32.mxu0 0.0
      %6076 = vmatmul.mubr.f32.gmra.mrb[0].mxu0 %v5986
      %v6077 = vpop.f32.mrb[0].mxu0
      %v6078 = vadd.f32 0.0, %v6077
      %v6079 = vpop.f32.mrb[0].mxu0
      %6080 = vmatprep.mubr.f32.mxu0 0.0
      %6081 = vmatmul.mubr.f32.gmra.mrb[0].mxu0 %v5989
      %v6082 = vpop.f32.mrb[0].mxu0
      %v6083 = vadd.f32 0.0, %v6082
      %v6084 = vpop.f32.mrb[0].mxu0
      %6085 = vmatprep.mubr.f32.mxu0 0.0
      %6086 = vmatmul.mubr.f32.gmra.mrb[0].mxu0 %v5992
      %v6087 = vpop.f32.mrb[0].mxu0
      %v6088 = vadd.f32 0.0, %v6087
      %v6089 = vpop.f32.mrb[0].mxu0
      %6090 = vmatprep.mubr.f32.mxu0 0.0
      %6091 = vmatmul.mubr.f32.gmra.mrb[0].mxu0 %v5995
      %v6092 = vpop.f32.mrb[0].mxu0
      %v6093 = vadd.f32 0.0, %v6092
      %v6094 = vpop.f32.mrb[0].mxu0
      %6095 = vmatprep.mubr.f32.mxu0 0.0
      %6096 = vmatmul.mubr.f32.gmra.mrb[0].mxu0 %v5998
      %v6097 = vpop.f32.mrb[0].mxu0
      %v6098 = vadd.f32 0.0, %v6097
      %v6099 = vpop.f32.mrb[0].mxu0
      %6100 = vmatprep.mubr.f32.mxu0 0.0
      %6101 = vmatmul.mubr.f32.gmra.mrb[0].mxu0 %v6001
      %v6102 = vpop.f32.mrb[0].mxu0
      %v6103 = vadd.f32 0.0, %v6102
      %v6104 = vpop.f32.mrb[0].mxu0
      %6105 = vmatprep.mubr.f32.mxu0 0.0
      %6106 = vmatmul.mubr.f32.gmra.mrb[0].mxu0 %v6004
      %v6107 = vpop.f32.mrb[0].mxu0
      %v6108 = vadd.f32 0.0, %v6107
      %v6109 = vpop.f32.mrb[0].mxu0
      %6110 = vdwg.mxu0
      %v6111 = vadd.f32 %v5963, %v6073
      %v6112 = vadd.f32 %v5964, %v6078
      %v6113 = vadd.f32 %v5965, %v6083
      %v6114 = vadd.f32 %v5966, %v6088
      %v6115 = vadd.f32 %v5967, %v6093
      %v6116 = vadd.f32 %v5968, %v6098
      %v6117 = vadd.f32 %v5969, %v6103
      %v6118 = vadd.f32 %v5970, %v6108
      %v6119 = vld [vmem:[#allocation2 + $0x12] sm:$0xff]
      %v6120 = vld [vmem:[#allocation2 + $0x1a] sm:$0xff]
      %v6121 = vld [vmem:[#allocation2 + $0x22] sm:$0xff]
      %v6122 = vld [vmem:[#allocation2 + $0x2a] sm:$0xff]
      %v6123 = vld [vmem:[#allocation2 + $0x32] sm:$0xff]
      %v6124 = vld [vmem:[#allocation2 + $0x3a] sm:$0xff]
      %v6125 = vld [vmem:[#allocation2 + $0x42] sm:$0xff]
      %v6126 = vld [vmem:[#allocation2 + $0x4a] sm:$0x7f]
      %s6127 = scalar_lea.vmem %s4, 384
      %v6128 = vld [vmem:[%s6127] sm:$0xff]
      %v6129 = vld [vmem:[%s6127 + $0x8] sm:$0xff]
      %v6131 = vsel %vm2499, %v6119, 0
      %v6134 = vsel %vm2499, %v6120, 0
      %v6137 = vsel %vm2499, %v6121, 0
      %v6140 = vsel %vm2499, %v6122, 0
      %v6143 = vsel %vm2499, %v6123, 0
      %v6146 = vsel %vm2499, %v6124, 0
      %v6149 = vsel %vm2499, %v6125, 0
      %v6152 = vsel %vm2499, %v6126, 0
      %6154 = vmatprep.subr.mxu0 0.0
      %6155 = vmatpush1.msra.mxu0 %v6128
      %6156 = vmatprep.subr.mxu0 0.0
      %6157 = vmatpush1.msra.mxu0 %v6129
      %6158 = vmatprep.subr.mxu0 0.0
      %6159 = vmatpush1.msra.mxu0 0.0
      %6160 = vmatprep.subr.mxu0 0.0
      %6161 = vmatpush1.msra.mxu0 0.0
      %6162 = vmatprep.subr.mxu0 0.0
      %6163 = vmatpush1.msra.mxu0 0.0
      %6164 = vmatprep.subr.mxu0 0.0
      %6165 = vmatpush1.msra.mxu0 0.0
      %6166 = vmatprep.subr.mxu0 0.0
      %6167 = vmatpush1.msra.mxu0 0.0
      %6168 = vmatprep.subr.mxu0 0.0
      %6169 = vmatpush1.msra.mxu0 0.0
      %6170 = vmatprep.subr.mxu0 0.0
      %6171 = vmatpush1.msra.mxu0 0.0
      %6172 = vmatprep.subr.mxu0 0.0
      %6173 = vmatpush1.msra.mxu0 0.0
      %6174 = vmatprep.subr.mxu0 0.0
      %6175 = vmatpush1.msra.mxu0 0.0
      %6176 = vmatprep.subr.mxu0 0.0
      %6177 = vmatpush1.msra.mxu0 0.0
      %6178 = vmatprep.subr.mxu0 0.0
      %6179 = vmatpush1.msra.mxu0 0.0
      %6180 = vmatprep.subr.mxu0 0.0
      %6181 = vmatpush1.msra.mxu0 0.0
      %6182 = vmatprep.subr.mxu0 0.0
      %6183 = vmatpush1.msra.mxu0 0.0
      %6184 = vmatprep.subr.mxu0 0.0
      %6185 = vmatpush1.msra.mxu0 0.0
      %6186 = vmatprep.subr.mxu0 0.0
      %6187 = vmatpush1.msra.mxu0 0.0
      %6188 = vmatprep.subr.mxu0 0.0
      %6189 = vmatpush1.msra.mxu0 0.0
      %6190 = vmatprep.subr.mxu0 0.0
      %6191 = vmatpush1.msra.mxu0 0.0
      %6192 = vmatprep.subr.mxu0 0.0
      %6193 = vmatpush1.msra.mxu0 0.0
      %6194 = vmatprep.subr.mxu0 0.0
      %6195 = vmatpush1.msra.mxu0 0.0
      %6196 = vmatprep.subr.mxu0 0.0
      %6197 = vmatpush1.msra.mxu0 0.0
      %6198 = vmatprep.subr.mxu0 0.0
      %6199 = vmatpush1.msra.mxu0 0.0
      %6200 = vmatprep.subr.mxu0 0.0
      %6201 = vmatpush1.msra.mxu0 0.0
      %6202 = vmatprep.subr.mxu0 0.0
      %6203 = vmatpush1.msra.mxu0 0.0
      %6204 = vmatprep.subr.mxu0 0.0
      %6205 = vmatpush1.msra.mxu0 0.0
      %6206 = vmatprep.subr.mxu0 0.0
      %6207 = vmatpush1.msra.mxu0 0.0
      %6208 = vmatprep.subr.mxu0 0.0
      %6209 = vmatpush1.msra.mxu0 0.0
      %6210 = vmatprep.subr.mxu0 0.0
      %6211 = vmatpush1.msra.mxu0 0.0
      %6212 = vmatprep.subr.mxu0 0.0
      %6213 = vmatpush1.msra.mxu0 0.0
      %6214 = vmatprep.subr.mxu0 0.0
      %6215 = vmatpush1.msra.mxu0 0.0
      %6216 = vmatprep.subr.mxu0 0.0
      %6217 = vmatpush1.msra.mxu0 0.0
      %6218 = vmatprep.mubr.f32.mxu0 0.0
      %6219 = vmatmul.mubr.f32.gmra.mrb[0].mxu0 %v6131
      %v6220 = vpop.f32.mrb[0].mxu0
      %v6221 = vadd.f32 0.0, %v6220
      %v6222 = vpop.f32.mrb[0].mxu0
      %6223 = vmatprep.mubr.f32.mxu0 0.0
      %6224 = vmatmul.mubr.f32.gmra.mrb[0].mxu0 %v6134
      %v6225 = vpop.f32.mrb[0].mxu0
      %v6226 = vadd.f32 0.0, %v6225
      %v6227 = vpop.f32.mrb[0].mxu0
      %6228 = vmatprep.mubr.f32.mxu0 0.0
      %6229 = vmatmul.mubr.f32.gmra.mrb[0].mxu0 %v6137
      %v6230 = vpop.f32.mrb[0].mxu0
      %v6231 = vadd.f32 0.0, %v6230
      %v6232 = vpop.f32.mrb[0].mxu0
      %6233 = vmatprep.mubr.f32.mxu0 0.0
      %6234 = vmatmul.mubr.f32.gmra.mrb[0].mxu0 %v6140
      %v6235 = vpop.f32.mrb[0].mxu0
      %v6236 = vadd.f32 0.0, %v6235
      %v6237 = vpop.f32.mrb[0].mxu0
      %6238 = vmatprep.mubr.f32.mxu0 0.0
      %6239 = vmatmul.mubr.f32.gmra.mrb[0].mxu0 %v6143
      %v6240 = vpop.f32.mrb[0].mxu0
      %v6241 = vadd.f32 0.0, %v6240
      %v6242 = vpop.f32.mrb[0].mxu0
      %6243 = vmatprep.mubr.f32.mxu0 0.0
      %6244 = vmatmul.mubr.f32.gmra.mrb[0].mxu0 %v6146
      %v6245 = vpop.f32.mrb[0].mxu0
      %v6246 = vadd.f32 0.0, %v6245
      %v6247 = vpop.f32.mrb[0].mxu0
      %6248 = vmatprep.mubr.f32.mxu0 0.0
      %6249 = vmatmul.mubr.f32.gmra.mrb[0].mxu0 %v6149
      %v6250 = vpop.f32.mrb[0].mxu0
      %v6251 = vadd.f32 0.0, %v6250
      %v6252 = vpop.f32.mrb[0].mxu0
      %6253 = vmatprep.mubr.f32.mxu0 0.0
      %6254 = vmatmul.mubr.f32.gmra.mrb[0].mxu0 %v6152
      %v6255 = vpop.f32.mrb[0].mxu0
      %v6256 = vadd.f32 0.0, %v6255
      %v6257 = vpop.f32.mrb[0].mxu0
      %6258 = vdwg.mxu0
      %v6259 = vadd.f32 %v6111, %v6221
      %v6260 = vadd.f32 %v6112, %v6226
      %v6261 = vadd.f32 %v6113, %v6231
      %v6262 = vadd.f32 %v6114, %v6236
      %v6263 = vadd.f32 %v6115, %v6241
      %v6264 = vadd.f32 %v6116, %v6246
      %v6265 = vadd.f32 %v6117, %v6251
      %v6266 = vadd.f32 %v6118, %v6256
      %v6267 = vld [vmem:[#allocation2 + $0x63] sm:$0xff]
      %v6268 = vld [vmem:[#allocation2 + $0x6b] sm:$0xff]
      %v6269 = vld [vmem:[#allocation2 + $0x73] sm:$0xff]
      %v6270 = vld [vmem:[#allocation2 + $0x7b] sm:$0xff]
      %v6271 = vld [vmem:[#allocation2 + $0x83] sm:$0xff]
      %v6272 = vld [vmem:[#allocation2 + $0x8b] sm:$0xff]
      %v6273 = vld [vmem:[#allocation2 + $0x93] sm:$0xff]
      %v6274 = vld [vmem:[#allocation2 + $0x9b] sm:$0x7f]
      %s6275 = scalar_lea.vmem %s4, 400
      %v6276 = vld [vmem:[%s6275] sm:$0xff]
      %v6277 = vld [vmem:[%s6275 + $0x8] sm:$0xff]
      %v6279 = vsel %vm2499, %v6267, 0
      %v6282 = vsel %vm2499, %v6268, 0
      %v6285 = vsel %vm2499, %v6269, 0
      %v6288 = vsel %vm2499, %v6270, 0
      %v6291 = vsel %vm2499, %v6271, 0
      %v6294 = vsel %vm2499, %v6272, 0
      %v6297 = vsel %vm2499, %v6273, 0
      %v6300 = vsel %vm2499, %v6274, 0
      %6302 = vmatprep.subr.mxu0 0.0
      %6303 = vmatpush1.msra.mxu0 %v6276
      %6304 = vmatprep.subr.mxu0 0.0
      %6305 = vmatpush1.msra.mxu0 %v6277
      %6306 = vmatprep.subr.mxu0 0.0
      %6307 = vmatpush1.msra.mxu0 0.0
      %6308 = vmatprep.subr.mxu0 0.0
      %6309 = vmatpush1.msra.mxu0 0.0
      %6310 = vmatprep.subr.mxu0 0.0
      %6311 = vmatpush1.msra.mxu0 0.0
      %6312 = vmatprep.subr.mxu0 0.0
      %6313 = vmatpush1.msra.mxu0 0.0
      %6314 = vmatprep.subr.mxu0 0.0
      %6315 = vmatpush1.msra.mxu0 0.0
      %6316 = vmatprep.subr.mxu0 0.0
      %6317 = vmatpush1.msra.mxu0 0.0
      %6318 = vmatprep.subr.mxu0 0.0
      %6319 = vmatpush1.msra.mxu0 0.0
      %6320 = vmatprep.subr.mxu0 0.0
      %6321 = vmatpush1.msra.mxu0 0.0
      %6322 = vmatprep.subr.mxu0 0.0
      %6323 = vmatpush1.msra.mxu0 0.0
      %6324 = vmatprep.subr.mxu0 0.0
      %6325 = vmatpush1.msra.mxu0 0.0
      %6326 = vmatprep.subr.mxu0 0.0
      %6327 = vmatpush1.msra.mxu0 0.0
      %6328 = vmatprep.subr.mxu0 0.0
      %6329 = vmatpush1.msra.mxu0 0.0
      %6330 = vmatprep.subr.mxu0 0.0
      %6331 = vmatpush1.msra.mxu0 0.0
      %6332 = vmatprep.subr.mxu0 0.0
      %6333 = vmatpush1.msra.mxu0 0.0
      %6334 = vmatprep.subr.mxu0 0.0
      %6335 = vmatpush1.msra.mxu0 0.0
      %6336 = vmatprep.subr.mxu0 0.0
      %6337 = vmatpush1.msra.mxu0 0.0
      %6338 = vmatprep.subr.mxu0 0.0
      %6339 = vmatpush1.msra.mxu0 0.0
      %6340 = vmatprep.subr.mxu0 0.0
      %6341 = vmatpush1.msra.mxu0 0.0
      %6342 = vmatprep.subr.mxu0 0.0
      %6343 = vmatpush1.msra.mxu0 0.0
      %6344 = vmatprep.subr.mxu0 0.0
      %6345 = vmatpush1.msra.mxu0 0.0
      %6346 = vmatprep.subr.mxu0 0.0
      %6347 = vmatpush1.msra.mxu0 0.0
      %6348 = vmatprep.subr.mxu0 0.0
      %6349 = vmatpush1.msra.mxu0 0.0
      %6350 = vmatprep.subr.mxu0 0.0
      %6351 = vmatpush1.msra.mxu0 0.0
      %6352 = vmatprep.subr.mxu0 0.0
      %6353 = vmatpush1.msra.mxu0 0.0
      %6354 = vmatprep.subr.mxu0 0.0
      %6355 = vmatpush1.msra.mxu0 0.0
      %6356 = vmatprep.subr.mxu0 0.0
      %6357 = vmatpush1.msra.mxu0 0.0
      %6358 = vmatprep.subr.mxu0 0.0
      %6359 = vmatpush1.msra.mxu0 0.0
      %6360 = vmatprep.subr.mxu0 0.0
      %6361 = vmatpush1.msra.mxu0 0.0
      %6362 = vmatprep.subr.mxu0 0.0
      %6363 = vmatpush1.msra.mxu0 0.0
      %6364 = vmatprep.subr.mxu0 0.0
      %6365 = vmatpush1.msra.mxu0 0.0
      %6366 = vmatprep.mubr.f32.mxu0 0.0
      %6367 = vmatmul.mubr.f32.gmra.mrb[0].mxu0 %v6279
      %v6368 = vpop.f32.mrb[0].mxu0
      %v6369 = vadd.f32 0.0, %v6368
      %v6370 = vpop.f32.mrb[0].mxu0
      %6371 = vmatprep.mubr.f32.mxu0 0.0
      %6372 = vmatmul.mubr.f32.gmra.mrb[0].mxu0 %v6282
      %v6373 = vpop.f32.mrb[0].mxu0
      %v6374 = vadd.f32 0.0, %v6373
      %v6375 = vpop.f32.mrb[0].mxu0
      %6376 = vmatprep.mubr.f32.mxu0 0.0
      %6377 = vmatmul.mubr.f32.gmra.mrb[0].mxu0 %v6285
      %v6378 = vpop.f32.mrb[0].mxu0
      %v6379 = vadd.f32 0.0, %v6378
      %v6380 = vpop.f32.mrb[0].mxu0
      %6381 = vmatprep.mubr.f32.mxu0 0.0
      %6382 = vmatmul.mubr.f32.gmra.mrb[0].mxu0 %v6288
      %v6383 = vpop.f32.mrb[0].mxu0
      %v6384 = vadd.f32 0.0, %v6383
      %v6385 = vpop.f32.mrb[0].mxu0
      %6386 = vmatprep.mubr.f32.mxu0 0.0
      %6387 = vmatmul.mubr.f32.gmra.mrb[0].mxu0 %v6291
      %v6388 = vpop.f32.mrb[0].mxu0
      %v6389 = vadd.f32 0.0, %v6388
      %v6390 = vpop.f32.mrb[0].mxu0
      %6391 = vmatprep.mubr.f32.mxu0 0.0
      %6392 = vmatmul.mubr.f32.gmra.mrb[0].mxu0 %v6294
      %v6393 = vpop.f32.mrb[0].mxu0
      %v6394 = vadd.f32 0.0, %v6393
      %v6395 = vpop.f32.mrb[0].mxu0
      %6396 = vmatprep.mubr.f32.mxu0 0.0
      %6397 = vmatmul.mubr.f32.gmra.mrb[0].mxu0 %v6297
      %v6398 = vpop.f32.mrb[0].mxu0
      %v6399 = vadd.f32 0.0, %v6398
      %v6400 = vpop.f32.mrb[0].mxu0
      %6401 = vmatprep.mubr.f32.mxu0 0.0
      %6402 = vmatmul.mubr.f32.gmra.mrb[0].mxu0 %v6300
      %v6403 = vpop.f32.mrb[0].mxu0
      %v6404 = vadd.f32 0.0, %v6403
      %v6405 = vpop.f32.mrb[0].mxu0
      %6406 = vdwg.mxu0
      %v6407 = vadd.f32 %v6259, %v6369
      %v6408 = vadd.f32 %v6260, %v6374
      %v6409 = vadd.f32 %v6261, %v6379
      %v6410 = vadd.f32 %v6262, %v6384
      %v6411 = vadd.f32 %v6263, %v6389
      %v6412 = vadd.f32 %v6264, %v6394
      %v6413 = vadd.f32 %v6265, %v6399
      %v6414 = vadd.f32 %v6266, %v6404
      %v6415 = vld [vmem:[#allocation2 + $0x13] sm:$0xff]
      %v6416 = vld [vmem:[#allocation2 + $0x1b] sm:$0xff]
      %v6417 = vld [vmem:[#allocation2 + $0x23] sm:$0xff]
      %v6418 = vld [vmem:[#allocation2 + $0x2b] sm:$0xff]
      %v6419 = vld [vmem:[#allocation2 + $0x33] sm:$0xff]
      %v6420 = vld [vmem:[#allocation2 + $0x3b] sm:$0xff]
      %v6421 = vld [vmem:[#allocation2 + $0x43] sm:$0xff]
      %v6422 = vld [vmem:[#allocation2 + $0x4b] sm:$0x7f]
      %s6423 = scalar_lea.vmem %s4, 416
      %v6424 = vld [vmem:[%s6423] sm:$0xff]
      %v6425 = vld [vmem:[%s6423 + $0x8] sm:$0xff]
      %v6427 = vsel %vm2499, %v6415, 0
      %v6430 = vsel %vm2499, %v6416, 0
      %v6433 = vsel %vm2499, %v6417, 0
      %v6436 = vsel %vm2499, %v6418, 0
      %v6439 = vsel %vm2499, %v6419, 0
      %v6442 = vsel %vm2499, %v6420, 0
      %v6445 = vsel %vm2499, %v6421, 0
      %v6448 = vsel %vm2499, %v6422, 0
      %6450 = vmatprep.subr.mxu0 0.0
      %6451 = vmatpush1.msra.mxu0 %v6424
      %6452 = vmatprep.subr.mxu0 0.0
      %6453 = vmatpush1.msra.mxu0 %v6425
      %6454 = vmatprep.subr.mxu0 0.0
      %6455 = vmatpush1.msra.mxu0 0.0
      %6456 = vmatprep.subr.mxu0 0.0
      %6457 = vmatpush1.msra.mxu0 0.0
      %6458 = vmatprep.subr.mxu0 0.0
      %6459 = vmatpush1.msra.mxu0 0.0
      %6460 = vmatprep.subr.mxu0 0.0
      %6461 = vmatpush1.msra.mxu0 0.0
      %6462 = vmatprep.subr.mxu0 0.0
      %6463 = vmatpush1.msra.mxu0 0.0
      %6464 = vmatprep.subr.mxu0 0.0
      %6465 = vmatpush1.msra.mxu0 0.0
      %6466 = vmatprep.subr.mxu0 0.0
      %6467 = vmatpush1.msra.mxu0 0.0
      %6468 = vmatprep.subr.mxu0 0.0
      %6469 = vmatpush1.msra.mxu0 0.0
      %6470 = vmatprep.subr.mxu0 0.0
      %6471 = vmatpush1.msra.mxu0 0.0
      %6472 = vmatprep.subr.mxu0 0.0
      %6473 = vmatpush1.msra.mxu0 0.0
      %6474 = vmatprep.subr.mxu0 0.0
      %6475 = vmatpush1.msra.mxu0 0.0
      %6476 = vmatprep.subr.mxu0 0.0
      %6477 = vmatpush1.msra.mxu0 0.0
      %6478 = vmatprep.subr.mxu0 0.0
      %6479 = vmatpush1.msra.mxu0 0.0
      %6480 = vmatprep.subr.mxu0 0.0
      %6481 = vmatpush1.msra.mxu0 0.0
      %6482 = vmatprep.subr.mxu0 0.0
      %6483 = vmatpush1.msra.mxu0 0.0
      %6484 = vmatprep.subr.mxu0 0.0
      %6485 = vmatpush1.msra.mxu0 0.0
      %6486 = vmatprep.subr.mxu0 0.0
      %6487 = vmatpush1.msra.mxu0 0.0
      %6488 = vmatprep.subr.mxu0 0.0
      %6489 = vmatpush1.msra.mxu0 0.0
      %6490 = vmatprep.subr.mxu0 0.0
      %6491 = vmatpush1.msra.mxu0 0.0
      %6492 = vmatprep.subr.mxu0 0.0
      %6493 = vmatpush1.msra.mxu0 0.0
      %6494 = vmatprep.subr.mxu0 0.0
      %6495 = vmatpush1.msra.mxu0 0.0
      %6496 = vmatprep.subr.mxu0 0.0
      %6497 = vmatpush1.msra.mxu0 0.0
      %6498 = vmatprep.subr.mxu0 0.0
      %6499 = vmatpush1.msra.mxu0 0.0
      %6500 = vmatprep.subr.mxu0 0.0
      %6501 = vmatpush1.msra.mxu0 0.0
      %6502 = vmatprep.subr.mxu0 0.0
      %6503 = vmatpush1.msra.mxu0 0.0
      %6504 = vmatprep.subr.mxu0 0.0
      %6505 = vmatpush1.msra.mxu0 0.0
      %6506 = vmatprep.subr.mxu0 0.0
      %6507 = vmatpush1.msra.mxu0 0.0
      %6508 = vmatprep.subr.mxu0 0.0
      %6509 = vmatpush1.msra.mxu0 0.0
      %6510 = vmatprep.subr.mxu0 0.0
      %6511 = vmatpush1.msra.mxu0 0.0
      %6512 = vmatprep.subr.mxu0 0.0
      %6513 = vmatpush1.msra.mxu0 0.0
      %6514 = vmatprep.mubr.f32.mxu0 0.0
      %6515 = vmatmul.mubr.f32.gmra.mrb[0].mxu0 %v6427
      %v6516 = vpop.f32.mrb[0].mxu0
      %v6517 = vadd.f32 0.0, %v6516
      %v6518 = vpop.f32.mrb[0].mxu0
      %6519 = vmatprep.mubr.f32.mxu0 0.0
      %6520 = vmatmul.mubr.f32.gmra.mrb[0].mxu0 %v6430
      %v6521 = vpop.f32.mrb[0].mxu0
      %v6522 = vadd.f32 0.0, %v6521
      %v6523 = vpop.f32.mrb[0].mxu0
      %6524 = vmatprep.mubr.f32.mxu0 0.0
      %6525 = vmatmul.mubr.f32.gmra.mrb[0].mxu0 %v6433
      %v6526 = vpop.f32.mrb[0].mxu0
      %v6527 = vadd.f32 0.0, %v6526
      %v6528 = vpop.f32.mrb[0].mxu0
      %6529 = vmatprep.mubr.f32.mxu0 0.0
      %6530 = vmatmul.mubr.f32.gmra.mrb[0].mxu0 %v6436
      %v6531 = vpop.f32.mrb[0].mxu0
      %v6532 = vadd.f32 0.0, %v6531
      %v6533 = vpop.f32.mrb[0].mxu0
      %6534 = vmatprep.mubr.f32.mxu0 0.0
      %6535 = vmatmul.mubr.f32.gmra.mrb[0].mxu0 %v6439
      %v6536 = vpop.f32.mrb[0].mxu0
      %v6537 = vadd.f32 0.0, %v6536
      %v6538 = vpop.f32.mrb[0].mxu0
      %6539 = vmatprep.mubr.f32.mxu0 0.0
      %6540 = vmatmul.mubr.f32.gmra.mrb[0].mxu0 %v6442
      %v6541 = vpop.f32.mrb[0].mxu0
      %v6542 = vadd.f32 0.0, %v6541
      %v6543 = vpop.f32.mrb[0].mxu0
      %6544 = vmatprep.mubr.f32.mxu0 0.0
      %6545 = vmatmul.mubr.f32.gmra.mrb[0].mxu0 %v6445
      %v6546 = vpop.f32.mrb[0].mxu0
      %v6547 = vadd.f32 0.0, %v6546
      %v6548 = vpop.f32.mrb[0].mxu0
      %6549 = vmatprep.mubr.f32.mxu0 0.0
      %6550 = vmatmul.mubr.f32.gmra.mrb[0].mxu0 %v6448
      %v6551 = vpop.f32.mrb[0].mxu0
      %v6552 = vadd.f32 0.0, %v6551
      %v6553 = vpop.f32.mrb[0].mxu0
      %6554 = vdwg.mxu0
      %v6555 = vadd.f32 %v6407, %v6517
      %v6556 = vadd.f32 %v6408, %v6522
      %v6557 = vadd.f32 %v6409, %v6527
      %v6558 = vadd.f32 %v6410, %v6532
      %v6559 = vadd.f32 %v6411, %v6537
      %v6560 = vadd.f32 %v6412, %v6542
      %v6561 = vadd.f32 %v6413, %v6547
      %v6562 = vadd.f32 %v6414, %v6552
      %v6563 = vld [vmem:[#allocation2 + $0x64] sm:$0xff]
      %v6564 = vld [vmem:[#allocation2 + $0x6c] sm:$0xff]
      %v6565 = vld [vmem:[#allocation2 + $0x74] sm:$0xff]
      %v6566 = vld [vmem:[#allocation2 + $0x7c] sm:$0xff]
      %v6567 = vld [vmem:[#allocation2 + $0x84] sm:$0xff]
      %v6568 = vld [vmem:[#allocation2 + $0x8c] sm:$0xff]
      %v6569 = vld [vmem:[#allocation2 + $0x94] sm:$0xff]
      %v6570 = vld [vmem:[#allocation2 + $0x9c] sm:$0x7f]
      %s6571 = scalar_lea.vmem %s4, 432
      %v6572 = vld [vmem:[%s6571] sm:$0xff]
      %v6573 = vld [vmem:[%s6571 + $0x8] sm:$0xff]
      %v6575 = vsel %vm2499, %v6563, 0
      %v6578 = vsel %vm2499, %v6564, 0
      %v6581 = vsel %vm2499, %v6565, 0
      %v6584 = vsel %vm2499, %v6566, 0
      %v6587 = vsel %vm2499, %v6567, 0
      %v6590 = vsel %vm2499, %v6568, 0
      %v6593 = vsel %vm2499, %v6569, 0
      %v6596 = vsel %vm2499, %v6570, 0
      %6598 = vmatprep.subr.mxu0 0.0
      %6599 = vmatpush1.msra.mxu0 %v6572
      %6600 = vmatprep.subr.mxu0 0.0
      %6601 = vmatpush1.msra.mxu0 %v6573
      %6602 = vmatprep.subr.mxu0 0.0
      %6603 = vmatpush1.msra.mxu0 0.0
      %6604 = vmatprep.subr.mxu0 0.0
      %6605 = vmatpush1.msra.mxu0 0.0
      %6606 = vmatprep.subr.mxu0 0.0
      %6607 = vmatpush1.msra.mxu0 0.0
      %6608 = vmatprep.subr.mxu0 0.0
      %6609 = vmatpush1.msra.mxu0 0.0
      %6610 = vmatprep.subr.mxu0 0.0
      %6611 = vmatpush1.msra.mxu0 0.0
      %6612 = vmatprep.subr.mxu0 0.0
      %6613 = vmatpush1.msra.mxu0 0.0
      %6614 = vmatprep.subr.mxu0 0.0
      %6615 = vmatpush1.msra.mxu0 0.0
      %6616 = vmatprep.subr.mxu0 0.0
      %6617 = vmatpush1.msra.mxu0 0.0
      %6618 = vmatprep.subr.mxu0 0.0
      %6619 = vmatpush1.msra.mxu0 0.0
      %6620 = vmatprep.subr.mxu0 0.0
      %6621 = vmatpush1.msra.mxu0 0.0
      %6622 = vmatprep.subr.mxu0 0.0
      %6623 = vmatpush1.msra.mxu0 0.0
      %6624 = vmatprep.subr.mxu0 0.0
      %6625 = vmatpush1.msra.mxu0 0.0
      %6626 = vmatprep.subr.mxu0 0.0
      %6627 = vmatpush1.msra.mxu0 0.0
      %6628 = vmatprep.subr.mxu0 0.0
      %6629 = vmatpush1.msra.mxu0 0.0
      %6630 = vmatprep.subr.mxu0 0.0
      %6631 = vmatpush1.msra.mxu0 0.0
      %6632 = vmatprep.subr.mxu0 0.0
      %6633 = vmatpush1.msra.mxu0 0.0
      %6634 = vmatprep.subr.mxu0 0.0
      %6635 = vmatpush1.msra.mxu0 0.0
      %6636 = vmatprep.subr.mxu0 0.0
      %6637 = vmatpush1.msra.mxu0 0.0
      %6638 = vmatprep.subr.mxu0 0.0
      %6639 = vmatpush1.msra.mxu0 0.0
      %6640 = vmatprep.subr.mxu0 0.0
      %6641 = vmatpush1.msra.mxu0 0.0
      %6642 = vmatprep.subr.mxu0 0.0
      %6643 = vmatpush1.msra.mxu0 0.0
      %6644 = vmatprep.subr.mxu0 0.0
      %6645 = vmatpush1.msra.mxu0 0.0
      %6646 = vmatprep.subr.mxu0 0.0
      %6647 = vmatpush1.msra.mxu0 0.0
      %6648 = vmatprep.subr.mxu0 0.0
      %6649 = vmatpush1.msra.mxu0 0.0
      %6650 = vmatprep.subr.mxu0 0.0
      %6651 = vmatpush1.msra.mxu0 0.0
      %6652 = vmatprep.subr.mxu0 0.0
      %6653 = vmatpush1.msra.mxu0 0.0
      %6654 = vmatprep.subr.mxu0 0.0
      %6655 = vmatpush1.msra.mxu0 0.0
      %6656 = vmatprep.subr.mxu0 0.0
      %6657 = vmatpush1.msra.mxu0 0.0
      %6658 = vmatprep.subr.mxu0 0.0
      %6659 = vmatpush1.msra.mxu0 0.0
      %6660 = vmatprep.subr.mxu0 0.0
      %6661 = vmatpush1.msra.mxu0 0.0
      %6662 = vmatprep.mubr.f32.mxu0 0.0
      %6663 = vmatmul.mubr.f32.gmra.mrb[0].mxu0 %v6575
      %v6664 = vpop.f32.mrb[0].mxu0
      %v6665 = vadd.f32 0.0, %v6664
      %v6666 = vpop.f32.mrb[0].mxu0
      %6667 = vmatprep.mubr.f32.mxu0 0.0
      %6668 = vmatmul.mubr.f32.gmra.mrb[0].mxu0 %v6578
      %v6669 = vpop.f32.mrb[0].mxu0
      %v6670 = vadd.f32 0.0, %v6669
      %v6671 = vpop.f32.mrb[0].mxu0
      %6672 = vmatprep.mubr.f32.mxu0 0.0
      %6673 = vmatmul.mubr.f32.gmra.mrb[0].mxu0 %v6581
      %v6674 = vpop.f32.mrb[0].mxu0
      %v6675 = vadd.f32 0.0, %v6674
      %v6676 = vpop.f32.mrb[0].mxu0
      %6677 = vmatprep.mubr.f32.mxu0 0.0
      %6678 = vmatmul.mubr.f32.gmra.mrb[0].mxu0 %v6584
      %v6679 = vpop.f32.mrb[0].mxu0
      %v6680 = vadd.f32 0.0, %v6679
      %v6681 = vpop.f32.mrb[0].mxu0
      %6682 = vmatprep.mubr.f32.mxu0 0.0
      %6683 = vmatmul.mubr.f32.gmra.mrb[0].mxu0 %v6587
      %v6684 = vpop.f32.mrb[0].mxu0
      %v6685 = vadd.f32 0.0, %v6684
      %v6686 = vpop.f32.mrb[0].mxu0
      %6687 = vmatprep.mubr.f32.mxu0 0.0
      %6688 = vmatmul.mubr.f32.gmra.mrb[0].mxu0 %v6590
      %v6689 = vpop.f32.mrb[0].mxu0
      %v6690 = vadd.f32 0.0, %v6689
      %v6691 = vpop.f32.mrb[0].mxu0
      %6692 = vmatprep.mubr.f32.mxu0 0.0
      %6693 = vmatmul.mubr.f32.gmra.mrb[0].mxu0 %v6593
      %v6694 = vpop.f32.mrb[0].mxu0
      %v6695 = vadd.f32 0.0, %v6694
      %v6696 = vpop.f32.mrb[0].mxu0
      %6697 = vmatprep.mubr.f32.mxu0 0.0
      %6698 = vmatmul.mubr.f32.gmra.mrb[0].mxu0 %v6596
      %v6699 = vpop.f32.mrb[0].mxu0
      %v6700 = vadd.f32 0.0, %v6699
      %v6701 = vpop.f32.mrb[0].mxu0
      %6702 = vdwg.mxu0
      %v6703 = vadd.f32 %v6555, %v6665
      %v6704 = vadd.f32 %v6556, %v6670
      %v6705 = vadd.f32 %v6557, %v6675
      %v6706 = vadd.f32 %v6558, %v6680
      %v6707 = vadd.f32 %v6559, %v6685
      %v6708 = vadd.f32 %v6560, %v6690
      %v6709 = vadd.f32 %v6561, %v6695
      %v6710 = vadd.f32 %v6562, %v6700
      %v6711 = vld [vmem:[#allocation2 + $0x14] sm:$0xff]
      %v6712 = vld [vmem:[#allocation2 + $0x1c] sm:$0xff]
      %v6713 = vld [vmem:[#allocation2 + $0x24] sm:$0xff]
      %v6714 = vld [vmem:[#allocation2 + $0x2c] sm:$0xff]
      %v6715 = vld [vmem:[#allocation2 + $0x34] sm:$0xff]
      %v6716 = vld [vmem:[#allocation2 + $0x3c] sm:$0xff]
      %v6717 = vld [vmem:[#allocation2 + $0x44] sm:$0xff]
      %v6718 = vld [vmem:[#allocation2 + $0x4c] sm:$0x7f]
      %s6719 = scalar_lea.vmem %s4, 448
      %v6720 = vld [vmem:[%s6719] sm:$0xff]
      %v6721 = vld [vmem:[%s6719 + $0x8] sm:$0xff]
      %v6723 = vsel %vm2499, %v6711, 0
      %v6726 = vsel %vm2499, %v6712, 0
      %v6729 = vsel %vm2499, %v6713, 0
      %v6732 = vsel %vm2499, %v6714, 0
      %v6735 = vsel %vm2499, %v6715, 0
      %v6738 = vsel %vm2499, %v6716, 0
      %v6741 = vsel %vm2499, %v6717, 0
      %v6744 = vsel %vm2499, %v6718, 0
      %6746 = vmatprep.subr.mxu0 0.0
      %6747 = vmatpush1.msra.mxu0 %v6720
      %6748 = vmatprep.subr.mxu0 0.0
      %6749 = vmatpush1.msra.mxu0 %v6721
      %6750 = vmatprep.subr.mxu0 0.0
      %6751 = vmatpush1.msra.mxu0 0.0
      %6752 = vmatprep.subr.mxu0 0.0
      %6753 = vmatpush1.msra.mxu0 0.0
      %6754 = vmatprep.subr.mxu0 0.0
      %6755 = vmatpush1.msra.mxu0 0.0
      %6756 = vmatprep.subr.mxu0 0.0
      %6757 = vmatpush1.msra.mxu0 0.0
      %6758 = vmatprep.subr.mxu0 0.0
      %6759 = vmatpush1.msra.mxu0 0.0
      %6760 = vmatprep.subr.mxu0 0.0
      %6761 = vmatpush1.msra.mxu0 0.0
      %6762 = vmatprep.subr.mxu0 0.0
      %6763 = vmatpush1.msra.mxu0 0.0
      %6764 = vmatprep.subr.mxu0 0.0
      %6765 = vmatpush1.msra.mxu0 0.0
      %6766 = vmatprep.subr.mxu0 0.0
      %6767 = vmatpush1.msra.mxu0 0.0
      %6768 = vmatprep.subr.mxu0 0.0
      %6769 = vmatpush1.msra.mxu0 0.0
      %6770 = vmatprep.subr.mxu0 0.0
      %6771 = vmatpush1.msra.mxu0 0.0
      %6772 = vmatprep.subr.mxu0 0.0
      %6773 = vmatpush1.msra.mxu0 0.0
      %6774 = vmatprep.subr.mxu0 0.0
      %6775 = vmatpush1.msra.mxu0 0.0
      %6776 = vmatprep.subr.mxu0 0.0
      %6777 = vmatpush1.msra.mxu0 0.0
      %6778 = vmatprep.subr.mxu0 0.0
      %6779 = vmatpush1.msra.mxu0 0.0
      %6780 = vmatprep.subr.mxu0 0.0
      %6781 = vmatpush1.msra.mxu0 0.0
      %6782 = vmatprep.subr.mxu0 0.0
      %6783 = vmatpush1.msra.mxu0 0.0
      %6784 = vmatprep.subr.mxu0 0.0
      %6785 = vmatpush1.msra.mxu0 0.0
      %6786 = vmatprep.subr.mxu0 0.0
      %6787 = vmatpush1.msra.mxu0 0.0
      %6788 = vmatprep.subr.mxu0 0.0
      %6789 = vmatpush1.msra.mxu0 0.0
      %6790 = vmatprep.subr.mxu0 0.0
      %6791 = vmatpush1.msra.mxu0 0.0
      %6792 = vmatprep.subr.mxu0 0.0
      %6793 = vmatpush1.msra.mxu0 0.0
      %6794 = vmatprep.subr.mxu0 0.0
      %6795 = vmatpush1.msra.mxu0 0.0
      %6796 = vmatprep.subr.mxu0 0.0
      %6797 = vmatpush1.msra.mxu0 0.0
      %6798 = vmatprep.subr.mxu0 0.0
      %6799 = vmatpush1.msra.mxu0 0.0
      %6800 = vmatprep.subr.mxu0 0.0
      %6801 = vmatpush1.msra.mxu0 0.0
      %6802 = vmatprep.subr.mxu0 0.0
      %6803 = vmatpush1.msra.mxu0 0.0
      %6804 = vmatprep.subr.mxu0 0.0
      %6805 = vmatpush1.msra.mxu0 0.0
      %6806 = vmatprep.subr.mxu0 0.0
      %6807 = vmatpush1.msra.mxu0 0.0
      %6808 = vmatprep.subr.mxu0 0.0
      %6809 = vmatpush1.msra.mxu0 0.0
      %6810 = vmatprep.mubr.f32.mxu0 0.0
      %6811 = vmatmul.mubr.f32.gmra.mrb[0].mxu0 %v6723
      %v6812 = vpop.f32.mrb[0].mxu0
      %v6813 = vadd.f32 0.0, %v6812
      %v6814 = vpop.f32.mrb[0].mxu0
      %6815 = vmatprep.mubr.f32.mxu0 0.0
      %6816 = vmatmul.mubr.f32.gmra.mrb[0].mxu0 %v6726
      %v6817 = vpop.f32.mrb[0].mxu0
      %v6818 = vadd.f32 0.0, %v6817
      %v6819 = vpop.f32.mrb[0].mxu0
      %6820 = vmatprep.mubr.f32.mxu0 0.0
      %6821 = vmatmul.mubr.f32.gmra.mrb[0].mxu0 %v6729
      %v6822 = vpop.f32.mrb[0].mxu0
      %v6823 = vadd.f32 0.0, %v6822
      %v6824 = vpop.f32.mrb[0].mxu0
      %6825 = vmatprep.mubr.f32.mxu0 0.0
      %6826 = vmatmul.mubr.f32.gmra.mrb[0].mxu0 %v6732
      %v6827 = vpop.f32.mrb[0].mxu0
      %v6828 = vadd.f32 0.0, %v6827
      %v6829 = vpop.f32.mrb[0].mxu0
      %6830 = vmatprep.mubr.f32.mxu0 0.0
      %6831 = vmatmul.mubr.f32.gmra.mrb[0].mxu0 %v6735
      %v6832 = vpop.f32.mrb[0].mxu0
      %v6833 = vadd.f32 0.0, %v6832
      %v6834 = vpop.f32.mrb[0].mxu0
      %6835 = vmatprep.mubr.f32.mxu0 0.0
      %6836 = vmatmul.mubr.f32.gmra.mrb[0].mxu0 %v6738
      %v6837 = vpop.f32.mrb[0].mxu0
      %v6838 = vadd.f32 0.0, %v6837
      %v6839 = vpop.f32.mrb[0].mxu0
      %6840 = vmatprep.mubr.f32.mxu0 0.0
      %6841 = vmatmul.mubr.f32.gmra.mrb[0].mxu0 %v6741
      %v6842 = vpop.f32.mrb[0].mxu0
      %v6843 = vadd.f32 0.0, %v6842
      %v6844 = vpop.f32.mrb[0].mxu0
      %6845 = vmatprep.mubr.f32.mxu0 0.0
      %6846 = vmatmul.mubr.f32.gmra.mrb[0].mxu0 %v6744
      %v6847 = vpop.f32.mrb[0].mxu0
      %v6848 = vadd.f32 0.0, %v6847
      %v6849 = vpop.f32.mrb[0].mxu0
      %6850 = vdwg.mxu0
      %v6851 = vadd.f32 %v6703, %v6813
      %v6852 = vadd.f32 %v6704, %v6818
      %v6853 = vadd.f32 %v6705, %v6823
      %v6854 = vadd.f32 %v6706, %v6828
      %v6855 = vadd.f32 %v6707, %v6833
      %v6856 = vadd.f32 %v6708, %v6838
      %v6857 = vadd.f32 %v6709, %v6843
      %v6858 = vadd.f32 %v6710, %v6848
      %v6859 = vld [vmem:[#allocation2 + $0x65] sm:$0xff]
      %v6860 = vld [vmem:[#allocation2 + $0x6d] sm:$0xff]
      %v6861 = vld [vmem:[#allocation2 + $0x75] sm:$0xff]
      %v6862 = vld [vmem:[#allocation2 + $0x7d] sm:$0xff]
      %v6863 = vld [vmem:[#allocation2 + $0x85] sm:$0xff]
      %v6864 = vld [vmem:[#allocation2 + $0x8d] sm:$0xff]
      %v6865 = vld [vmem:[#allocation2 + $0x95] sm:$0xff]
      %v6866 = vld [vmem:[#allocation2 + $0x9d] sm:$0x7f]
      %s6867 = scalar_lea.vmem %s4, 464
      %v6868 = vld [vmem:[%s6867] sm:$0xff]
      %v6869 = vld [vmem:[%s6867 + $0x8] sm:$0xff]
      %v6871 = vsel %vm2499, %v6859, 0
      %v6874 = vsel %vm2499, %v6860, 0
      %v6877 = vsel %vm2499, %v6861, 0
      %v6880 = vsel %vm2499, %v6862, 0
      %v6883 = vsel %vm2499, %v6863, 0
      %v6886 = vsel %vm2499, %v6864, 0
      %v6889 = vsel %vm2499, %v6865, 0
      %v6892 = vsel %vm2499, %v6866, 0
      %6894 = vmatprep.subr.mxu0 0.0
      %6895 = vmatpush1.msra.mxu0 %v6868
      %6896 = vmatprep.subr.mxu0 0.0
      %6897 = vmatpush1.msra.mxu0 %v6869
      %6898 = vmatprep.subr.mxu0 0.0
      %6899 = vmatpush1.msra.mxu0 0.0
      %6900 = vmatprep.subr.mxu0 0.0
      %6901 = vmatpush1.msra.mxu0 0.0
      %6902 = vmatprep.subr.mxu0 0.0
      %6903 = vmatpush1.msra.mxu0 0.0
      %6904 = vmatprep.subr.mxu0 0.0
      %6905 = vmatpush1.msra.mxu0 0.0
      %6906 = vmatprep.subr.mxu0 0.0
      %6907 = vmatpush1.msra.mxu0 0.0
      %6908 = vmatprep.subr.mxu0 0.0
      %6909 = vmatpush1.msra.mxu0 0.0
      %6910 = vmatprep.subr.mxu0 0.0
      %6911 = vmatpush1.msra.mxu0 0.0
      %6912 = vmatprep.subr.mxu0 0.0
      %6913 = vmatpush1.msra.mxu0 0.0
      %6914 = vmatprep.subr.mxu0 0.0
      %6915 = vmatpush1.msra.mxu0 0.0
      %6916 = vmatprep.subr.mxu0 0.0
      %6917 = vmatpush1.msra.mxu0 0.0
      %6918 = vmatprep.subr.mxu0 0.0
      %6919 = vmatpush1.msra.mxu0 0.0
      %6920 = vmatprep.subr.mxu0 0.0
      %6921 = vmatpush1.msra.mxu0 0.0
      %6922 = vmatprep.subr.mxu0 0.0
      %6923 = vmatpush1.msra.mxu0 0.0
      %6924 = vmatprep.subr.mxu0 0.0
      %6925 = vmatpush1.msra.mxu0 0.0
      %6926 = vmatprep.subr.mxu0 0.0
      %6927 = vmatpush1.msra.mxu0 0.0
      %6928 = vmatprep.subr.mxu0 0.0
      %6929 = vmatpush1.msra.mxu0 0.0
      %6930 = vmatprep.subr.mxu0 0.0
      %6931 = vmatpush1.msra.mxu0 0.0
      %6932 = vmatprep.subr.mxu0 0.0
      %6933 = vmatpush1.msra.mxu0 0.0
      %6934 = vmatprep.subr.mxu0 0.0
      %6935 = vmatpush1.msra.mxu0 0.0
      %6936 = vmatprep.subr.mxu0 0.0
      %6937 = vmatpush1.msra.mxu0 0.0
      %6938 = vmatprep.subr.mxu0 0.0
      %6939 = vmatpush1.msra.mxu0 0.0
      %6940 = vmatprep.subr.mxu0 0.0
      %6941 = vmatpush1.msra.mxu0 0.0
      %6942 = vmatprep.subr.mxu0 0.0
      %6943 = vmatpush1.msra.mxu0 0.0
      %6944 = vmatprep.subr.mxu0 0.0
      %6945 = vmatpush1.msra.mxu0 0.0
      %6946 = vmatprep.subr.mxu0 0.0
      %6947 = vmatpush1.msra.mxu0 0.0
      %6948 = vmatprep.subr.mxu0 0.0
      %6949 = vmatpush1.msra.mxu0 0.0
      %6950 = vmatprep.subr.mxu0 0.0
      %6951 = vmatpush1.msra.mxu0 0.0
      %6952 = vmatprep.subr.mxu0 0.0
      %6953 = vmatpush1.msra.mxu0 0.0
      %6954 = vmatprep.subr.mxu0 0.0
      %6955 = vmatpush1.msra.mxu0 0.0
      %6956 = vmatprep.subr.mxu0 0.0
      %6957 = vmatpush1.msra.mxu0 0.0
      %6958 = vmatprep.mubr.f32.mxu0 0.0
      %6959 = vmatmul.mubr.f32.gmra.mrb[0].mxu0 %v6871
      %v6960 = vpop.f32.mrb[0].mxu0
      %v6961 = vadd.f32 0.0, %v6960
      %v6962 = vpop.f32.mrb[0].mxu0
      %6963 = vmatprep.mubr.f32.mxu0 0.0
      %6964 = vmatmul.mubr.f32.gmra.mrb[0].mxu0 %v6874
      %v6965 = vpop.f32.mrb[0].mxu0
      %v6966 = vadd.f32 0.0, %v6965
      %v6967 = vpop.f32.mrb[0].mxu0
      %6968 = vmatprep.mubr.f32.mxu0 0.0
      %6969 = vmatmul.mubr.f32.gmra.mrb[0].mxu0 %v6877
      %v6970 = vpop.f32.mrb[0].mxu0
      %v6971 = vadd.f32 0.0, %v6970
      %v6972 = vpop.f32.mrb[0].mxu0
      %6973 = vmatprep.mubr.f32.mxu0 0.0
      %6974 = vmatmul.mubr.f32.gmra.mrb[0].mxu0 %v6880
      %v6975 = vpop.f32.mrb[0].mxu0
      %v6976 = vadd.f32 0.0, %v6975
      %v6977 = vpop.f32.mrb[0].mxu0
      %6978 = vmatprep.mubr.f32.mxu0 0.0
      %6979 = vmatmul.mubr.f32.gmra.mrb[0].mxu0 %v6883
      %v6980 = vpop.f32.mrb[0].mxu0
      %v6981 = vadd.f32 0.0, %v6980
      %v6982 = vpop.f32.mrb[0].mxu0
      %6983 = vmatprep.mubr.f32.mxu0 0.0
      %6984 = vmatmul.mubr.f32.gmra.mrb[0].mxu0 %v6886
      %v6985 = vpop.f32.mrb[0].mxu0
      %v6986 = vadd.f32 0.0, %v6985
      %v6987 = vpop.f32.mrb[0].mxu0
      %6988 = vmatprep.mubr.f32.mxu0 0.0
      %6989 = vmatmul.mubr.f32.gmra.mrb[0].mxu0 %v6889
      %v6990 = vpop.f32.mrb[0].mxu0
      %v6991 = vadd.f32 0.0, %v6990
      %v6992 = vpop.f32.mrb[0].mxu0
      %6993 = vmatprep.mubr.f32.mxu0 0.0
      %6994 = vmatmul.mubr.f32.gmra.mrb[0].mxu0 %v6892
      %v6995 = vpop.f32.mrb[0].mxu0
      %v6996 = vadd.f32 0.0, %v6995
      %v6997 = vpop.f32.mrb[0].mxu0
      %6998 = vdwg.mxu0
      %v6999 = vadd.f32 %v6851, %v6961
      %v7000 = vadd.f32 %v6852, %v6966
      %v7001 = vadd.f32 %v6853, %v6971
      %v7002 = vadd.f32 %v6854, %v6976
      %v7003 = vadd.f32 %v6855, %v6981
      %v7004 = vadd.f32 %v6856, %v6986
      %v7005 = vadd.f32 %v6857, %v6991
      %v7006 = vadd.f32 %v6858, %v6996
      %v7007 = vld [vmem:[#allocation2 + $0xb4] sm:$0xff]
      %v7008 = vld [vmem:[#allocation2 + $0xbc] sm:$0xff]
      %v7009 = vld [vmem:[#allocation2 + $0xc4] sm:$0xff]
      %v7010 = vld [vmem:[#allocation2 + $0xcc] sm:$0xff]
      %v7011 = vld [vmem:[#allocation2 + $0xd4] sm:$0xff]
      %v7012 = vld [vmem:[#allocation2 + $0xdc] sm:$0xff]
      %v7013 = vld [vmem:[#allocation2 + $0xe4] sm:$0xff]
      %v7014 = vld [vmem:[#allocation2 + $0xec] sm:$0x7f]
      %s7015 = scalar_lea.vmem %s4, 480
      %v7016 = vld [vmem:[%s7015] sm:$0xff]
      %v7017 = vld [vmem:[%s7015 + $0x8] sm:$0xff]
      %v7019 = vsel %vm2499, %v7007, 0
      %v7022 = vsel %vm2499, %v7008, 0
      %v7025 = vsel %vm2499, %v7009, 0
      %v7028 = vsel %vm2499, %v7010, 0
      %v7031 = vsel %vm2499, %v7011, 0
      %v7034 = vsel %vm2499, %v7012, 0
      %v7037 = vsel %vm2499, %v7013, 0
      %v7040 = vsel %vm2499, %v7014, 0
      %7042 = vmatprep.subr.mxu0 0.0
      %7043 = vmatpush1.msra.mxu0 %v7016
      %7044 = vmatprep.subr.mxu0 0.0
      %7045 = vmatpush1.msra.mxu0 %v7017
      %7046 = vmatprep.subr.mxu0 0.0
      %7047 = vmatpush1.msra.mxu0 0.0
      %7048 = vmatprep.subr.mxu0 0.0
      %7049 = vmatpush1.msra.mxu0 0.0
      %7050 = vmatprep.subr.mxu0 0.0
      %7051 = vmatpush1.msra.mxu0 0.0
      %7052 = vmatprep.subr.mxu0 0.0
      %7053 = vmatpush1.msra.mxu0 0.0
      %7054 = vmatprep.subr.mxu0 0.0
      %7055 = vmatpush1.msra.mxu0 0.0
      %7056 = vmatprep.subr.mxu0 0.0
      %7057 = vmatpush1.msra.mxu0 0.0
      %7058 = vmatprep.subr.mxu0 0.0
      %7059 = vmatpush1.msra.mxu0 0.0
      %7060 = vmatprep.subr.mxu0 0.0
      %7061 = vmatpush1.msra.mxu0 0.0
      %7062 = vmatprep.subr.mxu0 0.0
      %7063 = vmatpush1.msra.mxu0 0.0
      %7064 = vmatprep.subr.mxu0 0.0
      %7065 = vmatpush1.msra.mxu0 0.0
      %7066 = vmatprep.subr.mxu0 0.0
      %7067 = vmatpush1.msra.mxu0 0.0
      %7068 = vmatprep.subr.mxu0 0.0
      %7069 = vmatpush1.msra.mxu0 0.0
      %7070 = vmatprep.subr.mxu0 0.0
      %7071 = vmatpush1.msra.mxu0 0.0
      %7072 = vmatprep.subr.mxu0 0.0
      %7073 = vmatpush1.msra.mxu0 0.0
      %7074 = vmatprep.subr.mxu0 0.0
      %7075 = vmatpush1.msra.mxu0 0.0
      %7076 = vmatprep.subr.mxu0 0.0
      %7077 = vmatpush1.msra.mxu0 0.0
      %7078 = vmatprep.subr.mxu0 0.0
      %7079 = vmatpush1.msra.mxu0 0.0
      %7080 = vmatprep.subr.mxu0 0.0
      %7081 = vmatpush1.msra.mxu0 0.0
      %7082 = vmatprep.subr.mxu0 0.0
      %7083 = vmatpush1.msra.mxu0 0.0
      %7084 = vmatprep.subr.mxu0 0.0
      %7085 = vmatpush1.msra.mxu0 0.0
      %7086 = vmatprep.subr.mxu0 0.0
      %7087 = vmatpush1.msra.mxu0 0.0
      %7088 = vmatprep.subr.mxu0 0.0
      %7089 = vmatpush1.msra.mxu0 0.0
      %7090 = vmatprep.subr.mxu0 0.0
      %7091 = vmatpush1.msra.mxu0 0.0
      %7092 = vmatprep.subr.mxu0 0.0
      %7093 = vmatpush1.msra.mxu0 0.0
      %7094 = vmatprep.subr.mxu0 0.0
      %7095 = vmatpush1.msra.mxu0 0.0
      %7096 = vmatprep.subr.mxu0 0.0
      %7097 = vmatpush1.msra.mxu0 0.0
      %7098 = vmatprep.subr.mxu0 0.0
      %7099 = vmatpush1.msra.mxu0 0.0
      %7100 = vmatprep.subr.mxu0 0.0
      %7101 = vmatpush1.msra.mxu0 0.0
      %7102 = vmatprep.subr.mxu0 0.0
      %7103 = vmatpush1.msra.mxu0 0.0
      %7104 = vmatprep.subr.mxu0 0.0
      %7105 = vmatpush1.msra.mxu0 0.0
      %7106 = vmatprep.mubr.f32.mxu0 0.0
      %7107 = vmatmul.mubr.f32.gmra.mrb[0].mxu0 %v7019
      %v7108 = vpop.f32.mrb[0].mxu0
      %v7109 = vadd.f32 0.0, %v7108
      %v7110 = vpop.f32.mrb[0].mxu0
      %7111 = vmatprep.mubr.f32.mxu0 0.0
      %7112 = vmatmul.mubr.f32.gmra.mrb[0].mxu0 %v7022
      %v7113 = vpop.f32.mrb[0].mxu0
      %v7114 = vadd.f32 0.0, %v7113
      %v7115 = vpop.f32.mrb[0].mxu0
      %7116 = vmatprep.mubr.f32.mxu0 0.0
      %7117 = vmatmul.mubr.f32.gmra.mrb[0].mxu0 %v7025
      %v7118 = vpop.f32.mrb[0].mxu0
      %v7119 = vadd.f32 0.0, %v7118
      %v7120 = vpop.f32.mrb[0].mxu0
      %7121 = vmatprep.mubr.f32.mxu0 0.0
      %7122 = vmatmul.mubr.f32.gmra.mrb[0].mxu0 %v7028
      %v7123 = vpop.f32.mrb[0].mxu0
      %v7124 = vadd.f32 0.0, %v7123
      %v7125 = vpop.f32.mrb[0].mxu0
      %7126 = vmatprep.mubr.f32.mxu0 0.0
      %7127 = vmatmul.mubr.f32.gmra.mrb[0].mxu0 %v7031
      %v7128 = vpop.f32.mrb[0].mxu0
      %v7129 = vadd.f32 0.0, %v7128
      %v7130 = vpop.f32.mrb[0].mxu0
      %7131 = vmatprep.mubr.f32.mxu0 0.0
      %7132 = vmatmul.mubr.f32.gmra.mrb[0].mxu0 %v7034
      %v7133 = vpop.f32.mrb[0].mxu0
      %v7134 = vadd.f32 0.0, %v7133
      %v7135 = vpop.f32.mrb[0].mxu0
      %7136 = vmatprep.mubr.f32.mxu0 0.0
      %7137 = vmatmul.mubr.f32.gmra.mrb[0].mxu0 %v7037
      %v7138 = vpop.f32.mrb[0].mxu0
      %v7139 = vadd.f32 0.0, %v7138
      %v7140 = vpop.f32.mrb[0].mxu0
      %7141 = vmatprep.mubr.f32.mxu0 0.0
      %7142 = vmatmul.mubr.f32.gmra.mrb[0].mxu0 %v7040
      %v7143 = vpop.f32.mrb[0].mxu0
      %v7144 = vadd.f32 0.0, %v7143
      %v7145 = vpop.f32.mrb[0].mxu0
      %7146 = vdwg.mxu0
      %v7147 = vadd.f32 %v6999, %v7109
      %v7148 = vadd.f32 %v7000, %v7114
      %v7149 = vadd.f32 %v7001, %v7119
      %v7150 = vadd.f32 %v7002, %v7124
      %v7151 = vadd.f32 %v7003, %v7129
      %v7152 = vadd.f32 %v7004, %v7134
      %v7153 = vadd.f32 %v7005, %v7139
      %v7154 = vadd.f32 %v7006, %v7144
      %v7155 = vld [vmem:[#allocation2 + $0x105] sm:$0xff]
      %v7156 = vld [vmem:[#allocation2 + $0x10d] sm:$0xff]
      %v7157 = vld [vmem:[#allocation2 + $0x115] sm:$0xff]
      %v7158 = vld [vmem:[#allocation2 + $0x11d] sm:$0xff]
      %v7159 = vld [vmem:[#allocation2 + $0x125] sm:$0xff]
      %v7160 = vld [vmem:[#allocation2 + $0x12d] sm:$0xff]
      %v7161 = vld [vmem:[#allocation2 + $0x135] sm:$0xff]
      %v7162 = vld [vmem:[#allocation2 + $0x13d] sm:$0x7f]
      %s7163 = scalar_lea.vmem %s4, 496
      %v7164 = vld [vmem:[%s7163] sm:$0xff]
      %v7165 = vld [vmem:[%s7163 + $0x8] sm:$0xff]
      %v7167 = vsel %vm2499, %v7155, 0
      %v7170 = vsel %vm2499, %v7156, 0
      %v7173 = vsel %vm2499, %v7157, 0
      %v7176 = vsel %vm2499, %v7158, 0
      %v7179 = vsel %vm2499, %v7159, 0
      %v7182 = vsel %vm2499, %v7160, 0
      %v7185 = vsel %vm2499, %v7161, 0
      %v7188 = vsel %vm2499, %v7162, 0
      %7190 = vmatprep.subr.mxu0 0.0
      %7191 = vmatpush1.msra.mxu0 %v7164
      %7192 = vmatprep.subr.mxu0 0.0
      %7193 = vmatpush1.msra.mxu0 %v7165
      %7194 = vmatprep.subr.mxu0 0.0
      %7195 = vmatpush1.msra.mxu0 0.0
      %7196 = vmatprep.subr.mxu0 0.0
      %7197 = vmatpush1.msra.mxu0 0.0
      %7198 = vmatprep.subr.mxu0 0.0
      %7199 = vmatpush1.msra.mxu0 0.0
      %7200 = vmatprep.subr.mxu0 0.0
      %7201 = vmatpush1.msra.mxu0 0.0
      %7202 = vmatprep.subr.mxu0 0.0
      %7203 = vmatpush1.msra.mxu0 0.0
      %7204 = vmatprep.subr.mxu0 0.0
      %7205 = vmatpush1.msra.mxu0 0.0
      %7206 = vmatprep.subr.mxu0 0.0
      %7207 = vmatpush1.msra.mxu0 0.0
      %7208 = vmatprep.subr.mxu0 0.0
      %7209 = vmatpush1.msra.mxu0 0.0
      %7210 = vmatprep.subr.mxu0 0.0
      %7211 = vmatpush1.msra.mxu0 0.0
      %7212 = vmatprep.subr.mxu0 0.0
      %7213 = vmatpush1.msra.mxu0 0.0
      %7214 = vmatprep.subr.mxu0 0.0
      %7215 = vmatpush1.msra.mxu0 0.0
      %7216 = vmatprep.subr.mxu0 0.0
      %7217 = vmatpush1.msra.mxu0 0.0
      %7218 = vmatprep.subr.mxu0 0.0
      %7219 = vmatpush1.msra.mxu0 0.0
      %7220 = vmatprep.subr.mxu0 0.0
      %7221 = vmatpush1.msra.mxu0 0.0
      %7222 = vmatprep.subr.mxu0 0.0
      %7223 = vmatpush1.msra.mxu0 0.0
      %7224 = vmatprep.subr.mxu0 0.0
      %7225 = vmatpush1.msra.mxu0 0.0
      %7226 = vmatprep.subr.mxu0 0.0
      %7227 = vmatpush1.msra.mxu0 0.0
      %7228 = vmatprep.subr.mxu0 0.0
      %7229 = vmatpush1.msra.mxu0 0.0
      %7230 = vmatprep.subr.mxu0 0.0
      %7231 = vmatpush1.msra.mxu0 0.0
      %7232 = vmatprep.subr.mxu0 0.0
      %7233 = vmatpush1.msra.mxu0 0.0
      %7234 = vmatprep.subr.mxu0 0.0
      %7235 = vmatpush1.msra.mxu0 0.0
      %7236 = vmatprep.subr.mxu0 0.0
      %7237 = vmatpush1.msra.mxu0 0.0
      %7238 = vmatprep.subr.mxu0 0.0
      %7239 = vmatpush1.msra.mxu0 0.0
      %7240 = vmatprep.subr.mxu0 0.0
      %7241 = vmatpush1.msra.mxu0 0.0
      %7242 = vmatprep.subr.mxu0 0.0
      %7243 = vmatpush1.msra.mxu0 0.0
      %7244 = vmatprep.subr.mxu0 0.0
      %7245 = vmatpush1.msra.mxu0 0.0
      %7246 = vmatprep.subr.mxu0 0.0
      %7247 = vmatpush1.msra.mxu0 0.0
      %7248 = vmatprep.subr.mxu0 0.0
      %7249 = vmatpush1.msra.mxu0 0.0
      %7250 = vmatprep.subr.mxu0 0.0
      %7251 = vmatpush1.msra.mxu0 0.0
      %7252 = vmatprep.subr.mxu0 0.0
      %7253 = vmatpush1.msra.mxu0 0.0
      %7254 = vmatprep.mubr.f32.mxu0 0.0
      %7255 = vmatmul.mubr.f32.gmra.mrb[0].mxu0 %v7167
      %v7256 = vpop.f32.mrb[0].mxu0
      %v7257 = vadd.f32 0.0, %v7256
      %v7258 = vpop.f32.mrb[0].mxu0
      %7259 = vmatprep.mubr.f32.mxu0 0.0
      %7260 = vmatmul.mubr.f32.gmra.mrb[0].mxu0 %v7170
      %v7261 = vpop.f32.mrb[0].mxu0
      %v7262 = vadd.f32 0.0, %v7261
      %v7263 = vpop.f32.mrb[0].mxu0
      %7264 = vmatprep.mubr.f32.mxu0 0.0
      %7265 = vmatmul.mubr.f32.gmra.mrb[0].mxu0 %v7173
      %v7266 = vpop.f32.mrb[0].mxu0
      %v7267 = vadd.f32 0.0, %v7266
      %v7268 = vpop.f32.mrb[0].mxu0
      %7269 = vmatprep.mubr.f32.mxu0 0.0
      %7270 = vmatmul.mubr.f32.gmra.mrb[0].mxu0 %v7176
      %v7271 = vpop.f32.mrb[0].mxu0
      %v7272 = vadd.f32 0.0, %v7271
      %v7273 = vpop.f32.mrb[0].mxu0
      %7274 = vmatprep.mubr.f32.mxu0 0.0
      %7275 = vmatmul.mubr.f32.gmra.mrb[0].mxu0 %v7179
      %v7276 = vpop.f32.mrb[0].mxu0
      %v7277 = vadd.f32 0.0, %v7276
      %v7278 = vpop.f32.mrb[0].mxu0
      %7279 = vmatprep.mubr.f32.mxu0 0.0
      %7280 = vmatmul.mubr.f32.gmra.mrb[0].mxu0 %v7182
      %v7281 = vpop.f32.mrb[0].mxu0
      %v7282 = vadd.f32 0.0, %v7281
      %v7283 = vpop.f32.mrb[0].mxu0
      %7284 = vmatprep.mubr.f32.mxu0 0.0
      %7285 = vmatmul.mubr.f32.gmra.mrb[0].mxu0 %v7185
      %v7286 = vpop.f32.mrb[0].mxu0
      %v7287 = vadd.f32 0.0, %v7286
      %v7288 = vpop.f32.mrb[0].mxu0
      %7289 = vmatprep.mubr.f32.mxu0 0.0
      %7290 = vmatmul.mubr.f32.gmra.mrb[0].mxu0 %v7188
      %v7291 = vpop.f32.mrb[0].mxu0
      %v7292 = vadd.f32 0.0, %v7291
      %v7293 = vpop.f32.mrb[0].mxu0
      %7294 = vdwg.mxu0
      %v7295 = vadd.f32 %v7147, %v7257
      %v7296 = vadd.f32 %v7148, %v7262
      %v7297 = vadd.f32 %v7149, %v7267
      %v7298 = vadd.f32 %v7150, %v7272
      %v7299 = vadd.f32 %v7151, %v7277
      %v7300 = vadd.f32 %v7152, %v7282
      %v7301 = vadd.f32 %v7153, %v7287
      %v7302 = vadd.f32 %v7154, %v7292
      %v7303 = vld [vmem:[#allocation2 + $0xb5] sm:$0xff]
      %v7304 = vld [vmem:[#allocation2 + $0xbd] sm:$0xff]
      %v7305 = vld [vmem:[#allocation2 + $0xc5] sm:$0xff]
      %v7306 = vld [vmem:[#allocation2 + $0xcd] sm:$0xff]
      %v7307 = vld [vmem:[#allocation2 + $0xd5] sm:$0xff]
      %v7308 = vld [vmem:[#allocation2 + $0xdd] sm:$0xff]
      %v7309 = vld [vmem:[#allocation2 + $0xe5] sm:$0xff]
      %v7310 = vld [vmem:[#allocation2 + $0xed] sm:$0x7f]
      %s7311 = scalar_lea.vmem %s4, 512
      %v7312 = vld [vmem:[%s7311] sm:$0xff]
      %v7313 = vld [vmem:[%s7311 + $0x8] sm:$0xff]
      %v7315 = vsel %vm2499, %v7303, 0
      %v7318 = vsel %vm2499, %v7304, 0
      %v7321 = vsel %vm2499, %v7305, 0
      %v7324 = vsel %vm2499, %v7306, 0
      %v7327 = vsel %vm2499, %v7307, 0
      %v7330 = vsel %vm2499, %v7308, 0
      %v7333 = vsel %vm2499, %v7309, 0
      %v7336 = vsel %vm2499, %v7310, 0
      %7338 = vmatprep.subr.mxu0 0.0
      %7339 = vmatpush1.msra.mxu0 %v7312
      %7340 = vmatprep.subr.mxu0 0.0
      %7341 = vmatpush1.msra.mxu0 %v7313
      %7342 = vmatprep.subr.mxu0 0.0
      %7343 = vmatpush1.msra.mxu0 0.0
      %7344 = vmatprep.subr.mxu0 0.0
      %7345 = vmatpush1.msra.mxu0 0.0
      %7346 = vmatprep.subr.mxu0 0.0
      %7347 = vmatpush1.msra.mxu0 0.0
      %7348 = vmatprep.subr.mxu0 0.0
      %7349 = vmatpush1.msra.mxu0 0.0
      %7350 = vmatprep.subr.mxu0 0.0
      %7351 = vmatpush1.msra.mxu0 0.0
      %7352 = vmatprep.subr.mxu0 0.0
      %7353 = vmatpush1.msra.mxu0 0.0
      %7354 = vmatprep.subr.mxu0 0.0
      %7355 = vmatpush1.msra.mxu0 0.0
      %7356 = vmatprep.subr.mxu0 0.0
      %7357 = vmatpush1.msra.mxu0 0.0
      %7358 = vmatprep.subr.mxu0 0.0
      %7359 = vmatpush1.msra.mxu0 0.0
      %7360 = vmatprep.subr.mxu0 0.0
      %7361 = vmatpush1.msra.mxu0 0.0
      %7362 = vmatprep.subr.mxu0 0.0
      %7363 = vmatpush1.msra.mxu0 0.0
      %7364 = vmatprep.subr.mxu0 0.0
      %7365 = vmatpush1.msra.mxu0 0.0
      %7366 = vmatprep.subr.mxu0 0.0
      %7367 = vmatpush1.msra.mxu0 0.0
      %7368 = vmatprep.subr.mxu0 0.0
      %7369 = vmatpush1.msra.mxu0 0.0
      %7370 = vmatprep.subr.mxu0 0.0
      %7371 = vmatpush1.msra.mxu0 0.0
      %7372 = vmatprep.subr.mxu0 0.0
      %7373 = vmatpush1.msra.mxu0 0.0
      %7374 = vmatprep.subr.mxu0 0.0
      %7375 = vmatpush1.msra.mxu0 0.0
      %7376 = vmatprep.subr.mxu0 0.0
      %7377 = vmatpush1.msra.mxu0 0.0
      %7378 = vmatprep.subr.mxu0 0.0
      %7379 = vmatpush1.msra.mxu0 0.0
      %7380 = vmatprep.subr.mxu0 0.0
      %7381 = vmatpush1.msra.mxu0 0.0
      %7382 = vmatprep.subr.mxu0 0.0
      %7383 = vmatpush1.msra.mxu0 0.0
      %7384 = vmatprep.subr.mxu0 0.0
      %7385 = vmatpush1.msra.mxu0 0.0
      %7386 = vmatprep.subr.mxu0 0.0
      %7387 = vmatpush1.msra.mxu0 0.0
      %7388 = vmatprep.subr.mxu0 0.0
      %7389 = vmatpush1.msra.mxu0 0.0
      %7390 = vmatprep.subr.mxu0 0.0
      %7391 = vmatpush1.msra.mxu0 0.0
      %7392 = vmatprep.subr.mxu0 0.0
      %7393 = vmatpush1.msra.mxu0 0.0
      %7394 = vmatprep.subr.mxu0 0.0
      %7395 = vmatpush1.msra.mxu0 0.0
      %7396 = vmatprep.subr.mxu0 0.0
      %7397 = vmatpush1.msra.mxu0 0.0
      %7398 = vmatprep.subr.mxu0 0.0
      %7399 = vmatpush1.msra.mxu0 0.0
      %7400 = vmatprep.subr.mxu0 0.0
      %7401 = vmatpush1.msra.mxu0 0.0
      %7402 = vmatprep.mubr.f32.mxu0 0.0
      %7403 = vmatmul.mubr.f32.gmra.mrb[0].mxu0 %v7315
      %v7404 = vpop.f32.mrb[0].mxu0
      %v7405 = vadd.f32 0.0, %v7404
      %v7406 = vpop.f32.mrb[0].mxu0
      %7407 = vmatprep.mubr.f32.mxu0 0.0
      %7408 = vmatmul.mubr.f32.gmra.mrb[0].mxu0 %v7318
      %v7409 = vpop.f32.mrb[0].mxu0
      %v7410 = vadd.f32 0.0, %v7409
      %v7411 = vpop.f32.mrb[0].mxu0
      %7412 = vmatprep.mubr.f32.mxu0 0.0
      %7413 = vmatmul.mubr.f32.gmra.mrb[0].mxu0 %v7321
      %v7414 = vpop.f32.mrb[0].mxu0
      %v7415 = vadd.f32 0.0, %v7414
      %v7416 = vpop.f32.mrb[0].mxu0
      %7417 = vmatprep.mubr.f32.mxu0 0.0
      %7418 = vmatmul.mubr.f32.gmra.mrb[0].mxu0 %v7324
      %v7419 = vpop.f32.mrb[0].mxu0
      %v7420 = vadd.f32 0.0, %v7419
      %v7421 = vpop.f32.mrb[0].mxu0
      %7422 = vmatprep.mubr.f32.mxu0 0.0
      %7423 = vmatmul.mubr.f32.gmra.mrb[0].mxu0 %v7327
      %v7424 = vpop.f32.mrb[0].mxu0
      %v7425 = vadd.f32 0.0, %v7424
      %v7426 = vpop.f32.mrb[0].mxu0
      %7427 = vmatprep.mubr.f32.mxu0 0.0
      %7428 = vmatmul.mubr.f32.gmra.mrb[0].mxu0 %v7330
      %v7429 = vpop.f32.mrb[0].mxu0
      %v7430 = vadd.f32 0.0, %v7429
      %v7431 = vpop.f32.mrb[0].mxu0
      %7432 = vmatprep.mubr.f32.mxu0 0.0
      %7433 = vmatmul.mubr.f32.gmra.mrb[0].mxu0 %v7333
      %v7434 = vpop.f32.mrb[0].mxu0
      %v7435 = vadd.f32 0.0, %v7434
      %v7436 = vpop.f32.mrb[0].mxu0
      %7437 = vmatprep.mubr.f32.mxu0 0.0
      %7438 = vmatmul.mubr.f32.gmra.mrb[0].mxu0 %v7336
      %v7439 = vpop.f32.mrb[0].mxu0
      %v7440 = vadd.f32 0.0, %v7439
      %v7441 = vpop.f32.mrb[0].mxu0
      %7442 = vdwg.mxu0
      %v7443 = vadd.f32 %v7295, %v7405
      %v7444 = vadd.f32 %v7296, %v7410
      %v7445 = vadd.f32 %v7297, %v7415
      %v7446 = vadd.f32 %v7298, %v7420
      %v7447 = vadd.f32 %v7299, %v7425
      %v7448 = vadd.f32 %v7300, %v7430
      %v7449 = vadd.f32 %v7301, %v7435
      %v7450 = vadd.f32 %v7302, %v7440
      %v7451 = vld [vmem:[#allocation2 + $0x106] sm:$0xff]
      %v7452 = vld [vmem:[#allocation2 + $0x10e] sm:$0xff]
      %v7453 = vld [vmem:[#allocation2 + $0x116] sm:$0xff]
      %v7454 = vld [vmem:[#allocation2 + $0x11e] sm:$0xff]
      %v7455 = vld [vmem:[#allocation2 + $0x126] sm:$0xff]
      %v7456 = vld [vmem:[#allocation2 + $0x12e] sm:$0xff]
      %v7457 = vld [vmem:[#allocation2 + $0x136] sm:$0xff]
      %v7458 = vld [vmem:[#allocation2 + $0x13e] sm:$0x7f]
      %s7459 = scalar_lea.vmem %s4, 528
      %v7460 = vld [vmem:[%s7459] sm:$0xff]
      %v7461 = vld [vmem:[%s7459 + $0x8] sm:$0xff]
      %v7463 = vsel %vm2499, %v7451, 0
      %v7466 = vsel %vm2499, %v7452, 0
      %v7469 = vsel %vm2499, %v7453, 0
      %v7472 = vsel %vm2499, %v7454, 0
      %v7475 = vsel %vm2499, %v7455, 0
      %v7478 = vsel %vm2499, %v7456, 0
      %v7481 = vsel %vm2499, %v7457, 0
      %v7484 = vsel %vm2499, %v7458, 0
      %7486 = vmatprep.subr.mxu0 0.0
      %7487 = vmatpush1.msra.mxu0 %v7460
      %7488 = vmatprep.subr.mxu0 0.0
      %7489 = vmatpush1.msra.mxu0 %v7461
      %7490 = vmatprep.subr.mxu0 0.0
      %7491 = vmatpush1.msra.mxu0 0.0
      %7492 = vmatprep.subr.mxu0 0.0
      %7493 = vmatpush1.msra.mxu0 0.0
      %7494 = vmatprep.subr.mxu0 0.0
      %7495 = vmatpush1.msra.mxu0 0.0
      %7496 = vmatprep.subr.mxu0 0.0
      %7497 = vmatpush1.msra.mxu0 0.0
      %7498 = vmatprep.subr.mxu0 0.0
      %7499 = vmatpush1.msra.mxu0 0.0
      %7500 = vmatprep.subr.mxu0 0.0
      %7501 = vmatpush1.msra.mxu0 0.0
      %7502 = vmatprep.subr.mxu0 0.0
      %7503 = vmatpush1.msra.mxu0 0.0
      %7504 = vmatprep.subr.mxu0 0.0
      %7505 = vmatpush1.msra.mxu0 0.0
      %7506 = vmatprep.subr.mxu0 0.0
      %7507 = vmatpush1.msra.mxu0 0.0
      %7508 = vmatprep.subr.mxu0 0.0
      %7509 = vmatpush1.msra.mxu0 0.0
      %7510 = vmatprep.subr.mxu0 0.0
      %7511 = vmatpush1.msra.mxu0 0.0
      %7512 = vmatprep.subr.mxu0 0.0
      %7513 = vmatpush1.msra.mxu0 0.0
      %7514 = vmatprep.subr.mxu0 0.0
      %7515 = vmatpush1.msra.mxu0 0.0
      %7516 = vmatprep.subr.mxu0 0.0
      %7517 = vmatpush1.msra.mxu0 0.0
      %7518 = vmatprep.subr.mxu0 0.0
      %7519 = vmatpush1.msra.mxu0 0.0
      %7520 = vmatprep.subr.mxu0 0.0
      %7521 = vmatpush1.msra.mxu0 0.0
      %7522 = vmatprep.subr.mxu0 0.0
      %7523 = vmatpush1.msra.mxu0 0.0
      %7524 = vmatprep.subr.mxu0 0.0
      %7525 = vmatpush1.msra.mxu0 0.0
      %7526 = vmatprep.subr.mxu0 0.0
      %7527 = vmatpush1.msra.mxu0 0.0
      %7528 = vmatprep.subr.mxu0 0.0
      %7529 = vmatpush1.msra.mxu0 0.0
      %7530 = vmatprep.subr.mxu0 0.0
      %7531 = vmatpush1.msra.mxu0 0.0
      %7532 = vmatprep.subr.mxu0 0.0
      %7533 = vmatpush1.msra.mxu0 0.0
      %7534 = vmatprep.subr.mxu0 0.0
      %7535 = vmatpush1.msra.mxu0 0.0
      %7536 = vmatprep.subr.mxu0 0.0
      %7537 = vmatpush1.msra.mxu0 0.0
      %7538 = vmatprep.subr.mxu0 0.0
      %7539 = vmatpush1.msra.mxu0 0.0
      %7540 = vmatprep.subr.mxu0 0.0
      %7541 = vmatpush1.msra.mxu0 0.0
      %7542 = vmatprep.subr.mxu0 0.0
      %7543 = vmatpush1.msra.mxu0 0.0
      %7544 = vmatprep.subr.mxu0 0.0
      %7545 = vmatpush1.msra.mxu0 0.0
      %7546 = vmatprep.subr.mxu0 0.0
      %7547 = vmatpush1.msra.mxu0 0.0
      %7548 = vmatprep.subr.mxu0 0.0
      %7549 = vmatpush1.msra.mxu0 0.0
      %7550 = vmatprep.mubr.f32.mxu0 0.0
      %7551 = vmatmul.mubr.f32.gmra.mrb[0].mxu0 %v7463
      %v7552 = vpop.f32.mrb[0].mxu0
      %v7553 = vadd.f32 0.0, %v7552
      %v7554 = vpop.f32.mrb[0].mxu0
      %7555 = vmatprep.mubr.f32.mxu0 0.0
      %7556 = vmatmul.mubr.f32.gmra.mrb[0].mxu0 %v7466
      %v7557 = vpop.f32.mrb[0].mxu0
      %v7558 = vadd.f32 0.0, %v7557
      %v7559 = vpop.f32.mrb[0].mxu0
      %7560 = vmatprep.mubr.f32.mxu0 0.0
      %7561 = vmatmul.mubr.f32.gmra.mrb[0].mxu0 %v7469
      %v7562 = vpop.f32.mrb[0].mxu0
      %v7563 = vadd.f32 0.0, %v7562
      %v7564 = vpop.f32.mrb[0].mxu0
      %7565 = vmatprep.mubr.f32.mxu0 0.0
      %7566 = vmatmul.mubr.f32.gmra.mrb[0].mxu0 %v7472
      %v7567 = vpop.f32.mrb[0].mxu0
      %v7568 = vadd.f32 0.0, %v7567
      %v7569 = vpop.f32.mrb[0].mxu0
      %7570 = vmatprep.mubr.f32.mxu0 0.0
      %7571 = vmatmul.mubr.f32.gmra.mrb[0].mxu0 %v7475
      %v7572 = vpop.f32.mrb[0].mxu0
      %v7573 = vadd.f32 0.0, %v7572
      %v7574 = vpop.f32.mrb[0].mxu0
      %7575 = vmatprep.mubr.f32.mxu0 0.0
      %7576 = vmatmul.mubr.f32.gmra.mrb[0].mxu0 %v7478
      %v7577 = vpop.f32.mrb[0].mxu0
      %v7578 = vadd.f32 0.0, %v7577
      %v7579 = vpop.f32.mrb[0].mxu0
      %7580 = vmatprep.mubr.f32.mxu0 0.0
      %7581 = vmatmul.mubr.f32.gmra.mrb[0].mxu0 %v7481
      %v7582 = vpop.f32.mrb[0].mxu0
      %v7583 = vadd.f32 0.0, %v7582
      %v7584 = vpop.f32.mrb[0].mxu0
      %7585 = vmatprep.mubr.f32.mxu0 0.0
      %7586 = vmatmul.mubr.f32.gmra.mrb[0].mxu0 %v7484
      %v7587 = vpop.f32.mrb[0].mxu0
      %v7588 = vadd.f32 0.0, %v7587
      %v7589 = vpop.f32.mrb[0].mxu0
      %7590 = vdwg.mxu0
      %v7591 = vadd.f32 %v7443, %v7553
      %v7592 = vadd.f32 %v7444, %v7558
      %v7593 = vadd.f32 %v7445, %v7563
      %v7594 = vadd.f32 %v7446, %v7568
      %v7595 = vadd.f32 %v7447, %v7573
      %v7596 = vadd.f32 %v7448, %v7578
      %v7597 = vadd.f32 %v7449, %v7583
      %v7598 = vadd.f32 %v7450, %v7588
      %v7599 = vld [vmem:[#allocation2 + $0xb6] sm:$0xff]
      %v7600 = vld [vmem:[#allocation2 + $0xbe] sm:$0xff]
      %v7601 = vld [vmem:[#allocation2 + $0xc6] sm:$0xff]
      %v7602 = vld [vmem:[#allocation2 + $0xce] sm:$0xff]
      %v7603 = vld [vmem:[#allocation2 + $0xd6] sm:$0xff]
      %v7604 = vld [vmem:[#allocation2 + $0xde] sm:$0xff]
      %v7605 = vld [vmem:[#allocation2 + $0xe6] sm:$0xff]
      %v7606 = vld [vmem:[#allocation2 + $0xee] sm:$0x7f]
      %s7607 = scalar_lea.vmem %s4, 544
      %v7608 = vld [vmem:[%s7607] sm:$0xff]
      %v7609 = vld [vmem:[%s7607 + $0x8] sm:$0xff]
      %v7611 = vsel %vm2499, %v7599, 0
      %v7614 = vsel %vm2499, %v7600, 0
      %v7617 = vsel %vm2499, %v7601, 0
      %v7620 = vsel %vm2499, %v7602, 0
      %v7623 = vsel %vm2499, %v7603, 0
      %v7626 = vsel %vm2499, %v7604, 0
      %v7629 = vsel %vm2499, %v7605, 0
      %v7632 = vsel %vm2499, %v7606, 0
      %7634 = vmatprep.subr.mxu0 0.0
      %7635 = vmatpush1.msra.mxu0 %v7608
      %7636 = vmatprep.subr.mxu0 0.0
      %7637 = vmatpush1.msra.mxu0 %v7609
      %7638 = vmatprep.subr.mxu0 0.0
      %7639 = vmatpush1.msra.mxu0 0.0
      %7640 = vmatprep.subr.mxu0 0.0
      %7641 = vmatpush1.msra.mxu0 0.0
      %7642 = vmatprep.subr.mxu0 0.0
      %7643 = vmatpush1.msra.mxu0 0.0
      %7644 = vmatprep.subr.mxu0 0.0
      %7645 = vmatpush1.msra.mxu0 0.0
      %7646 = vmatprep.subr.mxu0 0.0
      %7647 = vmatpush1.msra.mxu0 0.0
      %7648 = vmatprep.subr.mxu0 0.0
      %7649 = vmatpush1.msra.mxu0 0.0
      %7650 = vmatprep.subr.mxu0 0.0
      %7651 = vmatpush1.msra.mxu0 0.0
      %7652 = vmatprep.subr.mxu0 0.0
      %7653 = vmatpush1.msra.mxu0 0.0
      %7654 = vmatprep.subr.mxu0 0.0
      %7655 = vmatpush1.msra.mxu0 0.0
      %7656 = vmatprep.subr.mxu0 0.0
      %7657 = vmatpush1.msra.mxu0 0.0
      %7658 = vmatprep.subr.mxu0 0.0
      %7659 = vmatpush1.msra.mxu0 0.0
      %7660 = vmatprep.subr.mxu0 0.0
      %7661 = vmatpush1.msra.mxu0 0.0
      %7662 = vmatprep.subr.mxu0 0.0
      %7663 = vmatpush1.msra.mxu0 0.0
      %7664 = vmatprep.subr.mxu0 0.0
      %7665 = vmatpush1.msra.mxu0 0.0
      %7666 = vmatprep.subr.mxu0 0.0
      %7667 = vmatpush1.msra.mxu0 0.0
      %7668 = vmatprep.subr.mxu0 0.0
      %7669 = vmatpush1.msra.mxu0 0.0
      %7670 = vmatprep.subr.mxu0 0.0
      %7671 = vmatpush1.msra.mxu0 0.0
      %7672 = vmatprep.subr.mxu0 0.0
      %7673 = vmatpush1.msra.mxu0 0.0
      %7674 = vmatprep.subr.mxu0 0.0
      %7675 = vmatpush1.msra.mxu0 0.0
      %7676 = vmatprep.subr.mxu0 0.0
      %7677 = vmatpush1.msra.mxu0 0.0
      %7678 = vmatprep.subr.mxu0 0.0
      %7679 = vmatpush1.msra.mxu0 0.0
      %7680 = vmatprep.subr.mxu0 0.0
      %7681 = vmatpush1.msra.mxu0 0.0
      %7682 = vmatprep.subr.mxu0 0.0
      %7683 = vmatpush1.msra.mxu0 0.0
      %7684 = vmatprep.subr.mxu0 0.0
      %7685 = vmatpush1.msra.mxu0 0.0
      %7686 = vmatprep.subr.mxu0 0.0
      %7687 = vmatpush1.msra.mxu0 0.0
      %7688 = vmatprep.subr.mxu0 0.0
      %7689 = vmatpush1.msra.mxu0 0.0
      %7690 = vmatprep.subr.mxu0 0.0
      %7691 = vmatpush1.msra.mxu0 0.0
      %7692 = vmatprep.subr.mxu0 0.0
      %7693 = vmatpush1.msra.mxu0 0.0
      %7694 = vmatprep.subr.mxu0 0.0
      %7695 = vmatpush1.msra.mxu0 0.0
      %7696 = vmatprep.subr.mxu0 0.0
      %7697 = vmatpush1.msra.mxu0 0.0
      %7698 = vmatprep.mubr.f32.mxu0 0.0
      %7699 = vmatmul.mubr.f32.gmra.mrb[0].mxu0 %v7611
      %v7700 = vpop.f32.mrb[0].mxu0
      %v7701 = vadd.f32 0.0, %v7700
      %v7702 = vpop.f32.mrb[0].mxu0
      %7703 = vmatprep.mubr.f32.mxu0 0.0
      %7704 = vmatmul.mubr.f32.gmra.mrb[0].mxu0 %v7614
      %v7705 = vpop.f32.mrb[0].mxu0
      %v7706 = vadd.f32 0.0, %v7705
      %v7707 = vpop.f32.mrb[0].mxu0
      %7708 = vmatprep.mubr.f32.mxu0 0.0
      %7709 = vmatmul.mubr.f32.gmra.mrb[0].mxu0 %v7617
      %v7710 = vpop.f32.mrb[0].mxu0
      %v7711 = vadd.f32 0.0, %v7710
      %v7712 = vpop.f32.mrb[0].mxu0
      %7713 = vmatprep.mubr.f32.mxu0 0.0
      %7714 = vmatmul.mubr.f32.gmra.mrb[0].mxu0 %v7620
      %v7715 = vpop.f32.mrb[0].mxu0
      %v7716 = vadd.f32 0.0, %v7715
      %v7717 = vpop.f32.mrb[0].mxu0
      %7718 = vmatprep.mubr.f32.mxu0 0.0
      %7719 = vmatmul.mubr.f32.gmra.mrb[0].mxu0 %v7623
      %v7720 = vpop.f32.mrb[0].mxu0
      %v7721 = vadd.f32 0.0, %v7720
      %v7722 = vpop.f32.mrb[0].mxu0
      %7723 = vmatprep.mubr.f32.mxu0 0.0
      %7724 = vmatmul.mubr.f32.gmra.mrb[0].mxu0 %v7626
      %v7725 = vpop.f32.mrb[0].mxu0
      %v7726 = vadd.f32 0.0, %v7725
      %v7727 = vpop.f32.mrb[0].mxu0
      %7728 = vmatprep.mubr.f32.mxu0 0.0
      %7729 = vmatmul.mubr.f32.gmra.mrb[0].mxu0 %v7629
      %v7730 = vpop.f32.mrb[0].mxu0
      %v7731 = vadd.f32 0.0, %v7730
      %v7732 = vpop.f32.mrb[0].mxu0
      %7733 = vmatprep.mubr.f32.mxu0 0.0
      %7734 = vmatmul.mubr.f32.gmra.mrb[0].mxu0 %v7632
      %v7735 = vpop.f32.mrb[0].mxu0
      %v7736 = vadd.f32 0.0, %v7735
      %v7737 = vpop.f32.mrb[0].mxu0
      %7738 = vdwg.mxu0
      %v7739 = vadd.f32 %v7591, %v7701
      %v7740 = vadd.f32 %v7592, %v7706
      %v7741 = vadd.f32 %v7593, %v7711
      %v7742 = vadd.f32 %v7594, %v7716
      %v7743 = vadd.f32 %v7595, %v7721
      %v7744 = vadd.f32 %v7596, %v7726
      %v7745 = vadd.f32 %v7597, %v7731
      %v7746 = vadd.f32 %v7598, %v7736
      %v7747 = vld [vmem:[#allocation2 + $0x107] sm:$0xff]
      %v7748 = vld [vmem:[#allocation2 + $0x10f] sm:$0xff]
      %v7749 = vld [vmem:[#allocation2 + $0x117] sm:$0xff]
      %v7750 = vld [vmem:[#allocation2 + $0x11f] sm:$0xff]
      %v7751 = vld [vmem:[#allocation2 + $0x127] sm:$0xff]
      %v7752 = vld [vmem:[#allocation2 + $0x12f] sm:$0xff]
      %v7753 = vld [vmem:[#allocation2 + $0x137] sm:$0xff]
      %v7754 = vld [vmem:[#allocation2 + $0x13f] sm:$0x7f]
      %s7755 = scalar_lea.vmem %s4, 560
      %v7756 = vld [vmem:[%s7755] sm:$0xff]
      %v7757 = vld [vmem:[%s7755 + $0x8] sm:$0xff]
      %v7759 = vsel %vm2499, %v7747, 0
      %v7762 = vsel %vm2499, %v7748, 0
      %v7765 = vsel %vm2499, %v7749, 0
      %v7768 = vsel %vm2499, %v7750, 0
      %v7771 = vsel %vm2499, %v7751, 0
      %v7774 = vsel %vm2499, %v7752, 0
      %v7777 = vsel %vm2499, %v7753, 0
      %v7780 = vsel %vm2499, %v7754, 0
      %7782 = vmatprep.subr.mxu0 0.0
      %7783 = vmatpush1.msra.mxu0 %v7756
      %7784 = vmatprep.subr.mxu0 0.0
      %7785 = vmatpush1.msra.mxu0 %v7757
      %7786 = vmatprep.subr.mxu0 0.0
      %7787 = vmatpush1.msra.mxu0 0.0
      %7788 = vmatprep.subr.mxu0 0.0
      %7789 = vmatpush1.msra.mxu0 0.0
      %7790 = vmatprep.subr.mxu0 0.0
      %7791 = vmatpush1.msra.mxu0 0.0
      %7792 = vmatprep.subr.mxu0 0.0
      %7793 = vmatpush1.msra.mxu0 0.0
      %7794 = vmatprep.subr.mxu0 0.0
      %7795 = vmatpush1.msra.mxu0 0.0
      %7796 = vmatprep.subr.mxu0 0.0
      %7797 = vmatpush1.msra.mxu0 0.0
      %7798 = vmatprep.subr.mxu0 0.0
      %7799 = vmatpush1.msra.mxu0 0.0
      %7800 = vmatprep.subr.mxu0 0.0
      %7801 = vmatpush1.msra.mxu0 0.0
      %7802 = vmatprep.subr.mxu0 0.0
      %7803 = vmatpush1.msra.mxu0 0.0
      %7804 = vmatprep.subr.mxu0 0.0
      %7805 = vmatpush1.msra.mxu0 0.0
      %7806 = vmatprep.subr.mxu0 0.0
      %7807 = vmatpush1.msra.mxu0 0.0
      %7808 = vmatprep.subr.mxu0 0.0
      %7809 = vmatpush1.msra.mxu0 0.0
      %7810 = vmatprep.subr.mxu0 0.0
      %7811 = vmatpush1.msra.mxu0 0.0
      %7812 = vmatprep.subr.mxu0 0.0
      %7813 = vmatpush1.msra.mxu0 0.0
      %7814 = vmatprep.subr.mxu0 0.0
      %7815 = vmatpush1.msra.mxu0 0.0
      %7816 = vmatprep.subr.mxu0 0.0
      %7817 = vmatpush1.msra.mxu0 0.0
      %7818 = vmatprep.subr.mxu0 0.0
      %7819 = vmatpush1.msra.mxu0 0.0
      %7820 = vmatprep.subr.mxu0 0.0
      %7821 = vmatpush1.msra.mxu0 0.0
      %7822 = vmatprep.subr.mxu0 0.0
      %7823 = vmatpush1.msra.mxu0 0.0
      %7824 = vmatprep.subr.mxu0 0.0
      %7825 = vmatpush1.msra.mxu0 0.0
      %7826 = vmatprep.subr.mxu0 0.0
      %7827 = vmatpush1.msra.mxu0 0.0
      %7828 = vmatprep.subr.mxu0 0.0
      %7829 = vmatpush1.msra.mxu0 0.0
      %7830 = vmatprep.subr.mxu0 0.0
      %7831 = vmatpush1.msra.mxu0 0.0
      %7832 = vmatprep.subr.mxu0 0.0
      %7833 = vmatpush1.msra.mxu0 0.0
      %7834 = vmatprep.subr.mxu0 0.0
      %7835 = vmatpush1.msra.mxu0 0.0
      %7836 = vmatprep.subr.mxu0 0.0
      %7837 = vmatpush1.msra.mxu0 0.0
      %7838 = vmatprep.subr.mxu0 0.0
      %7839 = vmatpush1.msra.mxu0 0.0
      %7840 = vmatprep.subr.mxu0 0.0
      %7841 = vmatpush1.msra.mxu0 0.0
      %7842 = vmatprep.subr.mxu0 0.0
      %7843 = vmatpush1.msra.mxu0 0.0
      %7844 = vmatprep.subr.mxu0 0.0
      %7845 = vmatpush1.msra.mxu0 0.0
      %7846 = vmatprep.mubr.f32.mxu0 0.0
      %7847 = vmatmul.mubr.f32.gmra.mrb[0].mxu0 %v7759
      %v7848 = vpop.f32.mrb[0].mxu0
      %v7849 = vadd.f32 0.0, %v7848
      %v7850 = vpop.f32.mrb[0].mxu0
      %7851 = vmatprep.mubr.f32.mxu0 0.0
      %7852 = vmatmul.mubr.f32.gmra.mrb[0].mxu0 %v7762
      %v7853 = vpop.f32.mrb[0].mxu0
      %v7854 = vadd.f32 0.0, %v7853
      %v7855 = vpop.f32.mrb[0].mxu0
      %7856 = vmatprep.mubr.f32.mxu0 0.0
      %7857 = vmatmul.mubr.f32.gmra.mrb[0].mxu0 %v7765
      %v7858 = vpop.f32.mrb[0].mxu0
      %v7859 = vadd.f32 0.0, %v7858
      %v7860 = vpop.f32.mrb[0].mxu0
      %7861 = vmatprep.mubr.f32.mxu0 0.0
      %7862 = vmatmul.mubr.f32.gmra.mrb[0].mxu0 %v7768
      %v7863 = vpop.f32.mrb[0].mxu0
      %v7864 = vadd.f32 0.0, %v7863
      %v7865 = vpop.f32.mrb[0].mxu0
      %7866 = vmatprep.mubr.f32.mxu0 0.0
      %7867 = vmatmul.mubr.f32.gmra.mrb[0].mxu0 %v7771
      %v7868 = vpop.f32.mrb[0].mxu0
      %v7869 = vadd.f32 0.0, %v7868
      %v7870 = vpop.f32.mrb[0].mxu0
      %7871 = vmatprep.mubr.f32.mxu0 0.0
      %7872 = vmatmul.mubr.f32.gmra.mrb[0].mxu0 %v7774
      %v7873 = vpop.f32.mrb[0].mxu0
      %v7874 = vadd.f32 0.0, %v7873
      %v7875 = vpop.f32.mrb[0].mxu0
      %7876 = vmatprep.mubr.f32.mxu0 0.0
      %7877 = vmatmul.mubr.f32.gmra.mrb[0].mxu0 %v7777
      %v7878 = vpop.f32.mrb[0].mxu0
      %v7879 = vadd.f32 0.0, %v7878
      %v7880 = vpop.f32.mrb[0].mxu0
      %7881 = vmatprep.mubr.f32.mxu0 0.0
      %7882 = vmatmul.mubr.f32.gmra.mrb[0].mxu0 %v7780
      %v7883 = vpop.f32.mrb[0].mxu0
      %v7884 = vadd.f32 0.0, %v7883
      %v7885 = vpop.f32.mrb[0].mxu0
      %7886 = vdwg.mxu0
      %v7887 = vadd.f32 %v7739, %v7849
      %v7888 = vadd.f32 %v7740, %v7854
      %v7889 = vadd.f32 %v7741, %v7859
      %v7890 = vadd.f32 %v7742, %v7864
      %v7891 = vadd.f32 %v7743, %v7869
      %v7892 = vadd.f32 %v7744, %v7874
      %v7893 = vadd.f32 %v7745, %v7879
      %v7894 = vadd.f32 %v7746, %v7884
      %7895 = vrot.lane.b32.xlu0 %v7887, 32
      %v7896 = vpop.permute.xlu0 %7895
      %7897 = vrot.lane.b32.xlu0 %v7888, 32
      %v7898 = vpop.permute.xlu0 %7897
      %7899 = vrot.lane.b32.xlu0 %v7889, 32
      %v7900 = vpop.permute.xlu0 %7899
      %7901 = vrot.lane.b32.xlu0 %v7890, 32
      %v7902 = vpop.permute.xlu0 %7901
      %7903 = vrot.lane.b32.xlu0 %v7891, 32
      %v7904 = vpop.permute.xlu0 %7903
      %7905 = vrot.lane.b32.xlu0 %v7892, 32
      %v7906 = vpop.permute.xlu0 %7905
      %7907 = vrot.lane.b32.xlu0 %v7893, 32
      %v7908 = vpop.permute.xlu0 %7907
      %7909 = vrot.lane.b32.xlu0 %v7894, 32
      %v7910 = vpop.permute.xlu0 %7909
      %v7911 = vmax.f32 %v7887, %v7896
      %v7912 = vmax.f32 %v7888, %v7898
      %v7913 = vmax.f32 %v7889, %v7900
      %v7914 = vmax.f32 %v7890, %v7902
      %v7915 = vmax.f32 %v7891, %v7904
      %v7916 = vmax.f32 %v7892, %v7906
      %v7917 = vmax.f32 %v7893, %v7908
      %v7918 = vmax.f32 %v7894, %v7910
      %7919 = vrot.lane.b32.xlu0 %v7911, 64
      %v7920 = vpop.permute.xlu0 %7919
      %7921 = vrot.lane.b32.xlu0 %v7912, 64
      %v7922 = vpop.permute.xlu0 %7921
      %7923 = vrot.lane.b32.xlu0 %v7913, 64
      %v7924 = vpop.permute.xlu0 %7923
      %7925 = vrot.lane.b32.xlu0 %v7914, 64
      %v7926 = vpop.permute.xlu0 %7925
      %7927 = vrot.lane.b32.xlu0 %v7915, 64
      %v7928 = vpop.permute.xlu0 %7927
      %7929 = vrot.lane.b32.xlu0 %v7916, 64
      %v7930 = vpop.permute.xlu0 %7929
      %7931 = vrot.lane.b32.xlu0 %v7917, 64
      %v7932 = vpop.permute.xlu0 %7931
      %7933 = vrot.lane.b32.xlu0 %v7918, 64
      %v7934 = vpop.permute.xlu0 %7933
      %v7935 = vmax.f32 %v7911, %v7920
      %v7936 = vmax.f32 %v7912, %v7922
      %v7937 = vmax.f32 %v7913, %v7924
      %v7938 = vmax.f32 %v7914, %v7926
      %v7939 = vmax.f32 %v7915, %v7928
      %v7940 = vmax.f32 %v7916, %v7930
      %v7941 = vmax.f32 %v7917, %v7932
      %v7942 = vmax.f32 %v7918, %v7934
      %v7943 = vld [vmem:[%s5] sm:$0x1]
      %v7945 = vlaneseq
      %v7946 = vshrl.u32 %v7945, 7
      %v7947 = vsub.s32 0, %v7946
      %v7948 = vrot.slane %v7943, %v7947
      %v7950 = vadd.f32 %v7935, %v7948
      %v7951 = vadd.f32 %v7936, %v7948
      %v7952 = vadd.f32 %v7937, %v7948
      %v7953 = vadd.f32 %v7938, %v7948
      %v7954 = vadd.f32 %v7939, %v7948
      %v7955 = vadd.f32 %v7940, %v7948
      %v7956 = vadd.f32 %v7941, %v7948
      %v7957 = vadd.f32 %v7942, %v7948
      %v7958 = vmax.f32 %v7950, 0.0
      %v7959 = vmax.f32 %v7951, 0.0
      %v7960 = vmax.f32 %v7952, 0.0
      %v7961 = vmax.f32 %v7953, 0.0
      %v7962 = vmax.f32 %v7954, 0.0
      %v7963 = vmax.f32 %v7955, 0.0
      %v7964 = vmax.f32 %v7956, 0.0
      %v7965 = vmax.f32 %v7957, 0.0
      %7966 = vst [vmem:[%s251] sm:$0xff] %v7958
      %7967 = vst [vmem:[%s251 + $0x8] sm:$0xff] %v7959
      %7968 = vst [vmem:[%s251 + $0x10] sm:$0xff] %v7960
      %7969 = vst [vmem:[%s251 + $0x18] sm:$0xff] %v7961
      %7970 = vst [vmem:[%s251 + $0x20] sm:$0xff] %v7962
      %7971 = vst [vmem:[%s251 + $0x28] sm:$0xff] %v7963
      %7972 = vst [vmem:[%s251 + $0x30] sm:$0xff] %v7964
      %7973 = vst [vmem:[%s251 + $0x38] sm:$0x7f] %v7965
      %p7974 = scmp.lt.s32.totalorder %s17, 1
      %s7975 = scalar_select %p7974, %s17, 1
      %s7976 = smul.addr %s7975, 8
      %s7977 = smul.addr %s7976, 8
      %s7978 = scalar_lea.vmem %s6, %s7977
      // Predicated region
      $region45: #{cnn_forward.2} parent=43 // pred_check
        %p7979 = pneg %p166
      $region46: #{cnn_forward.2} parent=43 // pred_check_branch
        %7981 = sbr.rel (%p7979) target = $region48
      $region47: #{cnn_forward.2} parent=43 // pred_region
        _
      $region48: #{cnn_forward.2} parent=43 // pred_fallthru
        _
    $region44: #{cnn_forward.2} parent=5 // pred_fallthru
      _
    %p7982 = scmp.le.s32.totalorder 2, %s12
    // Predicated region
    $region49: #{cnn_forward.2} parent=5 // pred_check
      %p7983 = pneg %p7982
    $region50: #{cnn_forward.2} parent=5 // pred_check_branch
      %7985 = sbr.rel (%p7983) target = $region52
    $region51: #{cnn_forward.2} parent=5 // pred_region
      %s7986 = ssub.s32 %s12, 2
      // Predicated region
      $region53: #{cnn_forward.2} parent=51 // pred_check
        %p7987 = pneg %p172
      $region54: #{cnn_forward.2} parent=51 // pred_check_branch
        %7989 = sbr.rel (%p7987) target = $region56
      $region55: #{cnn_forward.2} parent=51 // pred_region
        %p7990 = scmp.lt.s32.totalorder %s18, 1
        %s7991 = scalar_select %p7990, %s18, 1
        %s7992 = smul.addr %s7991, 8
        %s7993 = smul.addr %s7992, 8
        %s7994 = scalar_lea.vmem %s6, %s7993
      $region56: #{cnn_forward.2} parent=51 // pred_fallthru
        _
    $region52: #{cnn_forward.2} parent=5 // pred_fallthru
      _
  $region6: #{cnn_forward.2} parent=0 // loop_footer
    %s16 = sadd.s32 1, %s12
  $region7: #{cnn_forward.2} parent=0 // loop_footer_branch
    %11 = sbr.rel target = $region3
  $region8: #{cnn_forward.2} parent=0 // loop_exit
    _

</llo_original>
